<compile_context>
chip_gen: v7x
topology: tpu7x:2x2x1
jax: 0.10.0
libtpu: 0.0.40
codegen_flags: <defaults>
</compile_context>

<pallas_src>
import math

import jax
import jax.numpy as jnp
import numpy as np
from jax.experimental import pallas as pl
from jax.experimental.pallas import tpu as pltpu

F32 = jnp.float32
BF16 = jnp.bfloat16
_MARGIN = 8  # zero-column margin left of the activation interior


def _rup(x, m):
    return (x + m - 1) // m * m


def _pad_shape(H, W, C):
    # 1 zero row top/bottom, 8 zero cols left, >=1 zero col right; width
    # rounded to 16 so bf16 (16,128) tiles stay aligned for flat reshapes.
    return (H + 2, _rup(W + _MARGIN + 1, 16), C)


def _make_colsel(Ho, Wo, Wo_sel, Wpad, margin):
    """0/1 matrices (one per dx) picking columns 2*jo+dx of a padded,
    row-decimated slab flattened to (Ho*Wpad, Cin). Rows jo>=Wo stay zero."""
    sel = np.zeros((3, Ho * Wo_sel, Ho * Wpad), np.float32)
    for dx in range(3):
        for io in range(Ho):
            for jo in range(Wo):
                sel[dx, io * Wo_sel + jo,
                    io * Wpad + 2 * jo + dx + margin - 1] = 1.0
    return jnp.asarray(sel, BF16)


# ----------------------------------------------------------------------------
# Fused encoder kernel (one batch element per grid step)
# ----------------------------------------------------------------------------
def _make_kernel(dims):
    H1, W1, H2, W2, H3, W3 = dims

    def kernel(t1_ref, w1_ref, b1_ref,
               w2_ref, b2_ref,
               w3_ref, b3_ref, sel3_ref,
               w4_ref, b4_ref,
               w5_ref, b5_ref, sel5_ref,
               w6_ref, b6_ref,
               w7_ref, b7_ref,
               o_ref,
               pad2_ref, pad3_ref, pad4_ref, pad5_ref, pad6_ref, pad7_ref):

        def store_padded(pref, act):
            # act: (H, W, C) f32 -> bf16 padded scratch, single aligned store.
            H, W, C = act.shape
            _, Wp, _ = pref.shape
            a = act.astype(pref.dtype)
            zl = jnp.zeros((H, _MARGIN, C), pref.dtype)
            zr = jnp.zeros((H, Wp - _MARGIN - W, C), pref.dtype)
            rows = jnp.concatenate([zl, a, zr], axis=1)          # (H, Wp, C)
            zrow = jnp.zeros((1, Wp, C), pref.dtype)
            pref[...] = jnp.concatenate([zrow, rows, zrow], axis=0)

        def conv3x3_s1(pref, w_ref, b_ref, H, W):
            # 3x3 stride-1 conv + ReLU: dy-concat -> 3 matmuls (K = 3*Cin),
            # column-shift accumulation of the products.
            xp = pref[...]                               # (H+2, Wp, Cin) bf16
            _, Wp, Cin = xp.shape
            Cout = w_ref.shape[-1]
            cat = jnp.concatenate([xp[0:H], xp[1:H + 1], xp[2:H + 2]],
                                  axis=-1)               # (H, Wp, 3*Cin)
            slab = cat.reshape(H * Wp, 3 * Cin)
            acc = jnp.zeros((H, W, Cout), F32)
            for dx in range(3):
                prod = jnp.dot(slab, w_ref[dx],
                               preferred_element_type=F32)
                prod = prod.reshape(H, Wp, Cout)
                s = _MARGIN - 1 + dx
                acc = acc + prod[:, s:s + W, :]
            return jnp.maximum(acc + b_ref[...], 0.0)    # (H, W, Cout) f32

        def conv3x3_s2(pref, w_ref, b_ref, sel_ref, Ho, Wo, Wo_sel):
            # 3x3 stride-2 conv + ReLU:
            #   rows  : parity-split reshape (layout-preserving),
            #   cols  : constant 0/1 selection matmul,
            #   taps  : 3 matmuls with K = 3*Cin (dy-concat).
            xp = pref[...]                               # (2Ho+2, Wp, Cin)
            _, Wp, Cin = xp.shape
            Cout = w_ref.shape[-1]
            parts = []
            for dy in range(3):
                base, par = (0, dy) if dy < 2 else (2, 0)
                parts.append(
                    xp[base:base + 2 * Ho].reshape(Ho, 2, Wp, Cin)[:, par])
            cat = jnp.concatenate(parts, axis=-1)        # (Ho, Wp, 3*Cin)
            rf = cat.reshape(Ho * Wp, 3 * Cin)
            acc = jnp.zeros((Ho * Wo_sel, Cout), F32)
            for dx in range(3):
                tap = jnp.dot(sel_ref[dx], rf,
                              preferred_element_type=F32).astype(BF16)
                acc = acc + jnp.dot(tap, w_ref[dx],
                                    preferred_element_type=F32)
            act = jnp.maximum(acc + b_ref[...], 0.0)
            return act.reshape(Ho, Wo_sel, Cout)[:, :Wo, :]   # (Ho, Wo, Cout)

        # ---- layer 1: 3x3 s1 as a single K=9*Cin matmul (wrapper im2col) ---
        a1 = jnp.dot(t1_ref[0], w1_ref[...], preferred_element_type=F32)
        a1 = jnp.maximum(a1 + b1_ref[...], 0.0)          # (H1*W1, C1) f32
        store_padded(pad2_ref, a1.reshape(H1, W1, a1.shape[-1]))

        # ---- layers 2..6: alternate stride-1 / stride-2, all VMEM-resident -
        a2 = conv3x3_s1(pad2_ref, w2_ref, b2_ref, H1, W1)
        store_padded(pad3_ref, a2)
        a3 = conv3x3_s2(pad3_ref, w3_ref, b3_ref, sel3_ref,
                        H2, W2, _rup(W2, 8))
        store_padded(pad4_ref, a3)
        a4 = conv3x3_s1(pad4_ref, w4_ref, b4_ref, H2, W2)
        store_padded(pad5_ref, a4)
        a5 = conv3x3_s2(pad5_ref, w5_ref, b5_ref, sel5_ref,
                        H3, W3, _rup(W3, 8))
        store_padded(pad6_ref, a5)
        a6 = conv3x3_s1(pad6_ref, w6_ref, b6_ref, H3, W3)  # (H3, W3, C6) f32

        # ---- layer 7: 1x1 conv (no ReLU), one flat matmul over aligned pad -
        Wp7 = pad7_ref.shape[1]
        C6 = a6.shape[-1]
        if Wp7 > W3:
            a6p = jnp.concatenate(
                [a6, jnp.zeros((H3, Wp7 - W3, C6), F32)], axis=1)
        else:
            a6p = a6
        pad7_ref[...] = a6p.astype(pad7_ref.dtype)
        slab7 = pad7_ref[...].reshape(H3 * Wp7, C6)
        res = jnp.dot(slab7, w7_ref[...], preferred_element_type=F32)
        res = (res + b7_ref[...]).reshape(H3, Wp7, res.shape[-1])
        o_ref[0] = res[:, :W3, :].astype(o_ref.dtype)

    return kernel


# ----------------------------------------------------------------------------
# Wrapper
# ----------------------------------------------------------------------------
def cosae_encoder(x_nchw, params):
    """Pallas implementation of CosAEEncoder.forward (NCHW in, NCHW out)."""
    x = jnp.transpose(x_nchw, (0, 2, 3, 1)).astype(F32)   # NCHW -> NHWC
    N, H, W, Cin0 = x.shape
    assert H % 4 == 0 and W % 4 == 0, "demo wrapper assumes H%4==0, W%4==0"

    (w1, b1), (w2, b2), (w3, b3), (w4, b4), (w5, b5), (w6, b6), (w7, b7) = params
    H1, W1 = H, W
    H2, W2 = H // 2, W // 2
    H3, W3 = H // 4, W // 4
    C1, C2, C3, C4, C5, C6 = (w1.shape[-1], w2.shape[-1], w3.shape[-1],
                              w4.shape[-1], w5.shape[-1], w6.shape[-1])
    Cl = w7.shape[-1]

    # Layer-1 im2col on the *network input* only (K = 9*Cin, dy-major/dx-minor).
    xp = jnp.pad(x, ((0, 0), (1, 1), (1, 1), (0, 0)))
    taps = jnp.concatenate(
        [xp[:, dy:dy + H1, dx:dx + W1, :]
         for dy in range(3) for dx in range(3)], axis=-1)
    taps = taps.reshape(N, H1 * W1, 9 * Cin0).astype(BF16)

    # Weights -> bf16 MXU layout; biases -> (1, Cout) f32.
    w1m = jnp.asarray(w1, F32).reshape(9 * Cin0, C1).astype(BF16)

    def wcat(w):  # (3,3,Cin,Cout) HWIO -> (3 [dx], 3*Cin [dy-major], Cout)
        _, _, cin, cout = w.shape
        return (jnp.transpose(jnp.asarray(w, F32), (1, 0, 2, 3))
                .reshape(3, 3 * cin, cout).astype(BF16))

    w2m, w3m, w4m, w5m, w6m = (wcat(w) for w in (w2, w3, w4, w5, w6))
    w7m = jnp.asarray(w7, F32).reshape(C6, Cl).astype(BF16)

    def b2d(b):
        return jnp.asarray(b, F32).reshape(1, -1)

    b1m, b2m, b3m, b4m, b5m, b6m, b7m = (b2d(b) for b in
                                         (b1, b2, b3, b4, b5, b6, b7))

    pad2_shape = _pad_shape(H1, W1, C1)
    pad3_shape = _pad_shape(H1, W1, C2)
    pad4_shape = _pad_shape(H2, W2, C3)
    pad5_shape = _pad_shape(H2, W2, C4)
    pad6_shape = _pad_shape(H3, W3, C5)
    pad7_shape = (H3, _rup(W3, 16), C6)

    sel3 = _make_colsel(H2, W2, _rup(W2, 8), pad3_shape[1], _MARGIN)
    sel5 = _make_colsel(H3, W3, _rup(W3, 8), pad5_shape[1], _MARGIN)

    kernel = _make_kernel((H1, W1, H2, W2, H3, W3))

    def whole(a):
        idx = (0,) * a.ndim
        return pl.BlockSpec(a.shape, lambda n, _idx=idx: _idx)

    flops = 2 * N * (
        H1 * W1 * 9 * Cin0 * C1 + H1 * W1 * 9 * C1 * C2 +
        H2 * W2 * 9 * C2 * C3 + H2 * W2 * 9 * C3 * C4 +
        H3 * W3 * 9 * C4 * C5 + H3 * W3 * 9 * C5 * C6 +
        H3 * W3 * C6 * Cl +
        3 * (H2 * _rup(W2, 8)) * (H2 * pad3_shape[1]) * (3 * C2) +
        3 * (H3 * _rup(W3, 8)) * (H3 * pad5_shape[1]) * (3 * C4))
    bytes_accessed = int(
        taps.size * 2 +
        sum(a.size * 2 for a in (w1m, w2m, w3m, w4m, w5m, w6m, w7m, sel3, sel5)) +
        sum(a.size * 4 for a in (b1m, b2m, b3m, b4m, b5m, b6m, b7m)) +
        N * H3 * W3 * Cl * 4)

    out = pl.pallas_call(
        kernel,
        out_shape=jax.ShapeDtypeStruct((N, H3, W3, Cl), F32),
        grid=(N,),
        in_specs=[
            pl.BlockSpec((1, H1 * W1, 9 * Cin0), lambda n: (n, 0, 0)),
            whole(w1m), whole(b1m),
            whole(w2m), whole(b2m),
            whole(w3m), whole(b3m), whole(sel3),
            whole(w4m), whole(b4m),
            whole(w5m), whole(b5m), whole(sel5),
            whole(w6m), whole(b6m),
            whole(w7m), whole(b7m),
        ],
        out_specs=pl.BlockSpec((1, H3, W3, Cl), lambda n: (n, 0, 0, 0)),
        scratch_shapes=[
            pltpu.VMEM(pad2_shape, BF16),
            pltpu.VMEM(pad3_shape, BF16),
            pltpu.VMEM(pad4_shape, BF16),
            pltpu.VMEM(pad5_shape, BF16),
            pltpu.VMEM(pad6_shape, BF16),
            pltpu.VMEM(pad7_shape, BF16),
        ],
        compiler_params=pltpu.CompilerParams(
            dimension_semantics=("parallel",)),
        cost_estimate=pl.CostEstimate(
            flops=flops, transcendentals=0, bytes_accessed=bytes_accessed),
    )(taps, w1m, b1m, w2m, b2m, w3m, b3m, sel3,
      w4m, b4m, w5m, b5m, sel5, w6m, b6m, w7m, b7m)

    return jnp.transpose(out, (0, 3, 1, 2))               # NHWC -> NCHW


# ----------------------------------------------------------------------------
# Pure-JAX f32 reference (correctness check)
# ----------------------------------------------------------------------------
def _ref_conv(x, w, b, stride, pad):
    y = jax.lax.conv_general_dilated(
        x, w, window_strides=(stride, stride),
        padding=[(pad, pad), (pad, pad)],
        dimension_numbers=("NHWC", "HWIO", "NHWC"))
    return y + b


def reference_encoder(x_nchw, params):
    x = jnp.transpose(x_nchw, (0, 2, 3, 1))
    strides = [1, 1, 2, 1, 2, 1]
    for (w, b), s in zip(params[:-1], strides):
        x = jax.nn.relu(_ref_conv(x, w, b, s, 1))
    w, b = params[-1]
    x = _ref_conv(x, w, b, 1, 0)
    return jnp.transpose(x, (0, 3, 1, 2))


# ----------------------------------------------------------------------------
if __name__ == "__main__":
    # Small forward-consistent config: in_channels=3, base_channels=8,
    # latent_channels = 3 * 2 * base_channels = 48, 16x16 input -> 4x4 latent.
    in_channels, base_channels = 3, 8
    latent_channels = 3 * 2 * base_channels
    N, H, W = 2, 16, 16

    layer_defs = [
        (3, in_channels, base_channels),
        (3, base_channels, base_channels),
        (3, base_channels, 2 * base_channels),
        (3, 2 * base_channels, 2 * base_channels),
        (3, 2 * base_channels, 4 * base_channels),
        (3, 4 * base_channels, 4 * base_channels),
        (1, 4 * base_channels, latent_channels),
    ]

    key = jax.random.PRNGKey(0)
    keys = jax.random.split(key, len(layer_defs) + 1)
    params = []
    for k, (ks, cin, cout) in zip(keys[:-1], layer_defs):
        kw_key, kb_key = jax.random.split(k)
        bound = 1.0 / math.sqrt(ks * ks * cin)
        wgt = jax.random.uniform(kw_key, (ks, ks, cin, cout), jnp.float32,
                                 -bound, bound)
        bias = jax.random.uniform(kb_key, (cout,), jnp.float32, -bound, bound)
        params.append((wgt, bias))

    x_nchw = jax.random.normal(keys[-1], (N, in_channels, H, W), jnp.float32)

    out = jax.block_until_ready(cosae_encoder(x_nchw, params))
    ref = jax.block_until_ready(reference_encoder(x_nchw, params))

    assert out.shape == (N, latent_channels, H // 4, W // 4), out.shape
    # bf16 MXU matmuls vs f32 reference -> modest tolerance (catches real
    # tap/stride bugs, which are O(activation magnitude)).
    if not np.allclose(np.asarray(out), np.asarray(ref), rtol=5e-2, atol=2e-2):
        raise AssertionError(
            "Pallas output mismatch vs reference: max |diff| = "
            f"{float(np.max(np.abs(np.asarray(out) - np.asarray(ref))))}")

    print("KERNEL_OK")
</pallas_src>

<mosaic_0001>
module attributes {stable_mosaic.version = 11 : i64} {
  func.func @kernel(%arg0: i32, %arg1: memref<1x256x27xbf16, #tpu.memory_space<vmem>>, %arg2: memref<27x8xbf16, #tpu.memory_space<vmem>>, %arg3: memref<1x8xf32, #tpu.memory_space<vmem>>, %arg4: memref<3x24x8xbf16, #tpu.memory_space<vmem>>, %arg5: memref<1x8xf32, #tpu.memory_space<vmem>>, %arg6: memref<3x24x16xbf16, #tpu.memory_space<vmem>>, %arg7: memref<1x16xf32, #tpu.memory_space<vmem>>, %arg8: memref<3x64x256xbf16, #tpu.memory_space<vmem>>, %arg9: memref<3x48x16xbf16, #tpu.memory_space<vmem>>, %arg10: memref<1x16xf32, #tpu.memory_space<vmem>>, %arg11: memref<3x48x32xbf16, #tpu.memory_space<vmem>>, %arg12: memref<1x32xf32, #tpu.memory_space<vmem>>, %arg13: memref<3x32x128xbf16, #tpu.memory_space<vmem>>, %arg14: memref<3x96x32xbf16, #tpu.memory_space<vmem>>, %arg15: memref<1x32xf32, #tpu.memory_space<vmem>>, %arg16: memref<32x48xbf16, #tpu.memory_space<vmem>>, %arg17: memref<1x48xf32, #tpu.memory_space<vmem>>, %arg18: memref<1x4x4x48xf32, #tpu.memory_space<vmem>>, %arg19: memref<18x32x8xbf16, #tpu.memory_space<vmem>>, %arg20: memref<18x32x8xbf16, #tpu.memory_space<vmem>>, %arg21: memref<10x32x16xbf16, #tpu.memory_space<vmem>>, %arg22: memref<10x32x16xbf16, #tpu.memory_space<vmem>>, %arg23: memref<6x16x32xbf16, #tpu.memory_space<vmem>>, %arg24: memref<4x16x32xbf16, #tpu.memory_space<vmem>>) attributes {dimension_semantics = [#tpu.dimension_semantics<parallel>], iteration_bounds = array<i64: 2>, scalar_prefetch = 0 : i64, scratch_operands = 6 : i64, tpu.core_type = #tpu.core_type<tc>, window_params = [{transform_indices = @transform_0, window_bounds = array<i64: 1, 256, 27>}, {pipeline_mode = #tpu.pipeline_mode<synchronous>, transform_indices = @transform_1, window_bounds = array<i64: 27, 8>}, {pipeline_mode = #tpu.pipeline_mode<synchronous>, transform_indices = @transform_2, window_bounds = array<i64: 1, 8>}, {pipeline_mode = #tpu.pipeline_mode<synchronous>, transform_indices = @transform_3, window_bounds = array<i64: 3, 24, 8>}, {pipeline_mode = #tpu.pipeline_mode<synchronous>, transform_indices = @transform_4, window_bounds = array<i64: 1, 8>}, {pipeline_mode = #tpu.pipeline_mode<synchronous>, transform_indices = @transform_5, window_bounds = array<i64: 3, 24, 16>}, {pipeline_mode = #tpu.pipeline_mode<synchronous>, transform_indices = @transform_6, window_bounds = array<i64: 1, 16>}, {pipeline_mode = #tpu.pipeline_mode<synchronous>, transform_indices = @transform_7, window_bounds = array<i64: 3, 64, 256>}, {pipeline_mode = #tpu.pipeline_mode<synchronous>, transform_indices = @transform_8, window_bounds = array<i64: 3, 48, 16>}, {pipeline_mode = #tpu.pipeline_mode<synchronous>, transform_indices = @transform_9, window_bounds = array<i64: 1, 16>}, {pipeline_mode = #tpu.pipeline_mode<synchronous>, transform_indices = @transform_10, window_bounds = array<i64: 3, 48, 32>}, {pipeline_mode = #tpu.pipeline_mode<synchronous>, transform_indices = @transform_11, window_bounds = array<i64: 1, 32>}, {pipeline_mode = #tpu.pipeline_mode<synchronous>, transform_indices = @transform_12, window_bounds = array<i64: 3, 32, 128>}, {pipeline_mode = #tpu.pipeline_mode<synchronous>, transform_indices = @transform_13, window_bounds = array<i64: 3, 96, 32>}, {pipeline_mode = #tpu.pipeline_mode<synchronous>, transform_indices = @transform_14, window_bounds = array<i64: 1, 32>}, {pipeline_mode = #tpu.pipeline_mode<synchronous>, transform_indices = @transform_15, window_bounds = array<i64: 32, 48>}, {pipeline_mode = #tpu.pipeline_mode<synchronous>, transform_indices = @transform_16, window_bounds = array<i64: 1, 48>}, {transform_indices = @transform_17, window_bounds = array<i64: 1, 4, 4, 48>}]} {
    %c0 = arith.constant 0 : index
    %c0_0 = arith.constant 0 : index
    %c0_1 = arith.constant 0 : index
    %0 = vector.load %arg1[%c0, %c0_0, %c0_1] : memref<1x256x27xbf16, #tpu.memory_space<vmem>>, vector<1x256x27xbf16>
    %1 = vector.shape_cast %0 : vector<1x256x27xbf16> to vector<256x27xbf16>
    %c0_2 = arith.constant 0 : index
    %c0_3 = arith.constant 0 : index
    %2 = vector.load %arg2[%c0_2, %c0_3] : memref<27x8xbf16, #tpu.memory_space<vmem>>, vector<27x8xbf16>
    %cst = arith.constant dense<0.000000e+00> : vector<256x8xf32>
    %3 = tpu.matmul %1, %2, %cst {dimension_numbers = #tpu.dot_dimension_numbers<[1], [0], [0], [1], [0, 0, 1, 1], [], []>} : vector<256x27xbf16>, vector<27x8xbf16>, vector<256x8xf32> -> vector<256x8xf32>
    %c0_4 = arith.constant 0 : index
    %c0_5 = arith.constant 0 : index
    %4 = vector.load %arg3[%c0_4, %c0_5] : memref<1x8xf32, #tpu.memory_space<vmem>>, vector<1x8xf32>
    %5 = vector.broadcast %4 : vector<1x8xf32> to vector<256x8xf32>
    %6 = arith.addf %3, %5 : vector<256x8xf32>
    %cst_6 = arith.constant 0.000000e+00 : f32
    %7 = vector.broadcast %cst_6 : f32 to vector<256x8xf32>
    %8 = arith.maximumf %6, %7 : vector<256x8xf32>
    %9 = vector.shape_cast %8 : vector<256x8xf32> to vector<16x16x8xf32>
    %10 = arith.truncf %9 : vector<16x16x8xf32> to vector<16x16x8xbf16>
    %cst_7 = arith.constant 0.000000e+00 : bf16
    %11 = vector.broadcast %cst_7 : bf16 to vector<16x8x8xbf16>
    %cst_8 = arith.constant 0.000000e+00 : bf16
    %12 = vector.broadcast %cst_8 : bf16 to vector<16x8x8xbf16>
    %13 = tpu.concatenate %11, %10, %12 in 1 : vector<16x8x8xbf16>, vector<16x16x8xbf16>, vector<16x8x8xbf16> -> vector<16x32x8xbf16>
    %cst_9 = arith.constant 0.000000e+00 : bf16
    %14 = vector.broadcast %cst_9 : bf16 to vector<1x32x8xbf16>
    %15 = tpu.concatenate %14, %13, %14 in 0 : vector<1x32x8xbf16>, vector<16x32x8xbf16>, vector<1x32x8xbf16> -> vector<18x32x8xbf16>
    %c0_10 = arith.constant 0 : index
    %c0_11 = arith.constant 0 : index
    %c0_12 = arith.constant 0 : index
    %16 = vector.load %arg19[%c0_10, %c0_11, %c0_12] : memref<18x32x8xbf16, #tpu.memory_space<vmem>>, vector<18x32x8xbf16>
    tpu.vector_store %arg19[%c0_10, %c0_11, %c0_12], %15 {strides = array<i32>} : memref<18x32x8xbf16, #tpu.memory_space<vmem>>, vector<18x32x8xbf16>,
    %c0_13 = arith.constant 0 : index
    %c0_14 = arith.constant 0 : index
    %c0_15 = arith.constant 0 : index
    %17 = vector.load %arg19[%c0_13, %c0_14, %c0_15] : memref<18x32x8xbf16, #tpu.memory_space<vmem>>, vector<18x32x8xbf16>
    %18 = vector.extract_strided_slice %17 {offsets = [0, 0, 0], sizes = [16, 32, 8], strides = [1, 1, 1]} : vector<18x32x8xbf16> to vector<16x32x8xbf16>
    %19 = vector.extract_strided_slice %17 {offsets = [1, 0, 0], sizes = [16, 32, 8], strides = [1, 1, 1]} : vector<18x32x8xbf16> to vector<16x32x8xbf16>
    %20 = vector.extract_strided_slice %17 {offsets = [2, 0, 0], sizes = [16, 32, 8], strides = [1, 1, 1]} : vector<18x32x8xbf16> to vector<16x32x8xbf16>
    %21 = tpu.concatenate %18, %19, %20 in 2 : vector<16x32x8xbf16>, vector<16x32x8xbf16>, vector<16x32x8xbf16> -> vector<16x32x24xbf16>
    %22 = vector.shape_cast %21 : vector<16x32x24xbf16> to vector<512x24xbf16>
    %cst_16 = arith.constant 0.000000e+00 : f32
    %23 = vector.broadcast %cst_16 : f32 to vector<16x16x8xf32>
    %c0_17 = arith.constant 0 : index
    %c0_18 = arith.constant 0 : index
    %c0_19 = arith.constant 0 : index
    %24 = vector.load %arg4[%c0_17, %c0_18, %c0_19] : memref<3x24x8xbf16, #tpu.memory_space<vmem>>, vector<1x24x8xbf16>
    %25 = vector.shape_cast %24 : vector<1x24x8xbf16> to vector<24x8xbf16>
    %cst_20 = arith.constant dense<0.000000e+00> : vector<512x8xf32>
    %26 = tpu.matmul %22, %25, %cst_20 {dimension_numbers = #tpu.dot_dimension_numbers<[1], [0], [0], [1], [0, 0, 1, 1], [], []>} : vector<512x24xbf16>, vector<24x8xbf16>, vector<512x8xf32> -> vector<512x8xf32>
    %27 = vector.shape_cast %26 : vector<512x8xf32> to vector<16x32x8xf32>
    %28 = vector.extract_strided_slice %27 {offsets = [0, 7, 0], sizes = [16, 16, 8], strides = [1, 1, 1]} : vector<16x32x8xf32> to vector<16x16x8xf32>
    %29 = arith.addf %23, %28 : vector<16x16x8xf32>
    %c1 = arith.constant 1 : index
    %c0_21 = arith.constant 0 : index
    %c0_22 = arith.constant 0 : index
    %30 = vector.load %arg4[%c1, %c0_21, %c0_22] : memref<3x24x8xbf16, #tpu.memory_space<vmem>>, vector<1x24x8xbf16>
    %31 = vector.shape_cast %30 : vector<1x24x8xbf16> to vector<24x8xbf16>
    %cst_23 = arith.constant dense<0.000000e+00> : vector<512x8xf32>
    %32 = tpu.matmul %22, %31, %cst_23 {dimension_numbers = #tpu.dot_dimension_numbers<[1], [0], [0], [1], [0, 0, 1, 1], [], []>} : vector<512x24xbf16>, vector<24x8xbf16>, vector<512x8xf32> -> vector<512x8xf32>
    %33 = vector.shape_cast %32 : vector<512x8xf32> to vector<16x32x8xf32>
    %34 = vector.extract_strided_slice %33 {offsets = [0, 8, 0], sizes = [16, 16, 8], strides = [1, 1, 1]} : vector<16x32x8xf32> to vector<16x16x8xf32>
    %35 = arith.addf %29, %34 : vector<16x16x8xf32>
    %c2 = arith.constant 2 : index
    %c0_24 = arith.constant 0 : index
    %c0_25 = arith.constant 0 : index
    %36 = vector.load %arg4[%c2, %c0_24, %c0_25] : memref<3x24x8xbf16, #tpu.memory_space<vmem>>, vector<1x24x8xbf16>
    %37 = vector.shape_cast %36 : vector<1x24x8xbf16> to vector<24x8xbf16>
    %cst_26 = arith.constant dense<0.000000e+00> : vector<512x8xf32>
    %38 = tpu.matmul %22, %37, %cst_26 {dimension_numbers = #tpu.dot_dimension_numbers<[1], [0], [0], [1], [0, 0, 1, 1], [], []>} : vector<512x24xbf16>, vector<24x8xbf16>, vector<512x8xf32> -> vector<512x8xf32>
    %39 = vector.shape_cast %38 : vector<512x8xf32> to vector<16x32x8xf32>
    %40 = vector.extract_strided_slice %39 {offsets = [0, 9, 0], sizes = [16, 16, 8], strides = [1, 1, 1]} : vector<16x32x8xf32> to vector<16x16x8xf32>
    %41 = arith.addf %35, %40 : vector<16x16x8xf32>
    %c0_27 = arith.constant 0 : index
    %c0_28 = arith.constant 0 : index
    %42 = vector.load %arg5[%c0_27, %c0_28] : memref<1x8xf32, #tpu.memory_space<vmem>>, vector<1x8xf32>
    %43 = vector.shape_cast %42 : vector<1x8xf32> to vector<1x1x8xf32>
    %44 = vector.broadcast %43 : vector<1x1x8xf32> to vector<16x16x8xf32>
    %45 = arith.addf %41, %44 : vector<16x16x8xf32>
    %cst_29 = arith.constant 0.000000e+00 : f32
    %46 = vector.broadcast %cst_29 : f32 to vector<16x16x8xf32>
    %47 = arith.maximumf %45, %46 : vector<16x16x8xf32>
    %48 = arith.truncf %47 : vector<16x16x8xf32> to vector<16x16x8xbf16>
    %cst_30 = arith.constant 0.000000e+00 : bf16
    %49 = vector.broadcast %cst_30 : bf16 to vector<16x8x8xbf16>
    %cst_31 = arith.constant 0.000000e+00 : bf16
    %50 = vector.broadcast %cst_31 : bf16 to vector<16x8x8xbf16>
    %51 = tpu.concatenate %49, %48, %50 in 1 : vector<16x8x8xbf16>, vector<16x16x8xbf16>, vector<16x8x8xbf16> -> vector<16x32x8xbf16>
    %cst_32 = arith.constant 0.000000e+00 : bf16
    %52 = vector.broadcast %cst_32 : bf16 to vector<1x32x8xbf16>
    %53 = tpu.concatenate %52, %51, %52 in 0 : vector<1x32x8xbf16>, vector<16x32x8xbf16>, vector<1x32x8xbf16> -> vector<18x32x8xbf16>
    %c0_33 = arith.constant 0 : index
    %c0_34 = arith.constant 0 : index
    %c0_35 = arith.constant 0 : index
    %54 = vector.load %arg20[%c0_33, %c0_34, %c0_35] : memref<18x32x8xbf16, #tpu.memory_space<vmem>>, vector<18x32x8xbf16>
    tpu.vector_store %arg20[%c0_33, %c0_34, %c0_35], %53 {strides = array<i32>} : memref<18x32x8xbf16, #tpu.memory_space<vmem>>, vector<18x32x8xbf16>,
    %c0_36 = arith.constant 0 : index
    %c0_37 = arith.constant 0 : index
    %c0_38 = arith.constant 0 : index
    %55 = vector.load %arg20[%c0_36, %c0_37, %c0_38] : memref<18x32x8xbf16, #tpu.memory_space<vmem>>, vector<18x32x8xbf16>
    %56 = vector.extract_strided_slice %55 {offsets = [0, 0, 0], sizes = [16, 32, 8], strides = [1, 1, 1]} : vector<18x32x8xbf16> to vector<16x32x8xbf16>
    %57 = vector.shape_cast %56 : vector<16x32x8xbf16> to vector<8x2x32x8xbf16>
    %58 = vector.extract_strided_slice %57 {offsets = [0, 0, 0, 0], sizes = [8, 1, 32, 8], strides = [1, 1, 1, 1]} : vector<8x2x32x8xbf16> to vector<8x1x32x8xbf16>
    %59 = vector.shape_cast %58 : vector<8x1x32x8xbf16> to vector<8x32x8xbf16>
    %60 = vector.extract_strided_slice %55 {offsets = [0, 0, 0], sizes = [16, 32, 8], strides = [1, 1, 1]} : vector<18x32x8xbf16> to vector<16x32x8xbf16>
    %61 = vector.shape_cast %60 : vector<16x32x8xbf16> to vector<8x2x32x8xbf16>
    %62 = vector.extract_strided_slice %61 {offsets = [0, 1, 0, 0], sizes = [8, 1, 32, 8], strides = [1, 1, 1, 1]} : vector<8x2x32x8xbf16> to vector<8x1x32x8xbf16>
    %63 = vector.shape_cast %62 : vector<8x1x32x8xbf16> to vector<8x32x8xbf16>
    %64 = vector.extract_strided_slice %55 {offsets = [2, 0, 0], sizes = [16, 32, 8], strides = [1, 1, 1]} : vector<18x32x8xbf16> to vector<16x32x8xbf16>
    %65 = vector.shape_cast %64 : vector<16x32x8xbf16> to vector<8x2x32x8xbf16>
    %66 = vector.extract_strided_slice %65 {offsets = [0, 0, 0, 0], sizes = [8, 1, 32, 8], strides = [1, 1, 1, 1]} : vector<8x2x32x8xbf16> to vector<8x1x32x8xbf16>
    %67 = vector.shape_cast %66 : vector<8x1x32x8xbf16> to vector<8x32x8xbf16>
    %68 = tpu.concatenate %59, %63, %67 in 2 : vector<8x32x8xbf16>, vector<8x32x8xbf16>, vector<8x32x8xbf16> -> vector<8x32x24xbf16>
    %69 = vector.shape_cast %68 : vector<8x32x24xbf16> to vector<256x24xbf16>
    %cst_39 = arith.constant 0.000000e+00 : f32
    %70 = vector.broadcast %cst_39 : f32 to vector<64x16xf32>
    %c0_40 = arith.constant 0 : index
    %c0_41 = arith.constant 0 : index
    %c0_42 = arith.constant 0 : index
    %71 = vector.load %arg8[%c0_40, %c0_41, %c0_42] : memref<3x64x256xbf16, #tpu.memory_space<vmem>>, vector<1x64x256xbf16>
    %72 = vector.shape_cast %71 : vector<1x64x256xbf16> to vector<64x256xbf16>
    %cst_43 = arith.constant dense<0.000000e+00> : vector<64x24xf32>
    %73 = tpu.matmul %72, %69, %cst_43 {dimension_numbers = #tpu.dot_dimension_numbers<[1], [0], [0], [1], [0, 0, 1, 1], [], []>} : vector<64x256xbf16>, vector<256x24xbf16>, vector<64x24xf32> -> vector<64x24xf32>
    %74 = arith.truncf %73 : vector<64x24xf32> to vector<64x24xbf16>
    %c0_44 = arith.constant 0 : index
    %c0_45 = arith.constant 0 : index
    %c0_46 = arith.constant 0 : index
    %75 = vector.load %arg6[%c0_44, %c0_45, %c0_46] : memref<3x24x16xbf16, #tpu.memory_space<vmem>>, vector<1x24x16xbf16>
    %76 = vector.shape_cast %75 : vector<1x24x16xbf16> to vector<24x16xbf16>
    %cst_47 = arith.constant dense<0.000000e+00> : vector<64x16xf32>
    %77 = tpu.matmul %74, %76, %cst_47 {dimension_numbers = #tpu.dot_dimension_numbers<[1], [0], [0], [1], [0, 0, 1, 1], [], []>} : vector<64x24xbf16>, vector<24x16xbf16>, vector<64x16xf32> -> vector<64x16xf32>
    %78 = arith.addf %70, %77 : vector<64x16xf32>
    %c1_48 = arith.constant 1 : index
    %c0_49 = arith.constant 0 : index
    %c0_50 = arith.constant 0 : index
    %79 = vector.load %arg8[%c1_48, %c0_49, %c0_50] : memref<3x64x256xbf16, #tpu.memory_space<vmem>>, vector<1x64x256xbf16>
    %80 = vector.shape_cast %79 : vector<1x64x256xbf16> to vector<64x256xbf16>
    %cst_51 = arith.constant dense<0.000000e+00> : vector<64x24xf32>
    %81 = tpu.matmul %80, %69, %cst_51 {dimension_numbers = #tpu.dot_dimension_numbers<[1], [0], [0], [1], [0, 0, 1, 1], [], []>} : vector<64x256xbf16>, vector<256x24xbf16>, vector<64x24xf32> -> vector<64x24xf32>
    %82 = arith.truncf %81 : vector<64x24xf32> to vector<64x24xbf16>
    %c1_52 = arith.constant 1 : index
    %c0_53 = arith.constant 0 : index
    %c0_54 = arith.constant 0 : index
    %83 = vector.load %arg6[%c1_52, %c0_53, %c0_54] : memref<3x24x16xbf16, #tpu.memory_space<vmem>>, vector<1x24x16xbf16>
    %84 = vector.shape_cast %83 : vector<1x24x16xbf16> to vector<24x16xbf16>
    %cst_55 = arith.constant dense<0.000000e+00> : vector<64x16xf32>
    %85 = tpu.matmul %82, %84, %cst_55 {dimension_numbers = #tpu.dot_dimension_numbers<[1], [0], [0], [1], [0, 0, 1, 1], [], []>} : vector<64x24xbf16>, vector<24x16xbf16>, vector<64x16xf32> -> vector<64x16xf32>
    %86 = arith.addf %78, %85 : vector<64x16xf32>
    %c2_56 = arith.constant 2 : index
    %c0_57 = arith.constant 0 : index
    %c0_58 = arith.constant 0 : index
    %87 = vector.load %arg8[%c2_56, %c0_57, %c0_58] : memref<3x64x256xbf16, #tpu.memory_space<vmem>>, vector<1x64x256xbf16>
    %88 = vector.shape_cast %87 : vector<1x64x256xbf16> to vector<64x256xbf16>
    %cst_59 = arith.constant dense<0.000000e+00> : vector<64x24xf32>
    %89 = tpu.matmul %88, %69, %cst_59 {dimension_numbers = #tpu.dot_dimension_numbers<[1], [0], [0], [1], [0, 0, 1, 1], [], []>} : vector<64x256xbf16>, vector<256x24xbf16>, vector<64x24xf32> -> vector<64x24xf32>
    %90 = arith.truncf %89 : vector<64x24xf32> to vector<64x24xbf16>
    %c2_60 = arith.constant 2 : index
    %c0_61 = arith.constant 0 : index
    %c0_62 = arith.constant 0 : index
    %91 = vector.load %arg6[%c2_60, %c0_61, %c0_62] : memref<3x24x16xbf16, #tpu.memory_space<vmem>>, vector<1x24x16xbf16>
    %92 = vector.shape_cast %91 : vector<1x24x16xbf16> to vector<24x16xbf16>
    %cst_63 = arith.constant dense<0.000000e+00> : vector<64x16xf32>
    %93 = tpu.matmul %90, %92, %cst_63 {dimension_numbers = #tpu.dot_dimension_numbers<[1], [0], [0], [1], [0, 0, 1, 1], [], []>} : vector<64x24xbf16>, vector<24x16xbf16>, vector<64x16xf32> -> vector<64x16xf32>
    %94 = arith.addf %86, %93 : vector<64x16xf32>
    %c0_64 = arith.constant 0 : index
    %c0_65 = arith.constant 0 : index
    %95 = vector.load %arg7[%c0_64, %c0_65] : memref<1x16xf32, #tpu.memory_space<vmem>>, vector<1x16xf32>
    %96 = vector.broadcast %95 : vector<1x16xf32> to vector<64x16xf32>
    %97 = arith.addf %94, %96 : vector<64x16xf32>
    %cst_66 = arith.constant 0.000000e+00 : f32
    %98 = vector.broadcast %cst_66 : f32 to vector<64x16xf32>
    %99 = arith.maximumf %97, %98 : vector<64x16xf32>
    %100 = vector.shape_cast %99 : vector<64x16xf32> to vector<8x8x16xf32>
    %101 = arith.truncf %100 : vector<8x8x16xf32> to vector<8x8x16xbf16>
    %cst_67 = arith.constant 0.000000e+00 : bf16
    %102 = vector.broadcast %cst_67 : bf16 to vector<8x8x16xbf16>
    %cst_68 = arith.constant 0.000000e+00 : bf16
    %103 = vector.broadcast %cst_68 : bf16 to vector<8x16x16xbf16>
    %104 = tpu.concatenate %102, %101, %103 in 1 : vector<8x8x16xbf16>, vector<8x8x16xbf16>, vector<8x16x16xbf16> -> vector<8x32x16xbf16>
    %cst_69 = arith.constant 0.000000e+00 : bf16
    %105 = vector.broadcast %cst_69 : bf16 to vector<1x32x16xbf16>
    %106 = tpu.concatenate %105, %104, %105 in 0 : vector<1x32x16xbf16>, vector<8x32x16xbf16>, vector<1x32x16xbf16> -> vector<10x32x16xbf16>
    %c0_70 = arith.constant 0 : index
    %c0_71 = arith.constant 0 : index
    %c0_72 = arith.constant 0 : index
    %107 = vector.load %arg21[%c0_70, %c0_71, %c0_72] : memref<10x32x16xbf16, #tpu.memory_space<vmem>>, vector<10x32x16xbf16>
    tpu.vector_store %arg21[%c0_70, %c0_71, %c0_72], %106 {strides = array<i32>} : memref<10x32x16xbf16, #tpu.memory_space<vmem>>, vector<10x32x16xbf16>,
    %c0_73 = arith.constant 0 : index
    %c0_74 = arith.constant 0 : index
    %c0_75 = arith.constant 0 : index
    %108 = vector.load %arg21[%c0_73, %c0_74, %c0_75] : memref<10x32x16xbf16, #tpu.memory_space<vmem>>, vector<10x32x16xbf16>
    %109 = vector.extract_strided_slice %108 {offsets = [0, 0, 0], sizes = [8, 32, 16], strides = [1, 1, 1]} : vector<10x32x16xbf16> to vector<8x32x16xbf16>
    %110 = vector.extract_strided_slice %108 {offsets = [1, 0, 0], sizes = [8, 32, 16], strides = [1, 1, 1]} : vector<10x32x16xbf16> to vector<8x32x16xbf16>
    %111 = vector.extract_strided_slice %108 {offsets = [2, 0, 0], sizes = [8, 32, 16], strides = [1, 1, 1]} : vector<10x32x16xbf16> to vector<8x32x16xbf16>
    %112 = tpu.concatenate %109, %110, %111 in 2 : vector<8x32x16xbf16>, vector<8x32x16xbf16>, vector<8x32x16xbf16> -> vector<8x32x48xbf16>
    %113 = vector.shape_cast %112 : vector<8x32x48xbf16> to vector<256x48xbf16>
    %cst_76 = arith.constant 0.000000e+00 : f32
    %114 = vector.broadcast %cst_76 : f32 to vector<8x8x16xf32>
    %c0_77 = arith.constant 0 : index
    %c0_78 = arith.constant 0 : index
    %c0_79 = arith.constant 0 : index
    %115 = vector.load %arg9[%c0_77, %c0_78, %c0_79] : memref<3x48x16xbf16, #tpu.memory_space<vmem>>, vector<1x48x16xbf16>
    %116 = vector.shape_cast %115 : vector<1x48x16xbf16> to vector<48x16xbf16>
    %cst_80 = arith.constant dense<0.000000e+00> : vector<256x16xf32>
    %117 = tpu.matmul %113, %116, %cst_80 {dimension_numbers = #tpu.dot_dimension_numbers<[1], [0], [0], [1], [0, 0, 1, 1], [], []>} : vector<256x48xbf16>, vector<48x16xbf16>, vector<256x16xf32> -> vector<256x16xf32>
    %118 = vector.shape_cast %117 : vector<256x16xf32> to vector<8x32x16xf32>
    %119 = vector.extract_strided_slice %118 {offsets = [0, 7, 0], sizes = [8, 8, 16], strides = [1, 1, 1]} : vector<8x32x16xf32> to vector<8x8x16xf32>
    %120 = arith.addf %114, %119 : vector<8x8x16xf32>
    %c1_81 = arith.constant 1 : index
    %c0_82 = arith.constant 0 : index
    %c0_83 = arith.constant 0 : index
    %121 = vector.load %arg9[%c1_81, %c0_82, %c0_83] : memref<3x48x16xbf16, #tpu.memory_space<vmem>>, vector<1x48x16xbf16>
    %122 = vector.shape_cast %121 : vector<1x48x16xbf16> to vector<48x16xbf16>
    %cst_84 = arith.constant dense<0.000000e+00> : vector<256x16xf32>
    %123 = tpu.matmul %113, %122, %cst_84 {dimension_numbers = #tpu.dot_dimension_numbers<[1], [0], [0], [1], [0, 0, 1, 1], [], []>} : vector<256x48xbf16>, vector<48x16xbf16>, vector<256x16xf32> -> vector<256x16xf32>
    %124 = vector.shape_cast %123 : vector<256x16xf32> to vector<8x32x16xf32>
    %125 = vector.extract_strided_slice %124 {offsets = [0, 8, 0], sizes = [8, 8, 16], strides = [1, 1, 1]} : vector<8x32x16xf32> to vector<8x8x16xf32>
    %126 = arith.addf %120, %125 : vector<8x8x16xf32>
    %c2_85 = arith.constant 2 : index
    %c0_86 = arith.constant 0 : index
    %c0_87 = arith.constant 0 : index
    %127 = vector.load %arg9[%c2_85, %c0_86, %c0_87] : memref<3x48x16xbf16, #tpu.memory_space<vmem>>, vector<1x48x16xbf16>
    %128 = vector.shape_cast %127 : vector<1x48x16xbf16> to vector<48x16xbf16>
    %cst_88 = arith.constant dense<0.000000e+00> : vector<256x16xf32>
    %129 = tpu.matmul %113, %128, %cst_88 {dimension_numbers = #tpu.dot_dimension_numbers<[1], [0], [0], [1], [0, 0, 1, 1], [], []>} : vector<256x48xbf16>, vector<48x16xbf16>, vector<256x16xf32> -> vector<256x16xf32>
    %130 = vector.shape_cast %129 : vector<256x16xf32> to vector<8x32x16xf32>
    %131 = vector.extract_strided_slice %130 {offsets = [0, 9, 0], sizes = [8, 8, 16], strides = [1, 1, 1]} : vector<8x32x16xf32> to vector<8x8x16xf32>
    %132 = arith.addf %126, %131 : vector<8x8x16xf32>
    %c0_89 = arith.constant 0 : index
    %c0_90 = arith.constant 0 : index
    %133 = vector.load %arg10[%c0_89, %c0_90] : memref<1x16xf32, #tpu.memory_space<vmem>>, vector<1x16xf32>
    %134 = vector.shape_cast %133 : vector<1x16xf32> to vector<1x1x16xf32>
    %135 = vector.broadcast %134 : vector<1x1x16xf32> to vector<8x8x16xf32>
    %136 = arith.addf %132, %135 : vector<8x8x16xf32>
    %cst_91 = arith.constant 0.000000e+00 : f32
    %137 = vector.broadcast %cst_91 : f32 to vector<8x8x16xf32>
    %138 = arith.maximumf %136, %137 : vector<8x8x16xf32>
    %139 = arith.truncf %138 : vector<8x8x16xf32> to vector<8x8x16xbf16>
    %cst_92 = arith.constant 0.000000e+00 : bf16
    %140 = vector.broadcast %cst_92 : bf16 to vector<8x8x16xbf16>
    %cst_93 = arith.constant 0.000000e+00 : bf16
    %141 = vector.broadcast %cst_93 : bf16 to vector<8x16x16xbf16>
    %142 = tpu.concatenate %140, %139, %141 in 1 : vector<8x8x16xbf16>, vector<8x8x16xbf16>, vector<8x16x16xbf16> -> vector<8x32x16xbf16>
    %cst_94 = arith.constant 0.000000e+00 : bf16
    %143 = vector.broadcast %cst_94 : bf16 to vector<1x32x16xbf16>
    %144 = tpu.concatenate %143, %142, %143 in 0 : vector<1x32x16xbf16>, vector<8x32x16xbf16>, vector<1x32x16xbf16> -> vector<10x32x16xbf16>
    %c0_95 = arith.constant 0 : index
    %c0_96 = arith.constant 0 : index
    %c0_97 = arith.constant 0 : index
    %145 = vector.load %arg22[%c0_95, %c0_96, %c0_97] : memref<10x32x16xbf16, #tpu.memory_space<vmem>>, vector<10x32x16xbf16>
    tpu.vector_store %arg22[%c0_95, %c0_96, %c0_97], %144 {strides = array<i32>} : memref<10x32x16xbf16, #tpu.memory_space<vmem>>, vector<10x32x16xbf16>,
    %c0_98 = arith.constant 0 : index
    %c0_99 = arith.constant 0 : index
    %c0_100 = arith.constant 0 : index
    %146 = vector.load %arg22[%c0_98, %c0_99, %c0_100] : memref<10x32x16xbf16, #tpu.memory_space<vmem>>, vector<10x32x16xbf16>
    %147 = vector.extract_strided_slice %146 {offsets = [0, 0, 0], sizes = [8, 32, 16], strides = [1, 1, 1]} : vector<10x32x16xbf16> to vector<8x32x16xbf16>
    %148 = vector.shape_cast %147 : vector<8x32x16xbf16> to vector<4x2x32x16xbf16>
    %149 = vector.extract_strided_slice %148 {offsets = [0, 0, 0, 0], sizes = [4, 1, 32, 16], strides = [1, 1, 1, 1]} : vector<4x2x32x16xbf16> to vector<4x1x32x16xbf16>
    %150 = vector.shape_cast %149 : vector<4x1x32x16xbf16> to vector<4x32x16xbf16>
    %151 = vector.extract_strided_slice %146 {offsets = [0, 0, 0], sizes = [8, 32, 16], strides = [1, 1, 1]} : vector<10x32x16xbf16> to vector<8x32x16xbf16>
    %152 = vector.shape_cast %151 : vector<8x32x16xbf16> to vector<4x2x32x16xbf16>
    %153 = vector.extract_strided_slice %152 {offsets = [0, 1, 0, 0], sizes = [4, 1, 32, 16], strides = [1, 1, 1, 1]} : vector<4x2x32x16xbf16> to vector<4x1x32x16xbf16>
    %154 = vector.shape_cast %153 : vector<4x1x32x16xbf16> to vector<4x32x16xbf16>
    %155 = vector.extract_strided_slice %146 {offsets = [2, 0, 0], sizes = [8, 32, 16], strides = [1, 1, 1]} : vector<10x32x16xbf16> to vector<8x32x16xbf16>
    %156 = vector.shape_cast %155 : vector<8x32x16xbf16> to vector<4x2x32x16xbf16>
    %157 = vector.extract_strided_slice %156 {offsets = [0, 0, 0, 0], sizes = [4, 1, 32, 16], strides = [1, 1, 1, 1]} : vector<4x2x32x16xbf16> to vector<4x1x32x16xbf16>
    %158 = vector.shape_cast %157 : vector<4x1x32x16xbf16> to vector<4x32x16xbf16>
    %159 = tpu.concatenate %150, %154, %158 in 2 : vector<4x32x16xbf16>, vector<4x32x16xbf16>, vector<4x32x16xbf16> -> vector<4x32x48xbf16>
    %160 = vector.shape_cast %159 : vector<4x32x48xbf16> to vector<128x48xbf16>
    %cst_101 = arith.constant 0.000000e+00 : f32
    %161 = vector.broadcast %cst_101 : f32 to vector<32x32xf32>
    %c0_102 = arith.constant 0 : index
    %c0_103 = arith.constant 0 : index
    %c0_104 = arith.constant 0 : index
    %162 = vector.load %arg13[%c0_102, %c0_103, %c0_104] : memref<3x32x128xbf16, #tpu.memory_space<vmem>>, vector<1x32x128xbf16>
    %163 = vector.shape_cast %162 : vector<1x32x128xbf16> to vector<32x128xbf16>
    %cst_105 = arith.constant dense<0.000000e+00> : vector<32x48xf32>
    %164 = tpu.matmul %163, %160, %cst_105 {dimension_numbers = #tpu.dot_dimension_numbers<[1], [0], [0], [1], [0, 0, 1, 1], [], []>} : vector<32x128xbf16>, vector<128x48xbf16>, vector<32x48xf32> -> vector<32x48xf32>
    %165 = arith.truncf %164 : vector<32x48xf32> to vector<32x48xbf16>
    %c0_106 = arith.constant 0 : index
    %c0_107 = arith.constant 0 : index
    %c0_108 = arith.constant 0 : index
    %166 = vector.load %arg11[%c0_106, %c0_107, %c0_108] : memref<3x48x32xbf16, #tpu.memory_space<vmem>>, vector<1x48x32xbf16>
    %167 = vector.shape_cast %166 : vector<1x48x32xbf16> to vector<48x32xbf16>
    %cst_109 = arith.constant dense<0.000000e+00> : vector<32x32xf32>
    %168 = tpu.matmul %165, %167, %cst_109 {dimension_numbers = #tpu.dot_dimension_numbers<[1], [0], [0], [1], [0, 0, 1, 1], [], []>} : vector<32x48xbf16>, vector<48x32xbf16>, vector<32x32xf32> -> vector<32x32xf32>
    %169 = arith.addf %161, %168 : vector<32x32xf32>
    %c1_110 = arith.constant 1 : index
    %c0_111 = arith.constant 0 : index
    %c0_112 = arith.constant 0 : index
    %170 = vector.load %arg13[%c1_110, %c0_111, %c0_112] : memref<3x32x128xbf16, #tpu.memory_space<vmem>>, vector<1x32x128xbf16>
    %171 = vector.shape_cast %170 : vector<1x32x128xbf16> to vector<32x128xbf16>
    %cst_113 = arith.constant dense<0.000000e+00> : vector<32x48xf32>
    %172 = tpu.matmul %171, %160, %cst_113 {dimension_numbers = #tpu.dot_dimension_numbers<[1], [0], [0], [1], [0, 0, 1, 1], [], []>} : vector<32x128xbf16>, vector<128x48xbf16>, vector<32x48xf32> -> vector<32x48xf32>
    %173 = arith.truncf %172 : vector<32x48xf32> to vector<32x48xbf16>
    %c1_114 = arith.constant 1 : index
    %c0_115 = arith.constant 0 : index
    %c0_116 = arith.constant 0 : index
    %174 = vector.load %arg11[%c1_114, %c0_115, %c0_116] : memref<3x48x32xbf16, #tpu.memory_space<vmem>>, vector<1x48x32xbf16>
    %175 = vector.shape_cast %174 : vector<1x48x32xbf16> to vector<48x32xbf16>
    %cst_117 = arith.constant dense<0.000000e+00> : vector<32x32xf32>
    %176 = tpu.matmul %173, %175, %cst_117 {dimension_numbers = #tpu.dot_dimension_numbers<[1], [0], [0], [1], [0, 0, 1, 1], [], []>} : vector<32x48xbf16>, vector<48x32xbf16>, vector<32x32xf32> -> vector<32x32xf32>
    %177 = arith.addf %169, %176 : vector<32x32xf32>
    %c2_118 = arith.constant 2 : index
    %c0_119 = arith.constant 0 : index
    %c0_120 = arith.constant 0 : index
    %178 = vector.load %arg13[%c2_118, %c0_119, %c0_120] : memref<3x32x128xbf16, #tpu.memory_space<vmem>>, vector<1x32x128xbf16>
    %179 = vector.shape_cast %178 : vector<1x32x128xbf16> to vector<32x128xbf16>
    %cst_121 = arith.constant dense<0.000000e+00> : vector<32x48xf32>
    %180 = tpu.matmul %179, %160, %cst_121 {dimension_numbers = #tpu.dot_dimension_numbers<[1], [0], [0], [1], [0, 0, 1, 1], [], []>} : vector<32x128xbf16>, vector<128x48xbf16>, vector<32x48xf32> -> vector<32x48xf32>
    %181 = arith.truncf %180 : vector<32x48xf32> to vector<32x48xbf16>
    %c2_122 = arith.constant 2 : index
    %c0_123 = arith.constant 0 : index
    %c0_124 = arith.constant 0 : index
    %182 = vector.load %arg11[%c2_122, %c0_123, %c0_124] : memref<3x48x32xbf16, #tpu.memory_space<vmem>>, vector<1x48x32xbf16>
    %183 = vector.shape_cast %182 : vector<1x48x32xbf16> to vector<48x32xbf16>
    %cst_125 = arith.constant dense<0.000000e+00> : vector<32x32xf32>
    %184 = tpu.matmul %181, %183, %cst_125 {dimension_numbers = #tpu.dot_dimension_numbers<[1], [0], [0], [1], [0, 0, 1, 1], [], []>} : vector<32x48xbf16>, vector<48x32xbf16>, vector<32x32xf32> -> vector<32x32xf32>
    %185 = arith.addf %177, %184 : vector<32x32xf32>
    %c0_126 = arith.constant 0 : index
    %c0_127 = arith.constant 0 : index
    %186 = vector.load %arg12[%c0_126, %c0_127] : memref<1x32xf32, #tpu.memory_space<vmem>>, vector<1x32xf32>
    %187 = vector.broadcast %186 : vector<1x32xf32> to vector<32x32xf32>
    %188 = arith.addf %185, %187 : vector<32x32xf32>
    %cst_128 = arith.constant 0.000000e+00 : f32
    %189 = vector.broadcast %cst_128 : f32 to vector<32x32xf32>
    %190 = arith.maximumf %188, %189 : vector<32x32xf32>
    %191 = vector.shape_cast %190 : vector<32x32xf32> to vector<4x8x32xf32>
    %192 = vector.extract_strided_slice %191 {offsets = [0, 0, 0], sizes = [4, 4, 32], strides = [1, 1, 1]} : vector<4x8x32xf32> to vector<4x4x32xf32>
    %193 = arith.truncf %192 : vector<4x4x32xf32> to vector<4x4x32xbf16>
    %cst_129 = arith.constant 0.000000e+00 : bf16
    %194 = vector.broadcast %cst_129 : bf16 to vector<4x8x32xbf16>
    %cst_130 = arith.constant 0.000000e+00 : bf16
    %195 = vector.broadcast %cst_130 : bf16 to vector<4x4x32xbf16>
    %196 = tpu.concatenate %194, %193, %195 in 1 : vector<4x8x32xbf16>, vector<4x4x32xbf16>, vector<4x4x32xbf16> -> vector<4x16x32xbf16>
    %cst_131 = arith.constant 0.000000e+00 : bf16
    %197 = vector.broadcast %cst_131 : bf16 to vector<1x16x32xbf16>
    %198 = tpu.concatenate %197, %196, %197 in 0 : vector<1x16x32xbf16>, vector<4x16x32xbf16>, vector<1x16x32xbf16> -> vector<6x16x32xbf16>
    %c0_132 = arith.constant 0 : index
    %c0_133 = arith.constant 0 : index
    %c0_134 = arith.constant 0 : index
    %199 = vector.load %arg23[%c0_132, %c0_133, %c0_134] : memref<6x16x32xbf16, #tpu.memory_space<vmem>>, vector<6x16x32xbf16>
    tpu.vector_store %arg23[%c0_132, %c0_133, %c0_134], %198 {strides = array<i32>} : memref<6x16x32xbf16, #tpu.memory_space<vmem>>, vector<6x16x32xbf16>,
    %c0_135 = arith.constant 0 : index
    %c0_136 = arith.constant 0 : index
    %c0_137 = arith.constant 0 : index
    %200 = vector.load %arg23[%c0_135, %c0_136, %c0_137] : memref<6x16x32xbf16, #tpu.memory_space<vmem>>, vector<6x16x32xbf16>
    %201 = vector.extract_strided_slice %200 {offsets = [0, 0, 0], sizes = [4, 16, 32], strides = [1, 1, 1]} : vector<6x16x32xbf16> to vector<4x16x32xbf16>
    %202 = vector.extract_strided_slice %200 {offsets = [1, 0, 0], sizes = [4, 16, 32], strides = [1, 1, 1]} : vector<6x16x32xbf16> to vector<4x16x32xbf16>
    %203 = vector.extract_strided_slice %200 {offsets = [2, 0, 0], sizes = [4, 16, 32], strides = [1, 1, 1]} : vector<6x16x32xbf16> to vector<4x16x32xbf16>
    %204 = tpu.concatenate %201, %202, %203 in 2 : vector<4x16x32xbf16>, vector<4x16x32xbf16>, vector<4x16x32xbf16> -> vector<4x16x96xbf16>
    %205 = vector.shape_cast %204 : vector<4x16x96xbf16> to vector<64x96xbf16>
    %cst_138 = arith.constant 0.000000e+00 : f32
    %206 = vector.broadcast %cst_138 : f32 to vector<4x4x32xf32>
    %c0_139 = arith.constant 0 : index
    %c0_140 = arith.constant 0 : index
    %c0_141 = arith.constant 0 : index
    %207 = vector.load %arg14[%c0_139, %c0_140, %c0_141] : memref<3x96x32xbf16, #tpu.memory_space<vmem>>, vector<1x96x32xbf16>
    %208 = vector.shape_cast %207 : vector<1x96x32xbf16> to vector<96x32xbf16>
    %cst_142 = arith.constant dense<0.000000e+00> : vector<64x32xf32>
    %209 = tpu.matmul %205, %208, %cst_142 {dimension_numbers = #tpu.dot_dimension_numbers<[1], [0], [0], [1], [0, 0, 1, 1], [], []>} : vector<64x96xbf16>, vector<96x32xbf16>, vector<64x32xf32> -> vector<64x32xf32>
    %210 = vector.shape_cast %209 : vector<64x32xf32> to vector<4x16x32xf32>
    %211 = vector.extract_strided_slice %210 {offsets = [0, 7, 0], sizes = [4, 4, 32], strides = [1, 1, 1]} : vector<4x16x32xf32> to vector<4x4x32xf32>
    %212 = arith.addf %206, %211 : vector<4x4x32xf32>
    %c1_143 = arith.constant 1 : index
    %c0_144 = arith.constant 0 : index
    %c0_145 = arith.constant 0 : index
    %213 = vector.load %arg14[%c1_143, %c0_144, %c0_145] : memref<3x96x32xbf16, #tpu.memory_space<vmem>>, vector<1x96x32xbf16>
    %214 = vector.shape_cast %213 : vector<1x96x32xbf16> to vector<96x32xbf16>
    %cst_146 = arith.constant dense<0.000000e+00> : vector<64x32xf32>
    %215 = tpu.matmul %205, %214, %cst_146 {dimension_numbers = #tpu.dot_dimension_numbers<[1], [0], [0], [1], [0, 0, 1, 1], [], []>} : vector<64x96xbf16>, vector<96x32xbf16>, vector<64x32xf32> -> vector<64x32xf32>
    %216 = vector.shape_cast %215 : vector<64x32xf32> to vector<4x16x32xf32>
    %217 = vector.extract_strided_slice %216 {offsets = [0, 8, 0], sizes = [4, 4, 32], strides = [1, 1, 1]} : vector<4x16x32xf32> to vector<4x4x32xf32>
    %218 = arith.addf %212, %217 : vector<4x4x32xf32>
    %c2_147 = arith.constant 2 : index
    %c0_148 = arith.constant 0 : index
    %c0_149 = arith.constant 0 : index
    %219 = vector.load %arg14[%c2_147, %c0_148, %c0_149] : memref<3x96x32xbf16, #tpu.memory_space<vmem>>, vector<1x96x32xbf16>
    %220 = vector.shape_cast %219 : vector<1x96x32xbf16> to vector<96x32xbf16>
    %cst_150 = arith.constant dense<0.000000e+00> : vector<64x32xf32>
    %221 = tpu.matmul %205, %220, %cst_150 {dimension_numbers = #tpu.dot_dimension_numbers<[1], [0], [0], [1], [0, 0, 1, 1], [], []>} : vector<64x96xbf16>, vector<96x32xbf16>, vector<64x32xf32> -> vector<64x32xf32>
    %222 = vector.shape_cast %221 : vector<64x32xf32> to vector<4x16x32xf32>
    %223 = vector.extract_strided_slice %222 {offsets = [0, 9, 0], sizes = [4, 4, 32], strides = [1, 1, 1]} : vector<4x16x32xf32> to vector<4x4x32xf32>
    %224 = arith.addf %218, %223 : vector<4x4x32xf32>
    %c0_151 = arith.constant 0 : index
    %c0_152 = arith.constant 0 : index
    %225 = vector.load %arg15[%c0_151, %c0_152] : memref<1x32xf32, #tpu.memory_space<vmem>>, vector<1x32xf32>
    %226 = vector.shape_cast %225 : vector<1x32xf32> to vector<1x1x32xf32>
    %227 = vector.broadcast %226 : vector<1x1x32xf32> to vector<4x4x32xf32>
    %228 = arith.addf %224, %227 : vector<4x4x32xf32>
    %cst_153 = arith.constant 0.000000e+00 : f32
    %229 = vector.broadcast %cst_153 : f32 to vector<4x4x32xf32>
    %230 = arith.maximumf %228, %229 : vector<4x4x32xf32>
    %cst_154 = arith.constant 0.000000e+00 : f32
    %231 = vector.broadcast %cst_154 : f32 to vector<4x12x32xf32>
    %232 = tpu.concatenate %230, %231 in 1 : vector<4x4x32xf32>, vector<4x12x32xf32> -> vector<4x16x32xf32>
    %233 = arith.truncf %232 : vector<4x16x32xf32> to vector<4x16x32xbf16>
    %c0_155 = arith.constant 0 : index
    %c0_156 = arith.constant 0 : index
    %c0_157 = arith.constant 0 : index
    %234 = vector.load %arg24[%c0_155, %c0_156, %c0_157] : memref<4x16x32xbf16, #tpu.memory_space<vmem>>, vector<4x16x32xbf16>
    tpu.vector_store %arg24[%c0_155, %c0_156, %c0_157], %233 {strides = array<i32>} : memref<4x16x32xbf16, #tpu.memory_space<vmem>>, vector<4x16x32xbf16>,
    %c0_158 = arith.constant 0 : index
    %c0_159 = arith.constant 0 : index
    %c0_160 = arith.constant 0 : index
    %235 = vector.load %arg24[%c0_158, %c0_159, %c0_160] : memref<4x16x32xbf16, #tpu.memory_space<vmem>>, vector<4x16x32xbf16>
    %236 = vector.shape_cast %235 : vector<4x16x32xbf16> to vector<64x32xbf16>
    %c0_161 = arith.constant 0 : index
    %c0_162 = arith.constant 0 : index
    %237 = vector.load %arg16[%c0_161, %c0_162] : memref<32x48xbf16, #tpu.memory_space<vmem>>, vector<32x48xbf16>
    %cst_163 = arith.constant dense<0.000000e+00> : vector<64x48xf32>
    %238 = tpu.matmul %236, %237, %cst_163 {dimension_numbers = #tpu.dot_dimension_numbers<[1], [0], [0], [1], [0, 0, 1, 1], [], []>} : vector<64x32xbf16>, vector<32x48xbf16>, vector<64x48xf32> -> vector<64x48xf32>
    %c0_164 = arith.constant 0 : index
    %c0_165 = arith.constant 0 : index
    %239 = vector.load %arg17[%c0_164, %c0_165] : memref<1x48xf32, #tpu.memory_space<vmem>>, vector<1x48xf32>
    %240 = vector.broadcast %239 : vector<1x48xf32> to vector<64x48xf32>
    %241 = arith.addf %238, %240 : vector<64x48xf32>
    %242 = vector.shape_cast %241 : vector<64x48xf32> to vector<4x16x48xf32>
    %243 = vector.extract_strided_slice %242 {offsets = [0, 0, 0], sizes = [4, 4, 48], strides = [1, 1, 1]} : vector<4x16x48xf32> to vector<4x4x48xf32>
    %c0_166 = arith.constant 0 : index
    %c0_167 = arith.constant 0 : index
    %c0_168 = arith.constant 0 : index
    %c0_169 = arith.constant 0 : index
    %244 = vector.load %arg18[%c0_166, %c0_167, %c0_168, %c0_169] : memref<1x4x4x48xf32, #tpu.memory_space<vmem>>, vector<1x4x4x48xf32>
    %245 = vector.shape_cast %244 : vector<1x4x4x48xf32> to vector<4x4x48xf32>
    %246 = vector.shape_cast %243 : vector<4x4x48xf32> to vector<1x4x4x48xf32>
    tpu.vector_store %arg18[%c0_166, %c0_167, %c0_168, %c0_169], %246 {strides = array<i32>} : memref<1x4x4x48xf32, #tpu.memory_space<vmem>>, vector<1x4x4x48xf32>,
    return
  }
  func.func @transform_0(%arg0: i32) -> (i32, i32, i32) {
    %c0_i32 = arith.constant 0 : i32
    %c0_i32_0 = arith.constant 0 : i32
    %c0_i32_1 = arith.constant 0 : i32
    return %arg0, %c0_i32, %c0_i32_0 : i32, i32, i32
  }
  func.func @transform_1(%arg0: i32) -> (i32, i32) {
    %c0_i32 = arith.constant 0 : i32
    %c0_i32_0 = arith.constant 0 : i32
    %c0_i32_1 = arith.constant 0 : i32
    return %c0_i32, %c0_i32_0 : i32, i32
  }
  func.func @transform_2(%arg0: i32) -> (i32, i32) {
    %c0_i32 = arith.constant 0 : i32
    %c0_i32_0 = arith.constant 0 : i32
    %c0_i32_1 = arith.constant 0 : i32
    return %c0_i32, %c0_i32_0 : i32, i32
  }
  func.func @transform_3(%arg0: i32) -> (i32, i32, i32) {
    %c0_i32 = arith.constant 0 : i32
    %c0_i32_0 = arith.constant 0 : i32
    %c0_i32_1 = arith.constant 0 : i32
    %c0_i32_2 = arith.constant 0 : i32
    return %c0_i32, %c0_i32_0, %c0_i32_1 : i32, i32, i32
  }
  func.func @transform_4(%arg0: i32) -> (i32, i32) {
    %c0_i32 = arith.constant 0 : i32
    %c0_i32_0 = arith.constant 0 : i32
    %c0_i32_1 = arith.constant 0 : i32
    return %c0_i32, %c0_i32_0 : i32, i32
  }
  func.func @transform_5(%arg0: i32) -> (i32, i32, i32) {
    %c0_i32 = arith.constant 0 : i32
    %c0_i32_0 = arith.constant 0 : i32
    %c0_i32_1 = arith.constant 0 : i32
    %c0_i32_2 = arith.constant 0 : i32
    return %c0_i32, %c0_i32_0, %c0_i32_1 : i32, i32, i32
  }
  func.func @transform_6(%arg0: i32) -> (i32, i32) {
    %c0_i32 = arith.constant 0 : i32
    %c0_i32_0 = arith.constant 0 : i32
    %c0_i32_1 = arith.constant 0 : i32
    return %c0_i32, %c0_i32_0 : i32, i32
  }
  func.func @transform_7(%arg0: i32) -> (i32, i32, i32) {
    %c0_i32 = arith.constant 0 : i32
    %c0_i32_0 = arith.constant 0 : i32
    %c0_i32_1 = arith.constant 0 : i32
    %c0_i32_2 = arith.constant 0 : i32
    return %c0_i32, %c0_i32_0, %c0_i32_1 : i32, i32, i32
  }
  func.func @transform_8(%arg0: i32) -> (i32, i32, i32) {
    %c0_i32 = arith.constant 0 : i32
    %c0_i32_0 = arith.constant 0 : i32
    %c0_i32_1 = arith.constant 0 : i32
    %c0_i32_2 = arith.constant 0 : i32
    return %c0_i32, %c0_i32_0, %c0_i32_1 : i32, i32, i32
  }
  func.func @transform_9(%arg0: i32) -> (i32, i32) {
    %c0_i32 = arith.constant 0 : i32
    %c0_i32_0 = arith.constant 0 : i32
    %c0_i32_1 = arith.constant 0 : i32
    return %c0_i32, %c0_i32_0 : i32, i32
  }
  func.func @transform_10(%arg0: i32) -> (i32, i32, i32) {
    %c0_i32 = arith.constant 0 : i32
    %c0_i32_0 = arith.constant 0 : i32
    %c0_i32_1 = arith.constant 0 : i32
    %c0_i32_2 = arith.constant 0 : i32
    return %c0_i32, %c0_i32_0, %c0_i32_1 : i32, i32, i32
  }
  func.func @transform_11(%arg0: i32) -> (i32, i32) {
    %c0_i32 = arith.constant 0 : i32
    %c0_i32_0 = arith.constant 0 : i32
    %c0_i32_1 = arith.constant 0 : i32
    return %c0_i32, %c0_i32_0 : i32, i32
  }
  func.func @transform_12(%arg0: i32) -> (i32, i32, i32) {
    %c0_i32 = arith.constant 0 : i32
    %c0_i32_0 = arith.constant 0 : i32
    %c0_i32_1 = arith.constant 0 : i32
    %c0_i32_2 = arith.constant 0 : i32
    return %c0_i32, %c0_i32_0, %c0_i32_1 : i32, i32, i32
  }
  func.func @transform_13(%arg0: i32) -> (i32, i32, i32) {
    %c0_i32 = arith.constant 0 : i32
    %c0_i32_0 = arith.constant 0 : i32
    %c0_i32_1 = arith.constant 0 : i32
    %c0_i32_2 = arith.constant 0 : i32
    return %c0_i32, %c0_i32_0, %c0_i32_1 : i32, i32, i32
  }
  func.func @transform_14(%arg0: i32) -> (i32, i32) {
    %c0_i32 = arith.constant 0 : i32
    %c0_i32_0 = arith.constant 0 : i32
    %c0_i32_1 = arith.constant 0 : i32
    return %c0_i32, %c0_i32_0 : i32, i32
  }
  func.func @transform_15(%arg0: i32) -> (i32, i32) {
    %c0_i32 = arith.constant 0 : i32
    %c0_i32_0 = arith.constant 0 : i32
    %c0_i32_1 = arith.constant 0 : i32
    return %c0_i32, %c0_i32_0 : i32, i32
  }
  func.func @transform_16(%arg0: i32) -> (i32, i32) {
    %c0_i32 = arith.constant 0 : i32
    %c0_i32_0 = arith.constant 0 : i32
    %c0_i32_1 = arith.constant 0 : i32
    return %c0_i32, %c0_i32_0 : i32, i32
  }
  func.func @transform_17(%arg0: i32) -> (i32, i32, i32, i32) {
    %c0_i32 = arith.constant 0 : i32
    %c0_i32_0 = arith.constant 0 : i32
    %c0_i32_1 = arith.constant 0 : i32
    %c0_i32_2 = arith.constant 0 : i32
    return %arg0, %c0_i32, %c0_i32_0, %c0_i32_1 : i32, i32, i32, i32
  }
}

</mosaic_0001>

<llo_original>
// kernel: tpu_custom_call.1
$region0: #{tpu_custom_call.1}
  #allocation0 [shape = 'u32[]', space=smem, size = 0x4, offset = 0x4, fixed_abs, tag = 'smem constant byte address 0x4 - core index']
  #allocation1 [shape = 'u32[144,128]{1,0:T(1,128)}', space=vmem, size = 0x12000, scoped, tag = 'internal scratch']
  #allocation2 [shape = 'bf16[18,32,8]{2,1,0:T(16,128)(2,1)}', space=vmem, size = 0x24000, scoped, tag = 'scratch operand']
  #allocation3 [shape = 'bf16[18,32,8]{2,1,0:T(16,128)(2,1)}', space=vmem, size = 0x24000, scoped, tag = 'scratch operand']
  #allocation4 [shape = 'bf16[10,32,16]{2,1,0:T(16,128)(2,1)}', space=vmem, size = 0x14000, scoped, tag = 'scratch operand']
  #allocation5 [shape = 'bf16[10,32,16]{2,1,0:T(16,128)(2,1)}', space=vmem, size = 0x14000, scoped, tag = 'scratch operand']
  #allocation6 [shape = 'bf16[6,16,32]{2,1,0:T(16,128)(2,1)}', space=vmem, size = 0x6000, scoped, tag = 'scratch operand']
  #allocation7 [shape = 'bf16[4,16,32]{2,1,0:T(16,128)(2,1)}', space=vmem, size = 0x4000, scoped, tag = 'scratch operand']
  %s0 = inlined_call_operand.vmem [shape: bf16[2,256,27], index: 0, kind: input, shape index: {}]
  %s1 = inlined_call_operand.vmem [shape: bf16[27,8], index: 1, kind: input, shape index: {}]
  %s2 = inlined_call_operand.vmem [shape: f32[1,8], index: 2, kind: input, shape index: {}]
  %s3 = inlined_call_operand.vmem [shape: bf16[3,24,8], index: 3, kind: input, shape index: {}]
  %s4 = inlined_call_operand.vmem [shape: f32[1,8], index: 4, kind: input, shape index: {}]
  %s5 = inlined_call_operand.vmem [shape: bf16[3,24,16], index: 5, kind: input, shape index: {}]
  %s6 = inlined_call_operand.vmem [shape: f32[1,16], index: 6, kind: input, shape index: {}]
  %s7 = inlined_call_operand.vmem [shape: bf16[3,64,256], index: 7, kind: input, shape index: {}]
  %s8 = inlined_call_operand.vmem [shape: bf16[3,48,16], index: 8, kind: input, shape index: {}]
  %s9 = inlined_call_operand.vmem [shape: f32[1,16], index: 9, kind: input, shape index: {}]
  %s10 = inlined_call_operand.vmem [shape: bf16[3,48,32], index: 10, kind: input, shape index: {}]
  %s11 = inlined_call_operand.vmem [shape: f32[1,32], index: 11, kind: input, shape index: {}]
  %s12 = inlined_call_operand.vmem [shape: bf16[3,32,128], index: 12, kind: input, shape index: {}]
  %s13 = inlined_call_operand.vmem [shape: bf16[3,96,32], index: 13, kind: input, shape index: {}]
  %s14 = inlined_call_operand.vmem [shape: f32[1,32], index: 14, kind: input, shape index: {}]
  %s15 = inlined_call_operand.vmem [shape: bf16[32,48], index: 15, kind: input, shape index: {}]
  %s16 = inlined_call_operand.vmem [shape: f32[1,48], index: 16, kind: input, shape index: {}]
  %s17 = inlined_call_operand.hbm [shape: f32[2,4,4,48], index: 17, kind: output, shape index: {}]
  %s18 = sld [smem:[#allocation0]]
  $region101: #{tpu_custom_call.1} parent=0
    _
  %s20 = ssub.s32 1, %s18
  %s21 = scalar_select 0, %s20, %s18
  $region1: #{tpu_custom_call.1} parent=0
    #allocation8 [shape = 'u8[16384]{0}', space=vmem, size = 0x4000, scoped, tag = 'output window, operand 0']
    #allocation9 [shape = 's32[2]{0}', space=sflag, size = 0x8, scoped, tag = 'scoped memory for tpu_custom_call.1']
    %22 = vsyncpa [#allocation9], 0
    %s23 = scalar_lea.sflag [#allocation9], 1
    %24 = vsyncpa %s23, 0
    loop: start=0, step=1, limit=4
    $region2: #{tpu_custom_call.1} parent=1 // loop_pre_header
      _
    $region3: #{tpu_custom_call.1} parent=1 // loop_header
      %s26 = sphi 0, %s30
      %p27 = scmp.ge.s32.totalorder %s26, 4
      %s36 = sphi 0, %s38
      %s39 = sphi 0, %s36
      %s40 = sphi 0, %s39
      %s56 = sphi 0, %s40
      %s60 = sphi 0, %s60
      %s62 = sphi 0, %s60
      %s63 = sphi 0, %s62
      %s77 = sphi 0, %s63
      %s81 = sphi 0, %s81
      %s83 = sphi 0, %s81
      %s84 = sphi 0, %s83
      %s98 = sphi 0, %s84
      %s102 = sphi 0, %s102
      %s104 = sphi 0, %s102
      %s105 = sphi 0, %s104
      %s119 = sphi 0, %s105
      %s123 = sphi 0, %s123
      %s125 = sphi 0, %s123
      %s126 = sphi 0, %s125
      %s140 = sphi 0, %s126
      %s144 = sphi 0, %s144
      %s146 = sphi 0, %s144
      %s147 = sphi 0, %s146
      %s161 = sphi 0, %s147
      %s165 = sphi 0, %s165
      %s167 = sphi 0, %s165
      %s168 = sphi 0, %s167
      %s182 = sphi 0, %s168
      %s186 = sphi 0, %s186
      %s188 = sphi 0, %s186
      %s189 = sphi 0, %s188
      %s203 = sphi 0, %s189
      %s207 = sphi 0, %s207
      %s209 = sphi 0, %s207
      %s210 = sphi 0, %s209
      %s224 = sphi 0, %s210
      %s228 = sphi 0, %s228
      %s230 = sphi 0, %s228
      %s231 = sphi 0, %s230
      %s245 = sphi 0, %s231
      %s249 = sphi 0, %s249
      %s251 = sphi 0, %s249
      %s252 = sphi 0, %s251
      %s266 = sphi 0, %s252
      %s270 = sphi 0, %s270
      %s272 = sphi 0, %s270
      %s273 = sphi 0, %s272
      %s287 = sphi 0, %s273
      %s291 = sphi 0, %s291
      %s293 = sphi 0, %s291
      %s294 = sphi 0, %s293
      %s308 = sphi 0, %s294
      %s312 = sphi 0, %s312
      %s314 = sphi 0, %s312
      %s315 = sphi 0, %s314
      %s329 = sphi 0, %s315
      %s333 = sphi 0, %s333
      %s335 = sphi 0, %s333
      %s336 = sphi 0, %s335
      %s350 = sphi 0, %s336
      %s354 = sphi 0, %s354
      %s356 = sphi 0, %s354
      %s357 = sphi 0, %s356
      %s371 = sphi 0, %s357
      %s375 = sphi 0, %s375
      %s377 = sphi 0, %s375
      %s378 = sphi 0, %s377
      %s392 = sphi 0, %s378
      %s398 = sphi 0, %s400
      %s401 = sphi 0, %s398
      %s402 = sphi 0, %s401
      %s418 = sphi 0, %s402
    $region4: #{tpu_custom_call.1} parent=1 // loop_header_branch
      %29 = sbr.rel (%p27) target = $region8
    $region5: #{tpu_custom_call.1} parent=1 // loop_body
      %s31 = ssub.s32 %s26, 1
      %s32 = ssub.s32 %s26, 2
      %s33 = sadd.s32 %s26, 1
      %s34 = ssub.s32 %s26, %s33
      %p35 = scmp.eq.s32.totalorder %s34, 0
      %s37 = sadd.s32 %s36, 1
      %s38 = scalar_select %p35, %s36, %s37
      %p41 = pneg %p35
      %p42 = scmp.eq.s32.totalorder %s26, 1
      %p43 = por %p41, %p42
      %p44 = scmp.ne.s32.totalorder %s36, %s39
      %p45 = scmp.eq.s32.totalorder %s26, 0
      %p46 = por %p44, %p45
      %p47 = scmp.ne.s32.totalorder %s36, %s39
      %p48 = scmp.eq.s32.totalorder %s31, 1
      %p49 = por %p47, %p48
      %p50 = scmp.ne.s32.totalorder %s39, %s40
      %p51 = scmp.eq.s32.totalorder %s31, 0
      %p52 = por %p50, %p51
      %p53 = scmp.ne.s32.totalorder %s39, %s40
      %p54 = scmp.eq.s32.totalorder %s32, 1
      %p55 = por %p53, %p54
      %p57 = scmp.ne.s32.totalorder %s40, %s56
      %p58 = scmp.eq.s32.totalorder %s32, 0
      %p59 = por %p57, %p58
      %s61 = sadd.s32 %s60, 1
      %p64 = scmp.eq.s32.totalorder %s26, 1
      %p65 = scmp.ne.s32.totalorder %s60, %s62
      %p66 = scmp.eq.s32.totalorder %s26, 0
      %p67 = por %p65, %p66
      %p68 = scmp.ne.s32.totalorder %s60, %s62
      %p69 = scmp.eq.s32.totalorder %s31, 1
      %p70 = por %p68, %p69
      %p71 = scmp.ne.s32.totalorder %s62, %s63
      %p72 = scmp.eq.s32.totalorder %s31, 0
      %p73 = por %p71, %p72
      %p74 = scmp.ne.s32.totalorder %s62, %s63
      %p75 = scmp.eq.s32.totalorder %s32, 1
      %p76 = por %p74, %p75
      %p78 = scmp.ne.s32.totalorder %s63, %s77
      %p79 = scmp.eq.s32.totalorder %s32, 0
      %p80 = por %p78, %p79
      %s82 = sadd.s32 %s81, 1
      %p85 = scmp.eq.s32.totalorder %s26, 1
      %p86 = scmp.ne.s32.totalorder %s81, %s83
      %p87 = scmp.eq.s32.totalorder %s26, 0
      %p88 = por %p86, %p87
      %p89 = scmp.ne.s32.totalorder %s81, %s83
      %p90 = scmp.eq.s32.totalorder %s31, 1
      %p91 = por %p89, %p90
      %p92 = scmp.ne.s32.totalorder %s83, %s84
      %p93 = scmp.eq.s32.totalorder %s31, 0
      %p94 = por %p92, %p93
      %p95 = scmp.ne.s32.totalorder %s83, %s84
      %p96 = scmp.eq.s32.totalorder %s32, 1
      %p97 = por %p95, %p96
      %p99 = scmp.ne.s32.totalorder %s84, %s98
      %p100 = scmp.eq.s32.totalorder %s32, 0
      %p101 = por %p99, %p100
      %s103 = sadd.s32 %s102, 1
      %p106 = scmp.eq.s32.totalorder %s26, 1
      %p107 = scmp.ne.s32.totalorder %s102, %s104
      %p108 = scmp.eq.s32.totalorder %s26, 0
      %p109 = por %p107, %p108
      %p110 = scmp.ne.s32.totalorder %s102, %s104
      %p111 = scmp.eq.s32.totalorder %s31, 1
      %p112 = por %p110, %p111
      %p113 = scmp.ne.s32.totalorder %s104, %s105
      %p114 = scmp.eq.s32.totalorder %s31, 0
      %p115 = por %p113, %p114
      %p116 = scmp.ne.s32.totalorder %s104, %s105
      %p117 = scmp.eq.s32.totalorder %s32, 1
      %p118 = por %p116, %p117
      %p120 = scmp.ne.s32.totalorder %s105, %s119
      %p121 = scmp.eq.s32.totalorder %s32, 0
      %p122 = por %p120, %p121
      %s124 = sadd.s32 %s123, 1
      %p127 = scmp.eq.s32.totalorder %s26, 1
      %p128 = scmp.ne.s32.totalorder %s123, %s125
      %p129 = scmp.eq.s32.totalorder %s26, 0
      %p130 = por %p128, %p129
      %p131 = scmp.ne.s32.totalorder %s123, %s125
      %p132 = scmp.eq.s32.totalorder %s31, 1
      %p133 = por %p131, %p132
      %p134 = scmp.ne.s32.totalorder %s125, %s126
      %p135 = scmp.eq.s32.totalorder %s31, 0
      %p136 = por %p134, %p135
      %p137 = scmp.ne.s32.totalorder %s125, %s126
      %p138 = scmp.eq.s32.totalorder %s32, 1
      %p139 = por %p137, %p138
      %p141 = scmp.ne.s32.totalorder %s126, %s140
      %p142 = scmp.eq.s32.totalorder %s32, 0
      %p143 = por %p141, %p142
      %s145 = sadd.s32 %s144, 1
      %p148 = scmp.eq.s32.totalorder %s26, 1
      %p149 = scmp.ne.s32.totalorder %s144, %s146
      %p150 = scmp.eq.s32.totalorder %s26, 0
      %p151 = por %p149, %p150
      %p152 = scmp.ne.s32.totalorder %s144, %s146
      %p153 = scmp.eq.s32.totalorder %s31, 1
      %p154 = por %p152, %p153
      %p155 = scmp.ne.s32.totalorder %s146, %s147
      %p156 = scmp.eq.s32.totalorder %s31, 0
      %p157 = por %p155, %p156
      %p158 = scmp.ne.s32.totalorder %s146, %s147
      %p159 = scmp.eq.s32.totalorder %s32, 1
      %p160 = por %p158, %p159
      %p162 = scmp.ne.s32.totalorder %s147, %s161
      %p163 = scmp.eq.s32.totalorder %s32, 0
      %p164 = por %p162, %p163
      %s166 = sadd.s32 %s165, 1
      %p169 = scmp.eq.s32.totalorder %s26, 1
      %p170 = scmp.ne.s32.totalorder %s165, %s167
      %p171 = scmp.eq.s32.totalorder %s26, 0
      %p172 = por %p170, %p171
      %p173 = scmp.ne.s32.totalorder %s165, %s167
      %p174 = scmp.eq.s32.totalorder %s31, 1
      %p175 = por %p173, %p174
      %p176 = scmp.ne.s32.totalorder %s167, %s168
      %p177 = scmp.eq.s32.totalorder %s31, 0
      %p178 = por %p176, %p177
      %p179 = scmp.ne.s32.totalorder %s167, %s168
      %p180 = scmp.eq.s32.totalorder %s32, 1
      %p181 = por %p179, %p180
      %p183 = scmp.ne.s32.totalorder %s168, %s182
      %p184 = scmp.eq.s32.totalorder %s32, 0
      %p185 = por %p183, %p184
      %s187 = sadd.s32 %s186, 1
      %p190 = scmp.eq.s32.totalorder %s26, 1
      %p191 = scmp.ne.s32.totalorder %s186, %s188
      %p192 = scmp.eq.s32.totalorder %s26, 0
      %p193 = por %p191, %p192
      %p194 = scmp.ne.s32.totalorder %s186, %s188
      %p195 = scmp.eq.s32.totalorder %s31, 1
      %p196 = por %p194, %p195
      %p197 = scmp.ne.s32.totalorder %s188, %s189
      %p198 = scmp.eq.s32.totalorder %s31, 0
      %p199 = por %p197, %p198
      %p200 = scmp.ne.s32.totalorder %s188, %s189
      %p201 = scmp.eq.s32.totalorder %s32, 1
      %p202 = por %p200, %p201
      %p204 = scmp.ne.s32.totalorder %s189, %s203
      %p205 = scmp.eq.s32.totalorder %s32, 0
      %p206 = por %p204, %p205
      %s208 = sadd.s32 %s207, 1
      %p211 = scmp.eq.s32.totalorder %s26, 1
      %p212 = scmp.ne.s32.totalorder %s207, %s209
      %p213 = scmp.eq.s32.totalorder %s26, 0
      %p214 = por %p212, %p213
      %p215 = scmp.ne.s32.totalorder %s207, %s209
      %p216 = scmp.eq.s32.totalorder %s31, 1
      %p217 = por %p215, %p216
      %p218 = scmp.ne.s32.totalorder %s209, %s210
      %p219 = scmp.eq.s32.totalorder %s31, 0
      %p220 = por %p218, %p219
      %p221 = scmp.ne.s32.totalorder %s209, %s210
      %p222 = scmp.eq.s32.totalorder %s32, 1
      %p223 = por %p221, %p222
      %p225 = scmp.ne.s32.totalorder %s210, %s224
      %p226 = scmp.eq.s32.totalorder %s32, 0
      %p227 = por %p225, %p226
      %s229 = sadd.s32 %s228, 1
      %p232 = scmp.eq.s32.totalorder %s26, 1
      %p233 = scmp.ne.s32.totalorder %s228, %s230
      %p234 = scmp.eq.s32.totalorder %s26, 0
      %p235 = por %p233, %p234
      %p236 = scmp.ne.s32.totalorder %s228, %s230
      %p237 = scmp.eq.s32.totalorder %s31, 1
      %p238 = por %p236, %p237
      %p239 = scmp.ne.s32.totalorder %s230, %s231
      %p240 = scmp.eq.s32.totalorder %s31, 0
      %p241 = por %p239, %p240
      %p242 = scmp.ne.s32.totalorder %s230, %s231
      %p243 = scmp.eq.s32.totalorder %s32, 1
      %p244 = por %p242, %p243
      %p246 = scmp.ne.s32.totalorder %s231, %s245
      %p247 = scmp.eq.s32.totalorder %s32, 0
      %p248 = por %p246, %p247
      %s250 = sadd.s32 %s249, 1
      %p253 = scmp.eq.s32.totalorder %s26, 1
      %p254 = scmp.ne.s32.totalorder %s249, %s251
      %p255 = scmp.eq.s32.totalorder %s26, 0
      %p256 = por %p254, %p255
      %p257 = scmp.ne.s32.totalorder %s249, %s251
      %p258 = scmp.eq.s32.totalorder %s31, 1
      %p259 = por %p257, %p258
      %p260 = scmp.ne.s32.totalorder %s251, %s252
      %p261 = scmp.eq.s32.totalorder %s31, 0
      %p262 = por %p260, %p261
      %p263 = scmp.ne.s32.totalorder %s251, %s252
      %p264 = scmp.eq.s32.totalorder %s32, 1
      %p265 = por %p263, %p264
      %p267 = scmp.ne.s32.totalorder %s252, %s266
      %p268 = scmp.eq.s32.totalorder %s32, 0
      %p269 = por %p267, %p268
      %s271 = sadd.s32 %s270, 1
      %p274 = scmp.eq.s32.totalorder %s26, 1
      %p275 = scmp.ne.s32.totalorder %s270, %s272
      %p276 = scmp.eq.s32.totalorder %s26, 0
      %p277 = por %p275, %p276
      %p278 = scmp.ne.s32.totalorder %s270, %s272
      %p279 = scmp.eq.s32.totalorder %s31, 1
      %p280 = por %p278, %p279
      %p281 = scmp.ne.s32.totalorder %s272, %s273
      %p282 = scmp.eq.s32.totalorder %s31, 0
      %p283 = por %p281, %p282
      %p284 = scmp.ne.s32.totalorder %s272, %s273
      %p285 = scmp.eq.s32.totalorder %s32, 1
      %p286 = por %p284, %p285
      %p288 = scmp.ne.s32.totalorder %s273, %s287
      %p289 = scmp.eq.s32.totalorder %s32, 0
      %p290 = por %p288, %p289
      %s292 = sadd.s32 %s291, 1
      %p295 = scmp.eq.s32.totalorder %s26, 1
      %p296 = scmp.ne.s32.totalorder %s291, %s293
      %p297 = scmp.eq.s32.totalorder %s26, 0
      %p298 = por %p296, %p297
      %p299 = scmp.ne.s32.totalorder %s291, %s293
      %p300 = scmp.eq.s32.totalorder %s31, 1
      %p301 = por %p299, %p300
      %p302 = scmp.ne.s32.totalorder %s293, %s294
      %p303 = scmp.eq.s32.totalorder %s31, 0
      %p304 = por %p302, %p303
      %p305 = scmp.ne.s32.totalorder %s293, %s294
      %p306 = scmp.eq.s32.totalorder %s32, 1
      %p307 = por %p305, %p306
      %p309 = scmp.ne.s32.totalorder %s294, %s308
      %p310 = scmp.eq.s32.totalorder %s32, 0
      %p311 = por %p309, %p310
      %s313 = sadd.s32 %s312, 1
      %p316 = scmp.eq.s32.totalorder %s26, 1
      %p317 = scmp.ne.s32.totalorder %s312, %s314
      %p318 = scmp.eq.s32.totalorder %s26, 0
      %p319 = por %p317, %p318
      %p320 = scmp.ne.s32.totalorder %s312, %s314
      %p321 = scmp.eq.s32.totalorder %s31, 1
      %p322 = por %p320, %p321
      %p323 = scmp.ne.s32.totalorder %s314, %s315
      %p324 = scmp.eq.s32.totalorder %s31, 0
      %p325 = por %p323, %p324
      %p326 = scmp.ne.s32.totalorder %s314, %s315
      %p327 = scmp.eq.s32.totalorder %s32, 1
      %p328 = por %p326, %p327
      %p330 = scmp.ne.s32.totalorder %s315, %s329
      %p331 = scmp.eq.s32.totalorder %s32, 0
      %p332 = por %p330, %p331
      %s334 = sadd.s32 %s333, 1
      %p337 = scmp.eq.s32.totalorder %s26, 1
      %p338 = scmp.ne.s32.totalorder %s333, %s335
      %p339 = scmp.eq.s32.totalorder %s26, 0
      %p340 = por %p338, %p339
      %p341 = scmp.ne.s32.totalorder %s333, %s335
      %p342 = scmp.eq.s32.totalorder %s31, 1
      %p343 = por %p341, %p342
      %p344 = scmp.ne.s32.totalorder %s335, %s336
      %p345 = scmp.eq.s32.totalorder %s31, 0
      %p346 = por %p344, %p345
      %p347 = scmp.ne.s32.totalorder %s335, %s336
      %p348 = scmp.eq.s32.totalorder %s32, 1
      %p349 = por %p347, %p348
      %p351 = scmp.ne.s32.totalorder %s336, %s350
      %p352 = scmp.eq.s32.totalorder %s32, 0
      %p353 = por %p351, %p352
      %s355 = sadd.s32 %s354, 1
      %p358 = scmp.eq.s32.totalorder %s26, 1
      %p359 = scmp.ne.s32.totalorder %s354, %s356
      %p360 = scmp.eq.s32.totalorder %s26, 0
      %p361 = por %p359, %p360
      %p362 = scmp.ne.s32.totalorder %s354, %s356
      %p363 = scmp.eq.s32.totalorder %s31, 1
      %p364 = por %p362, %p363
      %p365 = scmp.ne.s32.totalorder %s356, %s357
      %p366 = scmp.eq.s32.totalorder %s31, 0
      %p367 = por %p365, %p366
      %p368 = scmp.ne.s32.totalorder %s356, %s357
      %p369 = scmp.eq.s32.totalorder %s32, 1
      %p370 = por %p368, %p369
      %p372 = scmp.ne.s32.totalorder %s357, %s371
      %p373 = scmp.eq.s32.totalorder %s32, 0
      %p374 = por %p372, %p373
      %s376 = sadd.s32 %s375, 1
      %p379 = scmp.eq.s32.totalorder %s26, 1
      %p380 = scmp.ne.s32.totalorder %s375, %s377
      %p381 = scmp.eq.s32.totalorder %s26, 0
      %p382 = por %p380, %p381
      %p383 = scmp.ne.s32.totalorder %s375, %s377
      %p384 = scmp.eq.s32.totalorder %s31, 1
      %p385 = por %p383, %p384
      %p386 = scmp.ne.s32.totalorder %s377, %s378
      %p387 = scmp.eq.s32.totalorder %s31, 0
      %p388 = por %p386, %p387
      %p389 = scmp.ne.s32.totalorder %s377, %s378
      %p390 = scmp.eq.s32.totalorder %s32, 1
      %p391 = por %p389, %p390
      %p393 = scmp.ne.s32.totalorder %s378, %s392
      %p394 = scmp.eq.s32.totalorder %s32, 0
      %p395 = por %p393, %p394
      %s396 = ssub.s32 %s26, %s33
      %p397 = scmp.eq.s32.totalorder %s396, 0
      %s399 = sadd.s32 %s398, 1
      %s400 = scalar_select %p397, %s398, %s399
      %p403 = pneg %p397
      %p404 = scmp.eq.s32.totalorder %s26, 1
      %p405 = por %p403, %p404
      %p406 = scmp.ne.s32.totalorder %s398, %s401
      %p407 = scmp.eq.s32.totalorder %s26, 0
      %p408 = por %p406, %p407
      %p409 = scmp.ne.s32.totalorder %s398, %s401
      %p410 = scmp.eq.s32.totalorder %s31, 1
      %p411 = por %p409, %p410
      %p412 = scmp.ne.s32.totalorder %s401, %s402
      %p413 = scmp.eq.s32.totalorder %s31, 0
      %p414 = por %p412, %p413
      %p415 = scmp.ne.s32.totalorder %s401, %s402
      %p416 = scmp.eq.s32.totalorder %s32, 1
      %p417 = por %p415, %p416
      %p419 = scmp.ne.s32.totalorder %s402, %s418
      %p420 = scmp.eq.s32.totalorder %s32, 0
      %p421 = por %p419, %p420
      %p422 = scmp.le.s32.totalorder 1, %s26
      %p423 = scmp.lt.s32.totalorder %s26, 3
      %p424 = pnand %p422, %p423
      %p425 = pneg %p424
      // Predicated region
      $region9: #{tpu_custom_call.1} parent=5 // pred_check
        _
      $region10: #{tpu_custom_call.1} parent=5 // pred_check_branch
        %427 = sbr.rel (%p424) target = $region12
      $region11: #{tpu_custom_call.1} parent=5 // pred_region
        %s428 = ssub.s32 %s26, 1
        // Predicated region
        $region13: #{tpu_custom_call.1} parent=11 // pred_check
          %p429 = pneg %p73
        $region14: #{tpu_custom_call.1} parent=11 // pred_check_branch
          %431 = sbr.rel (%p429) target = $region16
        $region15: #{tpu_custom_call.1} parent=11 // pred_region
          _
        $region16: #{tpu_custom_call.1} parent=11 // pred_fallthru
          _
        // Predicated region
        $region17: #{tpu_custom_call.1} parent=11 // pred_check
          %p432 = pneg %p94
        $region18: #{tpu_custom_call.1} parent=11 // pred_check_branch
          %434 = sbr.rel (%p432) target = $region20
        $region19: #{tpu_custom_call.1} parent=11 // pred_region
          _
        $region20: #{tpu_custom_call.1} parent=11 // pred_fallthru
          _
        // Predicated region
        $region21: #{tpu_custom_call.1} parent=11 // pred_check
          %p435 = pneg %p115
        $region22: #{tpu_custom_call.1} parent=11 // pred_check_branch
          %437 = sbr.rel (%p435) target = $region24
        $region23: #{tpu_custom_call.1} parent=11 // pred_region
          _
        $region24: #{tpu_custom_call.1} parent=11 // pred_fallthru
          _
        // Predicated region
        $region25: #{tpu_custom_call.1} parent=11 // pred_check
          %p438 = pneg %p136
        $region26: #{tpu_custom_call.1} parent=11 // pred_check_branch
          %440 = sbr.rel (%p438) target = $region28
        $region27: #{tpu_custom_call.1} parent=11 // pred_region
          _
        $region28: #{tpu_custom_call.1} parent=11 // pred_fallthru
          _
        // Predicated region
        $region29: #{tpu_custom_call.1} parent=11 // pred_check
          %p441 = pneg %p157
        $region30: #{tpu_custom_call.1} parent=11 // pred_check_branch
          %443 = sbr.rel (%p441) target = $region32
        $region31: #{tpu_custom_call.1} parent=11 // pred_region
          _
        $region32: #{tpu_custom_call.1} parent=11 // pred_fallthru
          _
        // Predicated region
        $region33: #{tpu_custom_call.1} parent=11 // pred_check
          %p444 = pneg %p178
        $region34: #{tpu_custom_call.1} parent=11 // pred_check_branch
          %446 = sbr.rel (%p444) target = $region36
        $region35: #{tpu_custom_call.1} parent=11 // pred_region
          _
        $region36: #{tpu_custom_call.1} parent=11 // pred_fallthru
          _
        // Predicated region
        $region37: #{tpu_custom_call.1} parent=11 // pred_check
          %p447 = pneg %p199
        $region38: #{tpu_custom_call.1} parent=11 // pred_check_branch
          %449 = sbr.rel (%p447) target = $region40
        $region39: #{tpu_custom_call.1} parent=11 // pred_region
          _
        $region40: #{tpu_custom_call.1} parent=11 // pred_fallthru
          _
        // Predicated region
        $region41: #{tpu_custom_call.1} parent=11 // pred_check
          %p450 = pneg %p220
        $region42: #{tpu_custom_call.1} parent=11 // pred_check_branch
          %452 = sbr.rel (%p450) target = $region44
        $region43: #{tpu_custom_call.1} parent=11 // pred_region
          _
        $region44: #{tpu_custom_call.1} parent=11 // pred_fallthru
          _
        // Predicated region
        $region45: #{tpu_custom_call.1} parent=11 // pred_check
          %p453 = pneg %p241
        $region46: #{tpu_custom_call.1} parent=11 // pred_check_branch
          %455 = sbr.rel (%p453) target = $region48
        $region47: #{tpu_custom_call.1} parent=11 // pred_region
          _
        $region48: #{tpu_custom_call.1} parent=11 // pred_fallthru
          _
        // Predicated region
        $region49: #{tpu_custom_call.1} parent=11 // pred_check
          %p456 = pneg %p262
        $region50: #{tpu_custom_call.1} parent=11 // pred_check_branch
          %458 = sbr.rel (%p456) target = $region52
        $region51: #{tpu_custom_call.1} parent=11 // pred_region
          _
        $region52: #{tpu_custom_call.1} parent=11 // pred_fallthru
          _
        // Predicated region
        $region53: #{tpu_custom_call.1} parent=11 // pred_check
          %p459 = pneg %p283
        $region54: #{tpu_custom_call.1} parent=11 // pred_check_branch
          %461 = sbr.rel (%p459) target = $region56
        $region55: #{tpu_custom_call.1} parent=11 // pred_region
          _
        $region56: #{tpu_custom_call.1} parent=11 // pred_fallthru
          _
        // Predicated region
        $region57: #{tpu_custom_call.1} parent=11 // pred_check
          %p462 = pneg %p304
        $region58: #{tpu_custom_call.1} parent=11 // pred_check_branch
          %464 = sbr.rel (%p462) target = $region60
        $region59: #{tpu_custom_call.1} parent=11 // pred_region
          _
        $region60: #{tpu_custom_call.1} parent=11 // pred_fallthru
          _
        // Predicated region
        $region61: #{tpu_custom_call.1} parent=11 // pred_check
          %p465 = pneg %p325
        $region62: #{tpu_custom_call.1} parent=11 // pred_check_branch
          %467 = sbr.rel (%p465) target = $region64
        $region63: #{tpu_custom_call.1} parent=11 // pred_region
          _
        $region64: #{tpu_custom_call.1} parent=11 // pred_fallthru
          _
        // Predicated region
        $region65: #{tpu_custom_call.1} parent=11 // pred_check
          %p468 = pneg %p346
        $region66: #{tpu_custom_call.1} parent=11 // pred_check_branch
          %470 = sbr.rel (%p468) target = $region68
        $region67: #{tpu_custom_call.1} parent=11 // pred_region
          _
        $region68: #{tpu_custom_call.1} parent=11 // pred_fallthru
          _
        // Predicated region
        $region69: #{tpu_custom_call.1} parent=11 // pred_check
          %p471 = pneg %p367
        $region70: #{tpu_custom_call.1} parent=11 // pred_check_branch
          %473 = sbr.rel (%p471) target = $region72
        $region71: #{tpu_custom_call.1} parent=11 // pred_region
          _
        $region72: #{tpu_custom_call.1} parent=11 // pred_fallthru
          _
        // Predicated region
        $region73: #{tpu_custom_call.1} parent=11 // pred_check
          %p474 = pneg %p388
        $region74: #{tpu_custom_call.1} parent=11 // pred_check_branch
          %476 = sbr.rel (%p474) target = $region76
        $region75: #{tpu_custom_call.1} parent=11 // pred_region
          _
        $region76: #{tpu_custom_call.1} parent=11 // pred_fallthru
          _
      $region12: #{tpu_custom_call.1} parent=5 // pred_fallthru
        _
      %p477 = scmp.lt.s32.totalorder %s26, 2
      // Predicated region
      $region77: #{tpu_custom_call.1} parent=5 // pred_check
        %p478 = pneg %p477
      $region78: #{tpu_custom_call.1} parent=5 // pred_check_branch
        %480 = sbr.rel (%p478) target = $region80
      $region79: #{tpu_custom_call.1} parent=5 // pred_region
        // Predicated region
        $region81: #{tpu_custom_call.1} parent=79 // pred_check
          %p481 = pneg %p46
        $region82: #{tpu_custom_call.1} parent=79 // pred_check_branch
          %483 = sbr.rel (%p481) target = $region84
        $region83: #{tpu_custom_call.1} parent=79 // pred_region
          %p484 = scmp.lt.s32.totalorder %s26, 1
          %s485 = scalar_select %p484, %s26, 1
          %s486 = smul.addr %s485, 32
          %s487 = smul.addr %s486, 4
          %s488 = scalar_lea.vmem %s0, %s487
        $region84: #{tpu_custom_call.1} parent=79 // pred_fallthru
          _
      $region80: #{tpu_custom_call.1} parent=5 // pred_fallthru
        _
      %p489 = scmp.le.s32.totalorder 1, %s26
      %p490 = scmp.lt.s32.totalorder %s26, 3
      %p491 = pnand %p489, %p490
      %p492 = pneg %p491
      // Predicated region
      $region85: #{tpu_custom_call.1} parent=5 // pred_check
        _
      $region86: #{tpu_custom_call.1} parent=5 // pred_check_branch
        %494 = sbr.rel (%p491) target = $region88
      $region87: #{tpu_custom_call.1} parent=5 // pred_region
        %s495 = ssub.s32 %s26, 1
        %p496 = scmp.lt.s32.totalorder %s31, 1
        %s497 = scalar_select %p496, %s31, 1
        %s498 = smul.addr %s497, 32
        %s499 = smul.addr %s498, 4
        %s500 = scalar_lea.vmem %s0, %s499
        %p501 = pneg %p52
        %p502 = pneg %p49
        %p503 = pneg %p73
        %p504 = pneg %p70
        %p505 = pneg %p94
        %p506 = pneg %p91
        %p507 = pneg %p115
        %p508 = pneg %p112
        %p509 = pneg %p136
        %p510 = pneg %p133
        %p511 = pneg %p157
        %p512 = pneg %p154
        %p513 = pneg %p178
        %p514 = pneg %p175
        %p515 = pneg %p199
        %p516 = pneg %p196
        %p517 = pneg %p220
        %p518 = pneg %p217
        %p519 = pneg %p241
        %p520 = pneg %p238
        %p521 = pneg %p262
        %p522 = pneg %p259
        %p523 = pneg %p283
        %p524 = pneg %p280
        %p525 = pneg %p304
        %p526 = pneg %p301
        %p527 = pneg %p325
        %p528 = pneg %p322
        %p529 = pneg %p346
        %p530 = pneg %p343
        %p531 = pneg %p367
        %p532 = pneg %p364
        %p533 = pneg %p388
        %p534 = pneg %p385
        %p535 = pneg %p414
        %p536 = pneg %p411
        %s537 = sand.u32 %s401, 1
        %s538 = scalar_lea.sflag [#allocation9], %s537
        %s539 = sand.u32 %s401, 1
        %s540 = smul.addr %s539, 16
        %s541 = scalar_lea.vmem [#allocation8], %s540
        %p542 = scmp.lt.s32.totalorder %s31, 1
        %s543 = scalar_select %p542, %s31, 1
        %s544 = smul.addr %s543, 32
        %s545 = smul.addr %s544, 4
        %s546 = scalar_lea.vmem %s0, %s545
        %v548 = vld [vmem:[%s546] sm:$0xf]
        %v549 = vld [vmem:[%s546 + $0x4] sm:$0xf]
        %v550 = vld [vmem:[%s546 + $0x8] sm:$0xf]
        %v551 = vld [vmem:[%s546 + $0xc] sm:$0xf]
        %v552 = vld [vmem:[%s546 + $0x10] sm:$0xf]
        %v553 = vld [vmem:[%s546 + $0x14] sm:$0xf]
        %v554 = vld [vmem:[%s546 + $0x18] sm:$0xf]
        %v555 = vld [vmem:[%s546 + $0x1c] sm:$0xf]
        %v556 = vld [vmem:[%s546 + $0x20] sm:$0xf]
        %v557 = vld [vmem:[%s546 + $0x24] sm:$0xf]
        %v558 = vld [vmem:[%s546 + $0x28] sm:$0xf]
        %v559 = vld [vmem:[%s546 + $0x2c] sm:$0xf]
        %v560 = vld [vmem:[%s546 + $0x30] sm:$0xf]
        %v561 = vld [vmem:[%s546 + $0x34] sm:$0xf]
        %v562 = vld [vmem:[%s546 + $0x38] sm:$0xf]
        %v563 = vld [vmem:[%s546 + $0x3c] sm:$0xf]
        %v564 = vld [vmem:[%s546 + $0x40] sm:$0xf]
        %v565 = vld [vmem:[%s546 + $0x44] sm:$0xf]
        %v566 = vld [vmem:[%s546 + $0x48] sm:$0xf]
        %v567 = vld [vmem:[%s546 + $0x4c] sm:$0xf]
        %v568 = vld [vmem:[%s546 + $0x50] sm:$0xf]
        %v569 = vld [vmem:[%s546 + $0x54] sm:$0xf]
        %v570 = vld [vmem:[%s546 + $0x58] sm:$0xf]
        %v571 = vld [vmem:[%s546 + $0x5c] sm:$0xf]
        %v572 = vld [vmem:[%s546 + $0x60] sm:$0xf]
        %v573 = vld [vmem:[%s546 + $0x64] sm:$0xf]
        %v574 = vld [vmem:[%s546 + $0x68] sm:$0xf]
        %v575 = vld [vmem:[%s546 + $0x6c] sm:$0xf]
        %v576 = vld [vmem:[%s546 + $0x70] sm:$0xf]
        %v577 = vld [vmem:[%s546 + $0x74] sm:$0xf]
        %v578 = vld [vmem:[%s546 + $0x78] sm:$0xf]
        %v579 = vld [vmem:[%s546 + $0x7c] sm:$0xf]
        %v580 = vld [vmem:[%s1] sm:$0xf]
        %v581 = vld [vmem:[%s1 + $0x4] sm:$0xf]
        %v582 = vld [vmem:[%s1 + $0x8] sm:$0xf]
        %v583 = vld [vmem:[%s1 + $0xc] sm:$0x3]
        %v584 = vld [vmem:[%s2] sm:$0x1]
        %v586 = vlaneseq
        %v587 = vshrl.u32 %v586, 7
        %v588 = vsub.s32 0, %v587
        %v589 = vrot.slane %v584, %v588
        %v623 = vunpack.c.l.b16 %v548
        %v624 = vunpack.c.l.b16 %v549
        %v625 = vunpack.c.l.b16 %v550
        %v626 = vunpack.c.l.b16 %v551
        %v627 = vunpack.c.l.b16 %v552
        %v628 = vunpack.c.l.b16 %v553
        %v629 = vunpack.c.l.b16 %v554
        %v630 = vunpack.c.l.b16 %v555
        %v631 = vunpack.c.l.b16 %v556
        %v632 = vunpack.c.l.b16 %v557
        %v633 = vunpack.c.l.b16 %v558
        %v634 = vunpack.c.l.b16 %v559
        %v635 = vunpack.c.l.b16 %v560
        %v636 = vunpack.c.l.b16 %v561
        %v637 = vunpack.c.l.b16 %v562
        %v638 = vunpack.c.l.b16 %v563
        %v639 = vunpack.c.l.b16 %v564
        %v640 = vunpack.c.l.b16 %v565
        %v641 = vunpack.c.l.b16 %v566
        %v642 = vunpack.c.l.b16 %v567
        %v643 = vunpack.c.l.b16 %v568
        %v644 = vunpack.c.l.b16 %v569
        %v645 = vunpack.c.l.b16 %v570
        %v646 = vunpack.c.l.b16 %v571
        %v647 = vunpack.c.l.b16 %v572
        %v648 = vunpack.c.l.b16 %v573
        %v649 = vunpack.c.l.b16 %v574
        %v650 = vunpack.c.l.b16 %v575
        %v651 = vunpack.c.l.b16 %v576
        %v652 = vunpack.c.l.b16 %v577
        %v653 = vunpack.c.l.b16 %v578
        %v654 = vunpack.c.l.b16 %v579
        %v655 = vpack.c.b16 %v624, %v623
        %v656 = vpack.c.b16 %v626, %v625
        %v657 = vpack.c.b16 %v628, %v627
        %v658 = vpack.c.b16 %v630, %v629
        %v659 = vpack.c.b16 %v632, %v631
        %v660 = vpack.c.b16 %v634, %v633
        %v661 = vpack.c.b16 %v636, %v635
        %v662 = vpack.c.b16 %v638, %v637
        %v663 = vpack.c.b16 %v640, %v639
        %v664 = vpack.c.b16 %v642, %v641
        %v665 = vpack.c.b16 %v644, %v643
        %v666 = vpack.c.b16 %v646, %v645
        %v667 = vpack.c.b16 %v648, %v647
        %v668 = vpack.c.b16 %v650, %v649
        %v669 = vpack.c.b16 %v652, %v651
        %v670 = vpack.c.b16 %v654, %v653
        %v675 = vunpack.c.l.b16 %v580
        %v676 = vunpack.c.l.b16 %v581
        %v677 = vunpack.c.l.b16 %v582
        %v678 = vunpack.c.l.b16 %v583
        %v679 = vpack.c.b16 %v676, %v675
        %v680 = vpack.c.b16 %v678, %v677
        %vm682 = vcmask 220160
        %v684 = vsel %vm682, %v655, 0
        %v687 = vsel %vm682, %v656, 0
        %v690 = vsel %vm682, %v657, 0
        %v693 = vsel %vm682, %v658, 0
        %v696 = vsel %vm682, %v659, 0
        %v699 = vsel %vm682, %v660, 0
        %v702 = vsel %vm682, %v661, 0
        %v705 = vsel %vm682, %v662, 0
        %v708 = vsel %vm682, %v663, 0
        %v711 = vsel %vm682, %v664, 0
        %v714 = vsel %vm682, %v665, 0
        %v717 = vsel %vm682, %v666, 0
        %v720 = vsel %vm682, %v667, 0
        %v723 = vsel %vm682, %v668, 0
        %v726 = vsel %vm682, %v669, 0
        %v729 = vsel %vm682, %v670, 0
        %vm731 = vcmask 1044480
        %vm732 = vcmask 1045504
        %v733 = vsel %vm731, 4294967295, 65535
        %v734 = vsel %vm732, %v733, 0
        %v736 = vand.u32 %v680, %v734
        %738 = vmatprep.subr.bf16.mxu0 0
        %739 = vmatpush1.bf16.msra.mxu0 %v679
        %740 = vmatprep.subr.bf16.mxu0 0
        %741 = vmatpush1.bf16.msra.mxu0 %v736
        %742 = vmatprep.subr.bf16.mxu0 0
        %743 = vmatpush1.bf16.msra.mxu0 0
        %744 = vmatprep.subr.bf16.mxu0 0
        %745 = vmatpush1.bf16.msra.mxu0 0
        %746 = vmatprep.subr.bf16.mxu0 0
        %747 = vmatpush1.bf16.msra.mxu0 0
        %748 = vmatprep.subr.bf16.mxu0 0
        %749 = vmatpush1.bf16.msra.mxu0 0
        %750 = vmatprep.subr.bf16.mxu0 0
        %751 = vmatpush1.bf16.msra.mxu0 0
        %752 = vmatprep.subr.bf16.mxu0 0
        %753 = vmatpush1.bf16.msra.mxu0 0
        %754 = vmatprep.subr.bf16.mxu0 0
        %755 = vmatpush1.bf16.msra.mxu0 0
        %756 = vmatprep.subr.bf16.mxu0 0
        %757 = vmatpush1.bf16.msra.mxu0 0
        %758 = vmatprep.subr.bf16.mxu0 0
        %759 = vmatpush1.bf16.msra.mxu0 0
        %760 = vmatprep.subr.bf16.mxu0 0
        %761 = vmatpush1.bf16.msra.mxu0 0
        %762 = vmatprep.subr.bf16.mxu0 0
        %763 = vmatpush1.bf16.msra.mxu0 0
        %764 = vmatprep.subr.bf16.mxu0 0
        %765 = vmatpush1.bf16.msra.mxu0 0
        %766 = vmatprep.subr.bf16.mxu0 0
        %767 = vmatpush1.bf16.msra.mxu0 0
        %768 = vmatprep.subr.bf16.mxu0 0
        %769 = vmatpush1.bf16.msra.mxu0 0
        %770 = vmatprep.mubr.bf16.mxu0 0
        %771 = vmatmul.mubr.bf16.gmra.mrb[0].mxu0 %v684
        %v772 = vpop.f32.mrb[0].mxu0
        %v773 = vadd.f32 %v589, %v772
        %v774 = vpop.f32.mrb[0].mxu0
        %v775 = vpop.f32.mrb[0].mxu0
        %v776 = vadd.f32 %v589, %v775
        %v777 = vpop.f32.mrb[0].mxu0
        %778 = vmatprep.mubr.bf16.mxu0 0
        %779 = vmatmul.mubr.bf16.gmra.mrb[0].mxu0 %v687
        %v780 = vpop.f32.mrb[0].mxu0
        %v781 = vadd.f32 %v589, %v780
        %v782 = vpop.f32.mrb[0].mxu0
        %v783 = vpop.f32.mrb[0].mxu0
        %v784 = vadd.f32 %v589, %v783
        %v785 = vpop.f32.mrb[0].mxu0
        %786 = vmatprep.mubr.bf16.mxu0 0
        %787 = vmatmul.mubr.bf16.gmra.mrb[0].mxu0 %v690
        %v788 = vpop.f32.mrb[0].mxu0
        %v789 = vadd.f32 %v589, %v788
        %v790 = vpop.f32.mrb[0].mxu0
        %v791 = vpop.f32.mrb[0].mxu0
        %v792 = vadd.f32 %v589, %v791
        %v793 = vpop.f32.mrb[0].mxu0
        %794 = vmatprep.mubr.bf16.mxu0 0
        %795 = vmatmul.mubr.bf16.gmra.mrb[0].mxu0 %v693
        %v796 = vpop.f32.mrb[0].mxu0
        %v797 = vadd.f32 %v589, %v796
        %v798 = vpop.f32.mrb[0].mxu0
        %v799 = vpop.f32.mrb[0].mxu0
        %v800 = vadd.f32 %v589, %v799
        %v801 = vpop.f32.mrb[0].mxu0
        %802 = vmatprep.mubr.bf16.mxu0 0
        %803 = vmatmul.mubr.bf16.gmra.mrb[0].mxu0 %v696
        %v804 = vpop.f32.mrb[0].mxu0
        %v805 = vadd.f32 %v589, %v804
        %v806 = vpop.f32.mrb[0].mxu0
        %v807 = vpop.f32.mrb[0].mxu0
        %v808 = vadd.f32 %v589, %v807
        %v809 = vpop.f32.mrb[0].mxu0
        %810 = vmatprep.mubr.bf16.mxu0 0
        %811 = vmatmul.mubr.bf16.gmra.mrb[0].mxu0 %v699
        %v812 = vpop.f32.mrb[0].mxu0
        %v813 = vadd.f32 %v589, %v812
        %v814 = vpop.f32.mrb[0].mxu0
        %v815 = vpop.f32.mrb[0].mxu0
        %v816 = vadd.f32 %v589, %v815
        %v817 = vpop.f32.mrb[0].mxu0
        %818 = vmatprep.mubr.bf16.mxu0 0
        %819 = vmatmul.mubr.bf16.gmra.mrb[0].mxu0 %v702
        %v820 = vpop.f32.mrb[0].mxu0
        %v821 = vadd.f32 %v589, %v820
        %v822 = vpop.f32.mrb[0].mxu0
        %v823 = vpop.f32.mrb[0].mxu0
        %v824 = vadd.f32 %v589, %v823
        %v825 = vpop.f32.mrb[0].mxu0
        %826 = vmatprep.mubr.bf16.mxu0 0
        %827 = vmatmul.mubr.bf16.gmra.mrb[0].mxu0 %v705
        %v828 = vpop.f32.mrb[0].mxu0
        %v829 = vadd.f32 %v589, %v828
        %v830 = vpop.f32.mrb[0].mxu0
        %v831 = vpop.f32.mrb[0].mxu0
        %v832 = vadd.f32 %v589, %v831
        %v833 = vpop.f32.mrb[0].mxu0
        %834 = vmatprep.mubr.bf16.mxu0 0
        %835 = vmatmul.mubr.bf16.gmra.mrb[0].mxu0 %v708
        %v836 = vpop.f32.mrb[0].mxu0
        %v837 = vadd.f32 %v589, %v836
        %v838 = vpop.f32.mrb[0].mxu0
        %v839 = vpop.f32.mrb[0].mxu0
        %v840 = vadd.f32 %v589, %v839
        %v841 = vpop.f32.mrb[0].mxu0
        %842 = vmatprep.mubr.bf16.mxu0 0
        %843 = vmatmul.mubr.bf16.gmra.mrb[0].mxu0 %v711
        %v844 = vpop.f32.mrb[0].mxu0
        %v845 = vadd.f32 %v589, %v844
        %v846 = vpop.f32.mrb[0].mxu0
        %v847 = vpop.f32.mrb[0].mxu0
        %v848 = vadd.f32 %v589, %v847
        %v849 = vpop.f32.mrb[0].mxu0
        %850 = vmatprep.mubr.bf16.mxu0 0
        %851 = vmatmul.mubr.bf16.gmra.mrb[0].mxu0 %v714
        %v852 = vpop.f32.mrb[0].mxu0
        %v853 = vadd.f32 %v589, %v852
        %v854 = vpop.f32.mrb[0].mxu0
        %v855 = vpop.f32.mrb[0].mxu0
        %v856 = vadd.f32 %v589, %v855
        %v857 = vpop.f32.mrb[0].mxu0
        %858 = vmatprep.mubr.bf16.mxu0 0
        %859 = vmatmul.mubr.bf16.gmra.mrb[0].mxu0 %v717
        %v860 = vpop.f32.mrb[0].mxu0
        %v861 = vadd.f32 %v589, %v860
        %v862 = vpop.f32.mrb[0].mxu0
        %v863 = vpop.f32.mrb[0].mxu0
        %v864 = vadd.f32 %v589, %v863
        %v865 = vpop.f32.mrb[0].mxu0
        %866 = vmatprep.mubr.bf16.mxu0 0
        %867 = vmatmul.mubr.bf16.gmra.mrb[0].mxu0 %v720
        %v868 = vpop.f32.mrb[0].mxu0
        %v869 = vadd.f32 %v589, %v868
        %v870 = vpop.f32.mrb[0].mxu0
        %v871 = vpop.f32.mrb[0].mxu0
        %v872 = vadd.f32 %v589, %v871
        %v873 = vpop.f32.mrb[0].mxu0
        %874 = vmatprep.mubr.bf16.mxu0 0
        %875 = vmatmul.mubr.bf16.gmra.mrb[0].mxu0 %v723
        %v876 = vpop.f32.mrb[0].mxu0
        %v877 = vadd.f32 %v589, %v876
        %v878 = vpop.f32.mrb[0].mxu0
        %v879 = vpop.f32.mrb[0].mxu0
        %v880 = vadd.f32 %v589, %v879
        %v881 = vpop.f32.mrb[0].mxu0
        %882 = vmatprep.mubr.bf16.mxu0 0
        %883 = vmatmul.mubr.bf16.gmra.mrb[0].mxu0 %v726
        %v884 = vpop.f32.mrb[0].mxu0
        %v885 = vadd.f32 %v589, %v884
        %v886 = vpop.f32.mrb[0].mxu0
        %v887 = vpop.f32.mrb[0].mxu0
        %v888 = vadd.f32 %v589, %v887
        %v889 = vpop.f32.mrb[0].mxu0
        %890 = vmatprep.mubr.bf16.mxu0 0
        %891 = vmatmul.mubr.bf16.gmra.mrb[0].mxu0 %v729
        %v892 = vpop.f32.mrb[0].mxu0
        %v893 = vadd.f32 %v589, %v892
        %v894 = vpop.f32.mrb[0].mxu0
        %v895 = vpop.f32.mrb[0].mxu0
        %v896 = vadd.f32 %v589, %v895
        %v897 = vpop.f32.mrb[0].mxu0
        %898 = vdwg.mxu0
        %v899 = vmax.f32 %v773, 0.0
        %v900 = vmax.f32 %v776, 0.0
        %v901 = vmax.f32 %v781, 0.0
        %v902 = vmax.f32 %v784, 0.0
        %v903 = vmax.f32 %v789, 0.0
        %v904 = vmax.f32 %v792, 0.0
        %v905 = vmax.f32 %v797, 0.0
        %v906 = vmax.f32 %v800, 0.0
        %v907 = vmax.f32 %v805, 0.0
        %v908 = vmax.f32 %v808, 0.0
        %v909 = vmax.f32 %v813, 0.0
        %v910 = vmax.f32 %v816, 0.0
        %v911 = vmax.f32 %v821, 0.0
        %v912 = vmax.f32 %v824, 0.0
        %v913 = vmax.f32 %v829, 0.0
        %v914 = vmax.f32 %v832, 0.0
        %v915 = vmax.f32 %v837, 0.0
        %v916 = vmax.f32 %v840, 0.0
        %v917 = vmax.f32 %v845, 0.0
        %v918 = vmax.f32 %v848, 0.0
        %v919 = vmax.f32 %v853, 0.0
        %v920 = vmax.f32 %v856, 0.0
        %v921 = vmax.f32 %v861, 0.0
        %v922 = vmax.f32 %v864, 0.0
        %v923 = vmax.f32 %v869, 0.0
        %v924 = vmax.f32 %v872, 0.0
        %v925 = vmax.f32 %v877, 0.0
        %v926 = vmax.f32 %v880, 0.0
        %v927 = vmax.f32 %v885, 0.0
        %v928 = vmax.f32 %v888, 0.0
        %v929 = vmax.f32 %v893, 0.0
        %v930 = vmax.f32 %v896, 0.0
        %v931 = vpack.c.bf16 %v900, %v899
        %v932 = vpack.c.bf16 %v902, %v901
        %v933 = vpack.c.bf16 %v904, %v903
        %v934 = vpack.c.bf16 %v906, %v905
        %v935 = vpack.c.bf16 %v908, %v907
        %v936 = vpack.c.bf16 %v910, %v909
        %v937 = vpack.c.bf16 %v912, %v911
        %v938 = vpack.c.bf16 %v914, %v913
        %v939 = vpack.c.bf16 %v916, %v915
        %v940 = vpack.c.bf16 %v918, %v917
        %v941 = vpack.c.bf16 %v920, %v919
        %v942 = vpack.c.bf16 %v922, %v921
        %v943 = vpack.c.bf16 %v924, %v923
        %v944 = vpack.c.bf16 %v926, %v925
        %v945 = vpack.c.bf16 %v928, %v927
        %v946 = vpack.c.bf16 %v930, %v929
        %v963 = vrot.slane %v931, 4
        %v964 = vrot.slane %v932, 4
        %v965 = vrot.slane %v933, 4
        %v966 = vrot.slane %v934, 4
        %v967 = vrot.slane %v935, 4
        %v968 = vrot.slane %v936, 4
        %v969 = vrot.slane %v937, 4
        %v970 = vrot.slane %v938, 4
        %v971 = vrot.slane %v939, 4
        %v972 = vrot.slane %v940, 4
        %v973 = vrot.slane %v941, 4
        %v974 = vrot.slane %v942, 4
        %v975 = vrot.slane %v943, 4
        %v976 = vrot.slane %v944, 4
        %v977 = vrot.slane %v945, 4
        %v978 = vrot.slane %v946, 4
        %vm979 = vcmask 1043456
        %v982 = vsel %vm979, 0, %v963
        %v985 = vsel %vm979, 0, %v964
        %v988 = vsel %vm979, 0, %v965
        %v991 = vsel %vm979, 0, %v966
        %v994 = vsel %vm979, 0, %v967
        %v997 = vsel %vm979, 0, %v968
        %v1000 = vsel %vm979, 0, %v969
        %v1003 = vsel %vm979, 0, %v970
        %v1006 = vsel %vm979, 0, %v971
        %v1009 = vsel %vm979, 0, %v972
        %v1012 = vsel %vm979, 0, %v973
        %v1015 = vsel %vm979, 0, %v974
        %v1018 = vsel %vm979, 0, %v975
        %v1021 = vsel %vm979, 0, %v976
        %v1024 = vsel %vm979, 0, %v977
        %v1027 = vsel %vm979, 0, %v978
        %v1029 = vsel %vm979, %v963, 0
        %v1031 = vsel %vm979, %v964, 0
        %v1033 = vsel %vm979, %v965, 0
        %v1035 = vsel %vm979, %v966, 0
        %v1037 = vsel %vm979, %v967, 0
        %v1039 = vsel %vm979, %v968, 0
        %v1041 = vsel %vm979, %v969, 0
        %v1043 = vsel %vm979, %v970, 0
        %v1045 = vsel %vm979, %v971, 0
        %v1047 = vsel %vm979, %v972, 0
        %v1049 = vsel %vm979, %v973, 0
        %v1051 = vsel %vm979, %v974, 0
        %v1053 = vsel %vm979, %v975, 0
        %v1055 = vsel %vm979, %v976, 0
        %v1057 = vsel %vm979, %v977, 0
        %v1059 = vsel %vm979, %v978, 0
        %vm1061 = vcmask 64512
        %1062 = vst.msk [vmem:[#allocation2] sm:$0xff] %vm1061, 0
        %1063 = vst.msk [vmem:[#allocation2 + $0x8] sm:$0xff] %vm1061, 0
        %1064 = vst.msk [vmem:[#allocation2 + $0x10] sm:$0xff] %vm1061, %v982
        %1065 = vst.msk [vmem:[#allocation2 + $0x18] sm:$0xff] %vm1061, %v1029
        %1066 = vst.msk [vmem:[#allocation2 + $0x20] sm:$0xff] %vm1061, %v985
        %1067 = vst.msk [vmem:[#allocation2 + $0x28] sm:$0xff] %vm1061, %v1031
        %1068 = vst.msk [vmem:[#allocation2 + $0x30] sm:$0xff] %vm1061, %v988
        %1069 = vst.msk [vmem:[#allocation2 + $0x38] sm:$0xff] %vm1061, %v1033
        %1070 = vst.msk [vmem:[#allocation2 + $0x40] sm:$0xff] %vm1061, %v991
        %1071 = vst.msk [vmem:[#allocation2 + $0x48] sm:$0xff] %vm1061, %v1035
        %1072 = vst.msk [vmem:[#allocation2 + $0x50] sm:$0xff] %vm1061, %v994
        %1073 = vst.msk [vmem:[#allocation2 + $0x58] sm:$0xff] %vm1061, %v1037
        %1074 = vst.msk [vmem:[#allocation2 + $0x60] sm:$0xff] %vm1061, %v997
        %1075 = vst.msk [vmem:[#allocation2 + $0x68] sm:$0xff] %vm1061, %v1039
        %1076 = vst.msk [vmem:[#allocation2 + $0x70] sm:$0xff] %vm1061, %v1000
        %1077 = vst.msk [vmem:[#allocation2 + $0x78] sm:$0xff] %vm1061, %v1041
        %1078 = vst.msk [vmem:[#allocation2 + $0x80] sm:$0xff] %vm1061, %v1003
        %1079 = vst.msk [vmem:[#allocation2 + $0x88] sm:$0xff] %vm1061, %v1043
        %1080 = vst.msk [vmem:[#allocation2 + $0x90] sm:$0xff] %vm1061, %v1006
        %1081 = vst.msk [vmem:[#allocation2 + $0x98] sm:$0xff] %vm1061, %v1045
        %1082 = vst.msk [vmem:[#allocation2 + $0xa0] sm:$0xff] %vm1061, %v1009
        %1083 = vst.msk [vmem:[#allocation2 + $0xa8] sm:$0xff] %vm1061, %v1047
        %1084 = vst.msk [vmem:[#allocation2 + $0xb0] sm:$0xff] %vm1061, %v1012
        %1085 = vst.msk [vmem:[#allocation2 + $0xb8] sm:$0xff] %vm1061, %v1049
        %1086 = vst.msk [vmem:[#allocation2 + $0xc0] sm:$0xff] %vm1061, %v1015
        %1087 = vst.msk [vmem:[#allocation2 + $0xc8] sm:$0xff] %vm1061, %v1051
        %1088 = vst.msk [vmem:[#allocation2 + $0xd0] sm:$0xff] %vm1061, %v1018
        %1089 = vst.msk [vmem:[#allocation2 + $0xd8] sm:$0xff] %vm1061, %v1053
        %1090 = vst.msk [vmem:[#allocation2 + $0xe0] sm:$0xff] %vm1061, %v1021
        %1091 = vst.msk [vmem:[#allocation2 + $0xe8] sm:$0xff] %vm1061, %v1055
        %1092 = vst.msk [vmem:[#allocation2 + $0xf0] sm:$0xff] %vm1061, %v1024
        %1093 = vst.msk [vmem:[#allocation2 + $0xf8] sm:$0xff] %vm1061, %v1057
        %1094 = vst.msk [vmem:[#allocation2 + $0x100] sm:$0xff] %vm1061, %v1027
        %1095 = vst.msk [vmem:[#allocation2 + $0x108] sm:$0xff] %vm1061, %v1059
        %1096 = vst.msk [vmem:[#allocation2 + $0x110] sm:$0xff] %vm1061, 0
        %1097 = vst.msk [vmem:[#allocation2 + $0x118] sm:$0xff] %vm1061, 0
        %v1098 = vld [vmem:[#allocation2] sm:$0xff]
        %v1099 = vld [vmem:[#allocation2 + $0x8] sm:$0xff]
        %v1100 = vld [vmem:[#allocation2 + $0x10] sm:$0xff]
        %v1101 = vld [vmem:[#allocation2 + $0x18] sm:$0xff]
        %v1102 = vld [vmem:[#allocation2 + $0x20] sm:$0xff]
        %v1103 = vld [vmem:[#allocation2 + $0x28] sm:$0xff]
        %v1104 = vld [vmem:[#allocation2 + $0x30] sm:$0xff]
        %v1105 = vld [vmem:[#allocation2 + $0x38] sm:$0xff]
        %v1106 = vld [vmem:[#allocation2 + $0x40] sm:$0xff]
        %v1107 = vld [vmem:[#allocation2 + $0x48] sm:$0xff]
        %v1108 = vld [vmem:[#allocation2 + $0x50] sm:$0xff]
        %v1109 = vld [vmem:[#allocation2 + $0x58] sm:$0xff]
        %v1110 = vld [vmem:[#allocation2 + $0x60] sm:$0xff]
        %v1111 = vld [vmem:[#allocation2 + $0x68] sm:$0xff]
        %v1112 = vld [vmem:[#allocation2 + $0x70] sm:$0xff]
        %v1113 = vld [vmem:[#allocation2 + $0x78] sm:$0xff]
        %v1114 = vld [vmem:[#allocation2 + $0x80] sm:$0xff]
        %v1115 = vld [vmem:[#allocation2 + $0x88] sm:$0xff]
        %v1116 = vld [vmem:[#allocation2 + $0x90] sm:$0xff]
        %v1117 = vld [vmem:[#allocation2 + $0x98] sm:$0xff]
        %v1118 = vld [vmem:[#allocation2 + $0xa0] sm:$0xff]
        %v1119 = vld [vmem:[#allocation2 + $0xa8] sm:$0xff]
        %v1120 = vld [vmem:[#allocation2 + $0xb0] sm:$0xff]
        %v1121 = vld [vmem:[#allocation2 + $0xb8] sm:$0xff]
        %v1122 = vld [vmem:[#allocation2 + $0xc0] sm:$0xff]
        %v1123 = vld [vmem:[#allocation2 + $0xc8] sm:$0xff]
        %v1124 = vld [vmem:[#allocation2 + $0xd0] sm:$0xff]
        %v1125 = vld [vmem:[#allocation2 + $0xd8] sm:$0xff]
        %v1126 = vld [vmem:[#allocation2 + $0xe0] sm:$0xff]
        %v1127 = vld [vmem:[#allocation2 + $0xe8] sm:$0xff]
        %v1128 = vld [vmem:[#allocation2 + $0xf0] sm:$0xff]
        %v1129 = vld [vmem:[#allocation2 + $0xf8] sm:$0xff]
        %v1130 = vld [vmem:[#allocation2 + $0x100] sm:$0xff]
        %v1131 = vld [vmem:[#allocation2 + $0x108] sm:$0xff]
        %v1132 = vld [vmem:[#allocation2 + $0x110] sm:$0xff]
        %v1133 = vld [vmem:[#allocation2 + $0x118] sm:$0xff]
        %1166 = vrot.lane.b32.xlu0 %v1100, 8
        %v1167 = vpop.permute.xlu0 %1166
        %1168 = vrot.lane.b32.xlu0 %v1101, 8
        %v1169 = vpop.permute.xlu0 %1168
        %1170 = vrot.lane.b32.xlu0 %v1102, 8
        %v1171 = vpop.permute.xlu0 %1170
        %1172 = vrot.lane.b32.xlu0 %v1103, 8
        %v1173 = vpop.permute.xlu0 %1172
        %1174 = vrot.lane.b32.xlu0 %v1104, 8
        %v1175 = vpop.permute.xlu0 %1174
        %1176 = vrot.lane.b32.xlu0 %v1105, 8
        %v1177 = vpop.permute.xlu0 %1176
        %1178 = vrot.lane.b32.xlu0 %v1106, 8
        %v1179 = vpop.permute.xlu0 %1178
        %1180 = vrot.lane.b32.xlu0 %v1107, 8
        %v1181 = vpop.permute.xlu0 %1180
        %1182 = vrot.lane.b32.xlu0 %v1108, 8
        %v1183 = vpop.permute.xlu0 %1182
        %1184 = vrot.lane.b32.xlu0 %v1109, 8
        %v1185 = vpop.permute.xlu0 %1184
        %1186 = vrot.lane.b32.xlu0 %v1110, 8
        %v1187 = vpop.permute.xlu0 %1186
        %1188 = vrot.lane.b32.xlu0 %v1111, 8
        %v1189 = vpop.permute.xlu0 %1188
        %1190 = vrot.lane.b32.xlu0 %v1112, 8
        %v1191 = vpop.permute.xlu0 %1190
        %1192 = vrot.lane.b32.xlu0 %v1113, 8
        %v1193 = vpop.permute.xlu0 %1192
        %1194 = vrot.lane.b32.xlu0 %v1114, 8
        %v1195 = vpop.permute.xlu0 %1194
        %1196 = vrot.lane.b32.xlu0 %v1115, 8
        %v1197 = vpop.permute.xlu0 %1196
        %1198 = vrot.lane.b32.xlu0 %v1116, 8
        %v1199 = vpop.permute.xlu0 %1198
        %1200 = vrot.lane.b32.xlu0 %v1117, 8
        %v1201 = vpop.permute.xlu0 %1200
        %1202 = vrot.lane.b32.xlu0 %v1118, 8
        %v1203 = vpop.permute.xlu0 %1202
        %1204 = vrot.lane.b32.xlu0 %v1119, 8
        %v1205 = vpop.permute.xlu0 %1204
        %1206 = vrot.lane.b32.xlu0 %v1120, 8
        %v1207 = vpop.permute.xlu0 %1206
        %1208 = vrot.lane.b32.xlu0 %v1121, 8
        %v1209 = vpop.permute.xlu0 %1208
        %1210 = vrot.lane.b32.xlu0 %v1122, 8
        %v1211 = vpop.permute.xlu0 %1210
        %1212 = vrot.lane.b32.xlu0 %v1123, 8
        %v1213 = vpop.permute.xlu0 %1212
        %1214 = vrot.lane.b32.xlu0 %v1124, 8
        %v1215 = vpop.permute.xlu0 %1214
        %1216 = vrot.lane.b32.xlu0 %v1125, 8
        %v1217 = vpop.permute.xlu0 %1216
        %1218 = vrot.lane.b32.xlu0 %v1126, 8
        %v1219 = vpop.permute.xlu0 %1218
        %1220 = vrot.lane.b32.xlu0 %v1127, 8
        %v1221 = vpop.permute.xlu0 %1220
        %1222 = vrot.lane.b32.xlu0 %v1128, 8
        %v1223 = vpop.permute.xlu0 %1222
        %1224 = vrot.lane.b32.xlu0 %v1129, 8
        %v1225 = vpop.permute.xlu0 %1224
        %1226 = vrot.lane.b32.xlu0 %v1130, 8
        %v1227 = vpop.permute.xlu0 %1226
        %1228 = vrot.lane.b32.xlu0 %v1131, 8
        %v1229 = vpop.permute.xlu0 %1228
        %1232 = vrot.lane.b32.xlu0 %v1102, 16
        %v1233 = vpop.permute.xlu0 %1232
        %1234 = vrot.lane.b32.xlu0 %v1103, 16
        %v1235 = vpop.permute.xlu0 %1234
        %1236 = vrot.lane.b32.xlu0 %v1104, 16
        %v1237 = vpop.permute.xlu0 %1236
        %1238 = vrot.lane.b32.xlu0 %v1105, 16
        %v1239 = vpop.permute.xlu0 %1238
        %1240 = vrot.lane.b32.xlu0 %v1106, 16
        %v1241 = vpop.permute.xlu0 %1240
        %1242 = vrot.lane.b32.xlu0 %v1107, 16
        %v1243 = vpop.permute.xlu0 %1242
        %1244 = vrot.lane.b32.xlu0 %v1108, 16
        %v1245 = vpop.permute.xlu0 %1244
        %1246 = vrot.lane.b32.xlu0 %v1109, 16
        %v1247 = vpop.permute.xlu0 %1246
        %1248 = vrot.lane.b32.xlu0 %v1110, 16
        %v1249 = vpop.permute.xlu0 %1248
        %1250 = vrot.lane.b32.xlu0 %v1111, 16
        %v1251 = vpop.permute.xlu0 %1250
        %1252 = vrot.lane.b32.xlu0 %v1112, 16
        %v1253 = vpop.permute.xlu0 %1252
        %1254 = vrot.lane.b32.xlu0 %v1113, 16
        %v1255 = vpop.permute.xlu0 %1254
        %1256 = vrot.lane.b32.xlu0 %v1114, 16
        %v1257 = vpop.permute.xlu0 %1256
        %1258 = vrot.lane.b32.xlu0 %v1115, 16
        %v1259 = vpop.permute.xlu0 %1258
        %1260 = vrot.lane.b32.xlu0 %v1116, 16
        %v1261 = vpop.permute.xlu0 %1260
        %1262 = vrot.lane.b32.xlu0 %v1117, 16
        %v1263 = vpop.permute.xlu0 %1262
        %1264 = vrot.lane.b32.xlu0 %v1118, 16
        %v1265 = vpop.permute.xlu0 %1264
        %1266 = vrot.lane.b32.xlu0 %v1119, 16
        %v1267 = vpop.permute.xlu0 %1266
        %1268 = vrot.lane.b32.xlu0 %v1120, 16
        %v1269 = vpop.permute.xlu0 %1268
        %1270 = vrot.lane.b32.xlu0 %v1121, 16
        %v1271 = vpop.permute.xlu0 %1270
        %1272 = vrot.lane.b32.xlu0 %v1122, 16
        %v1273 = vpop.permute.xlu0 %1272
        %1274 = vrot.lane.b32.xlu0 %v1123, 16
        %v1275 = vpop.permute.xlu0 %1274
        %1276 = vrot.lane.b32.xlu0 %v1124, 16
        %v1277 = vpop.permute.xlu0 %1276
        %1278 = vrot.lane.b32.xlu0 %v1125, 16
        %v1279 = vpop.permute.xlu0 %1278
        %1280 = vrot.lane.b32.xlu0 %v1126, 16
        %v1281 = vpop.permute.xlu0 %1280
        %1282 = vrot.lane.b32.xlu0 %v1127, 16
        %v1283 = vpop.permute.xlu0 %1282
        %1284 = vrot.lane.b32.xlu0 %v1128, 16
        %v1285 = vpop.permute.xlu0 %1284
        %1286 = vrot.lane.b32.xlu0 %v1129, 16
        %v1287 = vpop.permute.xlu0 %1286
        %1288 = vrot.lane.b32.xlu0 %v1130, 16
        %v1289 = vpop.permute.xlu0 %1288
        %1290 = vrot.lane.b32.xlu0 %v1131, 16
        %v1291 = vpop.permute.xlu0 %1290
        %1292 = vrot.lane.b32.xlu0 %v1132, 16
        %v1293 = vpop.permute.xlu0 %1292
        %1294 = vrot.lane.b32.xlu0 %v1133, 16
        %v1295 = vpop.permute.xlu0 %1294
        %v1298 = vsel %vm1061, %v1098, %v1167
        %v1301 = vsel %vm1061, %v1099, %v1169
        %v1304 = vsel %vm1061, %v1100, %v1171
        %v1307 = vsel %vm1061, %v1101, %v1173
        %v1310 = vsel %vm1061, %v1102, %v1175
        %v1313 = vsel %vm1061, %v1103, %v1177
        %v1316 = vsel %vm1061, %v1104, %v1179
        %v1319 = vsel %vm1061, %v1105, %v1181
        %v1322 = vsel %vm1061, %v1106, %v1183
        %v1325 = vsel %vm1061, %v1107, %v1185
        %v1328 = vsel %vm1061, %v1108, %v1187
        %v1331 = vsel %vm1061, %v1109, %v1189
        %v1334 = vsel %vm1061, %v1110, %v1191
        %v1337 = vsel %vm1061, %v1111, %v1193
        %v1340 = vsel %vm1061, %v1112, %v1195
        %v1343 = vsel %vm1061, %v1113, %v1197
        %v1346 = vsel %vm1061, %v1114, %v1199
        %v1349 = vsel %vm1061, %v1115, %v1201
        %v1352 = vsel %vm1061, %v1116, %v1203
        %v1355 = vsel %vm1061, %v1117, %v1205
        %v1358 = vsel %vm1061, %v1118, %v1207
        %v1361 = vsel %vm1061, %v1119, %v1209
        %v1364 = vsel %vm1061, %v1120, %v1211
        %v1367 = vsel %vm1061, %v1121, %v1213
        %v1370 = vsel %vm1061, %v1122, %v1215
        %v1373 = vsel %vm1061, %v1123, %v1217
        %v1376 = vsel %vm1061, %v1124, %v1219
        %v1379 = vsel %vm1061, %v1125, %v1221
        %v1382 = vsel %vm1061, %v1126, %v1223
        %v1385 = vsel %vm1061, %v1127, %v1225
        %v1388 = vsel %vm1061, %v1128, %v1227
        %v1391 = vsel %vm1061, %v1129, %v1229
        %vm1392 = vcmask 130048
        %v1394 = vsel %vm1392, %v1298, %v1233
        %v1396 = vsel %vm1392, %v1301, %v1235
        %v1398 = vsel %vm1392, %v1304, %v1237
        %v1400 = vsel %vm1392, %v1307, %v1239
        %v1402 = vsel %vm1392, %v1310, %v1241
        %v1404 = vsel %vm1392, %v1313, %v1243
        %v1406 = vsel %vm1392, %v1316, %v1245
        %v1408 = vsel %vm1392, %v1319, %v1247
        %v1410 = vsel %vm1392, %v1322, %v1249
        %v1412 = vsel %vm1392, %v1325, %v1251
        %v1414 = vsel %vm1392, %v1328, %v1253
        %v1416 = vsel %vm1392, %v1331, %v1255
        %v1418 = vsel %vm1392, %v1334, %v1257
        %v1420 = vsel %vm1392, %v1337, %v1259
        %v1422 = vsel %vm1392, %v1340, %v1261
        %v1424 = vsel %vm1392, %v1343, %v1263
        %v1426 = vsel %vm1392, %v1346, %v1265
        %v1428 = vsel %vm1392, %v1349, %v1267
        %v1430 = vsel %vm1392, %v1352, %v1269
        %v1432 = vsel %vm1392, %v1355, %v1271
        %v1434 = vsel %vm1392, %v1358, %v1273
        %v1436 = vsel %vm1392, %v1361, %v1275
        %v1438 = vsel %vm1392, %v1364, %v1277
        %v1440 = vsel %vm1392, %v1367, %v1279
        %v1442 = vsel %vm1392, %v1370, %v1281
        %v1444 = vsel %vm1392, %v1373, %v1283
        %v1446 = vsel %vm1392, %v1376, %v1285
        %v1448 = vsel %vm1392, %v1379, %v1287
        %v1450 = vsel %vm1392, %v1382, %v1289
        %v1452 = vsel %vm1392, %v1385, %v1291
        %v1454 = vsel %vm1392, %v1388, %v1293
        %v1456 = vsel %vm1392, %v1391, %v1295
        %v1457 = vld [vmem:[%s3] sm:$0xf]
        %v1458 = vld [vmem:[%s3 + $0x4] sm:$0xf]
        %v1459 = vld [vmem:[%s3 + $0x8] sm:$0xf]
        %v1463 = vunpack.c.l.b16 %v1457
        %v1464 = vunpack.c.l.b16 %v1458
        %v1465 = vunpack.c.l.b16 %v1459
        %v1466 = vpack.c.b16 %v1464, %v1463
        %v1467 = vpack.c.b16 %v1465, %v1465
        %vm1469 = vcmask 195584
        %v1470 = vsel %vm1469, %v1394, 0
        %v1472 = vsel %vm1469, %v1396, 0
        %v1474 = vsel %vm1469, %v1398, 0
        %v1476 = vsel %vm1469, %v1400, 0
        %v1478 = vsel %vm1469, %v1402, 0
        %v1480 = vsel %vm1469, %v1404, 0
        %v1482 = vsel %vm1469, %v1406, 0
        %v1484 = vsel %vm1469, %v1408, 0
        %v1486 = vsel %vm1469, %v1410, 0
        %v1488 = vsel %vm1469, %v1412, 0
        %v1490 = vsel %vm1469, %v1414, 0
        %v1492 = vsel %vm1469, %v1416, 0
        %v1494 = vsel %vm1469, %v1418, 0
        %v1496 = vsel %vm1469, %v1420, 0
        %v1498 = vsel %vm1469, %v1422, 0
        %v1500 = vsel %vm1469, %v1424, 0
        %v1502 = vsel %vm1469, %v1426, 0
        %v1504 = vsel %vm1469, %v1428, 0
        %v1506 = vsel %vm1469, %v1430, 0
        %v1508 = vsel %vm1469, %v1432, 0
        %v1510 = vsel %vm1469, %v1434, 0
        %v1512 = vsel %vm1469, %v1436, 0
        %v1514 = vsel %vm1469, %v1438, 0
        %v1516 = vsel %vm1469, %v1440, 0
        %v1518 = vsel %vm1469, %v1442, 0
        %v1520 = vsel %vm1469, %v1444, 0
        %v1522 = vsel %vm1469, %v1446, 0
        %v1524 = vsel %vm1469, %v1448, 0
        %v1526 = vsel %vm1469, %v1450, 0
        %v1528 = vsel %vm1469, %v1452, 0
        %v1530 = vsel %vm1469, %v1454, 0
        %v1532 = vsel %vm1469, %v1456, 0
        %v1535 = vsel %vm979, %v1467, 0
        %1537 = vmatprep.subr.bf16.mxu0 0
        %1538 = vmatpush1.bf16.msra.mxu0 %v1466
        %1539 = vmatprep.subr.bf16.mxu0 0
        %1540 = vmatpush1.bf16.msra.mxu0 %v1535
        %1541 = vmatprep.subr.bf16.mxu0 0
        %1542 = vmatpush1.bf16.msra.mxu0 0
        %1543 = vmatprep.subr.bf16.mxu0 0
        %1544 = vmatpush1.bf16.msra.mxu0 0
        %1545 = vmatprep.subr.bf16.mxu0 0
        %1546 = vmatpush1.bf16.msra.mxu0 0
        %1547 = vmatprep.subr.bf16.mxu0 0
        %1548 = vmatpush1.bf16.msra.mxu0 0
        %1549 = vmatprep.subr.bf16.mxu0 0
        %1550 = vmatpush1.bf16.msra.mxu0 0
        %1551 = vmatprep.subr.bf16.mxu0 0
        %1552 = vmatpush1.bf16.msra.mxu0 0
        %1553 = vmatprep.subr.bf16.mxu0 0
        %1554 = vmatpush1.bf16.msra.mxu0 0
        %1555 = vmatprep.subr.bf16.mxu0 0
        %1556 = vmatpush1.bf16.msra.mxu0 0
        %1557 = vmatprep.subr.bf16.mxu0 0
        %1558 = vmatpush1.bf16.msra.mxu0 0
        %1559 = vmatprep.subr.bf16.mxu0 0
        %1560 = vmatpush1.bf16.msra.mxu0 0
        %1561 = vmatprep.subr.bf16.mxu0 0
        %1562 = vmatpush1.bf16.msra.mxu0 0
        %1563 = vmatprep.subr.bf16.mxu0 0
        %1564 = vmatpush1.bf16.msra.mxu0 0
        %1565 = vmatprep.subr.bf16.mxu0 0
        %1566 = vmatpush1.bf16.msra.mxu0 0
        %1567 = vmatprep.subr.bf16.mxu0 0
        %1568 = vmatpush1.bf16.msra.mxu0 0
        %1569 = vmatprep.mubr.bf16.mxu0 0
        %1570 = vmatmul.mubr.bf16.gmra.mrb[0].mxu0 %v1470
        %v1571 = vpop.f32.mrb[0].mxu0
        %v1572 = vadd.f32 0.0, %v1571
        %v1573 = vpop.f32.mrb[0].mxu0
        %v1574 = vpop.f32.mrb[0].mxu0
        %v1575 = vadd.f32 0.0, %v1574
        %v1576 = vpop.f32.mrb[0].mxu0
        %1577 = vmatprep.mubr.bf16.mxu0 0
        %1578 = vmatmul.mubr.bf16.gmra.mrb[0].mxu0 %v1472
        %v1579 = vpop.f32.mrb[0].mxu0
        %v1580 = vadd.f32 0.0, %v1579
        %v1581 = vpop.f32.mrb[0].mxu0
        %v1582 = vpop.f32.mrb[0].mxu0
        %v1583 = vpop.f32.mrb[0].mxu0
        %1584 = vmatprep.mubr.bf16.mxu0 0
        %1585 = vmatmul.mubr.bf16.gmra.mrb[0].mxu0 %v1474
        %v1586 = vpop.f32.mrb[0].mxu0
        %v1587 = vadd.f32 0.0, %v1586
        %v1588 = vpop.f32.mrb[0].mxu0
        %v1589 = vpop.f32.mrb[0].mxu0
        %v1590 = vadd.f32 0.0, %v1589
        %v1591 = vpop.f32.mrb[0].mxu0
        %1592 = vmatprep.mubr.bf16.mxu0 0
        %1593 = vmatmul.mubr.bf16.gmra.mrb[0].mxu0 %v1476
        %v1594 = vpop.f32.mrb[0].mxu0
        %v1595 = vadd.f32 0.0, %v1594
        %v1596 = vpop.f32.mrb[0].mxu0
        %v1597 = vpop.f32.mrb[0].mxu0
        %v1598 = vpop.f32.mrb[0].mxu0
        %1599 = vmatprep.mubr.bf16.mxu0 0
        %1600 = vmatmul.mubr.bf16.gmra.mrb[0].mxu0 %v1478
        %v1601 = vpop.f32.mrb[0].mxu0
        %v1602 = vadd.f32 0.0, %v1601
        %v1603 = vpop.f32.mrb[0].mxu0
        %v1604 = vpop.f32.mrb[0].mxu0
        %v1605 = vadd.f32 0.0, %v1604
        %v1606 = vpop.f32.mrb[0].mxu0
        %1607 = vmatprep.mubr.bf16.mxu0 0
        %1608 = vmatmul.mubr.bf16.gmra.mrb[0].mxu0 %v1480
        %v1609 = vpop.f32.mrb[0].mxu0
        %v1610 = vadd.f32 0.0, %v1609
        %v1611 = vpop.f32.mrb[0].mxu0
        %v1612 = vpop.f32.mrb[0].mxu0
        %v1613 = vpop.f32.mrb[0].mxu0
        %1614 = vmatprep.mubr.bf16.mxu0 0
        %1615 = vmatmul.mubr.bf16.gmra.mrb[0].mxu0 %v1482
        %v1616 = vpop.f32.mrb[0].mxu0
        %v1617 = vadd.f32 0.0, %v1616
        %v1618 = vpop.f32.mrb[0].mxu0
        %v1619 = vpop.f32.mrb[0].mxu0
        %v1620 = vadd.f32 0.0, %v1619
        %v1621 = vpop.f32.mrb[0].mxu0
        %1622 = vmatprep.mubr.bf16.mxu0 0
        %1623 = vmatmul.mubr.bf16.gmra.mrb[0].mxu0 %v1484
        %v1624 = vpop.f32.mrb[0].mxu0
        %v1625 = vadd.f32 0.0, %v1624
        %v1626 = vpop.f32.mrb[0].mxu0
        %v1627 = vpop.f32.mrb[0].mxu0
        %v1628 = vpop.f32.mrb[0].mxu0
        %1629 = vmatprep.mubr.bf16.mxu0 0
        %1630 = vmatmul.mubr.bf16.gmra.mrb[0].mxu0 %v1486
        %v1631 = vpop.f32.mrb[0].mxu0
        %v1632 = vadd.f32 0.0, %v1631
        %v1633 = vpop.f32.mrb[0].mxu0
        %v1634 = vpop.f32.mrb[0].mxu0
        %v1635 = vadd.f32 0.0, %v1634
        %v1636 = vpop.f32.mrb[0].mxu0
        %1637 = vmatprep.mubr.bf16.mxu0 0
        %1638 = vmatmul.mubr.bf16.gmra.mrb[0].mxu0 %v1488
        %v1639 = vpop.f32.mrb[0].mxu0
        %v1640 = vadd.f32 0.0, %v1639
        %v1641 = vpop.f32.mrb[0].mxu0
        %v1642 = vpop.f32.mrb[0].mxu0
        %v1643 = vpop.f32.mrb[0].mxu0
        %1644 = vmatprep.mubr.bf16.mxu0 0
        %1645 = vmatmul.mubr.bf16.gmra.mrb[0].mxu0 %v1490
        %v1646 = vpop.f32.mrb[0].mxu0
        %v1647 = vadd.f32 0.0, %v1646
        %v1648 = vpop.f32.mrb[0].mxu0
        %v1649 = vpop.f32.mrb[0].mxu0
        %v1650 = vadd.f32 0.0, %v1649
        %v1651 = vpop.f32.mrb[0].mxu0
        %1652 = vmatprep.mubr.bf16.mxu0 0
        %1653 = vmatmul.mubr.bf16.gmra.mrb[0].mxu0 %v1492
        %v1654 = vpop.f32.mrb[0].mxu0
        %v1655 = vadd.f32 0.0, %v1654
        %v1656 = vpop.f32.mrb[0].mxu0
        %v1657 = vpop.f32.mrb[0].mxu0
        %v1658 = vpop.f32.mrb[0].mxu0
        %1659 = vmatprep.mubr.bf16.mxu0 0
        %1660 = vmatmul.mubr.bf16.gmra.mrb[0].mxu0 %v1494
        %v1661 = vpop.f32.mrb[0].mxu0
        %v1662 = vadd.f32 0.0, %v1661
        %v1663 = vpop.f32.mrb[0].mxu0
        %v1664 = vpop.f32.mrb[0].mxu0
        %v1665 = vadd.f32 0.0, %v1664
        %v1666 = vpop.f32.mrb[0].mxu0
        %1667 = vmatprep.mubr.bf16.mxu0 0
        %1668 = vmatmul.mubr.bf16.gmra.mrb[0].mxu0 %v1496
        %v1669 = vpop.f32.mrb[0].mxu0
        %v1670 = vadd.f32 0.0, %v1669
        %v1671 = vpop.f32.mrb[0].mxu0
        %v1672 = vpop.f32.mrb[0].mxu0
        %v1673 = vpop.f32.mrb[0].mxu0
        %1674 = vmatprep.mubr.bf16.mxu0 0
        %1675 = vmatmul.mubr.bf16.gmra.mrb[0].mxu0 %v1498
        %v1676 = vpop.f32.mrb[0].mxu0
        %v1677 = vadd.f32 0.0, %v1676
        %v1678 = vpop.f32.mrb[0].mxu0
        %v1679 = vpop.f32.mrb[0].mxu0
        %v1680 = vadd.f32 0.0, %v1679
        %v1681 = vpop.f32.mrb[0].mxu0
        %1682 = vmatprep.mubr.bf16.mxu0 0
        %1683 = vmatmul.mubr.bf16.gmra.mrb[0].mxu0 %v1500
        %v1684 = vpop.f32.mrb[0].mxu0
        %v1685 = vadd.f32 0.0, %v1684
        %v1686 = vpop.f32.mrb[0].mxu0
        %v1687 = vpop.f32.mrb[0].mxu0
        %v1688 = vpop.f32.mrb[0].mxu0
        %1689 = vmatprep.mubr.bf16.mxu0 0
        %1690 = vmatmul.mubr.bf16.gmra.mrb[0].mxu0 %v1502
        %v1691 = vpop.f32.mrb[0].mxu0
        %v1692 = vadd.f32 0.0, %v1691
        %v1693 = vpop.f32.mrb[0].mxu0
        %v1694 = vpop.f32.mrb[0].mxu0
        %v1695 = vadd.f32 0.0, %v1694
        %v1696 = vpop.f32.mrb[0].mxu0
        %1697 = vmatprep.mubr.bf16.mxu0 0
        %1698 = vmatmul.mubr.bf16.gmra.mrb[0].mxu0 %v1504
        %v1699 = vpop.f32.mrb[0].mxu0
        %v1700 = vadd.f32 0.0, %v1699
        %v1701 = vpop.f32.mrb[0].mxu0
        %v1702 = vpop.f32.mrb[0].mxu0
        %v1703 = vpop.f32.mrb[0].mxu0
        %1704 = vmatprep.mubr.bf16.mxu0 0
        %1705 = vmatmul.mubr.bf16.gmra.mrb[0].mxu0 %v1506
        %v1706 = vpop.f32.mrb[0].mxu0
        %v1707 = vadd.f32 0.0, %v1706
        %v1708 = vpop.f32.mrb[0].mxu0
        %v1709 = vpop.f32.mrb[0].mxu0
        %v1710 = vadd.f32 0.0, %v1709
        %v1711 = vpop.f32.mrb[0].mxu0
        %1712 = vmatprep.mubr.bf16.mxu0 0
        %1713 = vmatmul.mubr.bf16.gmra.mrb[0].mxu0 %v1508
        %v1714 = vpop.f32.mrb[0].mxu0
        %v1715 = vadd.f32 0.0, %v1714
        %v1716 = vpop.f32.mrb[0].mxu0
        %v1717 = vpop.f32.mrb[0].mxu0
        %v1718 = vpop.f32.mrb[0].mxu0
        %1719 = vmatprep.mubr.bf16.mxu0 0
        %1720 = vmatmul.mubr.bf16.gmra.mrb[0].mxu0 %v1510
        %v1721 = vpop.f32.mrb[0].mxu0
        %v1722 = vadd.f32 0.0, %v1721
        %v1723 = vpop.f32.mrb[0].mxu0
        %v1724 = vpop.f32.mrb[0].mxu0
        %v1725 = vadd.f32 0.0, %v1724
        %v1726 = vpop.f32.mrb[0].mxu0
        %1727 = vmatprep.mubr.bf16.mxu0 0
        %1728 = vmatmul.mubr.bf16.gmra.mrb[0].mxu0 %v1512
        %v1729 = vpop.f32.mrb[0].mxu0
        %v1730 = vadd.f32 0.0, %v1729
        %v1731 = vpop.f32.mrb[0].mxu0
        %v1732 = vpop.f32.mrb[0].mxu0
        %v1733 = vpop.f32.mrb[0].mxu0
        %1734 = vmatprep.mubr.bf16.mxu0 0
        %1735 = vmatmul.mubr.bf16.gmra.mrb[0].mxu0 %v1514
        %v1736 = vpop.f32.mrb[0].mxu0
        %v1737 = vadd.f32 0.0, %v1736
        %v1738 = vpop.f32.mrb[0].mxu0
        %v1739 = vpop.f32.mrb[0].mxu0
        %v1740 = vadd.f32 0.0, %v1739
        %v1741 = vpop.f32.mrb[0].mxu0
        %1742 = vmatprep.mubr.bf16.mxu0 0
        %1743 = vmatmul.mubr.bf16.gmra.mrb[0].mxu0 %v1516
        %v1744 = vpop.f32.mrb[0].mxu0
        %v1745 = vadd.f32 0.0, %v1744
        %v1746 = vpop.f32.mrb[0].mxu0
        %v1747 = vpop.f32.mrb[0].mxu0
        %v1748 = vpop.f32.mrb[0].mxu0
        %1749 = vmatprep.mubr.bf16.mxu0 0
        %1750 = vmatmul.mubr.bf16.gmra.mrb[0].mxu0 %v1518
        %v1751 = vpop.f32.mrb[0].mxu0
        %v1752 = vadd.f32 0.0, %v1751
        %v1753 = vpop.f32.mrb[0].mxu0
        %v1754 = vpop.f32.mrb[0].mxu0
        %v1755 = vadd.f32 0.0, %v1754
        %v1756 = vpop.f32.mrb[0].mxu0
        %1757 = vmatprep.mubr.bf16.mxu0 0
        %1758 = vmatmul.mubr.bf16.gmra.mrb[0].mxu0 %v1520
        %v1759 = vpop.f32.mrb[0].mxu0
        %v1760 = vadd.f32 0.0, %v1759
        %v1761 = vpop.f32.mrb[0].mxu0
        %v1762 = vpop.f32.mrb[0].mxu0
        %v1763 = vpop.f32.mrb[0].mxu0
        %1764 = vmatprep.mubr.bf16.mxu0 0
        %1765 = vmatmul.mubr.bf16.gmra.mrb[0].mxu0 %v1522
        %v1766 = vpop.f32.mrb[0].mxu0
        %v1767 = vadd.f32 0.0, %v1766
        %v1768 = vpop.f32.mrb[0].mxu0
        %v1769 = vpop.f32.mrb[0].mxu0
        %v1770 = vadd.f32 0.0, %v1769
        %v1771 = vpop.f32.mrb[0].mxu0
        %1772 = vmatprep.mubr.bf16.mxu0 0
        %1773 = vmatmul.mubr.bf16.gmra.mrb[0].mxu0 %v1524
        %v1774 = vpop.f32.mrb[0].mxu0
        %v1775 = vadd.f32 0.0, %v1774
        %v1776 = vpop.f32.mrb[0].mxu0
        %v1777 = vpop.f32.mrb[0].mxu0
        %v1778 = vpop.f32.mrb[0].mxu0
        %1779 = vmatprep.mubr.bf16.mxu0 0
        %1780 = vmatmul.mubr.bf16.gmra.mrb[0].mxu0 %v1526
        %v1781 = vpop.f32.mrb[0].mxu0
        %v1782 = vadd.f32 0.0, %v1781
        %v1783 = vpop.f32.mrb[0].mxu0
        %v1784 = vpop.f32.mrb[0].mxu0
        %v1785 = vadd.f32 0.0, %v1784
        %v1786 = vpop.f32.mrb[0].mxu0
        %1787 = vmatprep.mubr.bf16.mxu0 0
        %1788 = vmatmul.mubr.bf16.gmra.mrb[0].mxu0 %v1528
        %v1789 = vpop.f32.mrb[0].mxu0
        %v1790 = vadd.f32 0.0, %v1789
        %v1791 = vpop.f32.mrb[0].mxu0
        %v1792 = vpop.f32.mrb[0].mxu0
        %v1793 = vpop.f32.mrb[0].mxu0
        %1794 = vmatprep.mubr.bf16.mxu0 0
        %1795 = vmatmul.mubr.bf16.gmra.mrb[0].mxu0 %v1530
        %v1796 = vpop.f32.mrb[0].mxu0
        %v1797 = vadd.f32 0.0, %v1796
        %v1798 = vpop.f32.mrb[0].mxu0
        %v1799 = vpop.f32.mrb[0].mxu0
        %v1800 = vadd.f32 0.0, %v1799
        %v1801 = vpop.f32.mrb[0].mxu0
        %1802 = vmatprep.mubr.bf16.mxu0 0
        %1803 = vmatmul.mubr.bf16.gmra.mrb[0].mxu0 %v1532
        %v1804 = vpop.f32.mrb[0].mxu0
        %v1805 = vadd.f32 0.0, %v1804
        %v1806 = vpop.f32.mrb[0].mxu0
        %v1807 = vpop.f32.mrb[0].mxu0
        %v1808 = vpop.f32.mrb[0].mxu0
        %1809 = vdwg.mxu0
        %v1810 = vadd.f32 %v1572, 0.0
        %v1811 = vadd.f32 %v1575, 0.0
        %v1812 = vadd.f32 %v1580, 0.0
        %v1813 = vadd.f32 %v1587, 0.0
        %v1814 = vadd.f32 %v1590, 0.0
        %v1815 = vadd.f32 %v1595, 0.0
        %v1816 = vadd.f32 %v1602, 0.0
        %v1817 = vadd.f32 %v1605, 0.0
        %v1818 = vadd.f32 %v1610, 0.0
        %v1819 = vadd.f32 %v1617, 0.0
        %v1820 = vadd.f32 %v1620, 0.0
        %v1821 = vadd.f32 %v1625, 0.0
        %v1822 = vadd.f32 %v1632, 0.0
        %v1823 = vadd.f32 %v1635, 0.0
        %v1824 = vadd.f32 %v1640, 0.0
        %v1825 = vadd.f32 %v1647, 0.0
        %v1826 = vadd.f32 %v1650, 0.0
        %v1827 = vadd.f32 %v1655, 0.0
        %v1828 = vadd.f32 %v1662, 0.0
        %v1829 = vadd.f32 %v1665, 0.0
        %v1830 = vadd.f32 %v1670, 0.0
        %v1831 = vadd.f32 %v1677, 0.0
        %v1832 = vadd.f32 %v1680, 0.0
        %v1833 = vadd.f32 %v1685, 0.0
        %v1834 = vadd.f32 %v1692, 0.0
        %v1835 = vadd.f32 %v1695, 0.0
        %v1836 = vadd.f32 %v1700, 0.0
        %v1837 = vadd.f32 %v1707, 0.0
        %v1838 = vadd.f32 %v1710, 0.0
        %v1839 = vadd.f32 %v1715, 0.0
        %v1840 = vadd.f32 %v1722, 0.0
        %v1841 = vadd.f32 %v1725, 0.0
        %v1842 = vadd.f32 %v1730, 0.0
        %v1843 = vadd.f32 %v1737, 0.0
        %v1844 = vadd.f32 %v1740, 0.0
        %v1845 = vadd.f32 %v1745, 0.0
        %v1846 = vadd.f32 %v1752, 0.0
        %v1847 = vadd.f32 %v1755, 0.0
        %v1848 = vadd.f32 %v1760, 0.0
        %v1849 = vadd.f32 %v1767, 0.0
        %v1850 = vadd.f32 %v1770, 0.0
        %v1851 = vadd.f32 %v1775, 0.0
        %v1852 = vadd.f32 %v1782, 0.0
        %v1853 = vadd.f32 %v1785, 0.0
        %v1854 = vadd.f32 %v1790, 0.0
        %v1855 = vadd.f32 %v1797, 0.0
        %v1856 = vadd.f32 %v1800, 0.0
        %v1857 = vadd.f32 %v1805, 0.0
        %s1858 = scalar_lea.vmem %s3, 12
        %v1859 = vld [vmem:[%s1858] sm:$0xf]
        %v1860 = vld [vmem:[%s1858 + $0x4] sm:$0xf]
        %v1861 = vld [vmem:[%s1858 + $0x8] sm:$0xf]
        %v1865 = vunpack.c.l.b16 %v1859
        %v1866 = vunpack.c.l.b16 %v1860
        %v1867 = vunpack.c.l.b16 %v1861
        %v1868 = vpack.c.b16 %v1866, %v1865
        %v1869 = vpack.c.b16 %v1867, %v1867
        %v1872 = vsel %vm979, %v1869, 0
        %1874 = vmatprep.subr.bf16.mxu0 0
        %1875 = vmatpush1.bf16.msra.mxu0 %v1868
        %1876 = vmatprep.subr.bf16.mxu0 0
        %1877 = vmatpush1.bf16.msra.mxu0 %v1872
        %1878 = vmatprep.subr.bf16.mxu0 0
        %1879 = vmatpush1.bf16.msra.mxu0 0
        %1880 = vmatprep.subr.bf16.mxu0 0
        %1881 = vmatpush1.bf16.msra.mxu0 0
        %1882 = vmatprep.subr.bf16.mxu0 0
        %1883 = vmatpush1.bf16.msra.mxu0 0
        %1884 = vmatprep.subr.bf16.mxu0 0
        %1885 = vmatpush1.bf16.msra.mxu0 0
        %1886 = vmatprep.subr.bf16.mxu0 0
        %1887 = vmatpush1.bf16.msra.mxu0 0
        %1888 = vmatprep.subr.bf16.mxu0 0
        %1889 = vmatpush1.bf16.msra.mxu0 0
        %1890 = vmatprep.subr.bf16.mxu0 0
        %1891 = vmatpush1.bf16.msra.mxu0 0
        %1892 = vmatprep.subr.bf16.mxu0 0
        %1893 = vmatpush1.bf16.msra.mxu0 0
        %1894 = vmatprep.subr.bf16.mxu0 0
        %1895 = vmatpush1.bf16.msra.mxu0 0
        %1896 = vmatprep.subr.bf16.mxu0 0
        %1897 = vmatpush1.bf16.msra.mxu0 0
        %1898 = vmatprep.subr.bf16.mxu0 0
        %1899 = vmatpush1.bf16.msra.mxu0 0
        %1900 = vmatprep.subr.bf16.mxu0 0
        %1901 = vmatpush1.bf16.msra.mxu0 0
        %1902 = vmatprep.subr.bf16.mxu0 0
        %1903 = vmatpush1.bf16.msra.mxu0 0
        %1904 = vmatprep.subr.bf16.mxu0 0
        %1905 = vmatpush1.bf16.msra.mxu0 0
        %1906 = vmatprep.mubr.bf16.mxu0 0
        %1907 = vmatmul.mubr.bf16.gmra.mrb[0].mxu0 %v1470
        %v1908 = vpop.f32.mrb[0].mxu0
        %v1909 = vpop.f32.mrb[0].mxu0
        %v1910 = vpop.f32.mrb[0].mxu0
        %v1911 = vadd.f32 0.0, %v1910
        %v1912 = vpop.f32.mrb[0].mxu0
        %1913 = vmatprep.mubr.bf16.mxu0 0
        %1914 = vmatmul.mubr.bf16.gmra.mrb[0].mxu0 %v1472
        %v1915 = vpop.f32.mrb[0].mxu0
        %v1916 = vadd.f32 0.0, %v1915
        %v1917 = vpop.f32.mrb[0].mxu0
        %v1918 = vpop.f32.mrb[0].mxu0
        %v1919 = vpop.f32.mrb[0].mxu0
        %1920 = vmatprep.mubr.bf16.mxu0 0
        %1921 = vmatmul.mubr.bf16.gmra.mrb[0].mxu0 %v1474
        %v1922 = vpop.f32.mrb[0].mxu0
        %v1923 = vpop.f32.mrb[0].mxu0
        %v1924 = vpop.f32.mrb[0].mxu0
        %v1925 = vadd.f32 0.0, %v1924
        %v1926 = vpop.f32.mrb[0].mxu0
        %1927 = vmatprep.mubr.bf16.mxu0 0
        %1928 = vmatmul.mubr.bf16.gmra.mrb[0].mxu0 %v1476
        %v1929 = vpop.f32.mrb[0].mxu0
        %v1930 = vadd.f32 0.0, %v1929
        %v1931 = vpop.f32.mrb[0].mxu0
        %v1932 = vpop.f32.mrb[0].mxu0
        %v1933 = vpop.f32.mrb[0].mxu0
        %1934 = vmatprep.mubr.bf16.mxu0 0
        %1935 = vmatmul.mubr.bf16.gmra.mrb[0].mxu0 %v1478
        %v1936 = vpop.f32.mrb[0].mxu0
        %v1937 = vpop.f32.mrb[0].mxu0
        %v1938 = vpop.f32.mrb[0].mxu0
        %v1939 = vadd.f32 0.0, %v1938
        %v1940 = vpop.f32.mrb[0].mxu0
        %1941 = vmatprep.mubr.bf16.mxu0 0
        %1942 = vmatmul.mubr.bf16.gmra.mrb[0].mxu0 %v1480
        %v1943 = vpop.f32.mrb[0].mxu0
        %v1944 = vadd.f32 0.0, %v1943
        %v1945 = vpop.f32.mrb[0].mxu0
        %v1946 = vpop.f32.mrb[0].mxu0
        %v1947 = vpop.f32.mrb[0].mxu0
        %1948 = vmatprep.mubr.bf16.mxu0 0
        %1949 = vmatmul.mubr.bf16.gmra.mrb[0].mxu0 %v1482
        %v1950 = vpop.f32.mrb[0].mxu0
        %v1951 = vpop.f32.mrb[0].mxu0
        %v1952 = vpop.f32.mrb[0].mxu0
        %v1953 = vadd.f32 0.0, %v1952
        %v1954 = vpop.f32.mrb[0].mxu0
        %1955 = vmatprep.mubr.bf16.mxu0 0
        %1956 = vmatmul.mubr.bf16.gmra.mrb[0].mxu0 %v1484
        %v1957 = vpop.f32.mrb[0].mxu0
        %v1958 = vadd.f32 0.0, %v1957
        %v1959 = vpop.f32.mrb[0].mxu0
        %v1960 = vpop.f32.mrb[0].mxu0
        %v1961 = vpop.f32.mrb[0].mxu0
        %1962 = vmatprep.mubr.bf16.mxu0 0
        %1963 = vmatmul.mubr.bf16.gmra.mrb[0].mxu0 %v1486
        %v1964 = vpop.f32.mrb[0].mxu0
        %v1965 = vpop.f32.mrb[0].mxu0
        %v1966 = vpop.f32.mrb[0].mxu0
        %v1967 = vadd.f32 0.0, %v1966
        %v1968 = vpop.f32.mrb[0].mxu0
        %1969 = vmatprep.mubr.bf16.mxu0 0
        %1970 = vmatmul.mubr.bf16.gmra.mrb[0].mxu0 %v1488
        %v1971 = vpop.f32.mrb[0].mxu0
        %v1972 = vadd.f32 0.0, %v1971
        %v1973 = vpop.f32.mrb[0].mxu0
        %v1974 = vpop.f32.mrb[0].mxu0
        %v1975 = vpop.f32.mrb[0].mxu0
        %1976 = vmatprep.mubr.bf16.mxu0 0
        %1977 = vmatmul.mubr.bf16.gmra.mrb[0].mxu0 %v1490
        %v1978 = vpop.f32.mrb[0].mxu0
        %v1979 = vpop.f32.mrb[0].mxu0
        %v1980 = vpop.f32.mrb[0].mxu0
        %v1981 = vadd.f32 0.0, %v1980
        %v1982 = vpop.f32.mrb[0].mxu0
        %1983 = vmatprep.mubr.bf16.mxu0 0
        %1984 = vmatmul.mubr.bf16.gmra.mrb[0].mxu0 %v1492
        %v1985 = vpop.f32.mrb[0].mxu0
        %v1986 = vadd.f32 0.0, %v1985
        %v1987 = vpop.f32.mrb[0].mxu0
        %v1988 = vpop.f32.mrb[0].mxu0
        %v1989 = vpop.f32.mrb[0].mxu0
        %1990 = vmatprep.mubr.bf16.mxu0 0
        %1991 = vmatmul.mubr.bf16.gmra.mrb[0].mxu0 %v1494
        %v1992 = vpop.f32.mrb[0].mxu0
        %v1993 = vpop.f32.mrb[0].mxu0
        %v1994 = vpop.f32.mrb[0].mxu0
        %v1995 = vadd.f32 0.0, %v1994
        %v1996 = vpop.f32.mrb[0].mxu0
        %1997 = vmatprep.mubr.bf16.mxu0 0
        %1998 = vmatmul.mubr.bf16.gmra.mrb[0].mxu0 %v1496
        %v1999 = vpop.f32.mrb[0].mxu0
        %v2000 = vadd.f32 0.0, %v1999
        %v2001 = vpop.f32.mrb[0].mxu0
        %v2002 = vpop.f32.mrb[0].mxu0
        %v2003 = vpop.f32.mrb[0].mxu0
        %2004 = vmatprep.mubr.bf16.mxu0 0
        %2005 = vmatmul.mubr.bf16.gmra.mrb[0].mxu0 %v1498
        %v2006 = vpop.f32.mrb[0].mxu0
        %v2007 = vpop.f32.mrb[0].mxu0
        %v2008 = vpop.f32.mrb[0].mxu0
        %v2009 = vadd.f32 0.0, %v2008
        %v2010 = vpop.f32.mrb[0].mxu0
        %2011 = vmatprep.mubr.bf16.mxu0 0
        %2012 = vmatmul.mubr.bf16.gmra.mrb[0].mxu0 %v1500
        %v2013 = vpop.f32.mrb[0].mxu0
        %v2014 = vadd.f32 0.0, %v2013
        %v2015 = vpop.f32.mrb[0].mxu0
        %v2016 = vpop.f32.mrb[0].mxu0
        %v2017 = vpop.f32.mrb[0].mxu0
        %2018 = vmatprep.mubr.bf16.mxu0 0
        %2019 = vmatmul.mubr.bf16.gmra.mrb[0].mxu0 %v1502
        %v2020 = vpop.f32.mrb[0].mxu0
        %v2021 = vpop.f32.mrb[0].mxu0
        %v2022 = vpop.f32.mrb[0].mxu0
        %v2023 = vadd.f32 0.0, %v2022
        %v2024 = vpop.f32.mrb[0].mxu0
        %2025 = vmatprep.mubr.bf16.mxu0 0
        %2026 = vmatmul.mubr.bf16.gmra.mrb[0].mxu0 %v1504
        %v2027 = vpop.f32.mrb[0].mxu0
        %v2028 = vadd.f32 0.0, %v2027
        %v2029 = vpop.f32.mrb[0].mxu0
        %v2030 = vpop.f32.mrb[0].mxu0
        %v2031 = vpop.f32.mrb[0].mxu0
        %2032 = vmatprep.mubr.bf16.mxu0 0
        %2033 = vmatmul.mubr.bf16.gmra.mrb[0].mxu0 %v1506
        %v2034 = vpop.f32.mrb[0].mxu0
        %v2035 = vpop.f32.mrb[0].mxu0
        %v2036 = vpop.f32.mrb[0].mxu0
        %v2037 = vadd.f32 0.0, %v2036
        %v2038 = vpop.f32.mrb[0].mxu0
        %2039 = vmatprep.mubr.bf16.mxu0 0
        %2040 = vmatmul.mubr.bf16.gmra.mrb[0].mxu0 %v1508
        %v2041 = vpop.f32.mrb[0].mxu0
        %v2042 = vadd.f32 0.0, %v2041
        %v2043 = vpop.f32.mrb[0].mxu0
        %v2044 = vpop.f32.mrb[0].mxu0
        %v2045 = vpop.f32.mrb[0].mxu0
        %2046 = vmatprep.mubr.bf16.mxu0 0
        %2047 = vmatmul.mubr.bf16.gmra.mrb[0].mxu0 %v1510
        %v2048 = vpop.f32.mrb[0].mxu0
        %v2049 = vpop.f32.mrb[0].mxu0
        %v2050 = vpop.f32.mrb[0].mxu0
        %v2051 = vadd.f32 0.0, %v2050
        %v2052 = vpop.f32.mrb[0].mxu0
        %2053 = vmatprep.mubr.bf16.mxu0 0
        %2054 = vmatmul.mubr.bf16.gmra.mrb[0].mxu0 %v1512
        %v2055 = vpop.f32.mrb[0].mxu0
        %v2056 = vadd.f32 0.0, %v2055
        %v2057 = vpop.f32.mrb[0].mxu0
        %v2058 = vpop.f32.mrb[0].mxu0
        %v2059 = vpop.f32.mrb[0].mxu0
        %2060 = vmatprep.mubr.bf16.mxu0 0
        %2061 = vmatmul.mubr.bf16.gmra.mrb[0].mxu0 %v1514
        %v2062 = vpop.f32.mrb[0].mxu0
        %v2063 = vpop.f32.mrb[0].mxu0
        %v2064 = vpop.f32.mrb[0].mxu0
        %v2065 = vadd.f32 0.0, %v2064
        %v2066 = vpop.f32.mrb[0].mxu0
        %2067 = vmatprep.mubr.bf16.mxu0 0
        %2068 = vmatmul.mubr.bf16.gmra.mrb[0].mxu0 %v1516
        %v2069 = vpop.f32.mrb[0].mxu0
        %v2070 = vadd.f32 0.0, %v2069
        %v2071 = vpop.f32.mrb[0].mxu0
        %v2072 = vpop.f32.mrb[0].mxu0
        %v2073 = vpop.f32.mrb[0].mxu0
        %2074 = vmatprep.mubr.bf16.mxu0 0
        %2075 = vmatmul.mubr.bf16.gmra.mrb[0].mxu0 %v1518
        %v2076 = vpop.f32.mrb[0].mxu0
        %v2077 = vpop.f32.mrb[0].mxu0
        %v2078 = vpop.f32.mrb[0].mxu0
        %v2079 = vadd.f32 0.0, %v2078
        %v2080 = vpop.f32.mrb[0].mxu0
        %2081 = vmatprep.mubr.bf16.mxu0 0
        %2082 = vmatmul.mubr.bf16.gmra.mrb[0].mxu0 %v1520
        %v2083 = vpop.f32.mrb[0].mxu0
        %v2084 = vadd.f32 0.0, %v2083
        %v2085 = vpop.f32.mrb[0].mxu0
        %v2086 = vpop.f32.mrb[0].mxu0
        %v2087 = vpop.f32.mrb[0].mxu0
        %2088 = vmatprep.mubr.bf16.mxu0 0
        %2089 = vmatmul.mubr.bf16.gmra.mrb[0].mxu0 %v1522
        %v2090 = vpop.f32.mrb[0].mxu0
        %v2091 = vpop.f32.mrb[0].mxu0
        %v2092 = vpop.f32.mrb[0].mxu0
        %v2093 = vadd.f32 0.0, %v2092
        %v2094 = vpop.f32.mrb[0].mxu0
        %2095 = vmatprep.mubr.bf16.mxu0 0
        %2096 = vmatmul.mubr.bf16.gmra.mrb[0].mxu0 %v1524
        %v2097 = vpop.f32.mrb[0].mxu0
        %v2098 = vadd.f32 0.0, %v2097
        %v2099 = vpop.f32.mrb[0].mxu0
        %v2100 = vpop.f32.mrb[0].mxu0
        %v2101 = vpop.f32.mrb[0].mxu0
        %2102 = vmatprep.mubr.bf16.mxu0 0
        %2103 = vmatmul.mubr.bf16.gmra.mrb[0].mxu0 %v1526
        %v2104 = vpop.f32.mrb[0].mxu0
        %v2105 = vpop.f32.mrb[0].mxu0
        %v2106 = vpop.f32.mrb[0].mxu0
        %v2107 = vadd.f32 0.0, %v2106
        %v2108 = vpop.f32.mrb[0].mxu0
        %2109 = vmatprep.mubr.bf16.mxu0 0
        %2110 = vmatmul.mubr.bf16.gmra.mrb[0].mxu0 %v1528
        %v2111 = vpop.f32.mrb[0].mxu0
        %v2112 = vadd.f32 0.0, %v2111
        %v2113 = vpop.f32.mrb[0].mxu0
        %v2114 = vpop.f32.mrb[0].mxu0
        %v2115 = vpop.f32.mrb[0].mxu0
        %2116 = vmatprep.mubr.bf16.mxu0 0
        %2117 = vmatmul.mubr.bf16.gmra.mrb[0].mxu0 %v1530
        %v2118 = vpop.f32.mrb[0].mxu0
        %v2119 = vpop.f32.mrb[0].mxu0
        %v2120 = vpop.f32.mrb[0].mxu0
        %v2121 = vadd.f32 0.0, %v2120
        %v2122 = vpop.f32.mrb[0].mxu0
        %2123 = vmatprep.mubr.bf16.mxu0 0
        %2124 = vmatmul.mubr.bf16.gmra.mrb[0].mxu0 %v1532
        %v2125 = vpop.f32.mrb[0].mxu0
        %v2126 = vadd.f32 0.0, %v2125
        %v2127 = vpop.f32.mrb[0].mxu0
        %v2128 = vpop.f32.mrb[0].mxu0
        %v2129 = vpop.f32.mrb[0].mxu0
        %2130 = vdwg.mxu0
        %vm2163 = vcmask 1046528
        %v2164 = vrot.slane %v1911, 1
        %v2165 = vrot.slane %v1916, 1
        %v2166 = vsel %vm2163, %v2164, %v2165
        %v2167 = vrot.slane %v1925, 1
        %v2168 = vrot.slane %v1930, 1
        %v2169 = vsel %vm2163, %v2167, %v2168
        %v2170 = vrot.slane %v1939, 1
        %v2171 = vrot.slane %v1944, 1
        %v2172 = vsel %vm2163, %v2170, %v2171
        %v2173 = vrot.slane %v1953, 1
        %v2174 = vrot.slane %v1958, 1
        %v2175 = vsel %vm2163, %v2173, %v2174
        %v2176 = vrot.slane %v1967, 1
        %v2177 = vrot.slane %v1972, 1
        %v2178 = vsel %vm2163, %v2176, %v2177
        %v2179 = vrot.slane %v1981, 1
        %v2180 = vrot.slane %v1986, 1
        %v2181 = vsel %vm2163, %v2179, %v2180
        %v2182 = vrot.slane %v1995, 1
        %v2183 = vrot.slane %v2000, 1
        %v2184 = vsel %vm2163, %v2182, %v2183
        %v2185 = vrot.slane %v2009, 1
        %v2186 = vrot.slane %v2014, 1
        %v2187 = vsel %vm2163, %v2185, %v2186
        %v2188 = vrot.slane %v2023, 1
        %v2189 = vrot.slane %v2028, 1
        %v2190 = vsel %vm2163, %v2188, %v2189
        %v2191 = vrot.slane %v2037, 1
        %v2192 = vrot.slane %v2042, 1
        %v2193 = vsel %vm2163, %v2191, %v2192
        %v2194 = vrot.slane %v2051, 1
        %v2195 = vrot.slane %v2056, 1
        %v2196 = vsel %vm2163, %v2194, %v2195
        %v2197 = vrot.slane %v2065, 1
        %v2198 = vrot.slane %v2070, 1
        %v2199 = vsel %vm2163, %v2197, %v2198
        %v2200 = vrot.slane %v2079, 1
        %v2201 = vrot.slane %v2084, 1
        %v2202 = vsel %vm2163, %v2200, %v2201
        %v2203 = vrot.slane %v2093, 1
        %v2204 = vrot.slane %v2098, 1
        %v2205 = vsel %vm2163, %v2203, %v2204
        %v2206 = vrot.slane %v2107, 1
        %v2207 = vrot.slane %v2112, 1
        %v2208 = vsel %vm2163, %v2206, %v2207
        %v2209 = vrot.slane %v2121, 1
        %v2210 = vrot.slane %v2126, 1
        %v2211 = vsel %vm2163, %v2209, %v2210
        %v2260 = vadd.f32 %v1810, %v2164
        %v2261 = vadd.f32 %v1811, %v2166
        %v2262 = vadd.f32 %v1812, %v2165
        %v2263 = vadd.f32 %v1813, %v2167
        %v2264 = vadd.f32 %v1814, %v2169
        %v2265 = vadd.f32 %v1815, %v2168
        %v2266 = vadd.f32 %v1816, %v2170
        %v2267 = vadd.f32 %v1817, %v2172
        %v2268 = vadd.f32 %v1818, %v2171
        %v2269 = vadd.f32 %v1819, %v2173
        %v2270 = vadd.f32 %v1820, %v2175
        %v2271 = vadd.f32 %v1821, %v2174
        %v2272 = vadd.f32 %v1822, %v2176
        %v2273 = vadd.f32 %v1823, %v2178
        %v2274 = vadd.f32 %v1824, %v2177
        %v2275 = vadd.f32 %v1825, %v2179
        %v2276 = vadd.f32 %v1826, %v2181
        %v2277 = vadd.f32 %v1827, %v2180
        %v2278 = vadd.f32 %v1828, %v2182
        %v2279 = vadd.f32 %v1829, %v2184
        %v2280 = vadd.f32 %v1830, %v2183
        %v2281 = vadd.f32 %v1831, %v2185
        %v2282 = vadd.f32 %v1832, %v2187
        %v2283 = vadd.f32 %v1833, %v2186
        %v2284 = vadd.f32 %v1834, %v2188
        %v2285 = vadd.f32 %v1835, %v2190
        %v2286 = vadd.f32 %v1836, %v2189
        %v2287 = vadd.f32 %v1837, %v2191
        %v2288 = vadd.f32 %v1838, %v2193
        %v2289 = vadd.f32 %v1839, %v2192
        %v2290 = vadd.f32 %v1840, %v2194
        %v2291 = vadd.f32 %v1841, %v2196
        %v2292 = vadd.f32 %v1842, %v2195
        %v2293 = vadd.f32 %v1843, %v2197
        %v2294 = vadd.f32 %v1844, %v2199
        %v2295 = vadd.f32 %v1845, %v2198
        %v2296 = vadd.f32 %v1846, %v2200
        %v2297 = vadd.f32 %v1847, %v2202
        %v2298 = vadd.f32 %v1848, %v2201
        %v2299 = vadd.f32 %v1849, %v2203
        %v2300 = vadd.f32 %v1850, %v2205
        %v2301 = vadd.f32 %v1851, %v2204
        %v2302 = vadd.f32 %v1852, %v2206
        %v2303 = vadd.f32 %v1853, %v2208
        %v2304 = vadd.f32 %v1854, %v2207
        %v2305 = vadd.f32 %v1855, %v2209
        %v2306 = vadd.f32 %v1856, %v2211
        %v2307 = vadd.f32 %v1857, %v2210
        %s2308 = scalar_lea.vmem %s3, 24
        %v2309 = vld [vmem:[%s2308] sm:$0xf]
        %v2310 = vld [vmem:[%s2308 + $0x4] sm:$0xf]
        %v2311 = vld [vmem:[%s2308 + $0x8] sm:$0xf]
        %v2315 = vunpack.c.l.b16 %v2309
        %v2316 = vunpack.c.l.b16 %v2310
        %v2317 = vunpack.c.l.b16 %v2311
        %v2318 = vpack.c.b16 %v2316, %v2315
        %v2319 = vpack.c.b16 %v2317, %v2317
        %v2322 = vsel %vm979, %v2319, 0
        %2324 = vmatprep.subr.bf16.mxu0 0
        %2325 = vmatpush1.bf16.msra.mxu0 %v2318
        %2326 = vmatprep.subr.bf16.mxu0 0
        %2327 = vmatpush1.bf16.msra.mxu0 %v2322
        %2328 = vmatprep.subr.bf16.mxu0 0
        %2329 = vmatpush1.bf16.msra.mxu0 0
        %2330 = vmatprep.subr.bf16.mxu0 0
        %2331 = vmatpush1.bf16.msra.mxu0 0
        %2332 = vmatprep.subr.bf16.mxu0 0
        %2333 = vmatpush1.bf16.msra.mxu0 0
        %2334 = vmatprep.subr.bf16.mxu0 0
        %2335 = vmatpush1.bf16.msra.mxu0 0
        %2336 = vmatprep.subr.bf16.mxu0 0
        %2337 = vmatpush1.bf16.msra.mxu0 0
        %2338 = vmatprep.subr.bf16.mxu0 0
        %2339 = vmatpush1.bf16.msra.mxu0 0
        %2340 = vmatprep.subr.bf16.mxu0 0
        %2341 = vmatpush1.bf16.msra.mxu0 0
        %2342 = vmatprep.subr.bf16.mxu0 0
        %2343 = vmatpush1.bf16.msra.mxu0 0
        %2344 = vmatprep.subr.bf16.mxu0 0
        %2345 = vmatpush1.bf16.msra.mxu0 0
        %2346 = vmatprep.subr.bf16.mxu0 0
        %2347 = vmatpush1.bf16.msra.mxu0 0
        %2348 = vmatprep.subr.bf16.mxu0 0
        %2349 = vmatpush1.bf16.msra.mxu0 0
        %2350 = vmatprep.subr.bf16.mxu0 0
        %2351 = vmatpush1.bf16.msra.mxu0 0
        %2352 = vmatprep.subr.bf16.mxu0 0
        %2353 = vmatpush1.bf16.msra.mxu0 0
        %2354 = vmatprep.subr.bf16.mxu0 0
        %2355 = vmatpush1.bf16.msra.mxu0 0
        %2356 = vmatprep.mubr.bf16.mxu0 0
        %2357 = vmatmul.mubr.bf16.gmra.mrb[0].mxu0 %v1470
        %v2358 = vpop.f32.mrb[0].mxu0
        %v2359 = vpop.f32.mrb[0].mxu0
        %v2360 = vpop.f32.mrb[0].mxu0
        %v2361 = vadd.f32 0.0, %v2360
        %v2362 = vpop.f32.mrb[0].mxu0
        %2363 = vmatprep.mubr.bf16.mxu0 0
        %2364 = vmatmul.mubr.bf16.gmra.mrb[0].mxu0 %v1472
        %v2365 = vpop.f32.mrb[0].mxu0
        %v2366 = vadd.f32 0.0, %v2365
        %v2367 = vpop.f32.mrb[0].mxu0
        %v2368 = vpop.f32.mrb[0].mxu0
        %v2369 = vadd.f32 0.0, %v2368
        %v2370 = vpop.f32.mrb[0].mxu0
        %2371 = vmatprep.mubr.bf16.mxu0 0
        %2372 = vmatmul.mubr.bf16.gmra.mrb[0].mxu0 %v1474
        %v2373 = vpop.f32.mrb[0].mxu0
        %v2374 = vpop.f32.mrb[0].mxu0
        %v2375 = vpop.f32.mrb[0].mxu0
        %v2376 = vadd.f32 0.0, %v2375
        %v2377 = vpop.f32.mrb[0].mxu0
        %2378 = vmatprep.mubr.bf16.mxu0 0
        %2379 = vmatmul.mubr.bf16.gmra.mrb[0].mxu0 %v1476
        %v2380 = vpop.f32.mrb[0].mxu0
        %v2381 = vadd.f32 0.0, %v2380
        %v2382 = vpop.f32.mrb[0].mxu0
        %v2383 = vpop.f32.mrb[0].mxu0
        %v2384 = vadd.f32 0.0, %v2383
        %v2385 = vpop.f32.mrb[0].mxu0
        %2386 = vmatprep.mubr.bf16.mxu0 0
        %2387 = vmatmul.mubr.bf16.gmra.mrb[0].mxu0 %v1478
        %v2388 = vpop.f32.mrb[0].mxu0
        %v2389 = vpop.f32.mrb[0].mxu0
        %v2390 = vpop.f32.mrb[0].mxu0
        %v2391 = vadd.f32 0.0, %v2390
        %v2392 = vpop.f32.mrb[0].mxu0
        %2393 = vmatprep.mubr.bf16.mxu0 0
        %2394 = vmatmul.mubr.bf16.gmra.mrb[0].mxu0 %v1480
        %v2395 = vpop.f32.mrb[0].mxu0
        %v2396 = vadd.f32 0.0, %v2395
        %v2397 = vpop.f32.mrb[0].mxu0
        %v2398 = vpop.f32.mrb[0].mxu0
        %v2399 = vadd.f32 0.0, %v2398
        %v2400 = vpop.f32.mrb[0].mxu0
        %2401 = vmatprep.mubr.bf16.mxu0 0
        %2402 = vmatmul.mubr.bf16.gmra.mrb[0].mxu0 %v1482
        %v2403 = vpop.f32.mrb[0].mxu0
        %v2404 = vpop.f32.mrb[0].mxu0
        %v2405 = vpop.f32.mrb[0].mxu0
        %v2406 = vadd.f32 0.0, %v2405
        %v2407 = vpop.f32.mrb[0].mxu0
        %2408 = vmatprep.mubr.bf16.mxu0 0
        %2409 = vmatmul.mubr.bf16.gmra.mrb[0].mxu0 %v1484
        %v2410 = vpop.f32.mrb[0].mxu0
        %v2411 = vadd.f32 0.0, %v2410
        %v2412 = vpop.f32.mrb[0].mxu0
        %v2413 = vpop.f32.mrb[0].mxu0
        %v2414 = vadd.f32 0.0, %v2413
        %v2415 = vpop.f32.mrb[0].mxu0
        %2416 = vmatprep.mubr.bf16.mxu0 0
        %2417 = vmatmul.mubr.bf16.gmra.mrb[0].mxu0 %v1486
        %v2418 = vpop.f32.mrb[0].mxu0
        %v2419 = vpop.f32.mrb[0].mxu0
        %v2420 = vpop.f32.mrb[0].mxu0
        %v2421 = vadd.f32 0.0, %v2420
        %v2422 = vpop.f32.mrb[0].mxu0
        %2423 = vmatprep.mubr.bf16.mxu0 0
        %2424 = vmatmul.mubr.bf16.gmra.mrb[0].mxu0 %v1488
        %v2425 = vpop.f32.mrb[0].mxu0
        %v2426 = vadd.f32 0.0, %v2425
        %v2427 = vpop.f32.mrb[0].mxu0
        %v2428 = vpop.f32.mrb[0].mxu0
        %v2429 = vadd.f32 0.0, %v2428
        %v2430 = vpop.f32.mrb[0].mxu0
        %2431 = vmatprep.mubr.bf16.mxu0 0
        %2432 = vmatmul.mubr.bf16.gmra.mrb[0].mxu0 %v1490
        %v2433 = vpop.f32.mrb[0].mxu0
        %v2434 = vpop.f32.mrb[0].mxu0
        %v2435 = vpop.f32.mrb[0].mxu0
        %v2436 = vadd.f32 0.0, %v2435
        %v2437 = vpop.f32.mrb[0].mxu0
        %2438 = vmatprep.mubr.bf16.mxu0 0
        %2439 = vmatmul.mubr.bf16.gmra.mrb[0].mxu0 %v1492
        %v2440 = vpop.f32.mrb[0].mxu0
        %v2441 = vadd.f32 0.0, %v2440
        %v2442 = vpop.f32.mrb[0].mxu0
        %v2443 = vpop.f32.mrb[0].mxu0
        %v2444 = vadd.f32 0.0, %v2443
        %v2445 = vpop.f32.mrb[0].mxu0
        %2446 = vmatprep.mubr.bf16.mxu0 0
        %2447 = vmatmul.mubr.bf16.gmra.mrb[0].mxu0 %v1494
        %v2448 = vpop.f32.mrb[0].mxu0
        %v2449 = vpop.f32.mrb[0].mxu0
        %v2450 = vpop.f32.mrb[0].mxu0
        %v2451 = vadd.f32 0.0, %v2450
        %v2452 = vpop.f32.mrb[0].mxu0
        %2453 = vmatprep.mubr.bf16.mxu0 0
        %2454 = vmatmul.mubr.bf16.gmra.mrb[0].mxu0 %v1496
        %v2455 = vpop.f32.mrb[0].mxu0
        %v2456 = vadd.f32 0.0, %v2455
        %v2457 = vpop.f32.mrb[0].mxu0
        %v2458 = vpop.f32.mrb[0].mxu0
        %v2459 = vadd.f32 0.0, %v2458
        %v2460 = vpop.f32.mrb[0].mxu0
        %2461 = vmatprep.mubr.bf16.mxu0 0
        %2462 = vmatmul.mubr.bf16.gmra.mrb[0].mxu0 %v1498
        %v2463 = vpop.f32.mrb[0].mxu0
        %v2464 = vpop.f32.mrb[0].mxu0
        %v2465 = vpop.f32.mrb[0].mxu0
        %v2466 = vadd.f32 0.0, %v2465
        %v2467 = vpop.f32.mrb[0].mxu0
        %2468 = vmatprep.mubr.bf16.mxu0 0
        %2469 = vmatmul.mubr.bf16.gmra.mrb[0].mxu0 %v1500
        %v2470 = vpop.f32.mrb[0].mxu0
        %v2471 = vadd.f32 0.0, %v2470
        %v2472 = vpop.f32.mrb[0].mxu0
        %v2473 = vpop.f32.mrb[0].mxu0
        %v2474 = vadd.f32 0.0, %v2473
        %v2475 = vpop.f32.mrb[0].mxu0
        %2476 = vmatprep.mubr.bf16.mxu0 0
        %2477 = vmatmul.mubr.bf16.gmra.mrb[0].mxu0 %v1502
        %v2478 = vpop.f32.mrb[0].mxu0
        %v2479 = vpop.f32.mrb[0].mxu0
        %v2480 = vpop.f32.mrb[0].mxu0
        %v2481 = vadd.f32 0.0, %v2480
        %v2482 = vpop.f32.mrb[0].mxu0
        %2483 = vmatprep.mubr.bf16.mxu0 0
        %2484 = vmatmul.mubr.bf16.gmra.mrb[0].mxu0 %v1504
        %v2485 = vpop.f32.mrb[0].mxu0
        %v2486 = vadd.f32 0.0, %v2485
        %v2487 = vpop.f32.mrb[0].mxu0
        %v2488 = vpop.f32.mrb[0].mxu0
        %v2489 = vadd.f32 0.0, %v2488
        %v2490 = vpop.f32.mrb[0].mxu0
        %2491 = vmatprep.mubr.bf16.mxu0 0
        %2492 = vmatmul.mubr.bf16.gmra.mrb[0].mxu0 %v1506
        %v2493 = vpop.f32.mrb[0].mxu0
        %v2494 = vpop.f32.mrb[0].mxu0
        %v2495 = vpop.f32.mrb[0].mxu0
        %v2496 = vadd.f32 0.0, %v2495
        %v2497 = vpop.f32.mrb[0].mxu0
        %2498 = vmatprep.mubr.bf16.mxu0 0
        %2499 = vmatmul.mubr.bf16.gmra.mrb[0].mxu0 %v1508
        %v2500 = vpop.f32.mrb[0].mxu0
        %v2501 = vadd.f32 0.0, %v2500
        %v2502 = vpop.f32.mrb[0].mxu0
        %v2503 = vpop.f32.mrb[0].mxu0
        %v2504 = vadd.f32 0.0, %v2503
        %v2505 = vpop.f32.mrb[0].mxu0
        %2506 = vmatprep.mubr.bf16.mxu0 0
        %2507 = vmatmul.mubr.bf16.gmra.mrb[0].mxu0 %v1510
        %v2508 = vpop.f32.mrb[0].mxu0
        %v2509 = vpop.f32.mrb[0].mxu0
        %v2510 = vpop.f32.mrb[0].mxu0
        %v2511 = vadd.f32 0.0, %v2510
        %v2512 = vpop.f32.mrb[0].mxu0
        %2513 = vmatprep.mubr.bf16.mxu0 0
        %2514 = vmatmul.mubr.bf16.gmra.mrb[0].mxu0 %v1512
        %v2515 = vpop.f32.mrb[0].mxu0
        %v2516 = vadd.f32 0.0, %v2515
        %v2517 = vpop.f32.mrb[0].mxu0
        %v2518 = vpop.f32.mrb[0].mxu0
        %v2519 = vadd.f32 0.0, %v2518
        %v2520 = vpop.f32.mrb[0].mxu0
        %2521 = vmatprep.mubr.bf16.mxu0 0
        %2522 = vmatmul.mubr.bf16.gmra.mrb[0].mxu0 %v1514
        %v2523 = vpop.f32.mrb[0].mxu0
        %v2524 = vpop.f32.mrb[0].mxu0
        %v2525 = vpop.f32.mrb[0].mxu0
        %v2526 = vadd.f32 0.0, %v2525
        %v2527 = vpop.f32.mrb[0].mxu0
        %2528 = vmatprep.mubr.bf16.mxu0 0
        %2529 = vmatmul.mubr.bf16.gmra.mrb[0].mxu0 %v1516
        %v2530 = vpop.f32.mrb[0].mxu0
        %v2531 = vadd.f32 0.0, %v2530
        %v2532 = vpop.f32.mrb[0].mxu0
        %v2533 = vpop.f32.mrb[0].mxu0
        %v2534 = vadd.f32 0.0, %v2533
        %v2535 = vpop.f32.mrb[0].mxu0
        %2536 = vmatprep.mubr.bf16.mxu0 0
        %2537 = vmatmul.mubr.bf16.gmra.mrb[0].mxu0 %v1518
        %v2538 = vpop.f32.mrb[0].mxu0
        %v2539 = vpop.f32.mrb[0].mxu0
        %v2540 = vpop.f32.mrb[0].mxu0
        %v2541 = vadd.f32 0.0, %v2540
        %v2542 = vpop.f32.mrb[0].mxu0
        %2543 = vmatprep.mubr.bf16.mxu0 0
        %2544 = vmatmul.mubr.bf16.gmra.mrb[0].mxu0 %v1520
        %v2545 = vpop.f32.mrb[0].mxu0
        %v2546 = vadd.f32 0.0, %v2545
        %v2547 = vpop.f32.mrb[0].mxu0
        %v2548 = vpop.f32.mrb[0].mxu0
        %v2549 = vadd.f32 0.0, %v2548
        %v2550 = vpop.f32.mrb[0].mxu0
        %2551 = vmatprep.mubr.bf16.mxu0 0
        %2552 = vmatmul.mubr.bf16.gmra.mrb[0].mxu0 %v1522
        %v2553 = vpop.f32.mrb[0].mxu0
        %v2554 = vpop.f32.mrb[0].mxu0
        %v2555 = vpop.f32.mrb[0].mxu0
        %v2556 = vadd.f32 0.0, %v2555
        %v2557 = vpop.f32.mrb[0].mxu0
        %2558 = vmatprep.mubr.bf16.mxu0 0
        %2559 = vmatmul.mubr.bf16.gmra.mrb[0].mxu0 %v1524
        %v2560 = vpop.f32.mrb[0].mxu0
        %v2561 = vadd.f32 0.0, %v2560
        %v2562 = vpop.f32.mrb[0].mxu0
        %v2563 = vpop.f32.mrb[0].mxu0
        %v2564 = vadd.f32 0.0, %v2563
        %v2565 = vpop.f32.mrb[0].mxu0
        %2566 = vmatprep.mubr.bf16.mxu0 0
        %2567 = vmatmul.mubr.bf16.gmra.mrb[0].mxu0 %v1526
        %v2568 = vpop.f32.mrb[0].mxu0
        %v2569 = vpop.f32.mrb[0].mxu0
        %v2570 = vpop.f32.mrb[0].mxu0
        %v2571 = vadd.f32 0.0, %v2570
        %v2572 = vpop.f32.mrb[0].mxu0
        %2573 = vmatprep.mubr.bf16.mxu0 0
        %2574 = vmatmul.mubr.bf16.gmra.mrb[0].mxu0 %v1528
        %v2575 = vpop.f32.mrb[0].mxu0
        %v2576 = vadd.f32 0.0, %v2575
        %v2577 = vpop.f32.mrb[0].mxu0
        %v2578 = vpop.f32.mrb[0].mxu0
        %v2579 = vadd.f32 0.0, %v2578
        %v2580 = vpop.f32.mrb[0].mxu0
        %2581 = vmatprep.mubr.bf16.mxu0 0
        %2582 = vmatmul.mubr.bf16.gmra.mrb[0].mxu0 %v1530
        %v2583 = vpop.f32.mrb[0].mxu0
        %v2584 = vpop.f32.mrb[0].mxu0
        %v2585 = vpop.f32.mrb[0].mxu0
        %v2586 = vadd.f32 0.0, %v2585
        %v2587 = vpop.f32.mrb[0].mxu0
        %2588 = vmatprep.mubr.bf16.mxu0 0
        %2589 = vmatmul.mubr.bf16.gmra.mrb[0].mxu0 %v1532
        %v2590 = vpop.f32.mrb[0].mxu0
        %v2591 = vadd.f32 0.0, %v2590
        %v2592 = vpop.f32.mrb[0].mxu0
        %v2593 = vpop.f32.mrb[0].mxu0
        %v2594 = vadd.f32 0.0, %v2593
        %v2595 = vpop.f32.mrb[0].mxu0
        %2596 = vdwg.mxu0
        %v2645 = vrot.slane %v2361, 2
        %v2646 = vrot.slane %v2366, 2
        %v2647 = vsel %vm732, %v2645, %v2646
        %v2648 = vrot.slane %v2369, 2
        %v2649 = vsel %vm732, %v2646, %v2648
        %v2650 = vrot.slane %v2376, 2
        %v2651 = vrot.slane %v2381, 2
        %v2652 = vsel %vm732, %v2650, %v2651
        %v2653 = vrot.slane %v2384, 2
        %v2654 = vsel %vm732, %v2651, %v2653
        %v2655 = vrot.slane %v2391, 2
        %v2656 = vrot.slane %v2396, 2
        %v2657 = vsel %vm732, %v2655, %v2656
        %v2658 = vrot.slane %v2399, 2
        %v2659 = vsel %vm732, %v2656, %v2658
        %v2660 = vrot.slane %v2406, 2
        %v2661 = vrot.slane %v2411, 2
        %v2662 = vsel %vm732, %v2660, %v2661
        %v2663 = vrot.slane %v2414, 2
        %v2664 = vsel %vm732, %v2661, %v2663
        %v2665 = vrot.slane %v2421, 2
        %v2666 = vrot.slane %v2426, 2
        %v2667 = vsel %vm732, %v2665, %v2666
        %v2668 = vrot.slane %v2429, 2
        %v2669 = vsel %vm732, %v2666, %v2668
        %v2670 = vrot.slane %v2436, 2
        %v2671 = vrot.slane %v2441, 2
        %v2672 = vsel %vm732, %v2670, %v2671
        %v2673 = vrot.slane %v2444, 2
        %v2674 = vsel %vm732, %v2671, %v2673
        %v2675 = vrot.slane %v2451, 2
        %v2676 = vrot.slane %v2456, 2
        %v2677 = vsel %vm732, %v2675, %v2676
        %v2678 = vrot.slane %v2459, 2
        %v2679 = vsel %vm732, %v2676, %v2678
        %v2680 = vrot.slane %v2466, 2
        %v2681 = vrot.slane %v2471, 2
        %v2682 = vsel %vm732, %v2680, %v2681
        %v2683 = vrot.slane %v2474, 2
        %v2684 = vsel %vm732, %v2681, %v2683
        %v2685 = vrot.slane %v2481, 2
        %v2686 = vrot.slane %v2486, 2
        %v2687 = vsel %vm732, %v2685, %v2686
        %v2688 = vrot.slane %v2489, 2
        %v2689 = vsel %vm732, %v2686, %v2688
        %v2690 = vrot.slane %v2496, 2
        %v2691 = vrot.slane %v2501, 2
        %v2692 = vsel %vm732, %v2690, %v2691
        %v2693 = vrot.slane %v2504, 2
        %v2694 = vsel %vm732, %v2691, %v2693
        %v2695 = vrot.slane %v2511, 2
        %v2696 = vrot.slane %v2516, 2
        %v2697 = vsel %vm732, %v2695, %v2696
        %v2698 = vrot.slane %v2519, 2
        %v2699 = vsel %vm732, %v2696, %v2698
        %v2700 = vrot.slane %v2526, 2
        %v2701 = vrot.slane %v2531, 2
        %v2702 = vsel %vm732, %v2700, %v2701
        %v2703 = vrot.slane %v2534, 2
        %v2704 = vsel %vm732, %v2701, %v2703
        %v2705 = vrot.slane %v2541, 2
        %v2706 = vrot.slane %v2546, 2
        %v2707 = vsel %vm732, %v2705, %v2706
        %v2708 = vrot.slane %v2549, 2
        %v2709 = vsel %vm732, %v2706, %v2708
        %v2710 = vrot.slane %v2556, 2
        %v2711 = vrot.slane %v2561, 2
        %v2712 = vsel %vm732, %v2710, %v2711
        %v2713 = vrot.slane %v2564, 2
        %v2714 = vsel %vm732, %v2711, %v2713
        %v2715 = vrot.slane %v2571, 2
        %v2716 = vrot.slane %v2576, 2
        %v2717 = vsel %vm732, %v2715, %v2716
        %v2718 = vrot.slane %v2579, 2
        %v2719 = vsel %vm732, %v2716, %v2718
        %v2720 = vrot.slane %v2586, 2
        %v2721 = vrot.slane %v2591, 2
        %v2722 = vsel %vm732, %v2720, %v2721
        %v2723 = vrot.slane %v2594, 2
        %v2724 = vsel %vm732, %v2721, %v2723
        %v2773 = vadd.f32 %v2260, %v2645
        %v2774 = vadd.f32 %v2261, %v2647
        %v2775 = vadd.f32 %v2262, %v2649
        %v2776 = vadd.f32 %v2263, %v2650
        %v2777 = vadd.f32 %v2264, %v2652
        %v2778 = vadd.f32 %v2265, %v2654
        %v2779 = vadd.f32 %v2266, %v2655
        %v2780 = vadd.f32 %v2267, %v2657
        %v2781 = vadd.f32 %v2268, %v2659
        %v2782 = vadd.f32 %v2269, %v2660
        %v2783 = vadd.f32 %v2270, %v2662
        %v2784 = vadd.f32 %v2271, %v2664
        %v2785 = vadd.f32 %v2272, %v2665
        %v2786 = vadd.f32 %v2273, %v2667
        %v2787 = vadd.f32 %v2274, %v2669
        %v2788 = vadd.f32 %v2275, %v2670
        %v2789 = vadd.f32 %v2276, %v2672
        %v2790 = vadd.f32 %v2277, %v2674
        %v2791 = vadd.f32 %v2278, %v2675
        %v2792 = vadd.f32 %v2279, %v2677
        %v2793 = vadd.f32 %v2280, %v2679
        %v2794 = vadd.f32 %v2281, %v2680
        %v2795 = vadd.f32 %v2282, %v2682
        %v2796 = vadd.f32 %v2283, %v2684
        %v2797 = vadd.f32 %v2284, %v2685
        %v2798 = vadd.f32 %v2285, %v2687
        %v2799 = vadd.f32 %v2286, %v2689
        %v2800 = vadd.f32 %v2287, %v2690
        %v2801 = vadd.f32 %v2288, %v2692
        %v2802 = vadd.f32 %v2289, %v2694
        %v2803 = vadd.f32 %v2290, %v2695
        %v2804 = vadd.f32 %v2291, %v2697
        %v2805 = vadd.f32 %v2292, %v2699
        %v2806 = vadd.f32 %v2293, %v2700
        %v2807 = vadd.f32 %v2294, %v2702
        %v2808 = vadd.f32 %v2295, %v2704
        %v2809 = vadd.f32 %v2296, %v2705
        %v2810 = vadd.f32 %v2297, %v2707
        %v2811 = vadd.f32 %v2298, %v2709
        %v2812 = vadd.f32 %v2299, %v2710
        %v2813 = vadd.f32 %v2300, %v2712
        %v2814 = vadd.f32 %v2301, %v2714
        %v2815 = vadd.f32 %v2302, %v2715
        %v2816 = vadd.f32 %v2303, %v2717
        %v2817 = vadd.f32 %v2304, %v2719
        %v2818 = vadd.f32 %v2305, %v2720
        %v2819 = vadd.f32 %v2306, %v2722
        %v2820 = vadd.f32 %v2307, %v2724
        %v2821 = vld [vmem:[%s4] sm:$0x1]
        %v2823 = vlaneseq
        %v2824 = vshrl.u32 %v2823, 7
        %v2825 = vsub.s32 0, %v2824
        %v2826 = vrot.slane %v2821, %v2825
        %v2828 = vadd.f32 %v2773, %v2826
        %v2829 = vadd.f32 %v2774, %v2826
        %v2830 = vadd.f32 %v2775, %v2826
        %v2831 = vadd.f32 %v2776, %v2826
        %v2832 = vadd.f32 %v2777, %v2826
        %v2833 = vadd.f32 %v2778, %v2826
        %v2834 = vadd.f32 %v2779, %v2826
        %v2835 = vadd.f32 %v2780, %v2826
        %v2836 = vadd.f32 %v2781, %v2826
        %v2837 = vadd.f32 %v2782, %v2826
        %v2838 = vadd.f32 %v2783, %v2826
        %v2839 = vadd.f32 %v2784, %v2826
        %v2840 = vadd.f32 %v2785, %v2826
        %v2841 = vadd.f32 %v2786, %v2826
        %v2842 = vadd.f32 %v2787, %v2826
        %v2843 = vadd.f32 %v2788, %v2826
        %v2844 = vadd.f32 %v2789, %v2826
        %v2845 = vadd.f32 %v2790, %v2826
        %v2846 = vadd.f32 %v2791, %v2826
        %v2847 = vadd.f32 %v2792, %v2826
        %v2848 = vadd.f32 %v2793, %v2826
        %v2849 = vadd.f32 %v2794, %v2826
        %v2850 = vadd.f32 %v2795, %v2826
        %v2851 = vadd.f32 %v2796, %v2826
        %v2852 = vadd.f32 %v2797, %v2826
        %v2853 = vadd.f32 %v2798, %v2826
        %v2854 = vadd.f32 %v2799, %v2826
        %v2855 = vadd.f32 %v2800, %v2826
        %v2856 = vadd.f32 %v2801, %v2826
        %v2857 = vadd.f32 %v2802, %v2826
        %v2858 = vadd.f32 %v2803, %v2826
        %v2859 = vadd.f32 %v2804, %v2826
        %v2860 = vadd.f32 %v2805, %v2826
        %v2861 = vadd.f32 %v2806, %v2826
        %v2862 = vadd.f32 %v2807, %v2826
        %v2863 = vadd.f32 %v2808, %v2826
        %v2864 = vadd.f32 %v2809, %v2826
        %v2865 = vadd.f32 %v2810, %v2826
        %v2866 = vadd.f32 %v2811, %v2826
        %v2867 = vadd.f32 %v2812, %v2826
        %v2868 = vadd.f32 %v2813, %v2826
        %v2869 = vadd.f32 %v2814, %v2826
        %v2870 = vadd.f32 %v2815, %v2826
        %v2871 = vadd.f32 %v2816, %v2826
        %v2872 = vadd.f32 %v2817, %v2826
        %v2873 = vadd.f32 %v2818, %v2826
        %v2874 = vadd.f32 %v2819, %v2826
        %v2875 = vadd.f32 %v2820, %v2826
        %v2876 = vmax.f32 %v2828, 0.0
        %v2877 = vmax.f32 %v2829, 0.0
        %v2878 = vmax.f32 %v2830, 0.0
        %v2879 = vmax.f32 %v2831, 0.0
        %v2880 = vmax.f32 %v2832, 0.0
        %v2881 = vmax.f32 %v2833, 0.0
        %v2882 = vmax.f32 %v2834, 0.0
        %v2883 = vmax.f32 %v2835, 0.0
        %v2884 = vmax.f32 %v2836, 0.0
        %v2885 = vmax.f32 %v2837, 0.0
        %v2886 = vmax.f32 %v2838, 0.0
        %v2887 = vmax.f32 %v2839, 0.0
        %v2888 = vmax.f32 %v2840, 0.0
        %v2889 = vmax.f32 %v2841, 0.0
        %v2890 = vmax.f32 %v2842, 0.0
        %v2891 = vmax.f32 %v2843, 0.0
        %v2892 = vmax.f32 %v2844, 0.0
        %v2893 = vmax.f32 %v2845, 0.0
        %v2894 = vmax.f32 %v2846, 0.0
        %v2895 = vmax.f32 %v2847, 0.0
        %v2896 = vmax.f32 %v2848, 0.0
        %v2897 = vmax.f32 %v2849, 0.0
        %v2898 = vmax.f32 %v2850, 0.0
        %v2899 = vmax.f32 %v2851, 0.0
        %v2900 = vmax.f32 %v2852, 0.0
        %v2901 = vmax.f32 %v2853, 0.0
        %v2902 = vmax.f32 %v2854, 0.0
        %v2903 = vmax.f32 %v2855, 0.0
        %v2904 = vmax.f32 %v2856, 0.0
        %v2905 = vmax.f32 %v2857, 0.0
        %v2906 = vmax.f32 %v2858, 0.0
        %v2907 = vmax.f32 %v2859, 0.0
        %v2908 = vmax.f32 %v2860, 0.0
        %v2909 = vmax.f32 %v2861, 0.0
        %v2910 = vmax.f32 %v2862, 0.0
        %v2911 = vmax.f32 %v2863, 0.0
        %v2912 = vmax.f32 %v2864, 0.0
        %v2913 = vmax.f32 %v2865, 0.0
        %v2914 = vmax.f32 %v2866, 0.0
        %v2915 = vmax.f32 %v2867, 0.0
        %v2916 = vmax.f32 %v2868, 0.0
        %v2917 = vmax.f32 %v2869, 0.0
        %v2918 = vmax.f32 %v2870, 0.0
        %v2919 = vmax.f32 %v2871, 0.0
        %v2920 = vmax.f32 %v2872, 0.0
        %v2921 = vmax.f32 %v2873, 0.0
        %v2922 = vmax.f32 %v2874, 0.0
        %v2923 = vmax.f32 %v2875, 0.0
        %v2924 = vpack.c.bf16 %v2877, %v2876
        %v2925 = vpack.c.bf16 %v2878, %v2878
        %v2926 = vpack.c.bf16 %v2880, %v2879
        %v2927 = vpack.c.bf16 %v2881, %v2881
        %v2928 = vpack.c.bf16 %v2883, %v2882
        %v2929 = vpack.c.bf16 %v2884, %v2884
        %v2930 = vpack.c.bf16 %v2886, %v2885
        %v2931 = vpack.c.bf16 %v2887, %v2887
        %v2932 = vpack.c.bf16 %v2889, %v2888
        %v2933 = vpack.c.bf16 %v2890, %v2890
        %v2934 = vpack.c.bf16 %v2892, %v2891
        %v2935 = vpack.c.bf16 %v2893, %v2893
        %v2936 = vpack.c.bf16 %v2895, %v2894
        %v2937 = vpack.c.bf16 %v2896, %v2896
        %v2938 = vpack.c.bf16 %v2898, %v2897
        %v2939 = vpack.c.bf16 %v2899, %v2899
        %v2940 = vpack.c.bf16 %v2901, %v2900
        %v2941 = vpack.c.bf16 %v2902, %v2902
        %v2942 = vpack.c.bf16 %v2904, %v2903
        %v2943 = vpack.c.bf16 %v2905, %v2905
        %v2944 = vpack.c.bf16 %v2907, %v2906
        %v2945 = vpack.c.bf16 %v2908, %v2908
        %v2946 = vpack.c.bf16 %v2910, %v2909
        %v2947 = vpack.c.bf16 %v2911, %v2911
        %v2948 = vpack.c.bf16 %v2913, %v2912
        %v2949 = vpack.c.bf16 %v2914, %v2914
        %v2950 = vpack.c.bf16 %v2916, %v2915
        %v2951 = vpack.c.bf16 %v2917, %v2917
        %v2952 = vpack.c.bf16 %v2919, %v2918
        %v2953 = vpack.c.bf16 %v2920, %v2920
        %v2954 = vpack.c.bf16 %v2922, %v2921
        %v2955 = vpack.c.bf16 %v2923, %v2923
        %vm2956 = vsmask.f32 256
        %v2958 = vshrl.u32 %v2924, 16
        %v2960 = vrot.slane %v2958, 7
        %v2961 = vshll.u32 %v2924, 16
        %v2963 = vor.u32 %v2960, %v2961
        %v2965 = vshrl.u32 %v2925, 16
        %v2967 = vrot.slane %v2965, 7
        %v2968 = vshll.u32 %v2925, 16
        %v2970 = vor.u32 %v2967, %v2968
        %v2971 = vsel %vm2956, %v2960, %v2970
        %v2973 = vshrl.u32 %v2926, 16
        %v2975 = vrot.slane %v2973, 7
        %v2976 = vshll.u32 %v2926, 16
        %v2978 = vor.u32 %v2975, %v2976
        %v2980 = vshrl.u32 %v2927, 16
        %v2982 = vrot.slane %v2980, 7
        %v2983 = vshll.u32 %v2927, 16
        %v2985 = vor.u32 %v2982, %v2983
        %v2986 = vsel %vm2956, %v2975, %v2985
        %v2988 = vshrl.u32 %v2928, 16
        %v2990 = vrot.slane %v2988, 7
        %v2991 = vshll.u32 %v2928, 16
        %v2993 = vor.u32 %v2990, %v2991
        %v2995 = vshrl.u32 %v2929, 16
        %v2997 = vrot.slane %v2995, 7
        %v2998 = vshll.u32 %v2929, 16
        %v3000 = vor.u32 %v2997, %v2998
        %v3001 = vsel %vm2956, %v2990, %v3000
        %v3003 = vshrl.u32 %v2930, 16
        %v3005 = vrot.slane %v3003, 7
        %v3006 = vshll.u32 %v2930, 16
        %v3008 = vor.u32 %v3005, %v3006
        %v3010 = vshrl.u32 %v2931, 16
        %v3012 = vrot.slane %v3010, 7
        %v3013 = vshll.u32 %v2931, 16
        %v3015 = vor.u32 %v3012, %v3013
        %v3016 = vsel %vm2956, %v3005, %v3015
        %v3018 = vshrl.u32 %v2932, 16
        %v3020 = vrot.slane %v3018, 7
        %v3021 = vshll.u32 %v2932, 16
        %v3023 = vor.u32 %v3020, %v3021
        %v3025 = vshrl.u32 %v2933, 16
        %v3027 = vrot.slane %v3025, 7
        %v3028 = vshll.u32 %v2933, 16
        %v3030 = vor.u32 %v3027, %v3028
        %v3031 = vsel %vm2956, %v3020, %v3030
        %v3033 = vshrl.u32 %v2934, 16
        %v3035 = vrot.slane %v3033, 7
        %v3036 = vshll.u32 %v2934, 16
        %v3038 = vor.u32 %v3035, %v3036
        %v3040 = vshrl.u32 %v2935, 16
        %v3042 = vrot.slane %v3040, 7
        %v3043 = vshll.u32 %v2935, 16
        %v3045 = vor.u32 %v3042, %v3043
        %v3046 = vsel %vm2956, %v3035, %v3045
        %v3048 = vshrl.u32 %v2936, 16
        %v3050 = vrot.slane %v3048, 7
        %v3051 = vshll.u32 %v2936, 16
        %v3053 = vor.u32 %v3050, %v3051
        %v3055 = vshrl.u32 %v2937, 16
        %v3057 = vrot.slane %v3055, 7
        %v3058 = vshll.u32 %v2937, 16
        %v3060 = vor.u32 %v3057, %v3058
        %v3061 = vsel %vm2956, %v3050, %v3060
        %v3063 = vshrl.u32 %v2938, 16
        %v3065 = vrot.slane %v3063, 7
        %v3066 = vshll.u32 %v2938, 16
        %v3068 = vor.u32 %v3065, %v3066
        %v3070 = vshrl.u32 %v2939, 16
        %v3072 = vrot.slane %v3070, 7
        %v3073 = vshll.u32 %v2939, 16
        %v3075 = vor.u32 %v3072, %v3073
        %v3076 = vsel %vm2956, %v3065, %v3075
        %v3078 = vshrl.u32 %v2940, 16
        %v3080 = vrot.slane %v3078, 7
        %v3081 = vshll.u32 %v2940, 16
        %v3083 = vor.u32 %v3080, %v3081
        %v3085 = vshrl.u32 %v2941, 16
        %v3087 = vrot.slane %v3085, 7
        %v3088 = vshll.u32 %v2941, 16
        %v3090 = vor.u32 %v3087, %v3088
        %v3091 = vsel %vm2956, %v3080, %v3090
        %v3093 = vshrl.u32 %v2942, 16
        %v3095 = vrot.slane %v3093, 7
        %v3096 = vshll.u32 %v2942, 16
        %v3098 = vor.u32 %v3095, %v3096
        %v3100 = vshrl.u32 %v2943, 16
        %v3102 = vrot.slane %v3100, 7
        %v3103 = vshll.u32 %v2943, 16
        %v3105 = vor.u32 %v3102, %v3103
        %v3106 = vsel %vm2956, %v3095, %v3105
        %v3108 = vshrl.u32 %v2944, 16
        %v3110 = vrot.slane %v3108, 7
        %v3111 = vshll.u32 %v2944, 16
        %v3113 = vor.u32 %v3110, %v3111
        %v3115 = vshrl.u32 %v2945, 16
        %v3117 = vrot.slane %v3115, 7
        %v3118 = vshll.u32 %v2945, 16
        %v3120 = vor.u32 %v3117, %v3118
        %v3121 = vsel %vm2956, %v3110, %v3120
        %v3123 = vshrl.u32 %v2946, 16
        %v3125 = vrot.slane %v3123, 7
        %v3126 = vshll.u32 %v2946, 16
        %v3128 = vor.u32 %v3125, %v3126
        %v3130 = vshrl.u32 %v2947, 16
        %v3132 = vrot.slane %v3130, 7
        %v3133 = vshll.u32 %v2947, 16
        %v3135 = vor.u32 %v3132, %v3133
        %v3136 = vsel %vm2956, %v3125, %v3135
        %v3138 = vshrl.u32 %v2948, 16
        %v3140 = vrot.slane %v3138, 7
        %v3141 = vshll.u32 %v2948, 16
        %v3143 = vor.u32 %v3140, %v3141
        %v3145 = vshrl.u32 %v2949, 16
        %v3147 = vrot.slane %v3145, 7
        %v3148 = vshll.u32 %v2949, 16
        %v3150 = vor.u32 %v3147, %v3148
        %v3151 = vsel %vm2956, %v3140, %v3150
        %v3153 = vshrl.u32 %v2950, 16
        %v3155 = vrot.slane %v3153, 7
        %v3156 = vshll.u32 %v2950, 16
        %v3158 = vor.u32 %v3155, %v3156
        %v3160 = vshrl.u32 %v2951, 16
        %v3162 = vrot.slane %v3160, 7
        %v3163 = vshll.u32 %v2951, 16
        %v3165 = vor.u32 %v3162, %v3163
        %v3166 = vsel %vm2956, %v3155, %v3165
        %v3168 = vshrl.u32 %v2952, 16
        %v3170 = vrot.slane %v3168, 7
        %v3171 = vshll.u32 %v2952, 16
        %v3173 = vor.u32 %v3170, %v3171
        %v3175 = vshrl.u32 %v2953, 16
        %v3177 = vrot.slane %v3175, 7
        %v3178 = vshll.u32 %v2953, 16
        %v3180 = vor.u32 %v3177, %v3178
        %v3181 = vsel %vm2956, %v3170, %v3180
        %v3183 = vshrl.u32 %v2954, 16
        %v3185 = vrot.slane %v3183, 7
        %v3186 = vshll.u32 %v2954, 16
        %v3188 = vor.u32 %v3185, %v3186
        %v3190 = vshrl.u32 %v2955, 16
        %v3192 = vrot.slane %v3190, 7
        %v3193 = vshll.u32 %v2955, 16
        %v3195 = vor.u32 %v3192, %v3193
        %v3196 = vsel %vm2956, %v3185, %v3195
        %v3198 = vsel %vm979, 0, %v2963
        %v3201 = vsel %vm979, 0, %v2978
        %v3204 = vsel %vm979, 0, %v2993
        %v3207 = vsel %vm979, 0, %v3008
        %v3210 = vsel %vm979, 0, %v3023
        %v3213 = vsel %vm979, 0, %v3038
        %v3216 = vsel %vm979, 0, %v3053
        %v3219 = vsel %vm979, 0, %v3068
        %v3222 = vsel %vm979, 0, %v3083
        %v3225 = vsel %vm979, 0, %v3098
        %v3228 = vsel %vm979, 0, %v3113
        %v3231 = vsel %vm979, 0, %v3128
        %v3234 = vsel %vm979, 0, %v3143
        %v3237 = vsel %vm979, 0, %v3158
        %v3240 = vsel %vm979, 0, %v3173
        %v3243 = vsel %vm979, 0, %v3188
        %v3246 = vsel %vm979, %v2971, 0
        %v3249 = vsel %vm979, %v2986, 0
        %v3252 = vsel %vm979, %v3001, 0
        %v3255 = vsel %vm979, %v3016, 0
        %v3258 = vsel %vm979, %v3031, 0
        %v3261 = vsel %vm979, %v3046, 0
        %v3264 = vsel %vm979, %v3061, 0
        %v3267 = vsel %vm979, %v3076, 0
        %v3270 = vsel %vm979, %v3091, 0
        %v3273 = vsel %vm979, %v3106, 0
        %v3276 = vsel %vm979, %v3121, 0
        %v3279 = vsel %vm979, %v3136, 0
        %v3282 = vsel %vm979, %v3151, 0
        %v3285 = vsel %vm979, %v3166, 0
        %v3288 = vsel %vm979, %v3181, 0
        %v3291 = vsel %vm979, %v3196, 0
        %3293 = vst.msk [vmem:[#allocation3] sm:$0xff] %vm1061, 0
        %3294 = vst.msk [vmem:[#allocation3 + $0x8] sm:$0xff] %vm1061, 0
        %3295 = vst.msk [vmem:[#allocation3 + $0x10] sm:$0xff] %vm1061, %v3198
        %3296 = vst.msk [vmem:[#allocation3 + $0x18] sm:$0xff] %vm1061, %v3246
        %3297 = vst.msk [vmem:[#allocation3 + $0x20] sm:$0xff] %vm1061, %v3201
        %3298 = vst.msk [vmem:[#allocation3 + $0x28] sm:$0xff] %vm1061, %v3249
        %3299 = vst.msk [vmem:[#allocation3 + $0x30] sm:$0xff] %vm1061, %v3204
        %3300 = vst.msk [vmem:[#allocation3 + $0x38] sm:$0xff] %vm1061, %v3252
        %3301 = vst.msk [vmem:[#allocation3 + $0x40] sm:$0xff] %vm1061, %v3207
        %3302 = vst.msk [vmem:[#allocation3 + $0x48] sm:$0xff] %vm1061, %v3255
        %3303 = vst.msk [vmem:[#allocation3 + $0x50] sm:$0xff] %vm1061, %v3210
        %3304 = vst.msk [vmem:[#allocation3 + $0x58] sm:$0xff] %vm1061, %v3258
        %3305 = vst.msk [vmem:[#allocation3 + $0x60] sm:$0xff] %vm1061, %v3213
        %3306 = vst.msk [vmem:[#allocation3 + $0x68] sm:$0xff] %vm1061, %v3261
        %3307 = vst.msk [vmem:[#allocation3 + $0x70] sm:$0xff] %vm1061, %v3216
        %3308 = vst.msk [vmem:[#allocation3 + $0x78] sm:$0xff] %vm1061, %v3264
        %3309 = vst.msk [vmem:[#allocation3 + $0x80] sm:$0xff] %vm1061, %v3219
        %3310 = vst.msk [vmem:[#allocation3 + $0x88] sm:$0xff] %vm1061, %v3267
        %3311 = vst.msk [vmem:[#allocation3 + $0x90] sm:$0xff] %vm1061, %v3222
        %3312 = vst.msk [vmem:[#allocation3 + $0x98] sm:$0xff] %vm1061, %v3270
        %3313 = vst.msk [vmem:[#allocation3 + $0xa0] sm:$0xff] %vm1061, %v3225
        %3314 = vst.msk [vmem:[#allocation3 + $0xa8] sm:$0xff] %vm1061, %v3273
        %3315 = vst.msk [vmem:[#allocation3 + $0xb0] sm:$0xff] %vm1061, %v3228
        %3316 = vst.msk [vmem:[#allocation3 + $0xb8] sm:$0xff] %vm1061, %v3276
        %3317 = vst.msk [vmem:[#allocation3 + $0xc0] sm:$0xff] %vm1061, %v3231
        %3318 = vst.msk [vmem:[#allocation3 + $0xc8] sm:$0xff] %vm1061, %v3279
        %3319 = vst.msk [vmem:[#allocation3 + $0xd0] sm:$0xff] %vm1061, %v3234
        %3320 = vst.msk [vmem:[#allocation3 + $0xd8] sm:$0xff] %vm1061, %v3282
        %3321 = vst.msk [vmem:[#allocation3 + $0xe0] sm:$0xff] %vm1061, %v3237
        %3322 = vst.msk [vmem:[#allocation3 + $0xe8] sm:$0xff] %vm1061, %v3285
        %3323 = vst.msk [vmem:[#allocation3 + $0xf0] sm:$0xff] %vm1061, %v3240
        %3324 = vst.msk [vmem:[#allocation3 + $0xf8] sm:$0xff] %vm1061, %v3288
        %3325 = vst.msk [vmem:[#allocation3 + $0x100] sm:$0xff] %vm1061, %v3243
        %3326 = vst.msk [vmem:[#allocation3 + $0x108] sm:$0xff] %vm1061, %v3291
        %3327 = vst.msk [vmem:[#allocation3 + $0x110] sm:$0xff] %vm1061, 0
        %3328 = vst.msk [vmem:[#allocation3 + $0x118] sm:$0xff] %vm1061, 0
        %v3329 = vld [vmem:[#allocation3] sm:$0xff]
        %v3330 = vld [vmem:[#allocation3 + $0x8] sm:$0xff]
        %v3331 = vld [vmem:[#allocation3 + $0x10] sm:$0xff]
        %v3332 = vld [vmem:[#allocation3 + $0x18] sm:$0xff]
        %v3333 = vld [vmem:[#allocation3 + $0x20] sm:$0xff]
        %v3334 = vld [vmem:[#allocation3 + $0x28] sm:$0xff]
        %v3335 = vld [vmem:[#allocation3 + $0x30] sm:$0xff]
        %v3336 = vld [vmem:[#allocation3 + $0x38] sm:$0xff]
        %v3337 = vld [vmem:[#allocation3 + $0x40] sm:$0xff]
        %v3338 = vld [vmem:[#allocation3 + $0x48] sm:$0xff]
        %v3339 = vld [vmem:[#allocation3 + $0x50] sm:$0xff]
        %v3340 = vld [vmem:[#allocation3 + $0x58] sm:$0xff]
        %v3341 = vld [vmem:[#allocation3 + $0x60] sm:$0xff]
        %v3342 = vld [vmem:[#allocation3 + $0x68] sm:$0xff]
        %v3343 = vld [vmem:[#allocation3 + $0x70] sm:$0xff]
        %v3344 = vld [vmem:[#allocation3 + $0x78] sm:$0xff]
        %v3345 = vld [vmem:[#allocation3 + $0x80] sm:$0xff]
        %v3346 = vld [vmem:[#allocation3 + $0x88] sm:$0xff]
        %v3347 = vld [vmem:[#allocation3 + $0x90] sm:$0xff]
        %v3348 = vld [vmem:[#allocation3 + $0x98] sm:$0xff]
        %v3349 = vld [vmem:[#allocation3 + $0xa0] sm:$0xff]
        %v3350 = vld [vmem:[#allocation3 + $0xa8] sm:$0xff]
        %v3351 = vld [vmem:[#allocation3 + $0xb0] sm:$0xff]
        %v3352 = vld [vmem:[#allocation3 + $0xb8] sm:$0xff]
        %v3353 = vld [vmem:[#allocation3 + $0xc0] sm:$0xff]
        %v3354 = vld [vmem:[#allocation3 + $0xc8] sm:$0xff]
        %v3355 = vld [vmem:[#allocation3 + $0xd0] sm:$0xff]
        %v3356 = vld [vmem:[#allocation3 + $0xd8] sm:$0xff]
        %v3357 = vld [vmem:[#allocation3 + $0xe0] sm:$0xff]
        %v3358 = vld [vmem:[#allocation3 + $0xe8] sm:$0xff]
        %v3359 = vld [vmem:[#allocation3 + $0xf0] sm:$0xff]
        %v3360 = vld [vmem:[#allocation3 + $0xf8] sm:$0xff]
        %v3361 = vld [vmem:[#allocation3 + $0x100] sm:$0xff]
        %v3362 = vld [vmem:[#allocation3 + $0x108] sm:$0xff]
        %3379 = vrot.lane.b32.xlu0 %v3331, 8
        %v3380 = vpop.permute.xlu0 %3379
        %3381 = vrot.lane.b32.xlu0 %v3332, 8
        %v3382 = vpop.permute.xlu0 %3381
        %3383 = vrot.lane.b32.xlu0 %v3335, 8
        %v3384 = vpop.permute.xlu0 %3383
        %3385 = vrot.lane.b32.xlu0 %v3336, 8
        %v3386 = vpop.permute.xlu0 %3385
        %3387 = vrot.lane.b32.xlu0 %v3339, 8
        %v3388 = vpop.permute.xlu0 %3387
        %3389 = vrot.lane.b32.xlu0 %v3340, 8
        %v3390 = vpop.permute.xlu0 %3389
        %3391 = vrot.lane.b32.xlu0 %v3343, 8
        %v3392 = vpop.permute.xlu0 %3391
        %3393 = vrot.lane.b32.xlu0 %v3344, 8
        %v3394 = vpop.permute.xlu0 %3393
        %3395 = vrot.lane.b32.xlu0 %v3347, 8
        %v3396 = vpop.permute.xlu0 %3395
        %3397 = vrot.lane.b32.xlu0 %v3348, 8
        %v3398 = vpop.permute.xlu0 %3397
        %3399 = vrot.lane.b32.xlu0 %v3351, 8
        %v3400 = vpop.permute.xlu0 %3399
        %3401 = vrot.lane.b32.xlu0 %v3352, 8
        %v3402 = vpop.permute.xlu0 %3401
        %3403 = vrot.lane.b32.xlu0 %v3355, 8
        %v3404 = vpop.permute.xlu0 %3403
        %3405 = vrot.lane.b32.xlu0 %v3356, 8
        %v3406 = vpop.permute.xlu0 %3405
        %3407 = vrot.lane.b32.xlu0 %v3359, 8
        %v3408 = vpop.permute.xlu0 %3407
        %3409 = vrot.lane.b32.xlu0 %v3360, 8
        %v3410 = vpop.permute.xlu0 %3409
        %3427 = vrot.lane.b32.xlu0 %v3333, 16
        %v3428 = vpop.permute.xlu0 %3427
        %3429 = vrot.lane.b32.xlu0 %v3334, 16
        %v3430 = vpop.permute.xlu0 %3429
        %3431 = vrot.lane.b32.xlu0 %v3337, 16
        %v3432 = vpop.permute.xlu0 %3431
        %3433 = vrot.lane.b32.xlu0 %v3338, 16
        %v3434 = vpop.permute.xlu0 %3433
        %3435 = vrot.lane.b32.xlu0 %v3341, 16
        %v3436 = vpop.permute.xlu0 %3435
        %3437 = vrot.lane.b32.xlu0 %v3342, 16
        %v3438 = vpop.permute.xlu0 %3437
        %3439 = vrot.lane.b32.xlu0 %v3345, 16
        %v3440 = vpop.permute.xlu0 %3439
        %3441 = vrot.lane.b32.xlu0 %v3346, 16
        %v3442 = vpop.permute.xlu0 %3441
        %3443 = vrot.lane.b32.xlu0 %v3349, 16
        %v3444 = vpop.permute.xlu0 %3443
        %3445 = vrot.lane.b32.xlu0 %v3350, 16
        %v3446 = vpop.permute.xlu0 %3445
        %3447 = vrot.lane.b32.xlu0 %v3353, 16
        %v3448 = vpop.permute.xlu0 %3447
        %3449 = vrot.lane.b32.xlu0 %v3354, 16
        %v3450 = vpop.permute.xlu0 %3449
        %3451 = vrot.lane.b32.xlu0 %v3357, 16
        %v3452 = vpop.permute.xlu0 %3451
        %3453 = vrot.lane.b32.xlu0 %v3358, 16
        %v3454 = vpop.permute.xlu0 %3453
        %3455 = vrot.lane.b32.xlu0 %v3361, 16
        %v3456 = vpop.permute.xlu0 %3455
        %3457 = vrot.lane.b32.xlu0 %v3362, 16
        %v3458 = vpop.permute.xlu0 %3457
        %v3461 = vsel %vm1061, %v3329, %v3380
        %v3464 = vsel %vm1061, %v3330, %v3382
        %v3467 = vsel %vm1061, %v3333, %v3384
        %v3470 = vsel %vm1061, %v3334, %v3386
        %v3473 = vsel %vm1061, %v3337, %v3388
        %v3476 = vsel %vm1061, %v3338, %v3390
        %v3479 = vsel %vm1061, %v3341, %v3392
        %v3482 = vsel %vm1061, %v3342, %v3394
        %v3485 = vsel %vm1061, %v3345, %v3396
        %v3488 = vsel %vm1061, %v3346, %v3398
        %v3491 = vsel %vm1061, %v3349, %v3400
        %v3494 = vsel %vm1061, %v3350, %v3402
        %v3497 = vsel %vm1061, %v3353, %v3404
        %v3500 = vsel %vm1061, %v3354, %v3406
        %v3503 = vsel %vm1061, %v3357, %v3408
        %v3506 = vsel %vm1061, %v3358, %v3410
        %v3508 = vsel %vm1392, %v3461, %v3428
        %v3511 = vsel %vm1392, %v3464, %v3430
        %v3514 = vsel %vm1392, %v3467, %v3432
        %v3517 = vsel %vm1392, %v3470, %v3434
        %v3520 = vsel %vm1392, %v3473, %v3436
        %v3523 = vsel %vm1392, %v3476, %v3438
        %v3526 = vsel %vm1392, %v3479, %v3440
        %v3529 = vsel %vm1392, %v3482, %v3442
        %v3532 = vsel %vm1392, %v3485, %v3444
        %v3535 = vsel %vm1392, %v3488, %v3446
        %v3538 = vsel %vm1392, %v3491, %v3448
        %v3541 = vsel %vm1392, %v3494, %v3450
        %v3544 = vsel %vm1392, %v3497, %v3452
        %v3547 = vsel %vm1392, %v3500, %v3454
        %v3550 = vsel %vm1392, %v3503, %v3456
        %v3553 = vsel %vm1392, %v3506, %v3458
        %v3555 = vld [vmem:[%s7] sm:$0xff]
        %v3556 = vld [vmem:[%s7 + $0x8] sm:$0xff]
        %v3557 = vld [vmem:[%s7 + $0x10] sm:$0xff]
        %v3558 = vld [vmem:[%s7 + $0x18] sm:$0xff]
        %v3559 = vld [vmem:[%s7 + $0x20] sm:$0xff]
        %v3560 = vld [vmem:[%s7 + $0x28] sm:$0xff]
        %v3561 = vld [vmem:[%s7 + $0x30] sm:$0xff]
        %v3562 = vld [vmem:[%s7 + $0x38] sm:$0xff]
        %v3571 = vunpack.c.l.b16 %v3555
        %v3572 = vunpack.c.h.b16 %v3555
        %v3573 = vunpack.c.l.b16 %v3556
        %v3574 = vunpack.c.h.b16 %v3556
        %v3575 = vunpack.c.l.b16 %v3557
        %v3576 = vunpack.c.h.b16 %v3557
        %v3577 = vunpack.c.l.b16 %v3558
        %v3578 = vunpack.c.h.b16 %v3558
        %v3579 = vunpack.c.l.b16 %v3559
        %v3580 = vunpack.c.h.b16 %v3559
        %v3581 = vunpack.c.l.b16 %v3560
        %v3582 = vunpack.c.h.b16 %v3560
        %v3583 = vunpack.c.l.b16 %v3561
        %v3584 = vunpack.c.h.b16 %v3561
        %v3585 = vunpack.c.l.b16 %v3562
        %v3586 = vunpack.c.h.b16 %v3562
        %v3587 = vpack.c.b16 %v3573, %v3571
        %v3588 = vpack.c.b16 %v3574, %v3572
        %v3589 = vpack.c.b16 %v3577, %v3575
        %v3590 = vpack.c.b16 %v3578, %v3576
        %v3591 = vpack.c.b16 %v3581, %v3579
        %v3592 = vpack.c.b16 %v3582, %v3580
        %v3593 = vpack.c.b16 %v3585, %v3583
        %v3594 = vpack.c.b16 %v3586, %v3584
        %3603 = vmatprep.subr.bf16.mxu0 0
        %3604 = vmatpush1.bf16.msra.mxu0 %v3508
        %3605 = vmatprep.subr.bf16.mxu0 0
        %3606 = vmatpush1.bf16.msra.mxu0 %v3511
        %3607 = vmatprep.subr.bf16.mxu0 0
        %3608 = vmatpush1.bf16.msra.mxu0 %v3514
        %3609 = vmatprep.subr.bf16.mxu0 0
        %3610 = vmatpush1.bf16.msra.mxu0 %v3517
        %3611 = vmatprep.subr.bf16.mxu0 0
        %3612 = vmatpush1.bf16.msra.mxu0 %v3520
        %3613 = vmatprep.subr.bf16.mxu0 0
        %3614 = vmatpush1.bf16.msra.mxu0 %v3523
        %3615 = vmatprep.subr.bf16.mxu0 0
        %3616 = vmatpush1.bf16.msra.mxu0 %v3526
        %3617 = vmatprep.subr.bf16.mxu0 0
        %3618 = vmatpush1.bf16.msra.mxu0 %v3529
        %3619 = vmatprep.subr.bf16.mxu0 0
        %3620 = vmatpush1.bf16.msra.mxu0 %v3532
        %3621 = vmatprep.subr.bf16.mxu0 0
        %3622 = vmatpush1.bf16.msra.mxu0 %v3535
        %3623 = vmatprep.subr.bf16.mxu0 0
        %3624 = vmatpush1.bf16.msra.mxu0 %v3538
        %3625 = vmatprep.subr.bf16.mxu0 0
        %3626 = vmatpush1.bf16.msra.mxu0 %v3541
        %3627 = vmatprep.subr.bf16.mxu0 0
        %3628 = vmatpush1.bf16.msra.mxu0 %v3544
        %3629 = vmatprep.subr.bf16.mxu0 0
        %3630 = vmatpush1.bf16.msra.mxu0 %v3547
        %3631 = vmatprep.subr.bf16.mxu0 0
        %3632 = vmatpush1.bf16.msra.mxu0 %v3550
        %3633 = vmatprep.subr.bf16.mxu0 0
        %3634 = vmatpush1.bf16.msra.mxu0 %v3553
        %3635 = vmatprep.mubr.bf16.mxu0 %v3588
        %3636 = vmatmul.mubr.bf16.gmra.mrb[0].mxu0 %v3587
        %v3637 = vpop.f32.mrb[0].mxu0
        %v3638 = vadd.f32 0.0, %v3637
        %v3639 = vpop.f32.mrb[0].mxu0
        %v3640 = vpop.f32.mrb[0].mxu0
        %v3641 = vadd.f32 0.0, %v3640
        %v3642 = vpop.f32.mrb[0].mxu0
        %3643 = vmatprep.mubr.bf16.mxu0 %v3590
        %3644 = vmatmul.mubr.bf16.gmra.mrb[0].mxu0 %v3589
        %v3645 = vpop.f32.mrb[0].mxu0
        %v3646 = vadd.f32 0.0, %v3645
        %v3647 = vpop.f32.mrb[0].mxu0
        %v3648 = vpop.f32.mrb[0].mxu0
        %v3649 = vadd.f32 0.0, %v3648
        %v3650 = vpop.f32.mrb[0].mxu0
        %3651 = vmatprep.mubr.bf16.mxu0 %v3592
        %3652 = vmatmul.mubr.bf16.gmra.mrb[0].mxu0 %v3591
        %v3653 = vpop.f32.mrb[0].mxu0
        %v3654 = vadd.f32 0.0, %v3653
        %v3655 = vpop.f32.mrb[0].mxu0
        %v3656 = vpop.f32.mrb[0].mxu0
        %v3657 = vadd.f32 0.0, %v3656
        %v3658 = vpop.f32.mrb[0].mxu0
        %3659 = vmatprep.mubr.bf16.mxu0 %v3594
        %3660 = vmatmul.mubr.bf16.gmra.mrb[0].mxu0 %v3593
        %v3661 = vpop.f32.mrb[0].mxu0
        %v3662 = vadd.f32 0.0, %v3661
        %v3663 = vpop.f32.mrb[0].mxu0
        %v3664 = vpop.f32.mrb[0].mxu0
        %v3665 = vadd.f32 0.0, %v3664
        %v3666 = vpop.f32.mrb[0].mxu0
        %3667 = vdwg.mxu0
        %v3668 = vpack.c.bf16 %v3641, %v3638
        %v3669 = vpack.c.bf16 %v3649, %v3646
        %v3670 = vpack.c.bf16 %v3657, %v3654
        %v3671 = vpack.c.bf16 %v3665, %v3662
        %v3672 = vld [vmem:[%s5] sm:$0xf]
        %v3673 = vld [vmem:[%s5 + $0x4] sm:$0xf]
        %v3674 = vld [vmem:[%s5 + $0x8] sm:$0xf]
        %s3675 = scalar_lea.vmem %s7, 64
        %v3676 = vld [vmem:[%s3675] sm:$0xff]
        %v3677 = vld [vmem:[%s3675 + $0x8] sm:$0xff]
        %v3678 = vld [vmem:[%s3675 + $0x10] sm:$0xff]
        %v3679 = vld [vmem:[%s3675 + $0x18] sm:$0xff]
        %v3680 = vld [vmem:[%s3675 + $0x20] sm:$0xff]
        %v3681 = vld [vmem:[%s3675 + $0x28] sm:$0xff]
        %v3682 = vld [vmem:[%s3675 + $0x30] sm:$0xff]
        %v3683 = vld [vmem:[%s3675 + $0x38] sm:$0xff]
        %v3692 = vunpack.c.l.b16 %v3676
        %v3693 = vunpack.c.h.b16 %v3676
        %v3694 = vunpack.c.l.b16 %v3677
        %v3695 = vunpack.c.h.b16 %v3677
        %v3696 = vunpack.c.l.b16 %v3678
        %v3697 = vunpack.c.h.b16 %v3678
        %v3698 = vunpack.c.l.b16 %v3679
        %v3699 = vunpack.c.h.b16 %v3679
        %v3700 = vunpack.c.l.b16 %v3680
        %v3701 = vunpack.c.h.b16 %v3680
        %v3702 = vunpack.c.l.b16 %v3681
        %v3703 = vunpack.c.h.b16 %v3681
        %v3704 = vunpack.c.l.b16 %v3682
        %v3705 = vunpack.c.h.b16 %v3682
        %v3706 = vunpack.c.l.b16 %v3683
        %v3707 = vunpack.c.h.b16 %v3683
        %v3708 = vpack.c.b16 %v3694, %v3692
        %v3709 = vpack.c.b16 %v3695, %v3693
        %v3710 = vpack.c.b16 %v3698, %v3696
        %v3711 = vpack.c.b16 %v3699, %v3697
        %v3712 = vpack.c.b16 %v3702, %v3700
        %v3713 = vpack.c.b16 %v3703, %v3701
        %v3714 = vpack.c.b16 %v3706, %v3704
        %v3715 = vpack.c.b16 %v3707, %v3705
        %3724 = vmatprep.subr.bf16.mxu0 0
        %3725 = vmatpush1.bf16.msra.mxu0 %v3508
        %3726 = vmatprep.subr.bf16.mxu0 0
        %3727 = vmatpush1.bf16.msra.mxu0 %v3511
        %3728 = vmatprep.subr.bf16.mxu0 0
        %3729 = vmatpush1.bf16.msra.mxu0 %v3514
        %3730 = vmatprep.subr.bf16.mxu0 0
        %3731 = vmatpush1.bf16.msra.mxu0 %v3517
        %3732 = vmatprep.subr.bf16.mxu0 0
        %3733 = vmatpush1.bf16.msra.mxu0 %v3520
        %3734 = vmatprep.subr.bf16.mxu0 0
        %3735 = vmatpush1.bf16.msra.mxu0 %v3523
        %3736 = vmatprep.subr.bf16.mxu0 0
        %3737 = vmatpush1.bf16.msra.mxu0 %v3526
        %3738 = vmatprep.subr.bf16.mxu0 0
        %3739 = vmatpush1.bf16.msra.mxu0 %v3529
        %3740 = vmatprep.subr.bf16.mxu0 0
        %3741 = vmatpush1.bf16.msra.mxu0 %v3532
        %3742 = vmatprep.subr.bf16.mxu0 0
        %3743 = vmatpush1.bf16.msra.mxu0 %v3535
        %3744 = vmatprep.subr.bf16.mxu0 0
        %3745 = vmatpush1.bf16.msra.mxu0 %v3538
        %3746 = vmatprep.subr.bf16.mxu0 0
        %3747 = vmatpush1.bf16.msra.mxu0 %v3541
        %3748 = vmatprep.subr.bf16.mxu0 0
        %3749 = vmatpush1.bf16.msra.mxu0 %v3544
        %3750 = vmatprep.subr.bf16.mxu0 0
        %3751 = vmatpush1.bf16.msra.mxu0 %v3547
        %3752 = vmatprep.subr.bf16.mxu0 0
        %3753 = vmatpush1.bf16.msra.mxu0 %v3550
        %3754 = vmatprep.subr.bf16.mxu0 0
        %3755 = vmatpush1.bf16.msra.mxu0 %v3553
        %3756 = vmatprep.mubr.bf16.mxu0 %v3709
        %3757 = vmatmul.mubr.bf16.gmra.mrb[0].mxu0 %v3708
        %v3758 = vpop.f32.mrb[0].mxu0
        %v3759 = vadd.f32 0.0, %v3758
        %v3760 = vpop.f32.mrb[0].mxu0
        %v3761 = vpop.f32.mrb[0].mxu0
        %v3762 = vadd.f32 0.0, %v3761
        %v3763 = vpop.f32.mrb[0].mxu0
        %3764 = vmatprep.mubr.bf16.mxu0 %v3711
        %3765 = vmatmul.mubr.bf16.gmra.mrb[0].mxu0 %v3710
        %v3766 = vpop.f32.mrb[0].mxu0
        %v3767 = vadd.f32 0.0, %v3766
        %v3768 = vpop.f32.mrb[0].mxu0
        %v3769 = vpop.f32.mrb[0].mxu0
        %v3770 = vadd.f32 0.0, %v3769
        %v3771 = vpop.f32.mrb[0].mxu0
        %3772 = vmatprep.mubr.bf16.mxu0 %v3713
        %3773 = vmatmul.mubr.bf16.gmra.mrb[0].mxu0 %v3712
        %v3774 = vpop.f32.mrb[0].mxu0
        %v3775 = vadd.f32 0.0, %v3774
        %v3776 = vpop.f32.mrb[0].mxu0
        %v3777 = vpop.f32.mrb[0].mxu0
        %v3778 = vadd.f32 0.0, %v3777
        %v3779 = vpop.f32.mrb[0].mxu0
        %3780 = vmatprep.mubr.bf16.mxu0 %v3715
        %3781 = vmatmul.mubr.bf16.gmra.mrb[0].mxu0 %v3714
        %v3782 = vpop.f32.mrb[0].mxu0
        %v3783 = vadd.f32 0.0, %v3782
        %v3784 = vpop.f32.mrb[0].mxu0
        %v3785 = vpop.f32.mrb[0].mxu0
        %v3786 = vadd.f32 0.0, %v3785
        %v3787 = vpop.f32.mrb[0].mxu0
        %3788 = vdwg.mxu0
        %v3789 = vpack.c.bf16 %v3762, %v3759
        %v3790 = vpack.c.bf16 %v3770, %v3767
        %v3791 = vpack.c.bf16 %v3778, %v3775
        %v3792 = vpack.c.bf16 %v3786, %v3783
        %s3793 = scalar_lea.vmem %s5, 12
        %v3794 = vld [vmem:[%s3793] sm:$0xf]
        %v3795 = vld [vmem:[%s3793 + $0x4] sm:$0xf]
        %v3796 = vld [vmem:[%s3793 + $0x8] sm:$0xf]
        %v3800 = vunpack.c.l.b16 %v3794
        %v3801 = vunpack.c.l.b16 %v3795
        %v3802 = vunpack.c.l.b16 %v3796
        %v3803 = vpack.c.b16 %v3801, %v3800
        %v3804 = vpack.c.b16 %v3802, %v3802
        %v3807 = vsel %vm1469, %v3789, 0
        %v3810 = vsel %vm1469, %v3790, 0
        %v3813 = vsel %vm1469, %v3791, 0
        %v3816 = vsel %vm1469, %v3792, 0
        %v3819 = vsel %vm979, %v3804, 0
        %3821 = vmatprep.subr.bf16.mxu0 0
        %3822 = vmatpush1.bf16.msra.mxu0 %v3803
        %3823 = vmatprep.subr.bf16.mxu0 0
        %3824 = vmatpush1.bf16.msra.mxu0 %v3819
        %3825 = vmatprep.subr.bf16.mxu0 0
        %3826 = vmatpush1.bf16.msra.mxu0 0
        %3827 = vmatprep.subr.bf16.mxu0 0
        %3828 = vmatpush1.bf16.msra.mxu0 0
        %3829 = vmatprep.subr.bf16.mxu0 0
        %3830 = vmatpush1.bf16.msra.mxu0 0
        %3831 = vmatprep.subr.bf16.mxu0 0
        %3832 = vmatpush1.bf16.msra.mxu0 0
        %3833 = vmatprep.subr.bf16.mxu0 0
        %3834 = vmatpush1.bf16.msra.mxu0 0
        %3835 = vmatprep.subr.bf16.mxu0 0
        %3836 = vmatpush1.bf16.msra.mxu0 0
        %3837 = vmatprep.subr.bf16.mxu0 0
        %3838 = vmatpush1.bf16.msra.mxu0 0
        %3839 = vmatprep.subr.bf16.mxu0 0
        %3840 = vmatpush1.bf16.msra.mxu0 0
        %3841 = vmatprep.subr.bf16.mxu0 0
        %3842 = vmatpush1.bf16.msra.mxu0 0
        %3843 = vmatprep.subr.bf16.mxu0 0
        %3844 = vmatpush1.bf16.msra.mxu0 0
        %3845 = vmatprep.subr.bf16.mxu0 0
        %3846 = vmatpush1.bf16.msra.mxu0 0
        %3847 = vmatprep.subr.bf16.mxu0 0
        %3848 = vmatpush1.bf16.msra.mxu0 0
        %3849 = vmatprep.subr.bf16.mxu0 0
        %3850 = vmatpush1.bf16.msra.mxu0 0
        %3851 = vmatprep.subr.bf16.mxu0 0
        %3852 = vmatpush1.bf16.msra.mxu0 0
        %3853 = vmatprep.mubr.bf16.mxu0 0
        %3854 = vmatmul.mubr.bf16.gmra.mrb[0].mxu0 %v3807
        %v3855 = vpop.f32.mrb[0].mxu0
        %v3856 = vadd.f32 0.0, %v3855
        %v3857 = vpop.f32.mrb[0].mxu0
        %v3858 = vpop.f32.mrb[0].mxu0
        %v3859 = vadd.f32 0.0, %v3858
        %v3860 = vpop.f32.mrb[0].mxu0
        %3861 = vmatprep.mubr.bf16.mxu0 0
        %3862 = vmatmul.mubr.bf16.gmra.mrb[0].mxu0 %v3810
        %v3863 = vpop.f32.mrb[0].mxu0
        %v3864 = vadd.f32 0.0, %v3863
        %v3865 = vpop.f32.mrb[0].mxu0
        %v3866 = vpop.f32.mrb[0].mxu0
        %v3867 = vadd.f32 0.0, %v3866
        %v3868 = vpop.f32.mrb[0].mxu0
        %3869 = vmatprep.mubr.bf16.mxu0 0
        %3870 = vmatmul.mubr.bf16.gmra.mrb[0].mxu0 %v3813
        %v3871 = vpop.f32.mrb[0].mxu0
        %v3872 = vadd.f32 0.0, %v3871
        %v3873 = vpop.f32.mrb[0].mxu0
        %v3874 = vpop.f32.mrb[0].mxu0
        %v3875 = vadd.f32 0.0, %v3874
        %v3876 = vpop.f32.mrb[0].mxu0
        %3877 = vmatprep.mubr.bf16.mxu0 0
        %3878 = vmatmul.mubr.bf16.gmra.mrb[0].mxu0 %v3816
        %v3879 = vpop.f32.mrb[0].mxu0
        %v3880 = vadd.f32 0.0, %v3879
        %v3881 = vpop.f32.mrb[0].mxu0
        %v3882 = vpop.f32.mrb[0].mxu0
        %v3883 = vadd.f32 0.0, %v3882
        %v3884 = vpop.f32.mrb[0].mxu0
        %3885 = vdwg.mxu0
        %v3889 = vunpack.c.l.b16 %v3672
        %v3890 = vunpack.c.l.b16 %v3673
        %v3891 = vunpack.c.l.b16 %v3674
        %v3892 = vpack.c.b16 %v3890, %v3889
        %v3893 = vpack.c.b16 %v3891, %v3891
        %v3896 = vsel %vm1469, %v3668, 0
        %v3899 = vsel %vm1469, %v3669, 0
        %v3902 = vsel %vm1469, %v3670, 0
        %v3905 = vsel %vm1469, %v3671, 0
        %v3908 = vsel %vm979, %v3893, 0
        %3910 = vmatprep.subr.bf16.mxu0 0
        %3911 = vmatpush1.bf16.msra.mxu0 %v3892
        %3912 = vmatprep.subr.bf16.mxu0 0
        %3913 = vmatpush1.bf16.msra.mxu0 %v3908
        %3914 = vmatprep.subr.bf16.mxu0 0
        %3915 = vmatpush1.bf16.msra.mxu0 0
        %3916 = vmatprep.subr.bf16.mxu0 0
        %3917 = vmatpush1.bf16.msra.mxu0 0
        %3918 = vmatprep.subr.bf16.mxu0 0
        %3919 = vmatpush1.bf16.msra.mxu0 0
        %3920 = vmatprep.subr.bf16.mxu0 0
        %3921 = vmatpush1.bf16.msra.mxu0 0
        %3922 = vmatprep.subr.bf16.mxu0 0
        %3923 = vmatpush1.bf16.msra.mxu0 0
        %3924 = vmatprep.subr.bf16.mxu0 0
        %3925 = vmatpush1.bf16.msra.mxu0 0
        %3926 = vmatprep.subr.bf16.mxu0 0
        %3927 = vmatpush1.bf16.msra.mxu0 0
        %3928 = vmatprep.subr.bf16.mxu0 0
        %3929 = vmatpush1.bf16.msra.mxu0 0
        %3930 = vmatprep.subr.bf16.mxu0 0
        %3931 = vmatpush1.bf16.msra.mxu0 0
        %3932 = vmatprep.subr.bf16.mxu0 0
        %3933 = vmatpush1.bf16.msra.mxu0 0
        %3934 = vmatprep.subr.bf16.mxu0 0
        %3935 = vmatpush1.bf16.msra.mxu0 0
        %3936 = vmatprep.subr.bf16.mxu0 0
        %3937 = vmatpush1.bf16.msra.mxu0 0
        %3938 = vmatprep.subr.bf16.mxu0 0
        %3939 = vmatpush1.bf16.msra.mxu0 0
        %3940 = vmatprep.subr.bf16.mxu0 0
        %3941 = vmatpush1.bf16.msra.mxu0 0
        %3942 = vmatprep.mubr.bf16.mxu0 0
        %3943 = vmatmul.mubr.bf16.gmra.mrb[0].mxu0 %v3896
        %v3944 = vpop.f32.mrb[0].mxu0
        %v3945 = vadd.f32 %v3856, %v3944
        %v3946 = vpop.f32.mrb[0].mxu0
        %v3947 = vpop.f32.mrb[0].mxu0
        %v3948 = vadd.f32 %v3859, %v3947
        %v3949 = vpop.f32.mrb[0].mxu0
        %3950 = vmatprep.mubr.bf16.mxu0 0
        %3951 = vmatmul.mubr.bf16.gmra.mrb[0].mxu0 %v3899
        %v3952 = vpop.f32.mrb[0].mxu0
        %v3953 = vadd.f32 %v3864, %v3952
        %v3954 = vpop.f32.mrb[0].mxu0
        %v3955 = vpop.f32.mrb[0].mxu0
        %v3956 = vadd.f32 %v3867, %v3955
        %v3957 = vpop.f32.mrb[0].mxu0
        %3958 = vmatprep.mubr.bf16.mxu0 0
        %3959 = vmatmul.mubr.bf16.gmra.mrb[0].mxu0 %v3902
        %v3960 = vpop.f32.mrb[0].mxu0
        %v3961 = vadd.f32 %v3872, %v3960
        %v3962 = vpop.f32.mrb[0].mxu0
        %v3963 = vpop.f32.mrb[0].mxu0
        %v3964 = vadd.f32 %v3875, %v3963
        %v3965 = vpop.f32.mrb[0].mxu0
        %3966 = vmatprep.mubr.bf16.mxu0 0
        %3967 = vmatmul.mubr.bf16.gmra.mrb[0].mxu0 %v3905
        %v3968 = vpop.f32.mrb[0].mxu0
        %v3969 = vadd.f32 %v3880, %v3968
        %v3970 = vpop.f32.mrb[0].mxu0
        %v3971 = vpop.f32.mrb[0].mxu0
        %v3972 = vadd.f32 %v3883, %v3971
        %v3973 = vpop.f32.mrb[0].mxu0
        %3974 = vdwg.mxu0
        %s3975 = scalar_lea.vmem %s7, 128
        %v3976 = vld [vmem:[%s3975] sm:$0xff]
        %v3977 = vld [vmem:[%s3975 + $0x8] sm:$0xff]
        %v3978 = vld [vmem:[%s3975 + $0x10] sm:$0xff]
        %v3979 = vld [vmem:[%s3975 + $0x18] sm:$0xff]
        %v3980 = vld [vmem:[%s3975 + $0x20] sm:$0xff]
        %v3981 = vld [vmem:[%s3975 + $0x28] sm:$0xff]
        %v3982 = vld [vmem:[%s3975 + $0x30] sm:$0xff]
        %v3983 = vld [vmem:[%s3975 + $0x38] sm:$0xff]
        %v3992 = vunpack.c.l.b16 %v3976
        %v3993 = vunpack.c.h.b16 %v3976
        %v3994 = vunpack.c.l.b16 %v3977
        %v3995 = vunpack.c.h.b16 %v3977
        %v3996 = vunpack.c.l.b16 %v3978
        %v3997 = vunpack.c.h.b16 %v3978
        %v3998 = vunpack.c.l.b16 %v3979
        %v3999 = vunpack.c.h.b16 %v3979
        %v4000 = vunpack.c.l.b16 %v3980
        %v4001 = vunpack.c.h.b16 %v3980
        %v4002 = vunpack.c.l.b16 %v3981
        %v4003 = vunpack.c.h.b16 %v3981
        %v4004 = vunpack.c.l.b16 %v3982
        %v4005 = vunpack.c.h.b16 %v3982
        %v4006 = vunpack.c.l.b16 %v3983
        %v4007 = vunpack.c.h.b16 %v3983
        %v4008 = vpack.c.b16 %v3994, %v3992
        %v4009 = vpack.c.b16 %v3995, %v3993
        %v4010 = vpack.c.b16 %v3998, %v3996
        %v4011 = vpack.c.b16 %v3999, %v3997
        %v4012 = vpack.c.b16 %v4002, %v4000
        %v4013 = vpack.c.b16 %v4003, %v4001
        %v4014 = vpack.c.b16 %v4006, %v4004
        %v4015 = vpack.c.b16 %v4007, %v4005
        %4024 = vmatprep.subr.bf16.mxu0 0
        %4025 = vmatpush1.bf16.msra.mxu0 %v3508
        %4026 = vmatprep.subr.bf16.mxu0 0
        %4027 = vmatpush1.bf16.msra.mxu0 %v3511
        %4028 = vmatprep.subr.bf16.mxu0 0
        %4029 = vmatpush1.bf16.msra.mxu0 %v3514
        %4030 = vmatprep.subr.bf16.mxu0 0
        %4031 = vmatpush1.bf16.msra.mxu0 %v3517
        %4032 = vmatprep.subr.bf16.mxu0 0
        %4033 = vmatpush1.bf16.msra.mxu0 %v3520
        %4034 = vmatprep.subr.bf16.mxu0 0
        %4035 = vmatpush1.bf16.msra.mxu0 %v3523
        %4036 = vmatprep.subr.bf16.mxu0 0
        %4037 = vmatpush1.bf16.msra.mxu0 %v3526
        %4038 = vmatprep.subr.bf16.mxu0 0
        %4039 = vmatpush1.bf16.msra.mxu0 %v3529
        %4040 = vmatprep.subr.bf16.mxu0 0
        %4041 = vmatpush1.bf16.msra.mxu0 %v3532
        %4042 = vmatprep.subr.bf16.mxu0 0
        %4043 = vmatpush1.bf16.msra.mxu0 %v3535
        %4044 = vmatprep.subr.bf16.mxu0 0
        %4045 = vmatpush1.bf16.msra.mxu0 %v3538
        %4046 = vmatprep.subr.bf16.mxu0 0
        %4047 = vmatpush1.bf16.msra.mxu0 %v3541
        %4048 = vmatprep.subr.bf16.mxu0 0
        %4049 = vmatpush1.bf16.msra.mxu0 %v3544
        %4050 = vmatprep.subr.bf16.mxu0 0
        %4051 = vmatpush1.bf16.msra.mxu0 %v3547
        %4052 = vmatprep.subr.bf16.mxu0 0
        %4053 = vmatpush1.bf16.msra.mxu0 %v3550
        %4054 = vmatprep.subr.bf16.mxu0 0
        %4055 = vmatpush1.bf16.msra.mxu0 %v3553
        %4056 = vmatprep.mubr.bf16.mxu0 %v4009
        %4057 = vmatmul.mubr.bf16.gmra.mrb[0].mxu0 %v4008
        %v4058 = vpop.f32.mrb[0].mxu0
        %v4059 = vadd.f32 0.0, %v4058
        %v4060 = vpop.f32.mrb[0].mxu0
        %v4061 = vpop.f32.mrb[0].mxu0
        %v4062 = vadd.f32 0.0, %v4061
        %v4063 = vpop.f32.mrb[0].mxu0
        %4064 = vmatprep.mubr.bf16.mxu0 %v4011
        %4065 = vmatmul.mubr.bf16.gmra.mrb[0].mxu0 %v4010
        %v4066 = vpop.f32.mrb[0].mxu0
        %v4067 = vadd.f32 0.0, %v4066
        %v4068 = vpop.f32.mrb[0].mxu0
        %v4069 = vpop.f32.mrb[0].mxu0
        %v4070 = vadd.f32 0.0, %v4069
        %v4071 = vpop.f32.mrb[0].mxu0
        %4072 = vmatprep.mubr.bf16.mxu0 %v4013
        %4073 = vmatmul.mubr.bf16.gmra.mrb[0].mxu0 %v4012
        %v4074 = vpop.f32.mrb[0].mxu0
        %v4075 = vadd.f32 0.0, %v4074
        %v4076 = vpop.f32.mrb[0].mxu0
        %v4077 = vpop.f32.mrb[0].mxu0
        %v4078 = vadd.f32 0.0, %v4077
        %v4079 = vpop.f32.mrb[0].mxu0
        %4080 = vmatprep.mubr.bf16.mxu0 %v4015
        %4081 = vmatmul.mubr.bf16.gmra.mrb[0].mxu0 %v4014
        %v4082 = vpop.f32.mrb[0].mxu0
        %v4083 = vadd.f32 0.0, %v4082
        %v4084 = vpop.f32.mrb[0].mxu0
        %v4085 = vpop.f32.mrb[0].mxu0
        %v4086 = vadd.f32 0.0, %v4085
        %v4087 = vpop.f32.mrb[0].mxu0
        %4088 = vdwg.mxu0
        %v4089 = vpack.c.bf16 %v4062, %v4059
        %v4090 = vpack.c.bf16 %v4070, %v4067
        %v4091 = vpack.c.bf16 %v4078, %v4075
        %v4092 = vpack.c.bf16 %v4086, %v4083
        %s4093 = scalar_lea.vmem %s5, 24
        %v4094 = vld [vmem:[%s4093] sm:$0xf]
        %v4095 = vld [vmem:[%s4093 + $0x4] sm:$0xf]
        %v4096 = vld [vmem:[%s4093 + $0x8] sm:$0xf]
        %v4100 = vunpack.c.l.b16 %v4094
        %v4101 = vunpack.c.l.b16 %v4095
        %v4102 = vunpack.c.l.b16 %v4096
        %v4103 = vpack.c.b16 %v4101, %v4100
        %v4104 = vpack.c.b16 %v4102, %v4102
        %v4107 = vsel %vm1469, %v4089, 0
        %v4110 = vsel %vm1469, %v4090, 0
        %v4113 = vsel %vm1469, %v4091, 0
        %v4116 = vsel %vm1469, %v4092, 0
        %v4119 = vsel %vm979, %v4104, 0
        %4121 = vmatprep.subr.bf16.mxu0 0
        %4122 = vmatpush1.bf16.msra.mxu0 %v4103
        %4123 = vmatprep.subr.bf16.mxu0 0
        %4124 = vmatpush1.bf16.msra.mxu0 %v4119
        %4125 = vmatprep.subr.bf16.mxu0 0
        %4126 = vmatpush1.bf16.msra.mxu0 0
        %4127 = vmatprep.subr.bf16.mxu0 0
        %4128 = vmatpush1.bf16.msra.mxu0 0
        %4129 = vmatprep.subr.bf16.mxu0 0
        %4130 = vmatpush1.bf16.msra.mxu0 0
        %4131 = vmatprep.subr.bf16.mxu0 0
        %4132 = vmatpush1.bf16.msra.mxu0 0
        %4133 = vmatprep.subr.bf16.mxu0 0
        %4134 = vmatpush1.bf16.msra.mxu0 0
        %4135 = vmatprep.subr.bf16.mxu0 0
        %4136 = vmatpush1.bf16.msra.mxu0 0
        %4137 = vmatprep.subr.bf16.mxu0 0
        %4138 = vmatpush1.bf16.msra.mxu0 0
        %4139 = vmatprep.subr.bf16.mxu0 0
        %4140 = vmatpush1.bf16.msra.mxu0 0
        %4141 = vmatprep.subr.bf16.mxu0 0
        %4142 = vmatpush1.bf16.msra.mxu0 0
        %4143 = vmatprep.subr.bf16.mxu0 0
        %4144 = vmatpush1.bf16.msra.mxu0 0
        %4145 = vmatprep.subr.bf16.mxu0 0
        %4146 = vmatpush1.bf16.msra.mxu0 0
        %4147 = vmatprep.subr.bf16.mxu0 0
        %4148 = vmatpush1.bf16.msra.mxu0 0
        %4149 = vmatprep.subr.bf16.mxu0 0
        %4150 = vmatpush1.bf16.msra.mxu0 0
        %4151 = vmatprep.subr.bf16.mxu0 0
        %4152 = vmatpush1.bf16.msra.mxu0 0
        %4153 = vmatprep.mubr.bf16.mxu0 0
        %4154 = vmatmul.mubr.bf16.gmra.mrb[0].mxu0 %v4107
        %v4155 = vpop.f32.mrb[0].mxu0
        %v4156 = vadd.f32 0.0, %v4155
        %v4157 = vpop.f32.mrb[0].mxu0
        %v4158 = vpop.f32.mrb[0].mxu0
        %v4159 = vadd.f32 0.0, %v4158
        %v4160 = vpop.f32.mrb[0].mxu0
        %4161 = vmatprep.mubr.bf16.mxu0 0
        %4162 = vmatmul.mubr.bf16.gmra.mrb[0].mxu0 %v4110
        %v4163 = vpop.f32.mrb[0].mxu0
        %v4164 = vadd.f32 0.0, %v4163
        %v4165 = vpop.f32.mrb[0].mxu0
        %v4166 = vpop.f32.mrb[0].mxu0
        %v4167 = vadd.f32 0.0, %v4166
        %v4168 = vpop.f32.mrb[0].mxu0
        %4169 = vmatprep.mubr.bf16.mxu0 0
        %4170 = vmatmul.mubr.bf16.gmra.mrb[0].mxu0 %v4113
        %v4171 = vpop.f32.mrb[0].mxu0
        %v4172 = vadd.f32 0.0, %v4171
        %v4173 = vpop.f32.mrb[0].mxu0
        %v4174 = vpop.f32.mrb[0].mxu0
        %v4175 = vadd.f32 0.0, %v4174
        %v4176 = vpop.f32.mrb[0].mxu0
        %4177 = vmatprep.mubr.bf16.mxu0 0
        %4178 = vmatmul.mubr.bf16.gmra.mrb[0].mxu0 %v4116
        %v4179 = vpop.f32.mrb[0].mxu0
        %v4180 = vadd.f32 0.0, %v4179
        %v4181 = vpop.f32.mrb[0].mxu0
        %v4182 = vpop.f32.mrb[0].mxu0
        %v4183 = vadd.f32 0.0, %v4182
        %v4184 = vpop.f32.mrb[0].mxu0
        %4185 = vdwg.mxu0
        %v4186 = vadd.f32 %v3945, %v4156
        %v4187 = vadd.f32 %v3948, %v4159
        %v4188 = vadd.f32 %v3953, %v4164
        %v4189 = vadd.f32 %v3956, %v4167
        %v4190 = vadd.f32 %v3961, %v4172
        %v4191 = vadd.f32 %v3964, %v4175
        %v4192 = vadd.f32 %v3969, %v4180
        %v4193 = vadd.f32 %v3972, %v4183
        %v4194 = vld [vmem:[%s6] sm:$0x1]
        %v4196 = vlaneseq
        %v4197 = vshrl.u32 %v4196, 7
        %v4198 = vsub.s32 0, %v4197
        %v4199 = vrot.slane %v4194, %v4198
        %v4201 = vadd.f32 %v4186, %v4199
        %v4202 = vadd.f32 %v4187, %v4199
        %v4203 = vadd.f32 %v4188, %v4199
        %v4204 = vadd.f32 %v4189, %v4199
        %v4205 = vadd.f32 %v4190, %v4199
        %v4206 = vadd.f32 %v4191, %v4199
        %v4207 = vadd.f32 %v4192, %v4199
        %v4208 = vadd.f32 %v4193, %v4199
        %v4209 = vmax.f32 %v4201, 0.0
        %v4210 = vmax.f32 %v4202, 0.0
        %v4211 = vmax.f32 %v4203, 0.0
        %v4212 = vmax.f32 %v4204, 0.0
        %v4213 = vmax.f32 %v4205, 0.0
        %v4214 = vmax.f32 %v4206, 0.0
        %v4215 = vmax.f32 %v4207, 0.0
        %v4216 = vmax.f32 %v4208, 0.0
        %v4217 = vpack.c.bf16 %v4209, %v4209
        %v4218 = vpack.c.bf16 %v4210, %v4210
        %v4219 = vpack.c.bf16 %v4211, %v4211
        %v4220 = vpack.c.bf16 %v4212, %v4212
        %v4221 = vpack.c.bf16 %v4213, %v4213
        %v4222 = vpack.c.bf16 %v4214, %v4214
        %v4223 = vpack.c.bf16 %v4215, %v4215
        %v4224 = vpack.c.bf16 %v4216, %v4216
        %v4233 = vrot.slane %v4217, 4
        %v4234 = vrot.slane %v4218, 4
        %v4235 = vrot.slane %v4219, 4
        %v4236 = vrot.slane %v4220, 4
        %v4237 = vrot.slane %v4221, 4
        %v4238 = vrot.slane %v4222, 4
        %v4239 = vrot.slane %v4223, 4
        %v4240 = vrot.slane %v4224, 4
        %v4242 = vsel %vm979, 0, %v4233
        %v4245 = vsel %vm979, 0, %v4234
        %v4248 = vsel %vm979, 0, %v4235
        %v4251 = vsel %vm979, 0, %v4236
        %v4254 = vsel %vm979, 0, %v4237
        %v4257 = vsel %vm979, 0, %v4238
        %v4260 = vsel %vm979, 0, %v4239
        %v4263 = vsel %vm979, 0, %v4240
        %4265 = vst.msk [vmem:[#allocation4] sm:$0xff] %vm1392, 0
        %4266 = vst.msk [vmem:[#allocation4 + $0x8] sm:$0xff] %vm1392, 0
        %4267 = vst.msk [vmem:[#allocation4 + $0x10] sm:$0xff] %vm1392, %v4242
        %4268 = vst.msk [vmem:[#allocation4 + $0x18] sm:$0xff] %vm1392, 0
        %4269 = vst.msk [vmem:[#allocation4 + $0x20] sm:$0xff] %vm1392, %v4245
        %4270 = vst.msk [vmem:[#allocation4 + $0x28] sm:$0xff] %vm1392, 0
        %4271 = vst.msk [vmem:[#allocation4 + $0x30] sm:$0xff] %vm1392, %v4248
        %4272 = vst.msk [vmem:[#allocation4 + $0x38] sm:$0xff] %vm1392, 0
        %4273 = vst.msk [vmem:[#allocation4 + $0x40] sm:$0xff] %vm1392, %v4251
        %4274 = vst.msk [vmem:[#allocation4 + $0x48] sm:$0xff] %vm1392, 0
        %4275 = vst.msk [vmem:[#allocation4 + $0x50] sm:$0xff] %vm1392, %v4254
        %4276 = vst.msk [vmem:[#allocation4 + $0x58] sm:$0xff] %vm1392, 0
        %4277 = vst.msk [vmem:[#allocation4 + $0x60] sm:$0xff] %vm1392, %v4257
        %4278 = vst.msk [vmem:[#allocation4 + $0x68] sm:$0xff] %vm1392, 0
        %4279 = vst.msk [vmem:[#allocation4 + $0x70] sm:$0xff] %vm1392, %v4260
        %4280 = vst.msk [vmem:[#allocation4 + $0x78] sm:$0xff] %vm1392, 0
        %4281 = vst.msk [vmem:[#allocation4 + $0x80] sm:$0xff] %vm1392, %v4263
        %4282 = vst.msk [vmem:[#allocation4 + $0x88] sm:$0xff] %vm1392, 0
        %4283 = vst.msk [vmem:[#allocation4 + $0x90] sm:$0xff] %vm1392, 0
        %4284 = vst.msk [vmem:[#allocation4 + $0x98] sm:$0xff] %vm1392, 0
        %v4285 = vld [vmem:[#allocation4] sm:$0xff]
        %v4286 = vld [vmem:[#allocation4 + $0x8] sm:$0xff]
        %v4287 = vld [vmem:[#allocation4 + $0x10] sm:$0xff]
        %v4288 = vld [vmem:[#allocation4 + $0x18] sm:$0xff]
        %v4289 = vld [vmem:[#allocation4 + $0x20] sm:$0xff]
        %v4290 = vld [vmem:[#allocation4 + $0x28] sm:$0xff]
        %v4291 = vld [vmem:[#allocation4 + $0x30] sm:$0xff]
        %v4292 = vld [vmem:[#allocation4 + $0x38] sm:$0xff]
        %v4293 = vld [vmem:[#allocation4 + $0x40] sm:$0xff]
        %v4294 = vld [vmem:[#allocation4 + $0x48] sm:$0xff]
        %v4295 = vld [vmem:[#allocation4 + $0x50] sm:$0xff]
        %v4296 = vld [vmem:[#allocation4 + $0x58] sm:$0xff]
        %v4297 = vld [vmem:[#allocation4 + $0x60] sm:$0xff]
        %v4298 = vld [vmem:[#allocation4 + $0x68] sm:$0xff]
        %v4299 = vld [vmem:[#allocation4 + $0x70] sm:$0xff]
        %v4300 = vld [vmem:[#allocation4 + $0x78] sm:$0xff]
        %v4301 = vld [vmem:[#allocation4 + $0x80] sm:$0xff]
        %v4302 = vld [vmem:[#allocation4 + $0x88] sm:$0xff]
        %v4303 = vld [vmem:[#allocation4 + $0x90] sm:$0xff]
        %v4304 = vld [vmem:[#allocation4 + $0x98] sm:$0xff]
        %4321 = vrot.lane.b32.xlu0 %v4287, 16
        %v4322 = vpop.permute.xlu0 %4321
        %4323 = vrot.lane.b32.xlu0 %v4288, 16
        %v4324 = vpop.permute.xlu0 %4323
        %4325 = vrot.lane.b32.xlu0 %v4289, 16
        %v4326 = vpop.permute.xlu0 %4325
        %4327 = vrot.lane.b32.xlu0 %v4290, 16
        %v4328 = vpop.permute.xlu0 %4327
        %4329 = vrot.lane.b32.xlu0 %v4291, 16
        %v4330 = vpop.permute.xlu0 %4329
        %4331 = vrot.lane.b32.xlu0 %v4292, 16
        %v4332 = vpop.permute.xlu0 %4331
        %4333 = vrot.lane.b32.xlu0 %v4293, 16
        %v4334 = vpop.permute.xlu0 %4333
        %4335 = vrot.lane.b32.xlu0 %v4294, 16
        %v4336 = vpop.permute.xlu0 %4335
        %4337 = vrot.lane.b32.xlu0 %v4295, 16
        %v4338 = vpop.permute.xlu0 %4337
        %4339 = vrot.lane.b32.xlu0 %v4296, 16
        %v4340 = vpop.permute.xlu0 %4339
        %4341 = vrot.lane.b32.xlu0 %v4297, 16
        %v4342 = vpop.permute.xlu0 %4341
        %4343 = vrot.lane.b32.xlu0 %v4298, 16
        %v4344 = vpop.permute.xlu0 %4343
        %4345 = vrot.lane.b32.xlu0 %v4299, 16
        %v4346 = vpop.permute.xlu0 %4345
        %4347 = vrot.lane.b32.xlu0 %v4300, 16
        %v4348 = vpop.permute.xlu0 %4347
        %4349 = vrot.lane.b32.xlu0 %v4301, 16
        %v4350 = vpop.permute.xlu0 %4349
        %4351 = vrot.lane.b32.xlu0 %v4302, 16
        %v4352 = vpop.permute.xlu0 %4351
        %4355 = vrot.lane.b32.xlu0 %v4289, 32
        %v4356 = vpop.permute.xlu0 %4355
        %4357 = vrot.lane.b32.xlu0 %v4290, 32
        %v4358 = vpop.permute.xlu0 %4357
        %4359 = vrot.lane.b32.xlu0 %v4291, 32
        %v4360 = vpop.permute.xlu0 %4359
        %4361 = vrot.lane.b32.xlu0 %v4292, 32
        %v4362 = vpop.permute.xlu0 %4361
        %4363 = vrot.lane.b32.xlu0 %v4293, 32
        %v4364 = vpop.permute.xlu0 %4363
        %4365 = vrot.lane.b32.xlu0 %v4294, 32
        %v4366 = vpop.permute.xlu0 %4365
        %4367 = vrot.lane.b32.xlu0 %v4295, 32
        %v4368 = vpop.permute.xlu0 %4367
        %4369 = vrot.lane.b32.xlu0 %v4296, 32
        %v4370 = vpop.permute.xlu0 %4369
        %4371 = vrot.lane.b32.xlu0 %v4297, 32
        %v4372 = vpop.permute.xlu0 %4371
        %4373 = vrot.lane.b32.xlu0 %v4298, 32
        %v4374 = vpop.permute.xlu0 %4373
        %4375 = vrot.lane.b32.xlu0 %v4299, 32
        %v4376 = vpop.permute.xlu0 %4375
        %4377 = vrot.lane.b32.xlu0 %v4300, 32
        %v4378 = vpop.permute.xlu0 %4377
        %4379 = vrot.lane.b32.xlu0 %v4301, 32
        %v4380 = vpop.permute.xlu0 %4379
        %4381 = vrot.lane.b32.xlu0 %v4302, 32
        %v4382 = vpop.permute.xlu0 %4381
        %4383 = vrot.lane.b32.xlu0 %v4303, 32
        %v4384 = vpop.permute.xlu0 %4383
        %4385 = vrot.lane.b32.xlu0 %v4304, 32
        %v4386 = vpop.permute.xlu0 %4385
        %v4389 = vsel %vm1392, %v4285, %v4322
        %v4392 = vsel %vm1392, %v4286, %v4324
        %v4395 = vsel %vm1392, %v4287, %v4326
        %v4398 = vsel %vm1392, %v4288, %v4328
        %v4401 = vsel %vm1392, %v4289, %v4330
        %v4404 = vsel %vm1392, %v4290, %v4332
        %v4407 = vsel %vm1392, %v4291, %v4334
        %v4410 = vsel %vm1392, %v4292, %v4336
        %v4413 = vsel %vm1392, %v4293, %v4338
        %v4416 = vsel %vm1392, %v4294, %v4340
        %v4419 = vsel %vm1392, %v4295, %v4342
        %v4422 = vsel %vm1392, %v4296, %v4344
        %v4425 = vsel %vm1392, %v4297, %v4346
        %v4428 = vsel %vm1392, %v4298, %v4348
        %v4431 = vsel %vm1392, %v4299, %v4350
        %v4434 = vsel %vm1392, %v4300, %v4352
        %vm4435 = vcmask 261120
        %v4437 = vsel %vm4435, %v4389, %v4356
        %v4439 = vsel %vm4435, %v4392, %v4358
        %v4441 = vsel %vm4435, %v4395, %v4360
        %v4443 = vsel %vm4435, %v4398, %v4362
        %v4445 = vsel %vm4435, %v4401, %v4364
        %v4447 = vsel %vm4435, %v4404, %v4366
        %v4449 = vsel %vm4435, %v4407, %v4368
        %v4451 = vsel %vm4435, %v4410, %v4370
        %v4453 = vsel %vm4435, %v4413, %v4372
        %v4455 = vsel %vm4435, %v4416, %v4374
        %v4457 = vsel %vm4435, %v4419, %v4376
        %v4459 = vsel %vm4435, %v4422, %v4378
        %v4461 = vsel %vm4435, %v4425, %v4380
        %v4463 = vsel %vm4435, %v4428, %v4382
        %v4465 = vsel %vm4435, %v4431, %v4384
        %v4467 = vsel %vm4435, %v4434, %v4386
        %v4468 = vld [vmem:[%s8] sm:$0xf]
        %v4469 = vld [vmem:[%s8 + $0x4] sm:$0xf]
        %v4470 = vld [vmem:[%s8 + $0x8] sm:$0xf]
        %v4471 = vld [vmem:[%s8 + $0xc] sm:$0xf]
        %v4472 = vld [vmem:[%s8 + $0x10] sm:$0xf]
        %v4473 = vld [vmem:[%s8 + $0x14] sm:$0xf]
        %v4480 = vunpack.c.l.b16 %v4468
        %v4481 = vunpack.c.l.b16 %v4469
        %v4482 = vunpack.c.l.b16 %v4470
        %v4483 = vunpack.c.l.b16 %v4471
        %v4484 = vunpack.c.l.b16 %v4472
        %v4485 = vunpack.c.l.b16 %v4473
        %v4486 = vpack.c.b16 %v4481, %v4480
        %v4487 = vpack.c.b16 %v4483, %v4482
        %v4488 = vpack.c.b16 %v4485, %v4484
        %vm4492 = vcmask 392192
        %v4493 = vsel %vm4492, %v4437, 0
        %v4495 = vsel %vm4492, %v4439, 0
        %v4497 = vsel %vm4492, %v4441, 0
        %v4499 = vsel %vm4492, %v4443, 0
        %v4501 = vsel %vm4492, %v4445, 0
        %v4503 = vsel %vm4492, %v4447, 0
        %v4505 = vsel %vm4492, %v4449, 0
        %v4507 = vsel %vm4492, %v4451, 0
        %v4509 = vsel %vm4492, %v4453, 0
        %v4511 = vsel %vm4492, %v4455, 0
        %v4513 = vsel %vm4492, %v4457, 0
        %v4515 = vsel %vm4492, %v4459, 0
        %v4517 = vsel %vm4492, %v4461, 0
        %v4519 = vsel %vm4492, %v4463, 0
        %v4521 = vsel %vm4492, %v4465, 0
        %v4523 = vsel %vm4492, %v4467, 0
        %4525 = vmatprep.subr.bf16.mxu0 0
        %4526 = vmatpush1.bf16.msra.mxu0 %v4486
        %4527 = vmatprep.subr.bf16.mxu0 0
        %4528 = vmatpush1.bf16.msra.mxu0 %v4487
        %4529 = vmatprep.subr.bf16.mxu0 0
        %4530 = vmatpush1.bf16.msra.mxu0 %v4488
        %4531 = vmatprep.subr.bf16.mxu0 0
        %4532 = vmatpush1.bf16.msra.mxu0 0
        %4533 = vmatprep.subr.bf16.mxu0 0
        %4534 = vmatpush1.bf16.msra.mxu0 0
        %4535 = vmatprep.subr.bf16.mxu0 0
        %4536 = vmatpush1.bf16.msra.mxu0 0
        %4537 = vmatprep.subr.bf16.mxu0 0
        %4538 = vmatpush1.bf16.msra.mxu0 0
        %4539 = vmatprep.subr.bf16.mxu0 0
        %4540 = vmatpush1.bf16.msra.mxu0 0
        %4541 = vmatprep.subr.bf16.mxu0 0
        %4542 = vmatpush1.bf16.msra.mxu0 0
        %4543 = vmatprep.subr.bf16.mxu0 0
        %4544 = vmatpush1.bf16.msra.mxu0 0
        %4545 = vmatprep.subr.bf16.mxu0 0
        %4546 = vmatpush1.bf16.msra.mxu0 0
        %4547 = vmatprep.subr.bf16.mxu0 0
        %4548 = vmatpush1.bf16.msra.mxu0 0
        %4549 = vmatprep.subr.bf16.mxu0 0
        %4550 = vmatpush1.bf16.msra.mxu0 0
        %4551 = vmatprep.subr.bf16.mxu0 0
        %4552 = vmatpush1.bf16.msra.mxu0 0
        %4553 = vmatprep.subr.bf16.mxu0 0
        %4554 = vmatpush1.bf16.msra.mxu0 0
        %4555 = vmatprep.subr.bf16.mxu0 0
        %4556 = vmatpush1.bf16.msra.mxu0 0
        %4557 = vmatprep.mubr.bf16.mxu0 0
        %4558 = vmatmul.mubr.bf16.gmra.mrb[0].mxu0 %v4493
        %v4559 = vpop.f32.mrb[0].mxu0
        %v4560 = vadd.f32 0.0, %v4559
        %v4561 = vpop.f32.mrb[0].mxu0
        %v4562 = vpop.f32.mrb[0].mxu0
        %v4563 = vadd.f32 0.0, %v4562
        %v4564 = vpop.f32.mrb[0].mxu0
        %4565 = vmatprep.mubr.bf16.mxu0 0
        %4566 = vmatmul.mubr.bf16.gmra.mrb[0].mxu0 %v4495
        %v4567 = vpop.f32.mrb[0].mxu0
        %v4568 = vpop.f32.mrb[0].mxu0
        %v4569 = vpop.f32.mrb[0].mxu0
        %v4570 = vpop.f32.mrb[0].mxu0
        %4571 = vmatprep.mubr.bf16.mxu0 0
        %4572 = vmatmul.mubr.bf16.gmra.mrb[0].mxu0 %v4497
        %v4573 = vpop.f32.mrb[0].mxu0
        %v4574 = vadd.f32 0.0, %v4573
        %v4575 = vpop.f32.mrb[0].mxu0
        %v4576 = vpop.f32.mrb[0].mxu0
        %v4577 = vadd.f32 0.0, %v4576
        %v4578 = vpop.f32.mrb[0].mxu0
        %4579 = vmatprep.mubr.bf16.mxu0 0
        %4580 = vmatmul.mubr.bf16.gmra.mrb[0].mxu0 %v4499
        %v4581 = vpop.f32.mrb[0].mxu0
        %v4582 = vpop.f32.mrb[0].mxu0
        %v4583 = vpop.f32.mrb[0].mxu0
        %v4584 = vpop.f32.mrb[0].mxu0
        %4585 = vmatprep.mubr.bf16.mxu0 0
        %4586 = vmatmul.mubr.bf16.gmra.mrb[0].mxu0 %v4501
        %v4587 = vpop.f32.mrb[0].mxu0
        %v4588 = vadd.f32 0.0, %v4587
        %v4589 = vpop.f32.mrb[0].mxu0
        %v4590 = vpop.f32.mrb[0].mxu0
        %v4591 = vadd.f32 0.0, %v4590
        %v4592 = vpop.f32.mrb[0].mxu0
        %4593 = vmatprep.mubr.bf16.mxu0 0
        %4594 = vmatmul.mubr.bf16.gmra.mrb[0].mxu0 %v4503
        %v4595 = vpop.f32.mrb[0].mxu0
        %v4596 = vpop.f32.mrb[0].mxu0
        %v4597 = vpop.f32.mrb[0].mxu0
        %v4598 = vpop.f32.mrb[0].mxu0
        %4599 = vmatprep.mubr.bf16.mxu0 0
        %4600 = vmatmul.mubr.bf16.gmra.mrb[0].mxu0 %v4505
        %v4601 = vpop.f32.mrb[0].mxu0
        %v4602 = vadd.f32 0.0, %v4601
        %v4603 = vpop.f32.mrb[0].mxu0
        %v4604 = vpop.f32.mrb[0].mxu0
        %v4605 = vadd.f32 0.0, %v4604
        %v4606 = vpop.f32.mrb[0].mxu0
        %4607 = vmatprep.mubr.bf16.mxu0 0
        %4608 = vmatmul.mubr.bf16.gmra.mrb[0].mxu0 %v4507
        %v4609 = vpop.f32.mrb[0].mxu0
        %v4610 = vpop.f32.mrb[0].mxu0
        %v4611 = vpop.f32.mrb[0].mxu0
        %v4612 = vpop.f32.mrb[0].mxu0
        %4613 = vmatprep.mubr.bf16.mxu0 0
        %4614 = vmatmul.mubr.bf16.gmra.mrb[0].mxu0 %v4509
        %v4615 = vpop.f32.mrb[0].mxu0
        %v4616 = vadd.f32 0.0, %v4615
        %v4617 = vpop.f32.mrb[0].mxu0
        %v4618 = vpop.f32.mrb[0].mxu0
        %v4619 = vadd.f32 0.0, %v4618
        %v4620 = vpop.f32.mrb[0].mxu0
        %4621 = vmatprep.mubr.bf16.mxu0 0
        %4622 = vmatmul.mubr.bf16.gmra.mrb[0].mxu0 %v4511
        %v4623 = vpop.f32.mrb[0].mxu0
        %v4624 = vpop.f32.mrb[0].mxu0
        %v4625 = vpop.f32.mrb[0].mxu0
        %v4626 = vpop.f32.mrb[0].mxu0
        %4627 = vmatprep.mubr.bf16.mxu0 0
        %4628 = vmatmul.mubr.bf16.gmra.mrb[0].mxu0 %v4513
        %v4629 = vpop.f32.mrb[0].mxu0
        %v4630 = vadd.f32 0.0, %v4629
        %v4631 = vpop.f32.mrb[0].mxu0
        %v4632 = vpop.f32.mrb[0].mxu0
        %v4633 = vadd.f32 0.0, %v4632
        %v4634 = vpop.f32.mrb[0].mxu0
        %4635 = vmatprep.mubr.bf16.mxu0 0
        %4636 = vmatmul.mubr.bf16.gmra.mrb[0].mxu0 %v4515
        %v4637 = vpop.f32.mrb[0].mxu0
        %v4638 = vpop.f32.mrb[0].mxu0
        %v4639 = vpop.f32.mrb[0].mxu0
        %v4640 = vpop.f32.mrb[0].mxu0
        %4641 = vmatprep.mubr.bf16.mxu0 0
        %4642 = vmatmul.mubr.bf16.gmra.mrb[0].mxu0 %v4517
        %v4643 = vpop.f32.mrb[0].mxu0
        %v4644 = vadd.f32 0.0, %v4643
        %v4645 = vpop.f32.mrb[0].mxu0
        %v4646 = vpop.f32.mrb[0].mxu0
        %v4647 = vadd.f32 0.0, %v4646
        %v4648 = vpop.f32.mrb[0].mxu0
        %4649 = vmatprep.mubr.bf16.mxu0 0
        %4650 = vmatmul.mubr.bf16.gmra.mrb[0].mxu0 %v4519
        %v4651 = vpop.f32.mrb[0].mxu0
        %v4652 = vpop.f32.mrb[0].mxu0
        %v4653 = vpop.f32.mrb[0].mxu0
        %v4654 = vpop.f32.mrb[0].mxu0
        %4655 = vmatprep.mubr.bf16.mxu0 0
        %4656 = vmatmul.mubr.bf16.gmra.mrb[0].mxu0 %v4521
        %v4657 = vpop.f32.mrb[0].mxu0
        %v4658 = vadd.f32 0.0, %v4657
        %v4659 = vpop.f32.mrb[0].mxu0
        %v4660 = vpop.f32.mrb[0].mxu0
        %v4661 = vadd.f32 0.0, %v4660
        %v4662 = vpop.f32.mrb[0].mxu0
        %4663 = vmatprep.mubr.bf16.mxu0 0
        %4664 = vmatmul.mubr.bf16.gmra.mrb[0].mxu0 %v4523
        %v4665 = vpop.f32.mrb[0].mxu0
        %v4666 = vpop.f32.mrb[0].mxu0
        %v4667 = vpop.f32.mrb[0].mxu0
        %v4668 = vpop.f32.mrb[0].mxu0
        %4669 = vdwg.mxu0
        %v4670 = vadd.f32 %v4560, 0.0
        %v4671 = vadd.f32 %v4563, 0.0
        %v4672 = vadd.f32 %v4574, 0.0
        %v4673 = vadd.f32 %v4577, 0.0
        %v4674 = vadd.f32 %v4588, 0.0
        %v4675 = vadd.f32 %v4591, 0.0
        %v4676 = vadd.f32 %v4602, 0.0
        %v4677 = vadd.f32 %v4605, 0.0
        %v4678 = vadd.f32 %v4616, 0.0
        %v4679 = vadd.f32 %v4619, 0.0
        %v4680 = vadd.f32 %v4630, 0.0
        %v4681 = vadd.f32 %v4633, 0.0
        %v4682 = vadd.f32 %v4644, 0.0
        %v4683 = vadd.f32 %v4647, 0.0
        %v4684 = vadd.f32 %v4658, 0.0
        %v4685 = vadd.f32 %v4661, 0.0
        %s4686 = scalar_lea.vmem %s8, 24
        %v4687 = vld [vmem:[%s4686] sm:$0xf]
        %v4688 = vld [vmem:[%s4686 + $0x4] sm:$0xf]
        %v4689 = vld [vmem:[%s4686 + $0x8] sm:$0xf]
        %v4690 = vld [vmem:[%s4686 + $0xc] sm:$0xf]
        %v4691 = vld [vmem:[%s4686 + $0x10] sm:$0xf]
        %v4692 = vld [vmem:[%s4686 + $0x14] sm:$0xf]
        %v4699 = vunpack.c.l.b16 %v4687
        %v4700 = vunpack.c.l.b16 %v4688
        %v4701 = vunpack.c.l.b16 %v4689
        %v4702 = vunpack.c.l.b16 %v4690
        %v4703 = vunpack.c.l.b16 %v4691
        %v4704 = vunpack.c.l.b16 %v4692
        %v4705 = vpack.c.b16 %v4700, %v4699
        %v4706 = vpack.c.b16 %v4702, %v4701
        %v4707 = vpack.c.b16 %v4704, %v4703
        %4711 = vmatprep.subr.bf16.mxu0 0
        %4712 = vmatpush1.bf16.msra.mxu0 %v4705
        %4713 = vmatprep.subr.bf16.mxu0 0
        %4714 = vmatpush1.bf16.msra.mxu0 %v4706
        %4715 = vmatprep.subr.bf16.mxu0 0
        %4716 = vmatpush1.bf16.msra.mxu0 %v4707
        %4717 = vmatprep.subr.bf16.mxu0 0
        %4718 = vmatpush1.bf16.msra.mxu0 0
        %4719 = vmatprep.subr.bf16.mxu0 0
        %4720 = vmatpush1.bf16.msra.mxu0 0
        %4721 = vmatprep.subr.bf16.mxu0 0
        %4722 = vmatpush1.bf16.msra.mxu0 0
        %4723 = vmatprep.subr.bf16.mxu0 0
        %4724 = vmatpush1.bf16.msra.mxu0 0
        %4725 = vmatprep.subr.bf16.mxu0 0
        %4726 = vmatpush1.bf16.msra.mxu0 0
        %4727 = vmatprep.subr.bf16.mxu0 0
        %4728 = vmatpush1.bf16.msra.mxu0 0
        %4729 = vmatprep.subr.bf16.mxu0 0
        %4730 = vmatpush1.bf16.msra.mxu0 0
        %4731 = vmatprep.subr.bf16.mxu0 0
        %4732 = vmatpush1.bf16.msra.mxu0 0
        %4733 = vmatprep.subr.bf16.mxu0 0
        %4734 = vmatpush1.bf16.msra.mxu0 0
        %4735 = vmatprep.subr.bf16.mxu0 0
        %4736 = vmatpush1.bf16.msra.mxu0 0
        %4737 = vmatprep.subr.bf16.mxu0 0
        %4738 = vmatpush1.bf16.msra.mxu0 0
        %4739 = vmatprep.subr.bf16.mxu0 0
        %4740 = vmatpush1.bf16.msra.mxu0 0
        %4741 = vmatprep.subr.bf16.mxu0 0
        %4742 = vmatpush1.bf16.msra.mxu0 0
        %4743 = vmatprep.mubr.bf16.mxu0 0
        %4744 = vmatmul.mubr.bf16.gmra.mrb[0].mxu0 %v4493
        %v4745 = vpop.f32.mrb[0].mxu0
        %v4746 = vpop.f32.mrb[0].mxu0
        %v4747 = vpop.f32.mrb[0].mxu0
        %v4748 = vadd.f32 0.0, %v4747
        %v4749 = vpop.f32.mrb[0].mxu0
        %4750 = vmatprep.mubr.bf16.mxu0 0
        %4751 = vmatmul.mubr.bf16.gmra.mrb[0].mxu0 %v4495
        %v4752 = vpop.f32.mrb[0].mxu0
        %v4753 = vpop.f32.mrb[0].mxu0
        %v4754 = vpop.f32.mrb[0].mxu0
        %v4755 = vpop.f32.mrb[0].mxu0
        %4756 = vmatprep.mubr.bf16.mxu0 0
        %4757 = vmatmul.mubr.bf16.gmra.mrb[0].mxu0 %v4497
        %v4758 = vpop.f32.mrb[0].mxu0
        %v4759 = vpop.f32.mrb[0].mxu0
        %v4760 = vpop.f32.mrb[0].mxu0
        %v4761 = vadd.f32 0.0, %v4760
        %v4762 = vpop.f32.mrb[0].mxu0
        %4763 = vmatprep.mubr.bf16.mxu0 0
        %4764 = vmatmul.mubr.bf16.gmra.mrb[0].mxu0 %v4499
        %v4765 = vpop.f32.mrb[0].mxu0
        %v4766 = vpop.f32.mrb[0].mxu0
        %v4767 = vpop.f32.mrb[0].mxu0
        %v4768 = vpop.f32.mrb[0].mxu0
        %4769 = vmatprep.mubr.bf16.mxu0 0
        %4770 = vmatmul.mubr.bf16.gmra.mrb[0].mxu0 %v4501
        %v4771 = vpop.f32.mrb[0].mxu0
        %v4772 = vpop.f32.mrb[0].mxu0
        %v4773 = vpop.f32.mrb[0].mxu0
        %v4774 = vadd.f32 0.0, %v4773
        %v4775 = vpop.f32.mrb[0].mxu0
        %4776 = vmatprep.mubr.bf16.mxu0 0
        %4777 = vmatmul.mubr.bf16.gmra.mrb[0].mxu0 %v4503
        %v4778 = vpop.f32.mrb[0].mxu0
        %v4779 = vpop.f32.mrb[0].mxu0
        %v4780 = vpop.f32.mrb[0].mxu0
        %v4781 = vpop.f32.mrb[0].mxu0
        %4782 = vmatprep.mubr.bf16.mxu0 0
        %4783 = vmatmul.mubr.bf16.gmra.mrb[0].mxu0 %v4505
        %v4784 = vpop.f32.mrb[0].mxu0
        %v4785 = vpop.f32.mrb[0].mxu0
        %v4786 = vpop.f32.mrb[0].mxu0
        %v4787 = vadd.f32 0.0, %v4786
        %v4788 = vpop.f32.mrb[0].mxu0
        %4789 = vmatprep.mubr.bf16.mxu0 0
        %4790 = vmatmul.mubr.bf16.gmra.mrb[0].mxu0 %v4507
        %v4791 = vpop.f32.mrb[0].mxu0
        %v4792 = vpop.f32.mrb[0].mxu0
        %v4793 = vpop.f32.mrb[0].mxu0
        %v4794 = vpop.f32.mrb[0].mxu0
        %4795 = vmatprep.mubr.bf16.mxu0 0
        %4796 = vmatmul.mubr.bf16.gmra.mrb[0].mxu0 %v4509
        %v4797 = vpop.f32.mrb[0].mxu0
        %v4798 = vpop.f32.mrb[0].mxu0
        %v4799 = vpop.f32.mrb[0].mxu0
        %v4800 = vadd.f32 0.0, %v4799
        %v4801 = vpop.f32.mrb[0].mxu0
        %4802 = vmatprep.mubr.bf16.mxu0 0
        %4803 = vmatmul.mubr.bf16.gmra.mrb[0].mxu0 %v4511
        %v4804 = vpop.f32.mrb[0].mxu0
        %v4805 = vpop.f32.mrb[0].mxu0
        %v4806 = vpop.f32.mrb[0].mxu0
        %v4807 = vpop.f32.mrb[0].mxu0
        %4808 = vmatprep.mubr.bf16.mxu0 0
        %4809 = vmatmul.mubr.bf16.gmra.mrb[0].mxu0 %v4513
        %v4810 = vpop.f32.mrb[0].mxu0
        %v4811 = vpop.f32.mrb[0].mxu0
        %v4812 = vpop.f32.mrb[0].mxu0
        %v4813 = vadd.f32 0.0, %v4812
        %v4814 = vpop.f32.mrb[0].mxu0
        %4815 = vmatprep.mubr.bf16.mxu0 0
        %4816 = vmatmul.mubr.bf16.gmra.mrb[0].mxu0 %v4515
        %v4817 = vpop.f32.mrb[0].mxu0
        %v4818 = vpop.f32.mrb[0].mxu0
        %v4819 = vpop.f32.mrb[0].mxu0
        %v4820 = vpop.f32.mrb[0].mxu0
        %4821 = vmatprep.mubr.bf16.mxu0 0
        %4822 = vmatmul.mubr.bf16.gmra.mrb[0].mxu0 %v4517
        %v4823 = vpop.f32.mrb[0].mxu0
        %v4824 = vpop.f32.mrb[0].mxu0
        %v4825 = vpop.f32.mrb[0].mxu0
        %v4826 = vadd.f32 0.0, %v4825
        %v4827 = vpop.f32.mrb[0].mxu0
        %4828 = vmatprep.mubr.bf16.mxu0 0
        %4829 = vmatmul.mubr.bf16.gmra.mrb[0].mxu0 %v4519
        %v4830 = vpop.f32.mrb[0].mxu0
        %v4831 = vpop.f32.mrb[0].mxu0
        %v4832 = vpop.f32.mrb[0].mxu0
        %v4833 = vpop.f32.mrb[0].mxu0
        %4834 = vmatprep.mubr.bf16.mxu0 0
        %4835 = vmatmul.mubr.bf16.gmra.mrb[0].mxu0 %v4521
        %v4836 = vpop.f32.mrb[0].mxu0
        %v4837 = vpop.f32.mrb[0].mxu0
        %v4838 = vpop.f32.mrb[0].mxu0
        %v4839 = vadd.f32 0.0, %v4838
        %v4840 = vpop.f32.mrb[0].mxu0
        %4841 = vmatprep.mubr.bf16.mxu0 0
        %4842 = vmatmul.mubr.bf16.gmra.mrb[0].mxu0 %v4523
        %v4843 = vpop.f32.mrb[0].mxu0
        %v4844 = vpop.f32.mrb[0].mxu0
        %v4845 = vpop.f32.mrb[0].mxu0
        %v4846 = vpop.f32.mrb[0].mxu0
        %4847 = vdwg.mxu0
        %v4856 = vrot.slane %v4748, 1
        %v4857 = vrot.slane %v4761, 1
        %v4858 = vrot.slane %v4774, 1
        %v4859 = vrot.slane %v4787, 1
        %v4860 = vrot.slane %v4800, 1
        %v4861 = vrot.slane %v4813, 1
        %v4862 = vrot.slane %v4826, 1
        %v4863 = vrot.slane %v4839, 1
        %v4872 = vadd.f32 %v4670, %v4856
        %v4873 = vadd.f32 %v4671, %v4856
        %v4874 = vadd.f32 %v4672, %v4857
        %v4875 = vadd.f32 %v4673, %v4857
        %v4876 = vadd.f32 %v4674, %v4858
        %v4877 = vadd.f32 %v4675, %v4858
        %v4878 = vadd.f32 %v4676, %v4859
        %v4879 = vadd.f32 %v4677, %v4859
        %v4880 = vadd.f32 %v4678, %v4860
        %v4881 = vadd.f32 %v4679, %v4860
        %v4882 = vadd.f32 %v4680, %v4861
        %v4883 = vadd.f32 %v4681, %v4861
        %v4884 = vadd.f32 %v4682, %v4862
        %v4885 = vadd.f32 %v4683, %v4862
        %v4886 = vadd.f32 %v4684, %v4863
        %v4887 = vadd.f32 %v4685, %v4863
        %s4888 = scalar_lea.vmem %s8, 48
        %v4889 = vld [vmem:[%s4888] sm:$0xf]
        %v4890 = vld [vmem:[%s4888 + $0x4] sm:$0xf]
        %v4891 = vld [vmem:[%s4888 + $0x8] sm:$0xf]
        %v4892 = vld [vmem:[%s4888 + $0xc] sm:$0xf]
        %v4893 = vld [vmem:[%s4888 + $0x10] sm:$0xf]
        %v4894 = vld [vmem:[%s4888 + $0x14] sm:$0xf]
        %v4901 = vunpack.c.l.b16 %v4889
        %v4902 = vunpack.c.l.b16 %v4890
        %v4903 = vunpack.c.l.b16 %v4891
        %v4904 = vunpack.c.l.b16 %v4892
        %v4905 = vunpack.c.l.b16 %v4893
        %v4906 = vunpack.c.l.b16 %v4894
        %v4907 = vpack.c.b16 %v4902, %v4901
        %v4908 = vpack.c.b16 %v4904, %v4903
        %v4909 = vpack.c.b16 %v4906, %v4905
        %4913 = vmatprep.subr.bf16.mxu0 0
        %4914 = vmatpush1.bf16.msra.mxu0 %v4907
        %4915 = vmatprep.subr.bf16.mxu0 0
        %4916 = vmatpush1.bf16.msra.mxu0 %v4908
        %4917 = vmatprep.subr.bf16.mxu0 0
        %4918 = vmatpush1.bf16.msra.mxu0 %v4909
        %4919 = vmatprep.subr.bf16.mxu0 0
        %4920 = vmatpush1.bf16.msra.mxu0 0
        %4921 = vmatprep.subr.bf16.mxu0 0
        %4922 = vmatpush1.bf16.msra.mxu0 0
        %4923 = vmatprep.subr.bf16.mxu0 0
        %4924 = vmatpush1.bf16.msra.mxu0 0
        %4925 = vmatprep.subr.bf16.mxu0 0
        %4926 = vmatpush1.bf16.msra.mxu0 0
        %4927 = vmatprep.subr.bf16.mxu0 0
        %4928 = vmatpush1.bf16.msra.mxu0 0
        %4929 = vmatprep.subr.bf16.mxu0 0
        %4930 = vmatpush1.bf16.msra.mxu0 0
        %4931 = vmatprep.subr.bf16.mxu0 0
        %4932 = vmatpush1.bf16.msra.mxu0 0
        %4933 = vmatprep.subr.bf16.mxu0 0
        %4934 = vmatpush1.bf16.msra.mxu0 0
        %4935 = vmatprep.subr.bf16.mxu0 0
        %4936 = vmatpush1.bf16.msra.mxu0 0
        %4937 = vmatprep.subr.bf16.mxu0 0
        %4938 = vmatpush1.bf16.msra.mxu0 0
        %4939 = vmatprep.subr.bf16.mxu0 0
        %4940 = vmatpush1.bf16.msra.mxu0 0
        %4941 = vmatprep.subr.bf16.mxu0 0
        %4942 = vmatpush1.bf16.msra.mxu0 0
        %4943 = vmatprep.subr.bf16.mxu0 0
        %4944 = vmatpush1.bf16.msra.mxu0 0
        %4945 = vmatprep.mubr.bf16.mxu0 0
        %4946 = vmatmul.mubr.bf16.gmra.mrb[0].mxu0 %v4493
        %v4947 = vpop.f32.mrb[0].mxu0
        %v4948 = vpop.f32.mrb[0].mxu0
        %v4949 = vpop.f32.mrb[0].mxu0
        %v4950 = vadd.f32 0.0, %v4949
        %v4951 = vpop.f32.mrb[0].mxu0
        %4952 = vmatprep.mubr.bf16.mxu0 0
        %4953 = vmatmul.mubr.bf16.gmra.mrb[0].mxu0 %v4495
        %v4954 = vpop.f32.mrb[0].mxu0
        %v4955 = vadd.f32 0.0, %v4954
        %v4956 = vpop.f32.mrb[0].mxu0
        %v4957 = vpop.f32.mrb[0].mxu0
        %v4958 = vpop.f32.mrb[0].mxu0
        %4959 = vmatprep.mubr.bf16.mxu0 0
        %4960 = vmatmul.mubr.bf16.gmra.mrb[0].mxu0 %v4497
        %v4961 = vpop.f32.mrb[0].mxu0
        %v4962 = vpop.f32.mrb[0].mxu0
        %v4963 = vpop.f32.mrb[0].mxu0
        %v4964 = vadd.f32 0.0, %v4963
        %v4965 = vpop.f32.mrb[0].mxu0
        %4966 = vmatprep.mubr.bf16.mxu0 0
        %4967 = vmatmul.mubr.bf16.gmra.mrb[0].mxu0 %v4499
        %v4968 = vpop.f32.mrb[0].mxu0
        %v4969 = vadd.f32 0.0, %v4968
        %v4970 = vpop.f32.mrb[0].mxu0
        %v4971 = vpop.f32.mrb[0].mxu0
        %v4972 = vpop.f32.mrb[0].mxu0
        %4973 = vmatprep.mubr.bf16.mxu0 0
        %4974 = vmatmul.mubr.bf16.gmra.mrb[0].mxu0 %v4501
        %v4975 = vpop.f32.mrb[0].mxu0
        %v4976 = vpop.f32.mrb[0].mxu0
        %v4977 = vpop.f32.mrb[0].mxu0
        %v4978 = vadd.f32 0.0, %v4977
        %v4979 = vpop.f32.mrb[0].mxu0
        %4980 = vmatprep.mubr.bf16.mxu0 0
        %4981 = vmatmul.mubr.bf16.gmra.mrb[0].mxu0 %v4503
        %v4982 = vpop.f32.mrb[0].mxu0
        %v4983 = vadd.f32 0.0, %v4982
        %v4984 = vpop.f32.mrb[0].mxu0
        %v4985 = vpop.f32.mrb[0].mxu0
        %v4986 = vpop.f32.mrb[0].mxu0
        %4987 = vmatprep.mubr.bf16.mxu0 0
        %4988 = vmatmul.mubr.bf16.gmra.mrb[0].mxu0 %v4505
        %v4989 = vpop.f32.mrb[0].mxu0
        %v4990 = vpop.f32.mrb[0].mxu0
        %v4991 = vpop.f32.mrb[0].mxu0
        %v4992 = vadd.f32 0.0, %v4991
        %v4993 = vpop.f32.mrb[0].mxu0
        %4994 = vmatprep.mubr.bf16.mxu0 0
        %4995 = vmatmul.mubr.bf16.gmra.mrb[0].mxu0 %v4507
        %v4996 = vpop.f32.mrb[0].mxu0
        %v4997 = vadd.f32 0.0, %v4996
        %v4998 = vpop.f32.mrb[0].mxu0
        %v4999 = vpop.f32.mrb[0].mxu0
        %v5000 = vpop.f32.mrb[0].mxu0
        %5001 = vmatprep.mubr.bf16.mxu0 0
        %5002 = vmatmul.mubr.bf16.gmra.mrb[0].mxu0 %v4509
        %v5003 = vpop.f32.mrb[0].mxu0
        %v5004 = vpop.f32.mrb[0].mxu0
        %v5005 = vpop.f32.mrb[0].mxu0
        %v5006 = vadd.f32 0.0, %v5005
        %v5007 = vpop.f32.mrb[0].mxu0
        %5008 = vmatprep.mubr.bf16.mxu0 0
        %5009 = vmatmul.mubr.bf16.gmra.mrb[0].mxu0 %v4511
        %v5010 = vpop.f32.mrb[0].mxu0
        %v5011 = vadd.f32 0.0, %v5010
        %v5012 = vpop.f32.mrb[0].mxu0
        %v5013 = vpop.f32.mrb[0].mxu0
        %v5014 = vpop.f32.mrb[0].mxu0
        %5015 = vmatprep.mubr.bf16.mxu0 0
        %5016 = vmatmul.mubr.bf16.gmra.mrb[0].mxu0 %v4513
        %v5017 = vpop.f32.mrb[0].mxu0
        %v5018 = vpop.f32.mrb[0].mxu0
        %v5019 = vpop.f32.mrb[0].mxu0
        %v5020 = vadd.f32 0.0, %v5019
        %v5021 = vpop.f32.mrb[0].mxu0
        %5022 = vmatprep.mubr.bf16.mxu0 0
        %5023 = vmatmul.mubr.bf16.gmra.mrb[0].mxu0 %v4515
        %v5024 = vpop.f32.mrb[0].mxu0
        %v5025 = vadd.f32 0.0, %v5024
        %v5026 = vpop.f32.mrb[0].mxu0
        %v5027 = vpop.f32.mrb[0].mxu0
        %v5028 = vpop.f32.mrb[0].mxu0
        %5029 = vmatprep.mubr.bf16.mxu0 0
        %5030 = vmatmul.mubr.bf16.gmra.mrb[0].mxu0 %v4517
        %v5031 = vpop.f32.mrb[0].mxu0
        %v5032 = vpop.f32.mrb[0].mxu0
        %v5033 = vpop.f32.mrb[0].mxu0
        %v5034 = vadd.f32 0.0, %v5033
        %v5035 = vpop.f32.mrb[0].mxu0
        %5036 = vmatprep.mubr.bf16.mxu0 0
        %5037 = vmatmul.mubr.bf16.gmra.mrb[0].mxu0 %v4519
        %v5038 = vpop.f32.mrb[0].mxu0
        %v5039 = vadd.f32 0.0, %v5038
        %v5040 = vpop.f32.mrb[0].mxu0
        %v5041 = vpop.f32.mrb[0].mxu0
        %v5042 = vpop.f32.mrb[0].mxu0
        %5043 = vmatprep.mubr.bf16.mxu0 0
        %5044 = vmatmul.mubr.bf16.gmra.mrb[0].mxu0 %v4521
        %v5045 = vpop.f32.mrb[0].mxu0
        %v5046 = vpop.f32.mrb[0].mxu0
        %v5047 = vpop.f32.mrb[0].mxu0
        %v5048 = vadd.f32 0.0, %v5047
        %v5049 = vpop.f32.mrb[0].mxu0
        %5050 = vmatprep.mubr.bf16.mxu0 0
        %5051 = vmatmul.mubr.bf16.gmra.mrb[0].mxu0 %v4523
        %v5052 = vpop.f32.mrb[0].mxu0
        %v5053 = vadd.f32 0.0, %v5052
        %v5054 = vpop.f32.mrb[0].mxu0
        %v5055 = vpop.f32.mrb[0].mxu0
        %v5056 = vpop.f32.mrb[0].mxu0
        %5057 = vdwg.mxu0
        %v5074 = vrot.slane %v4950, 2
        %v5075 = vrot.slane %v4955, 2
        %v5076 = vsel %vm732, %v5074, %v5075
        %v5077 = vrot.slane %v4964, 2
        %v5078 = vrot.slane %v4969, 2
        %v5079 = vsel %vm732, %v5077, %v5078
        %v5080 = vrot.slane %v4978, 2
        %v5081 = vrot.slane %v4983, 2
        %v5082 = vsel %vm732, %v5080, %v5081
        %v5083 = vrot.slane %v4992, 2
        %v5084 = vrot.slane %v4997, 2
        %v5085 = vsel %vm732, %v5083, %v5084
        %v5086 = vrot.slane %v5006, 2
        %v5087 = vrot.slane %v5011, 2
        %v5088 = vsel %vm732, %v5086, %v5087
        %v5089 = vrot.slane %v5020, 2
        %v5090 = vrot.slane %v5025, 2
        %v5091 = vsel %vm732, %v5089, %v5090
        %v5092 = vrot.slane %v5034, 2
        %v5093 = vrot.slane %v5039, 2
        %v5094 = vsel %vm732, %v5092, %v5093
        %v5095 = vrot.slane %v5048, 2
        %v5096 = vrot.slane %v5053, 2
        %v5097 = vsel %vm732, %v5095, %v5096
        %v5114 = vadd.f32 %v4872, %v5074
        %v5115 = vadd.f32 %v4873, %v5076
        %v5116 = vadd.f32 %v4874, %v5077
        %v5117 = vadd.f32 %v4875, %v5079
        %v5118 = vadd.f32 %v4876, %v5080
        %v5119 = vadd.f32 %v4877, %v5082
        %v5120 = vadd.f32 %v4878, %v5083
        %v5121 = vadd.f32 %v4879, %v5085
        %v5122 = vadd.f32 %v4880, %v5086
        %v5123 = vadd.f32 %v4881, %v5088
        %v5124 = vadd.f32 %v4882, %v5089
        %v5125 = vadd.f32 %v4883, %v5091
        %v5126 = vadd.f32 %v4884, %v5092
        %v5127 = vadd.f32 %v4885, %v5094
        %v5128 = vadd.f32 %v4886, %v5095
        %v5129 = vadd.f32 %v4887, %v5097
        %v5130 = vld [vmem:[%s9] sm:$0x1]
        %v5132 = vlaneseq
        %v5133 = vshrl.u32 %v5132, 7
        %v5134 = vsub.s32 0, %v5133
        %v5135 = vrot.slane %v5130, %v5134
        %v5137 = vadd.f32 %v5114, %v5135
        %v5138 = vadd.f32 %v5115, %v5135
        %v5139 = vadd.f32 %v5116, %v5135
        %v5140 = vadd.f32 %v5117, %v5135
        %v5141 = vadd.f32 %v5118, %v5135
        %v5142 = vadd.f32 %v5119, %v5135
        %v5143 = vadd.f32 %v5120, %v5135
        %v5144 = vadd.f32 %v5121, %v5135
        %v5145 = vadd.f32 %v5122, %v5135
        %v5146 = vadd.f32 %v5123, %v5135
        %v5147 = vadd.f32 %v5124, %v5135
        %v5148 = vadd.f32 %v5125, %v5135
        %v5149 = vadd.f32 %v5126, %v5135
        %v5150 = vadd.f32 %v5127, %v5135
        %v5151 = vadd.f32 %v5128, %v5135
        %v5152 = vadd.f32 %v5129, %v5135
        %v5153 = vmax.f32 %v5137, 0.0
        %v5154 = vmax.f32 %v5138, 0.0
        %v5155 = vmax.f32 %v5139, 0.0
        %v5156 = vmax.f32 %v5140, 0.0
        %v5157 = vmax.f32 %v5141, 0.0
        %v5158 = vmax.f32 %v5142, 0.0
        %v5159 = vmax.f32 %v5143, 0.0
        %v5160 = vmax.f32 %v5144, 0.0
        %v5161 = vmax.f32 %v5145, 0.0
        %v5162 = vmax.f32 %v5146, 0.0
        %v5163 = vmax.f32 %v5147, 0.0
        %v5164 = vmax.f32 %v5148, 0.0
        %v5165 = vmax.f32 %v5149, 0.0
        %v5166 = vmax.f32 %v5150, 0.0
        %v5167 = vmax.f32 %v5151, 0.0
        %v5168 = vmax.f32 %v5152, 0.0
        %v5169 = vpack.c.bf16 %v5154, %v5153
        %v5170 = vpack.c.bf16 %v5156, %v5155
        %v5171 = vpack.c.bf16 %v5158, %v5157
        %v5172 = vpack.c.bf16 %v5160, %v5159
        %v5173 = vpack.c.bf16 %v5162, %v5161
        %v5174 = vpack.c.bf16 %v5164, %v5163
        %v5175 = vpack.c.bf16 %v5166, %v5165
        %v5176 = vpack.c.bf16 %v5168, %v5167
        %v5178 = vshrl.u32 %v5169, 16
        %v5180 = vrot.slane %v5178, 7
        %v5181 = vshll.u32 %v5169, 16
        %v5183 = vor.u32 %v5180, %v5181
        %v5185 = vshrl.u32 %v5170, 16
        %v5187 = vrot.slane %v5185, 7
        %v5188 = vshll.u32 %v5170, 16
        %v5190 = vor.u32 %v5187, %v5188
        %v5192 = vshrl.u32 %v5171, 16
        %v5194 = vrot.slane %v5192, 7
        %v5195 = vshll.u32 %v5171, 16
        %v5197 = vor.u32 %v5194, %v5195
        %v5199 = vshrl.u32 %v5172, 16
        %v5201 = vrot.slane %v5199, 7
        %v5202 = vshll.u32 %v5172, 16
        %v5204 = vor.u32 %v5201, %v5202
        %v5206 = vshrl.u32 %v5173, 16
        %v5208 = vrot.slane %v5206, 7
        %v5209 = vshll.u32 %v5173, 16
        %v5211 = vor.u32 %v5208, %v5209
        %v5213 = vshrl.u32 %v5174, 16
        %v5215 = vrot.slane %v5213, 7
        %v5216 = vshll.u32 %v5174, 16
        %v5218 = vor.u32 %v5215, %v5216
        %v5220 = vshrl.u32 %v5175, 16
        %v5222 = vrot.slane %v5220, 7
        %v5223 = vshll.u32 %v5175, 16
        %v5225 = vor.u32 %v5222, %v5223
        %v5227 = vshrl.u32 %v5176, 16
        %v5229 = vrot.slane %v5227, 7
        %v5230 = vshll.u32 %v5176, 16
        %v5232 = vor.u32 %v5229, %v5230
        %v5234 = vsel %vm979, 0, %v5183
        %v5237 = vsel %vm979, 0, %v5190
        %v5240 = vsel %vm979, 0, %v5197
        %v5243 = vsel %vm979, 0, %v5204
        %v5246 = vsel %vm979, 0, %v5211
        %v5249 = vsel %vm979, 0, %v5218
        %v5252 = vsel %vm979, 0, %v5225
        %v5255 = vsel %vm979, 0, %v5232
        %5257 = vst.msk [vmem:[#allocation5] sm:$0xff] %vm1392, 0
        %5258 = vst.msk [vmem:[#allocation5 + $0x8] sm:$0xff] %vm1392, 0
        %5259 = vst.msk [vmem:[#allocation5 + $0x10] sm:$0xff] %vm1392, %v5234
        %5260 = vst.msk [vmem:[#allocation5 + $0x18] sm:$0xff] %vm1392, 0
        %5261 = vst.msk [vmem:[#allocation5 + $0x20] sm:$0xff] %vm1392, %v5237
        %5262 = vst.msk [vmem:[#allocation5 + $0x28] sm:$0xff] %vm1392, 0
        %5263 = vst.msk [vmem:[#allocation5 + $0x30] sm:$0xff] %vm1392, %v5240
        %5264 = vst.msk [vmem:[#allocation5 + $0x38] sm:$0xff] %vm1392, 0
        %5265 = vst.msk [vmem:[#allocation5 + $0x40] sm:$0xff] %vm1392, %v5243
        %5266 = vst.msk [vmem:[#allocation5 + $0x48] sm:$0xff] %vm1392, 0
        %5267 = vst.msk [vmem:[#allocation5 + $0x50] sm:$0xff] %vm1392, %v5246
        %5268 = vst.msk [vmem:[#allocation5 + $0x58] sm:$0xff] %vm1392, 0
        %5269 = vst.msk [vmem:[#allocation5 + $0x60] sm:$0xff] %vm1392, %v5249
        %5270 = vst.msk [vmem:[#allocation5 + $0x68] sm:$0xff] %vm1392, 0
        %5271 = vst.msk [vmem:[#allocation5 + $0x70] sm:$0xff] %vm1392, %v5252
        %5272 = vst.msk [vmem:[#allocation5 + $0x78] sm:$0xff] %vm1392, 0
        %5273 = vst.msk [vmem:[#allocation5 + $0x80] sm:$0xff] %vm1392, %v5255
        %5274 = vst.msk [vmem:[#allocation5 + $0x88] sm:$0xff] %vm1392, 0
        %5275 = vst.msk [vmem:[#allocation5 + $0x90] sm:$0xff] %vm1392, 0
        %5276 = vst.msk [vmem:[#allocation5 + $0x98] sm:$0xff] %vm1392, 0
        %v5277 = vld [vmem:[#allocation5] sm:$0xff]
        %v5278 = vld [vmem:[#allocation5 + $0x8] sm:$0xff]
        %v5279 = vld [vmem:[#allocation5 + $0x10] sm:$0xff]
        %v5280 = vld [vmem:[#allocation5 + $0x18] sm:$0xff]
        %v5281 = vld [vmem:[#allocation5 + $0x20] sm:$0xff]
        %v5282 = vld [vmem:[#allocation5 + $0x28] sm:$0xff]
        %v5283 = vld [vmem:[#allocation5 + $0x30] sm:$0xff]
        %v5284 = vld [vmem:[#allocation5 + $0x38] sm:$0xff]
        %v5285 = vld [vmem:[#allocation5 + $0x40] sm:$0xff]
        %v5286 = vld [vmem:[#allocation5 + $0x48] sm:$0xff]
        %v5287 = vld [vmem:[#allocation5 + $0x50] sm:$0xff]
        %v5288 = vld [vmem:[#allocation5 + $0x58] sm:$0xff]
        %v5289 = vld [vmem:[#allocation5 + $0x60] sm:$0xff]
        %v5290 = vld [vmem:[#allocation5 + $0x68] sm:$0xff]
        %v5291 = vld [vmem:[#allocation5 + $0x70] sm:$0xff]
        %v5292 = vld [vmem:[#allocation5 + $0x78] sm:$0xff]
        %v5293 = vld [vmem:[#allocation5 + $0x80] sm:$0xff]
        %v5294 = vld [vmem:[#allocation5 + $0x88] sm:$0xff]
        %5303 = vrot.lane.b32.xlu0 %v5279, 16
        %v5304 = vpop.permute.xlu0 %5303
        %5305 = vrot.lane.b32.xlu0 %v5280, 16
        %v5306 = vpop.permute.xlu0 %5305
        %5307 = vrot.lane.b32.xlu0 %v5283, 16
        %v5308 = vpop.permute.xlu0 %5307
        %5309 = vrot.lane.b32.xlu0 %v5284, 16
        %v5310 = vpop.permute.xlu0 %5309
        %5311 = vrot.lane.b32.xlu0 %v5287, 16
        %v5312 = vpop.permute.xlu0 %5311
        %5313 = vrot.lane.b32.xlu0 %v5288, 16
        %v5314 = vpop.permute.xlu0 %5313
        %5315 = vrot.lane.b32.xlu0 %v5291, 16
        %v5316 = vpop.permute.xlu0 %5315
        %5317 = vrot.lane.b32.xlu0 %v5292, 16
        %v5318 = vpop.permute.xlu0 %5317
        %5327 = vrot.lane.b32.xlu0 %v5281, 32
        %v5328 = vpop.permute.xlu0 %5327
        %5329 = vrot.lane.b32.xlu0 %v5282, 32
        %v5330 = vpop.permute.xlu0 %5329
        %5331 = vrot.lane.b32.xlu0 %v5285, 32
        %v5332 = vpop.permute.xlu0 %5331
        %5333 = vrot.lane.b32.xlu0 %v5286, 32
        %v5334 = vpop.permute.xlu0 %5333
        %5335 = vrot.lane.b32.xlu0 %v5289, 32
        %v5336 = vpop.permute.xlu0 %5335
        %5337 = vrot.lane.b32.xlu0 %v5290, 32
        %v5338 = vpop.permute.xlu0 %5337
        %5339 = vrot.lane.b32.xlu0 %v5293, 32
        %v5340 = vpop.permute.xlu0 %5339
        %5341 = vrot.lane.b32.xlu0 %v5294, 32
        %v5342 = vpop.permute.xlu0 %5341
        %v5345 = vsel %vm1392, %v5277, %v5304
        %v5348 = vsel %vm1392, %v5278, %v5306
        %v5351 = vsel %vm1392, %v5281, %v5308
        %v5354 = vsel %vm1392, %v5282, %v5310
        %v5357 = vsel %vm1392, %v5285, %v5312
        %v5360 = vsel %vm1392, %v5286, %v5314
        %v5363 = vsel %vm1392, %v5289, %v5316
        %v5366 = vsel %vm1392, %v5290, %v5318
        %v5368 = vsel %vm4435, %v5345, %v5328
        %v5371 = vsel %vm4435, %v5348, %v5330
        %v5374 = vsel %vm4435, %v5351, %v5332
        %v5377 = vsel %vm4435, %v5354, %v5334
        %v5380 = vsel %vm4435, %v5357, %v5336
        %v5383 = vsel %vm4435, %v5360, %v5338
        %v5386 = vsel %vm4435, %v5363, %v5340
        %v5389 = vsel %vm4435, %v5366, %v5342
        %v5391 = vld [vmem:[%s12] sm:$0xf]
        %v5392 = vld [vmem:[%s12 + $0x4] sm:$0xf]
        %v5393 = vld [vmem:[%s12 + $0x8] sm:$0xf]
        %v5394 = vld [vmem:[%s12 + $0xc] sm:$0xf]
        %v5399 = vunpack.c.l.b16 %v5391
        %v5400 = vunpack.c.l.b16 %v5392
        %v5401 = vunpack.c.l.b16 %v5393
        %v5402 = vunpack.c.l.b16 %v5394
        %v5403 = vpack.c.b16 %v5400, %v5399
        %v5404 = vpack.c.b16 %v5402, %v5401
        %5407 = vmatprep.subr.bf16.mxu0 0
        %5408 = vmatpush1.bf16.msra.mxu0 %v5368
        %5409 = vmatprep.subr.bf16.mxu0 0
        %5410 = vmatpush1.bf16.msra.mxu0 %v5371
        %5411 = vmatprep.subr.bf16.mxu0 0
        %5412 = vmatpush1.bf16.msra.mxu0 %v5374
        %5413 = vmatprep.subr.bf16.mxu0 0
        %5414 = vmatpush1.bf16.msra.mxu0 %v5377
        %5415 = vmatprep.subr.bf16.mxu0 0
        %5416 = vmatpush1.bf16.msra.mxu0 %v5380
        %5417 = vmatprep.subr.bf16.mxu0 0
        %5418 = vmatpush1.bf16.msra.mxu0 %v5383
        %5419 = vmatprep.subr.bf16.mxu0 0
        %5420 = vmatpush1.bf16.msra.mxu0 %v5386
        %5421 = vmatprep.subr.bf16.mxu0 0
        %5422 = vmatpush1.bf16.msra.mxu0 %v5389
        %5423 = vmatprep.subr.bf16.mxu0 0
        %5424 = vmatpush1.bf16.msra.mxu0 0
        %5425 = vmatprep.subr.bf16.mxu0 0
        %5426 = vmatpush1.bf16.msra.mxu0 0
        %5427 = vmatprep.subr.bf16.mxu0 0
        %5428 = vmatpush1.bf16.msra.mxu0 0
        %5429 = vmatprep.subr.bf16.mxu0 0
        %5430 = vmatpush1.bf16.msra.mxu0 0
        %5431 = vmatprep.subr.bf16.mxu0 0
        %5432 = vmatpush1.bf16.msra.mxu0 0
        %5433 = vmatprep.subr.bf16.mxu0 0
        %5434 = vmatpush1.bf16.msra.mxu0 0
        %5435 = vmatprep.subr.bf16.mxu0 0
        %5436 = vmatpush1.bf16.msra.mxu0 0
        %5437 = vmatprep.subr.bf16.mxu0 0
        %5438 = vmatpush1.bf16.msra.mxu0 0
        %5439 = vmatprep.mubr.bf16.mxu0 0
        %5440 = vmatmul.mubr.bf16.gmra.mrb[0].mxu0 %v5403
        %v5441 = vpop.f32.mrb[0].mxu0
        %v5442 = vadd.f32 0.0, %v5441
        %v5443 = vpop.f32.mrb[0].mxu0
        %v5444 = vpop.f32.mrb[0].mxu0
        %v5445 = vadd.f32 0.0, %v5444
        %v5446 = vpop.f32.mrb[0].mxu0
        %5447 = vmatprep.mubr.bf16.mxu0 0
        %5448 = vmatmul.mubr.bf16.gmra.mrb[0].mxu0 %v5404
        %v5449 = vpop.f32.mrb[0].mxu0
        %v5450 = vadd.f32 0.0, %v5449
        %v5451 = vpop.f32.mrb[0].mxu0
        %v5452 = vpop.f32.mrb[0].mxu0
        %v5453 = vadd.f32 0.0, %v5452
        %v5454 = vpop.f32.mrb[0].mxu0
        %5455 = vdwg.mxu0
        %v5456 = vpack.c.bf16 %v5445, %v5442
        %v5457 = vpack.c.bf16 %v5453, %v5450
        %v5458 = vld [vmem:[%s10] sm:$0xf]
        %v5459 = vld [vmem:[%s10 + $0x4] sm:$0xf]
        %v5460 = vld [vmem:[%s10 + $0x8] sm:$0xf]
        %v5461 = vld [vmem:[%s10 + $0xc] sm:$0xf]
        %v5462 = vld [vmem:[%s10 + $0x10] sm:$0xf]
        %v5463 = vld [vmem:[%s10 + $0x14] sm:$0xf]
        %s5464 = scalar_lea.vmem %s12, 16
        %v5465 = vld [vmem:[%s5464] sm:$0xf]
        %v5466 = vld [vmem:[%s5464 + $0x4] sm:$0xf]
        %v5467 = vld [vmem:[%s5464 + $0x8] sm:$0xf]
        %v5468 = vld [vmem:[%s5464 + $0xc] sm:$0xf]
        %v5473 = vunpack.c.l.b16 %v5465
        %v5474 = vunpack.c.l.b16 %v5466
        %v5475 = vunpack.c.l.b16 %v5467
        %v5476 = vunpack.c.l.b16 %v5468
        %v5477 = vpack.c.b16 %v5474, %v5473
        %v5478 = vpack.c.b16 %v5476, %v5475
        %5481 = vmatprep.subr.bf16.mxu0 0
        %5482 = vmatpush1.bf16.msra.mxu0 %v5368
        %5483 = vmatprep.subr.bf16.mxu0 0
        %5484 = vmatpush1.bf16.msra.mxu0 %v5371
        %5485 = vmatprep.subr.bf16.mxu0 0
        %5486 = vmatpush1.bf16.msra.mxu0 %v5374
        %5487 = vmatprep.subr.bf16.mxu0 0
        %5488 = vmatpush1.bf16.msra.mxu0 %v5377
        %5489 = vmatprep.subr.bf16.mxu0 0
        %5490 = vmatpush1.bf16.msra.mxu0 %v5380
        %5491 = vmatprep.subr.bf16.mxu0 0
        %5492 = vmatpush1.bf16.msra.mxu0 %v5383
        %5493 = vmatprep.subr.bf16.mxu0 0
        %5494 = vmatpush1.bf16.msra.mxu0 %v5386
        %5495 = vmatprep.subr.bf16.mxu0 0
        %5496 = vmatpush1.bf16.msra.mxu0 %v5389
        %5497 = vmatprep.subr.bf16.mxu0 0
        %5498 = vmatpush1.bf16.msra.mxu0 0
        %5499 = vmatprep.subr.bf16.mxu0 0
        %5500 = vmatpush1.bf16.msra.mxu0 0
        %5501 = vmatprep.subr.bf16.mxu0 0
        %5502 = vmatpush1.bf16.msra.mxu0 0
        %5503 = vmatprep.subr.bf16.mxu0 0
        %5504 = vmatpush1.bf16.msra.mxu0 0
        %5505 = vmatprep.subr.bf16.mxu0 0
        %5506 = vmatpush1.bf16.msra.mxu0 0
        %5507 = vmatprep.subr.bf16.mxu0 0
        %5508 = vmatpush1.bf16.msra.mxu0 0
        %5509 = vmatprep.subr.bf16.mxu0 0
        %5510 = vmatpush1.bf16.msra.mxu0 0
        %5511 = vmatprep.subr.bf16.mxu0 0
        %5512 = vmatpush1.bf16.msra.mxu0 0
        %5513 = vmatprep.mubr.bf16.mxu0 0
        %5514 = vmatmul.mubr.bf16.gmra.mrb[0].mxu0 %v5477
        %v5515 = vpop.f32.mrb[0].mxu0
        %v5516 = vadd.f32 0.0, %v5515
        %v5517 = vpop.f32.mrb[0].mxu0
        %v5518 = vpop.f32.mrb[0].mxu0
        %v5519 = vadd.f32 0.0, %v5518
        %v5520 = vpop.f32.mrb[0].mxu0
        %5521 = vmatprep.mubr.bf16.mxu0 0
        %5522 = vmatmul.mubr.bf16.gmra.mrb[0].mxu0 %v5478
        %v5523 = vpop.f32.mrb[0].mxu0
        %v5524 = vadd.f32 0.0, %v5523
        %v5525 = vpop.f32.mrb[0].mxu0
        %v5526 = vpop.f32.mrb[0].mxu0
        %v5527 = vadd.f32 0.0, %v5526
        %v5528 = vpop.f32.mrb[0].mxu0
        %5529 = vdwg.mxu0
        %v5530 = vpack.c.bf16 %v5519, %v5516
        %v5531 = vpack.c.bf16 %v5527, %v5524
        %s5532 = scalar_lea.vmem %s10, 24
        %v5533 = vld [vmem:[%s5532] sm:$0xf]
        %v5534 = vld [vmem:[%s5532 + $0x4] sm:$0xf]
        %v5535 = vld [vmem:[%s5532 + $0x8] sm:$0xf]
        %v5536 = vld [vmem:[%s5532 + $0xc] sm:$0xf]
        %v5537 = vld [vmem:[%s5532 + $0x10] sm:$0xf]
        %v5538 = vld [vmem:[%s5532 + $0x14] sm:$0xf]
        %v5545 = vunpack.c.l.b16 %v5533
        %v5546 = vunpack.c.l.b16 %v5534
        %v5547 = vunpack.c.l.b16 %v5535
        %v5548 = vunpack.c.l.b16 %v5536
        %v5549 = vunpack.c.l.b16 %v5537
        %v5550 = vunpack.c.l.b16 %v5538
        %v5551 = vpack.c.b16 %v5546, %v5545
        %v5552 = vpack.c.b16 %v5548, %v5547
        %v5553 = vpack.c.b16 %v5550, %v5549
        %v5558 = vsel %vm4492, %v5530, 0
        %v5561 = vsel %vm4492, %v5531, 0
        %5563 = vmatprep.subr.bf16.mxu0 0
        %5564 = vmatpush1.bf16.msra.mxu0 %v5551
        %5565 = vmatprep.subr.bf16.mxu0 0
        %5566 = vmatpush1.bf16.msra.mxu0 %v5552
        %5567 = vmatprep.subr.bf16.mxu0 0
        %5568 = vmatpush1.bf16.msra.mxu0 %v5553
        %5569 = vmatprep.subr.bf16.mxu0 0
        %5570 = vmatpush1.bf16.msra.mxu0 0
        %5571 = vmatprep.subr.bf16.mxu0 0
        %5572 = vmatpush1.bf16.msra.mxu0 0
        %5573 = vmatprep.subr.bf16.mxu0 0
        %5574 = vmatpush1.bf16.msra.mxu0 0
        %5575 = vmatprep.subr.bf16.mxu0 0
        %5576 = vmatpush1.bf16.msra.mxu0 0
        %5577 = vmatprep.subr.bf16.mxu0 0
        %5578 = vmatpush1.bf16.msra.mxu0 0
        %5579 = vmatprep.subr.bf16.mxu0 0
        %5580 = vmatpush1.bf16.msra.mxu0 0
        %5581 = vmatprep.subr.bf16.mxu0 0
        %5582 = vmatpush1.bf16.msra.mxu0 0
        %5583 = vmatprep.subr.bf16.mxu0 0
        %5584 = vmatpush1.bf16.msra.mxu0 0
        %5585 = vmatprep.subr.bf16.mxu0 0
        %5586 = vmatpush1.bf16.msra.mxu0 0
        %5587 = vmatprep.subr.bf16.mxu0 0
        %5588 = vmatpush1.bf16.msra.mxu0 0
        %5589 = vmatprep.subr.bf16.mxu0 0
        %5590 = vmatpush1.bf16.msra.mxu0 0
        %5591 = vmatprep.subr.bf16.mxu0 0
        %5592 = vmatpush1.bf16.msra.mxu0 0
        %5593 = vmatprep.subr.bf16.mxu0 0
        %5594 = vmatpush1.bf16.msra.mxu0 0
        %5595 = vmatprep.mubr.bf16.mxu0 0
        %5596 = vmatmul.mubr.bf16.gmra.mrb[0].mxu0 %v5558
        %v5597 = vpop.f32.mrb[0].mxu0
        %v5598 = vadd.f32 0.0, %v5597
        %v5599 = vpop.f32.mrb[0].mxu0
        %v5600 = vpop.f32.mrb[0].mxu0
        %v5601 = vadd.f32 0.0, %v5600
        %v5602 = vpop.f32.mrb[0].mxu0
        %5603 = vmatprep.mubr.bf16.mxu0 0
        %5604 = vmatmul.mubr.bf16.gmra.mrb[0].mxu0 %v5561
        %v5605 = vpop.f32.mrb[0].mxu0
        %v5606 = vadd.f32 0.0, %v5605
        %v5607 = vpop.f32.mrb[0].mxu0
        %v5608 = vpop.f32.mrb[0].mxu0
        %v5609 = vadd.f32 0.0, %v5608
        %v5610 = vpop.f32.mrb[0].mxu0
        %5611 = vdwg.mxu0
        %v5618 = vunpack.c.l.b16 %v5458
        %v5619 = vunpack.c.l.b16 %v5459
        %v5620 = vunpack.c.l.b16 %v5460
        %v5621 = vunpack.c.l.b16 %v5461
        %v5622 = vunpack.c.l.b16 %v5462
        %v5623 = vunpack.c.l.b16 %v5463
        %v5624 = vpack.c.b16 %v5619, %v5618
        %v5625 = vpack.c.b16 %v5621, %v5620
        %v5626 = vpack.c.b16 %v5623, %v5622
        %v5631 = vsel %vm4492, %v5456, 0
        %v5634 = vsel %vm4492, %v5457, 0
        %5636 = vmatprep.subr.bf16.mxu0 0
        %5637 = vmatpush1.bf16.msra.mxu0 %v5624
        %5638 = vmatprep.subr.bf16.mxu0 0
        %5639 = vmatpush1.bf16.msra.mxu0 %v5625
        %5640 = vmatprep.subr.bf16.mxu0 0
        %5641 = vmatpush1.bf16.msra.mxu0 %v5626
        %5642 = vmatprep.subr.bf16.mxu0 0
        %5643 = vmatpush1.bf16.msra.mxu0 0
        %5644 = vmatprep.subr.bf16.mxu0 0
        %5645 = vmatpush1.bf16.msra.mxu0 0
        %5646 = vmatprep.subr.bf16.mxu0 0
        %5647 = vmatpush1.bf16.msra.mxu0 0
        %5648 = vmatprep.subr.bf16.mxu0 0
        %5649 = vmatpush1.bf16.msra.mxu0 0
        %5650 = vmatprep.subr.bf16.mxu0 0
        %5651 = vmatpush1.bf16.msra.mxu0 0
        %5652 = vmatprep.subr.bf16.mxu0 0
        %5653 = vmatpush1.bf16.msra.mxu0 0
        %5654 = vmatprep.subr.bf16.mxu0 0
        %5655 = vmatpush1.bf16.msra.mxu0 0
        %5656 = vmatprep.subr.bf16.mxu0 0
        %5657 = vmatpush1.bf16.msra.mxu0 0
        %5658 = vmatprep.subr.bf16.mxu0 0
        %5659 = vmatpush1.bf16.msra.mxu0 0
        %5660 = vmatprep.subr.bf16.mxu0 0
        %5661 = vmatpush1.bf16.msra.mxu0 0
        %5662 = vmatprep.subr.bf16.mxu0 0
        %5663 = vmatpush1.bf16.msra.mxu0 0
        %5664 = vmatprep.subr.bf16.mxu0 0
        %5665 = vmatpush1.bf16.msra.mxu0 0
        %5666 = vmatprep.subr.bf16.mxu0 0
        %5667 = vmatpush1.bf16.msra.mxu0 0
        %5668 = vmatprep.mubr.bf16.mxu0 0
        %5669 = vmatmul.mubr.bf16.gmra.mrb[0].mxu0 %v5631
        %v5670 = vpop.f32.mrb[0].mxu0
        %v5671 = vadd.f32 %v5598, %v5670
        %v5672 = vpop.f32.mrb[0].mxu0
        %v5673 = vpop.f32.mrb[0].mxu0
        %v5674 = vadd.f32 %v5601, %v5673
        %v5675 = vpop.f32.mrb[0].mxu0
        %5676 = vmatprep.mubr.bf16.mxu0 0
        %5677 = vmatmul.mubr.bf16.gmra.mrb[0].mxu0 %v5634
        %v5678 = vpop.f32.mrb[0].mxu0
        %v5679 = vadd.f32 %v5606, %v5678
        %v5680 = vpop.f32.mrb[0].mxu0
        %v5681 = vpop.f32.mrb[0].mxu0
        %v5682 = vadd.f32 %v5609, %v5681
        %v5683 = vpop.f32.mrb[0].mxu0
        %5684 = vdwg.mxu0
        %s5685 = scalar_lea.vmem %s12, 32
        %v5686 = vld [vmem:[%s5685] sm:$0xf]
        %v5687 = vld [vmem:[%s5685 + $0x4] sm:$0xf]
        %v5688 = vld [vmem:[%s5685 + $0x8] sm:$0xf]
        %v5689 = vld [vmem:[%s5685 + $0xc] sm:$0xf]
        %v5694 = vunpack.c.l.b16 %v5686
        %v5695 = vunpack.c.l.b16 %v5687
        %v5696 = vunpack.c.l.b16 %v5688
        %v5697 = vunpack.c.l.b16 %v5689
        %v5698 = vpack.c.b16 %v5695, %v5694
        %v5699 = vpack.c.b16 %v5697, %v5696
        %5702 = vmatprep.subr.bf16.mxu0 0
        %5703 = vmatpush1.bf16.msra.mxu0 %v5368
        %5704 = vmatprep.subr.bf16.mxu0 0
        %5705 = vmatpush1.bf16.msra.mxu0 %v5371
        %5706 = vmatprep.subr.bf16.mxu0 0
        %5707 = vmatpush1.bf16.msra.mxu0 %v5374
        %5708 = vmatprep.subr.bf16.mxu0 0
        %5709 = vmatpush1.bf16.msra.mxu0 %v5377
        %5710 = vmatprep.subr.bf16.mxu0 0
        %5711 = vmatpush1.bf16.msra.mxu0 %v5380
        %5712 = vmatprep.subr.bf16.mxu0 0
        %5713 = vmatpush1.bf16.msra.mxu0 %v5383
        %5714 = vmatprep.subr.bf16.mxu0 0
        %5715 = vmatpush1.bf16.msra.mxu0 %v5386
        %5716 = vmatprep.subr.bf16.mxu0 0
        %5717 = vmatpush1.bf16.msra.mxu0 %v5389
        %5718 = vmatprep.subr.bf16.mxu0 0
        %5719 = vmatpush1.bf16.msra.mxu0 0
        %5720 = vmatprep.subr.bf16.mxu0 0
        %5721 = vmatpush1.bf16.msra.mxu0 0
        %5722 = vmatprep.subr.bf16.mxu0 0
        %5723 = vmatpush1.bf16.msra.mxu0 0
        %5724 = vmatprep.subr.bf16.mxu0 0
        %5725 = vmatpush1.bf16.msra.mxu0 0
        %5726 = vmatprep.subr.bf16.mxu0 0
        %5727 = vmatpush1.bf16.msra.mxu0 0
        %5728 = vmatprep.subr.bf16.mxu0 0
        %5729 = vmatpush1.bf16.msra.mxu0 0
        %5730 = vmatprep.subr.bf16.mxu0 0
        %5731 = vmatpush1.bf16.msra.mxu0 0
        %5732 = vmatprep.subr.bf16.mxu0 0
        %5733 = vmatpush1.bf16.msra.mxu0 0
        %5734 = vmatprep.mubr.bf16.mxu0 0
        %5735 = vmatmul.mubr.bf16.gmra.mrb[0].mxu0 %v5698
        %v5736 = vpop.f32.mrb[0].mxu0
        %v5737 = vadd.f32 0.0, %v5736
        %v5738 = vpop.f32.mrb[0].mxu0
        %v5739 = vpop.f32.mrb[0].mxu0
        %v5740 = vadd.f32 0.0, %v5739
        %v5741 = vpop.f32.mrb[0].mxu0
        %5742 = vmatprep.mubr.bf16.mxu0 0
        %5743 = vmatmul.mubr.bf16.gmra.mrb[0].mxu0 %v5699
        %v5744 = vpop.f32.mrb[0].mxu0
        %v5745 = vadd.f32 0.0, %v5744
        %v5746 = vpop.f32.mrb[0].mxu0
        %v5747 = vpop.f32.mrb[0].mxu0
        %v5748 = vadd.f32 0.0, %v5747
        %v5749 = vpop.f32.mrb[0].mxu0
        %5750 = vdwg.mxu0
        %v5751 = vpack.c.bf16 %v5740, %v5737
        %v5752 = vpack.c.bf16 %v5748, %v5745
        %s5753 = scalar_lea.vmem %s10, 48
        %v5754 = vld [vmem:[%s5753] sm:$0xf]
        %v5755 = vld [vmem:[%s5753 + $0x4] sm:$0xf]
        %v5756 = vld [vmem:[%s5753 + $0x8] sm:$0xf]
        %v5757 = vld [vmem:[%s5753 + $0xc] sm:$0xf]
        %v5758 = vld [vmem:[%s5753 + $0x10] sm:$0xf]
        %v5759 = vld [vmem:[%s5753 + $0x14] sm:$0xf]
        %v5766 = vunpack.c.l.b16 %v5754
        %v5767 = vunpack.c.l.b16 %v5755
        %v5768 = vunpack.c.l.b16 %v5756
        %v5769 = vunpack.c.l.b16 %v5757
        %v5770 = vunpack.c.l.b16 %v5758
        %v5771 = vunpack.c.l.b16 %v5759
        %v5772 = vpack.c.b16 %v5767, %v5766
        %v5773 = vpack.c.b16 %v5769, %v5768
        %v5774 = vpack.c.b16 %v5771, %v5770
        %v5779 = vsel %vm4492, %v5751, 0
        %v5782 = vsel %vm4492, %v5752, 0
        %5784 = vmatprep.subr.bf16.mxu0 0
        %5785 = vmatpush1.bf16.msra.mxu0 %v5772
        %5786 = vmatprep.subr.bf16.mxu0 0
        %5787 = vmatpush1.bf16.msra.mxu0 %v5773
        %5788 = vmatprep.subr.bf16.mxu0 0
        %5789 = vmatpush1.bf16.msra.mxu0 %v5774
        %5790 = vmatprep.subr.bf16.mxu0 0
        %5791 = vmatpush1.bf16.msra.mxu0 0
        %5792 = vmatprep.subr.bf16.mxu0 0
        %5793 = vmatpush1.bf16.msra.mxu0 0
        %5794 = vmatprep.subr.bf16.mxu0 0
        %5795 = vmatpush1.bf16.msra.mxu0 0
        %5796 = vmatprep.subr.bf16.mxu0 0
        %5797 = vmatpush1.bf16.msra.mxu0 0
        %5798 = vmatprep.subr.bf16.mxu0 0
        %5799 = vmatpush1.bf16.msra.mxu0 0
        %5800 = vmatprep.subr.bf16.mxu0 0
        %5801 = vmatpush1.bf16.msra.mxu0 0
        %5802 = vmatprep.subr.bf16.mxu0 0
        %5803 = vmatpush1.bf16.msra.mxu0 0
        %5804 = vmatprep.subr.bf16.mxu0 0
        %5805 = vmatpush1.bf16.msra.mxu0 0
        %5806 = vmatprep.subr.bf16.mxu0 0
        %5807 = vmatpush1.bf16.msra.mxu0 0
        %5808 = vmatprep.subr.bf16.mxu0 0
        %5809 = vmatpush1.bf16.msra.mxu0 0
        %5810 = vmatprep.subr.bf16.mxu0 0
        %5811 = vmatpush1.bf16.msra.mxu0 0
        %5812 = vmatprep.subr.bf16.mxu0 0
        %5813 = vmatpush1.bf16.msra.mxu0 0
        %5814 = vmatprep.subr.bf16.mxu0 0
        %5815 = vmatpush1.bf16.msra.mxu0 0
        %5816 = vmatprep.mubr.bf16.mxu0 0
        %5817 = vmatmul.mubr.bf16.gmra.mrb[0].mxu0 %v5779
        %v5818 = vpop.f32.mrb[0].mxu0
        %v5819 = vadd.f32 0.0, %v5818
        %v5820 = vpop.f32.mrb[0].mxu0
        %v5821 = vpop.f32.mrb[0].mxu0
        %v5822 = vadd.f32 0.0, %v5821
        %v5823 = vpop.f32.mrb[0].mxu0
        %5824 = vmatprep.mubr.bf16.mxu0 0
        %5825 = vmatmul.mubr.bf16.gmra.mrb[0].mxu0 %v5782
        %v5826 = vpop.f32.mrb[0].mxu0
        %v5827 = vadd.f32 0.0, %v5826
        %v5828 = vpop.f32.mrb[0].mxu0
        %v5829 = vpop.f32.mrb[0].mxu0
        %v5830 = vadd.f32 0.0, %v5829
        %v5831 = vpop.f32.mrb[0].mxu0
        %5832 = vdwg.mxu0
        %v5833 = vadd.f32 %v5671, %v5819
        %v5834 = vadd.f32 %v5674, %v5822
        %v5835 = vadd.f32 %v5679, %v5827
        %v5836 = vadd.f32 %v5682, %v5830
        %v5837 = vld [vmem:[%s11] sm:$0x1]
        %v5839 = vlaneseq
        %v5840 = vshrl.u32 %v5839, 7
        %v5841 = vsub.s32 0, %v5840
        %v5842 = vrot.slane %v5837, %v5841
        %v5844 = vadd.f32 %v5833, %v5842
        %v5845 = vadd.f32 %v5834, %v5842
        %v5846 = vadd.f32 %v5835, %v5842
        %v5847 = vadd.f32 %v5836, %v5842
        %v5848 = vmax.f32 %v5844, 0.0
        %v5849 = vmax.f32 %v5845, 0.0
        %v5850 = vmax.f32 %v5846, 0.0
        %v5851 = vmax.f32 %v5847, 0.0
        %v5852 = vpack.c.bf16 %v5848, %v5848
        %v5853 = vpack.c.bf16 %v5849, %v5849
        %v5854 = vpack.c.bf16 %v5850, %v5850
        %v5855 = vpack.c.bf16 %v5851, %v5851
        %v5860 = vrot.slane %v5852, 4
        %v5861 = vrot.slane %v5853, 4
        %v5862 = vrot.slane %v5854, 4
        %v5863 = vrot.slane %v5855, 4
        %v5865 = vsel %vm979, 0, %v5860
        %v5867 = vsel %vm979, 0, %v5861
        %v5869 = vsel %vm979, 0, %v5862
        %v5871 = vsel %vm979, 0, %v5863
        %v5872 = vsel %vm732, %v5865, 0
        %v5874 = vsel %vm732, %v5867, 0
        %v5876 = vsel %vm732, %v5869, 0
        %v5878 = vsel %vm732, %v5871, 0
        %5880 = vst.msk [vmem:[#allocation6] sm:$0xff] %vm4435, 0
        %5881 = vst.msk [vmem:[#allocation6 + $0x8] sm:$0xff] %vm4435, %v5872
        %5882 = vst.msk [vmem:[#allocation6 + $0x10] sm:$0xff] %vm4435, %v5874
        %5883 = vst.msk [vmem:[#allocation6 + $0x18] sm:$0xff] %vm4435, %v5876
        %5884 = vst.msk [vmem:[#allocation6 + $0x20] sm:$0xff] %vm4435, %v5878
        %5885 = vst.msk [vmem:[#allocation6 + $0x28] sm:$0xff] %vm4435, 0
        %v5886 = vld [vmem:[#allocation6] sm:$0xff]
        %v5887 = vld [vmem:[#allocation6 + $0x8] sm:$0xff]
        %v5888 = vld [vmem:[#allocation6 + $0x10] sm:$0xff]
        %v5889 = vld [vmem:[#allocation6 + $0x18] sm:$0xff]
        %v5890 = vld [vmem:[#allocation6 + $0x20] sm:$0xff]
        %v5891 = vld [vmem:[#allocation6 + $0x28] sm:$0xff]
        %5896 = vrot.lane.b32.xlu0 %v5887, 32
        %v5897 = vpop.permute.xlu0 %5896
        %5898 = vrot.lane.b32.xlu0 %v5888, 32
        %v5899 = vpop.permute.xlu0 %5898
        %5900 = vrot.lane.b32.xlu0 %v5889, 32
        %v5901 = vpop.permute.xlu0 %5900
        %5902 = vrot.lane.b32.xlu0 %v5890, 32
        %v5903 = vpop.permute.xlu0 %5902
        %5905 = vrot.lane.b32.xlu0 %v5888, 64
        %v5906 = vpop.permute.xlu0 %5905
        %5907 = vrot.lane.b32.xlu0 %v5889, 64
        %v5908 = vpop.permute.xlu0 %5907
        %5909 = vrot.lane.b32.xlu0 %v5890, 64
        %v5910 = vpop.permute.xlu0 %5909
        %5911 = vrot.lane.b32.xlu0 %v5891, 64
        %v5912 = vpop.permute.xlu0 %5911
        %v5915 = vsel %vm4435, %v5886, %v5897
        %v5918 = vsel %vm4435, %v5887, %v5899
        %v5921 = vsel %vm4435, %v5888, %v5901
        %v5924 = vsel %vm4435, %v5889, %v5903
        %vm5925 = vcmask 523264
        %v5927 = vsel %vm5925, %v5915, %v5906
        %v5929 = vsel %vm5925, %v5918, %v5908
        %v5931 = vsel %vm5925, %v5921, %v5910
        %v5933 = vsel %vm5925, %v5924, %v5912
        %v5934 = vld [vmem:[%s13] sm:$0xf]
        %v5935 = vld [vmem:[%s13 + $0x4] sm:$0xf]
        %v5936 = vld [vmem:[%s13 + $0x8] sm:$0xf]
        %v5937 = vld [vmem:[%s13 + $0xc] sm:$0xf]
        %v5938 = vld [vmem:[%s13 + $0x10] sm:$0xf]
        %v5939 = vld [vmem:[%s13 + $0x14] sm:$0xf]
        %v5940 = vld [vmem:[%s13 + $0x18] sm:$0xf]
        %v5941 = vld [vmem:[%s13 + $0x1c] sm:$0xf]
        %v5942 = vld [vmem:[%s13 + $0x20] sm:$0xf]
        %v5943 = vld [vmem:[%s13 + $0x24] sm:$0xf]
        %v5944 = vld [vmem:[%s13 + $0x28] sm:$0xf]
        %v5945 = vld [vmem:[%s13 + $0x2c] sm:$0xf]
        %v5958 = vunpack.c.l.b16 %v5934
        %v5959 = vunpack.c.l.b16 %v5935
        %v5960 = vunpack.c.l.b16 %v5936
        %v5961 = vunpack.c.l.b16 %v5937
        %v5962 = vunpack.c.l.b16 %v5938
        %v5963 = vunpack.c.l.b16 %v5939
        %v5964 = vunpack.c.l.b16 %v5940
        %v5965 = vunpack.c.l.b16 %v5941
        %v5966 = vunpack.c.l.b16 %v5942
        %v5967 = vunpack.c.l.b16 %v5943
        %v5968 = vunpack.c.l.b16 %v5944
        %v5969 = vunpack.c.l.b16 %v5945
        %v5970 = vpack.c.b16 %v5959, %v5958
        %v5971 = vpack.c.b16 %v5961, %v5960
        %v5972 = vpack.c.b16 %v5963, %v5962
        %v5973 = vpack.c.b16 %v5965, %v5964
        %v5974 = vpack.c.b16 %v5967, %v5966
        %v5975 = vpack.c.b16 %v5969, %v5968
        %vm5982 = vcmask 785408
        %v5983 = vsel %vm5982, %v5927, 0
        %v5985 = vsel %vm5982, %v5929, 0
        %v5987 = vsel %vm5982, %v5931, 0
        %v5989 = vsel %vm5982, %v5933, 0
        %5991 = vmatprep.subr.bf16.mxu0 0
        %5992 = vmatpush1.bf16.msra.mxu0 %v5970
        %5993 = vmatprep.subr.bf16.mxu0 0
        %5994 = vmatpush1.bf16.msra.mxu0 %v5971
        %5995 = vmatprep.subr.bf16.mxu0 0
        %5996 = vmatpush1.bf16.msra.mxu0 %v5972
        %5997 = vmatprep.subr.bf16.mxu0 0
        %5998 = vmatpush1.bf16.msra.mxu0 %v5973
        %5999 = vmatprep.subr.bf16.mxu0 0
        %6000 = vmatpush1.bf16.msra.mxu0 %v5974
        %6001 = vmatprep.subr.bf16.mxu0 0
        %6002 = vmatpush1.bf16.msra.mxu0 %v5975
        %6003 = vmatprep.subr.bf16.mxu0 0
        %6004 = vmatpush1.bf16.msra.mxu0 0
        %6005 = vmatprep.subr.bf16.mxu0 0
        %6006 = vmatpush1.bf16.msra.mxu0 0
        %6007 = vmatprep.subr.bf16.mxu0 0
        %6008 = vmatpush1.bf16.msra.mxu0 0
        %6009 = vmatprep.subr.bf16.mxu0 0
        %6010 = vmatpush1.bf16.msra.mxu0 0
        %6011 = vmatprep.subr.bf16.mxu0 0
        %6012 = vmatpush1.bf16.msra.mxu0 0
        %6013 = vmatprep.subr.bf16.mxu0 0
        %6014 = vmatpush1.bf16.msra.mxu0 0
        %6015 = vmatprep.subr.bf16.mxu0 0
        %6016 = vmatpush1.bf16.msra.mxu0 0
        %6017 = vmatprep.subr.bf16.mxu0 0
        %6018 = vmatpush1.bf16.msra.mxu0 0
        %6019 = vmatprep.subr.bf16.mxu0 0
        %6020 = vmatpush1.bf16.msra.mxu0 0
        %6021 = vmatprep.subr.bf16.mxu0 0
        %6022 = vmatpush1.bf16.msra.mxu0 0
        %6023 = vmatprep.mubr.bf16.mxu0 0
        %6024 = vmatmul.mubr.bf16.gmra.mrb[0].mxu0 %v5983
        %v6025 = vpop.f32.mrb[0].mxu0
        %v6026 = vadd.f32 0.0, %v6025
        %v6027 = vpop.f32.mrb[0].mxu0
        %v6028 = vpop.f32.mrb[0].mxu0
        %v6029 = vadd.f32 0.0, %v6028
        %v6030 = vpop.f32.mrb[0].mxu0
        %6031 = vmatprep.mubr.bf16.mxu0 0
        %6032 = vmatmul.mubr.bf16.gmra.mrb[0].mxu0 %v5985
        %v6033 = vpop.f32.mrb[0].mxu0
        %v6034 = vadd.f32 0.0, %v6033
        %v6035 = vpop.f32.mrb[0].mxu0
        %v6036 = vpop.f32.mrb[0].mxu0
        %v6037 = vadd.f32 0.0, %v6036
        %v6038 = vpop.f32.mrb[0].mxu0
        %6039 = vmatprep.mubr.bf16.mxu0 0
        %6040 = vmatmul.mubr.bf16.gmra.mrb[0].mxu0 %v5987
        %v6041 = vpop.f32.mrb[0].mxu0
        %v6042 = vadd.f32 0.0, %v6041
        %v6043 = vpop.f32.mrb[0].mxu0
        %v6044 = vpop.f32.mrb[0].mxu0
        %v6045 = vadd.f32 0.0, %v6044
        %v6046 = vpop.f32.mrb[0].mxu0
        %6047 = vmatprep.mubr.bf16.mxu0 0
        %6048 = vmatmul.mubr.bf16.gmra.mrb[0].mxu0 %v5989
        %v6049 = vpop.f32.mrb[0].mxu0
        %v6050 = vadd.f32 0.0, %v6049
        %v6051 = vpop.f32.mrb[0].mxu0
        %v6052 = vpop.f32.mrb[0].mxu0
        %v6053 = vadd.f32 0.0, %v6052
        %v6054 = vpop.f32.mrb[0].mxu0
        %6055 = vdwg.mxu0
        %v6056 = vadd.f32 %v6026, 0.0
        %v6057 = vadd.f32 %v6029, 0.0
        %v6058 = vadd.f32 %v6034, 0.0
        %v6059 = vadd.f32 %v6037, 0.0
        %v6060 = vadd.f32 %v6042, 0.0
        %v6061 = vadd.f32 %v6045, 0.0
        %v6062 = vadd.f32 %v6050, 0.0
        %v6063 = vadd.f32 %v6053, 0.0
        %s6064 = scalar_lea.vmem %s13, 48
        %v6065 = vld [vmem:[%s6064] sm:$0xf]
        %v6066 = vld [vmem:[%s6064 + $0x4] sm:$0xf]
        %v6067 = vld [vmem:[%s6064 + $0x8] sm:$0xf]
        %v6068 = vld [vmem:[%s6064 + $0xc] sm:$0xf]
        %v6069 = vld [vmem:[%s6064 + $0x10] sm:$0xf]
        %v6070 = vld [vmem:[%s6064 + $0x14] sm:$0xf]
        %v6071 = vld [vmem:[%s6064 + $0x18] sm:$0xf]
        %v6072 = vld [vmem:[%s6064 + $0x1c] sm:$0xf]
        %v6073 = vld [vmem:[%s6064 + $0x20] sm:$0xf]
        %v6074 = vld [vmem:[%s6064 + $0x24] sm:$0xf]
        %v6075 = vld [vmem:[%s6064 + $0x28] sm:$0xf]
        %v6076 = vld [vmem:[%s6064 + $0x2c] sm:$0xf]
        %v6089 = vunpack.c.l.b16 %v6065
        %v6090 = vunpack.c.l.b16 %v6066
        %v6091 = vunpack.c.l.b16 %v6067
        %v6092 = vunpack.c.l.b16 %v6068
        %v6093 = vunpack.c.l.b16 %v6069
        %v6094 = vunpack.c.l.b16 %v6070
        %v6095 = vunpack.c.l.b16 %v6071
        %v6096 = vunpack.c.l.b16 %v6072
        %v6097 = vunpack.c.l.b16 %v6073
        %v6098 = vunpack.c.l.b16 %v6074
        %v6099 = vunpack.c.l.b16 %v6075
        %v6100 = vunpack.c.l.b16 %v6076
        %v6101 = vpack.c.b16 %v6090, %v6089
        %v6102 = vpack.c.b16 %v6092, %v6091
        %v6103 = vpack.c.b16 %v6094, %v6093
        %v6104 = vpack.c.b16 %v6096, %v6095
        %v6105 = vpack.c.b16 %v6098, %v6097
        %v6106 = vpack.c.b16 %v6100, %v6099
        %6113 = vmatprep.subr.bf16.mxu0 0
        %6114 = vmatpush1.bf16.msra.mxu0 %v6101
        %6115 = vmatprep.subr.bf16.mxu0 0
        %6116 = vmatpush1.bf16.msra.mxu0 %v6102
        %6117 = vmatprep.subr.bf16.mxu0 0
        %6118 = vmatpush1.bf16.msra.mxu0 %v6103
        %6119 = vmatprep.subr.bf16.mxu0 0
        %6120 = vmatpush1.bf16.msra.mxu0 %v6104
        %6121 = vmatprep.subr.bf16.mxu0 0
        %6122 = vmatpush1.bf16.msra.mxu0 %v6105
        %6123 = vmatprep.subr.bf16.mxu0 0
        %6124 = vmatpush1.bf16.msra.mxu0 %v6106
        %6125 = vmatprep.subr.bf16.mxu0 0
        %6126 = vmatpush1.bf16.msra.mxu0 0
        %6127 = vmatprep.subr.bf16.mxu0 0
        %6128 = vmatpush1.bf16.msra.mxu0 0
        %6129 = vmatprep.subr.bf16.mxu0 0
        %6130 = vmatpush1.bf16.msra.mxu0 0
        %6131 = vmatprep.subr.bf16.mxu0 0
        %6132 = vmatpush1.bf16.msra.mxu0 0
        %6133 = vmatprep.subr.bf16.mxu0 0
        %6134 = vmatpush1.bf16.msra.mxu0 0
        %6135 = vmatprep.subr.bf16.mxu0 0
        %6136 = vmatpush1.bf16.msra.mxu0 0
        %6137 = vmatprep.subr.bf16.mxu0 0
        %6138 = vmatpush1.bf16.msra.mxu0 0
        %6139 = vmatprep.subr.bf16.mxu0 0
        %6140 = vmatpush1.bf16.msra.mxu0 0
        %6141 = vmatprep.subr.bf16.mxu0 0
        %6142 = vmatpush1.bf16.msra.mxu0 0
        %6143 = vmatprep.subr.bf16.mxu0 0
        %6144 = vmatpush1.bf16.msra.mxu0 0
        %6145 = vmatprep.mubr.bf16.mxu0 0
        %6146 = vmatmul.mubr.bf16.gmra.mrb[0].mxu0 %v5983
        %v6147 = vpop.f32.mrb[0].mxu0
        %v6148 = vpop.f32.mrb[0].mxu0
        %v6149 = vpop.f32.mrb[0].mxu0
        %v6150 = vadd.f32 0.0, %v6149
        %v6151 = vpop.f32.mrb[0].mxu0
        %6152 = vmatprep.mubr.bf16.mxu0 0
        %6153 = vmatmul.mubr.bf16.gmra.mrb[0].mxu0 %v5985
        %v6154 = vpop.f32.mrb[0].mxu0
        %v6155 = vpop.f32.mrb[0].mxu0
        %v6156 = vpop.f32.mrb[0].mxu0
        %v6157 = vadd.f32 0.0, %v6156
        %v6158 = vpop.f32.mrb[0].mxu0
        %6159 = vmatprep.mubr.bf16.mxu0 0
        %6160 = vmatmul.mubr.bf16.gmra.mrb[0].mxu0 %v5987
        %v6161 = vpop.f32.mrb[0].mxu0
        %v6162 = vpop.f32.mrb[0].mxu0
        %v6163 = vpop.f32.mrb[0].mxu0
        %v6164 = vadd.f32 0.0, %v6163
        %v6165 = vpop.f32.mrb[0].mxu0
        %6166 = vmatprep.mubr.bf16.mxu0 0
        %6167 = vmatmul.mubr.bf16.gmra.mrb[0].mxu0 %v5989
        %v6168 = vpop.f32.mrb[0].mxu0
        %v6169 = vpop.f32.mrb[0].mxu0
        %v6170 = vpop.f32.mrb[0].mxu0
        %v6171 = vadd.f32 0.0, %v6170
        %v6172 = vpop.f32.mrb[0].mxu0
        %6173 = vdwg.mxu0
        %v6178 = vrot.slane %v6150, 1
        %v6179 = vrot.slane %v6157, 1
        %v6180 = vrot.slane %v6164, 1
        %v6181 = vrot.slane %v6171, 1
        %v6186 = vadd.f32 %v6056, %v6178
        %v6187 = vadd.f32 %v6057, %v6178
        %v6188 = vadd.f32 %v6058, %v6179
        %v6189 = vadd.f32 %v6059, %v6179
        %v6190 = vadd.f32 %v6060, %v6180
        %v6191 = vadd.f32 %v6061, %v6180
        %v6192 = vadd.f32 %v6062, %v6181
        %v6193 = vadd.f32 %v6063, %v6181
        %s6194 = scalar_lea.vmem %s13, 96
        %v6195 = vld [vmem:[%s6194] sm:$0xf]
        %v6196 = vld [vmem:[%s6194 + $0x4] sm:$0xf]
        %v6197 = vld [vmem:[%s6194 + $0x8] sm:$0xf]
        %v6198 = vld [vmem:[%s6194 + $0xc] sm:$0xf]
        %v6199 = vld [vmem:[%s6194 + $0x10] sm:$0xf]
        %v6200 = vld [vmem:[%s6194 + $0x14] sm:$0xf]
        %v6201 = vld [vmem:[%s6194 + $0x18] sm:$0xf]
        %v6202 = vld [vmem:[%s6194 + $0x1c] sm:$0xf]
        %v6203 = vld [vmem:[%s6194 + $0x20] sm:$0xf]
        %v6204 = vld [vmem:[%s6194 + $0x24] sm:$0xf]
        %v6205 = vld [vmem:[%s6194 + $0x28] sm:$0xf]
        %v6206 = vld [vmem:[%s6194 + $0x2c] sm:$0xf]
        %v6219 = vunpack.c.l.b16 %v6195
        %v6220 = vunpack.c.l.b16 %v6196
        %v6221 = vunpack.c.l.b16 %v6197
        %v6222 = vunpack.c.l.b16 %v6198
        %v6223 = vunpack.c.l.b16 %v6199
        %v6224 = vunpack.c.l.b16 %v6200
        %v6225 = vunpack.c.l.b16 %v6201
        %v6226 = vunpack.c.l.b16 %v6202
        %v6227 = vunpack.c.l.b16 %v6203
        %v6228 = vunpack.c.l.b16 %v6204
        %v6229 = vunpack.c.l.b16 %v6205
        %v6230 = vunpack.c.l.b16 %v6206
        %v6231 = vpack.c.b16 %v6220, %v6219
        %v6232 = vpack.c.b16 %v6222, %v6221
        %v6233 = vpack.c.b16 %v6224, %v6223
        %v6234 = vpack.c.b16 %v6226, %v6225
        %v6235 = vpack.c.b16 %v6228, %v6227
        %v6236 = vpack.c.b16 %v6230, %v6229
        %6243 = vmatprep.subr.bf16.mxu0 0
        %6244 = vmatpush1.bf16.msra.mxu0 %v6231
        %6245 = vmatprep.subr.bf16.mxu0 0
        %6246 = vmatpush1.bf16.msra.mxu0 %v6232
        %6247 = vmatprep.subr.bf16.mxu0 0
        %6248 = vmatpush1.bf16.msra.mxu0 %v6233
        %6249 = vmatprep.subr.bf16.mxu0 0
        %6250 = vmatpush1.bf16.msra.mxu0 %v6234
        %6251 = vmatprep.subr.bf16.mxu0 0
        %6252 = vmatpush1.bf16.msra.mxu0 %v6235
        %6253 = vmatprep.subr.bf16.mxu0 0
        %6254 = vmatpush1.bf16.msra.mxu0 %v6236
        %6255 = vmatprep.subr.bf16.mxu0 0
        %6256 = vmatpush1.bf16.msra.mxu0 0
        %6257 = vmatprep.subr.bf16.mxu0 0
        %6258 = vmatpush1.bf16.msra.mxu0 0
        %6259 = vmatprep.subr.bf16.mxu0 0
        %6260 = vmatpush1.bf16.msra.mxu0 0
        %6261 = vmatprep.subr.bf16.mxu0 0
        %6262 = vmatpush1.bf16.msra.mxu0 0
        %6263 = vmatprep.subr.bf16.mxu0 0
        %6264 = vmatpush1.bf16.msra.mxu0 0
        %6265 = vmatprep.subr.bf16.mxu0 0
        %6266 = vmatpush1.bf16.msra.mxu0 0
        %6267 = vmatprep.subr.bf16.mxu0 0
        %6268 = vmatpush1.bf16.msra.mxu0 0
        %6269 = vmatprep.subr.bf16.mxu0 0
        %6270 = vmatpush1.bf16.msra.mxu0 0
        %6271 = vmatprep.subr.bf16.mxu0 0
        %6272 = vmatpush1.bf16.msra.mxu0 0
        %6273 = vmatprep.subr.bf16.mxu0 0
        %6274 = vmatpush1.bf16.msra.mxu0 0
        %6275 = vmatprep.mubr.bf16.mxu0 0
        %6276 = vmatmul.mubr.bf16.gmra.mrb[0].mxu0 %v5983
        %v6277 = vpop.f32.mrb[0].mxu0
        %v6278 = vpop.f32.mrb[0].mxu0
        %v6279 = vpop.f32.mrb[0].mxu0
        %v6280 = vadd.f32 0.0, %v6279
        %v6281 = vpop.f32.mrb[0].mxu0
        %6282 = vmatprep.mubr.bf16.mxu0 0
        %6283 = vmatmul.mubr.bf16.gmra.mrb[0].mxu0 %v5985
        %v6284 = vpop.f32.mrb[0].mxu0
        %v6285 = vpop.f32.mrb[0].mxu0
        %v6286 = vpop.f32.mrb[0].mxu0
        %v6287 = vadd.f32 0.0, %v6286
        %v6288 = vpop.f32.mrb[0].mxu0
        %6289 = vmatprep.mubr.bf16.mxu0 0
        %6290 = vmatmul.mubr.bf16.gmra.mrb[0].mxu0 %v5987
        %v6291 = vpop.f32.mrb[0].mxu0
        %v6292 = vpop.f32.mrb[0].mxu0
        %v6293 = vpop.f32.mrb[0].mxu0
        %v6294 = vadd.f32 0.0, %v6293
        %v6295 = vpop.f32.mrb[0].mxu0
        %6296 = vmatprep.mubr.bf16.mxu0 0
        %6297 = vmatmul.mubr.bf16.gmra.mrb[0].mxu0 %v5989
        %v6298 = vpop.f32.mrb[0].mxu0
        %v6299 = vpop.f32.mrb[0].mxu0
        %v6300 = vpop.f32.mrb[0].mxu0
        %v6301 = vadd.f32 0.0, %v6300
        %v6302 = vpop.f32.mrb[0].mxu0
        %6303 = vdwg.mxu0
        %v6308 = vrot.slane %v6280, 2
        %v6309 = vrot.slane %v6287, 2
        %v6310 = vrot.slane %v6294, 2
        %v6311 = vrot.slane %v6301, 2
        %v6316 = vadd.f32 %v6186, %v6308
        %v6317 = vadd.f32 %v6187, %v6308
        %v6318 = vadd.f32 %v6188, %v6309
        %v6319 = vadd.f32 %v6189, %v6309
        %v6320 = vadd.f32 %v6190, %v6310
        %v6321 = vadd.f32 %v6191, %v6310
        %v6322 = vadd.f32 %v6192, %v6311
        %v6323 = vadd.f32 %v6193, %v6311
        %v6324 = vld [vmem:[%s14] sm:$0x1]
        %v6326 = vlaneseq
        %v6327 = vshrl.u32 %v6326, 7
        %v6328 = vsub.s32 0, %v6327
        %v6329 = vrot.slane %v6324, %v6328
        %v6331 = vadd.f32 %v6316, %v6329
        %v6332 = vadd.f32 %v6317, %v6329
        %v6333 = vadd.f32 %v6318, %v6329
        %v6334 = vadd.f32 %v6319, %v6329
        %v6335 = vadd.f32 %v6320, %v6329
        %v6336 = vadd.f32 %v6321, %v6329
        %v6337 = vadd.f32 %v6322, %v6329
        %v6338 = vadd.f32 %v6323, %v6329
        %v6339 = vmax.f32 %v6331, 0.0
        %v6340 = vmax.f32 %v6332, 0.0
        %v6341 = vmax.f32 %v6333, 0.0
        %v6342 = vmax.f32 %v6334, 0.0
        %v6343 = vmax.f32 %v6335, 0.0
        %v6344 = vmax.f32 %v6336, 0.0
        %v6345 = vmax.f32 %v6337, 0.0
        %v6346 = vmax.f32 %v6338, 0.0
        %vm6355 = vcmask 1040384
        %v6356 = vrot.slane %v6339, 7
        %v6357 = vrot.slane %v6340, 7
        %v6358 = vsel %vm6355, %v6356, %v6357
        %v6359 = vrot.slane %v6341, 7
        %v6360 = vrot.slane %v6342, 7
        %v6361 = vsel %vm6355, %v6359, %v6360
        %v6362 = vrot.slane %v6343, 7
        %v6363 = vrot.slane %v6344, 7
        %v6364 = vsel %vm6355, %v6362, %v6363
        %v6365 = vrot.slane %v6345, 7
        %v6366 = vrot.slane %v6346, 7
        %v6367 = vsel %vm6355, %v6365, %v6366
        %v6372 = vsel %vm979, %v6358, 0.0
        %v6373 = vsel %vm979, %v6361, 0.0
        %v6374 = vsel %vm979, %v6364, 0.0
        %v6375 = vsel %vm979, %v6367, 0.0
        %v6376 = vpack.c.bf16 0.0, %v6372
        %v6377 = vpack.c.bf16 0.0, %v6373
        %v6378 = vpack.c.bf16 0.0, %v6374
        %v6379 = vpack.c.bf16 0.0, %v6375
        %6380 = vst.msk [vmem:[#allocation7] sm:$0xff] %vm4435, %v6376
        %6381 = vst.msk [vmem:[#allocation7 + $0x8] sm:$0xff] %vm4435, %v6377
        %6382 = vst.msk [vmem:[#allocation7 + $0x10] sm:$0xff] %vm4435, %v6378
        %6383 = vst.msk [vmem:[#allocation7 + $0x18] sm:$0xff] %vm4435, %v6379
        %v6384 = vld [vmem:[#allocation7] sm:$0xff]
        %v6385 = vld [vmem:[#allocation7 + $0x8] sm:$0xff]
        %v6386 = vld [vmem:[#allocation7 + $0x10] sm:$0xff]
        %v6387 = vld [vmem:[#allocation7 + $0x18] sm:$0xff]
        %v6388 = vld [vmem:[%s15] sm:$0xf]
        %v6389 = vld [vmem:[%s15 + $0x4] sm:$0xf]
        %v6390 = vld [vmem:[%s15 + $0x8] sm:$0xf]
        %v6391 = vld [vmem:[%s15 + $0xc] sm:$0xf]
        %v6392 = vld [vmem:[%s16] sm:$0x1]
        %v6394 = vlaneseq
        %v6395 = vshrl.u32 %v6394, 7
        %v6396 = vsub.s32 0, %v6395
        %v6397 = vrot.slane %v6392, %v6396
        %v6403 = vunpack.c.l.b16 %v6388
        %v6404 = vunpack.c.l.b16 %v6389
        %v6405 = vunpack.c.l.b16 %v6390
        %v6406 = vunpack.c.l.b16 %v6391
        %v6407 = vpack.c.b16 %v6404, %v6403
        %v6408 = vpack.c.b16 %v6406, %v6405
        %v6412 = vsel %vm4435, %v6384, 0
        %v6415 = vsel %vm4435, %v6385, 0
        %v6418 = vsel %vm4435, %v6386, 0
        %v6421 = vsel %vm4435, %v6387, 0
        %6423 = vmatprep.subr.bf16.mxu0 0
        %6424 = vmatpush1.bf16.msra.mxu0 %v6407
        %6425 = vmatprep.subr.bf16.mxu0 0
        %6426 = vmatpush1.bf16.msra.mxu0 %v6408
        %6427 = vmatprep.subr.bf16.mxu0 0
        %6428 = vmatpush1.bf16.msra.mxu0 0
        %6429 = vmatprep.subr.bf16.mxu0 0
        %6430 = vmatpush1.bf16.msra.mxu0 0
        %6431 = vmatprep.subr.bf16.mxu0 0
        %6432 = vmatpush1.bf16.msra.mxu0 0
        %6433 = vmatprep.subr.bf16.mxu0 0
        %6434 = vmatpush1.bf16.msra.mxu0 0
        %6435 = vmatprep.subr.bf16.mxu0 0
        %6436 = vmatpush1.bf16.msra.mxu0 0
        %6437 = vmatprep.subr.bf16.mxu0 0
        %6438 = vmatpush1.bf16.msra.mxu0 0
        %6439 = vmatprep.subr.bf16.mxu0 0
        %6440 = vmatpush1.bf16.msra.mxu0 0
        %6441 = vmatprep.subr.bf16.mxu0 0
        %6442 = vmatpush1.bf16.msra.mxu0 0
        %6443 = vmatprep.subr.bf16.mxu0 0
        %6444 = vmatpush1.bf16.msra.mxu0 0
        %6445 = vmatprep.subr.bf16.mxu0 0
        %6446 = vmatpush1.bf16.msra.mxu0 0
        %6447 = vmatprep.subr.bf16.mxu0 0
        %6448 = vmatpush1.bf16.msra.mxu0 0
        %6449 = vmatprep.subr.bf16.mxu0 0
        %6450 = vmatpush1.bf16.msra.mxu0 0
        %6451 = vmatprep.subr.bf16.mxu0 0
        %6452 = vmatpush1.bf16.msra.mxu0 0
        %6453 = vmatprep.subr.bf16.mxu0 0
        %6454 = vmatpush1.bf16.msra.mxu0 0
        %6455 = vmatprep.mubr.bf16.mxu0 0
        %6456 = vmatmul.mubr.bf16.gmra.mrb[0].mxu0 %v6412
        %v6457 = vpop.f32.mrb[0].mxu0
        %v6458 = vadd.f32 %v6397, %v6457
        %v6459 = vpop.f32.mrb[0].mxu0
        %v6460 = vpop.f32.mrb[0].mxu0
        %v6461 = vpop.f32.mrb[0].mxu0
        %6462 = vmatprep.mubr.bf16.mxu0 0
        %6463 = vmatmul.mubr.bf16.gmra.mrb[0].mxu0 %v6415
        %v6464 = vpop.f32.mrb[0].mxu0
        %v6465 = vadd.f32 %v6397, %v6464
        %v6466 = vpop.f32.mrb[0].mxu0
        %v6467 = vpop.f32.mrb[0].mxu0
        %v6468 = vpop.f32.mrb[0].mxu0
        %6469 = vmatprep.mubr.bf16.mxu0 0
        %6470 = vmatmul.mubr.bf16.gmra.mrb[0].mxu0 %v6418
        %v6471 = vpop.f32.mrb[0].mxu0
        %v6472 = vadd.f32 %v6397, %v6471
        %v6473 = vpop.f32.mrb[0].mxu0
        %v6474 = vpop.f32.mrb[0].mxu0
        %v6475 = vpop.f32.mrb[0].mxu0
        %6476 = vmatprep.mubr.bf16.mxu0 0
        %6477 = vmatmul.mubr.bf16.gmra.mrb[0].mxu0 %v6421
        %v6478 = vpop.f32.mrb[0].mxu0
        %v6479 = vadd.f32 %v6397, %v6478
        %v6480 = vpop.f32.mrb[0].mxu0
        %v6481 = vpop.f32.mrb[0].mxu0
        %v6482 = vpop.f32.mrb[0].mxu0
        %6483 = vdwg.mxu0
        %vm6484 = vcmask 388096
        %6485 = vst.msk [vmem:[%s541] sm:$0xf] %vm6484, %v6458
        %6486 = vst.msk [vmem:[%s541 + $0x4] sm:$0xf] %vm6484, %v6465
        %6487 = vst.msk [vmem:[%s541 + $0x8] sm:$0xf] %vm6484, %v6472
        %6488 = vst.msk [vmem:[%s541 + $0xc] sm:$0xf] %vm6484, %v6479
        %s6489 = sand.u32 %s401, 1
        %s6490 = scalar_lea.sflag [#allocation9], %s6489
        %s6491 = sand.u32 %s401, 1
        %s6492 = smul.addr %s6491, 16
        %s6493 = scalar_lea.vmem [#allocation8], %s6492
        // Predicated region
        $region89: #{tpu_custom_call.1} parent=87 // pred_check
          %p6494 = pneg %p411
        $region90: #{tpu_custom_call.1} parent=87 // pred_check_branch
          %6496 = sbr.rel (%p6494) target = $region92
        $region91: #{tpu_custom_call.1} parent=87 // pred_region
          %s6498 = ssub.s32 256, 256
          %6499 = vsyncadd %s6490, %s6498
          %s6500 = smul.addr %s31, 4
          %s6501 = smul.addr %s6500, 64
          %s6502 = scalar_lea.hbm %s17, %s6501
          %s6503 = sshll.u32 %s6493, 4
          %s6504 = int_to_ptr.vmem [resolvable:$true] %s6503
          %6509 = dma.vmem_to_hbm [thread:$0]  %s6504, 256, %s6502, %s6490, 64, 64, 4
        $region92: #{tpu_custom_call.1} parent=87 // pred_fallthru
          _
      $region88: #{tpu_custom_call.1} parent=5 // pred_fallthru
        _
      %p6510 = scmp.le.s32.totalorder 2, %s26
      // Predicated region
      $region93: #{tpu_custom_call.1} parent=5 // pred_check
        %p6511 = pneg %p6510
      $region94: #{tpu_custom_call.1} parent=5 // pred_check_branch
        %6513 = sbr.rel (%p6511) target = $region96
      $region95: #{tpu_custom_call.1} parent=5 // pred_region
        %s6514 = ssub.s32 %s26, 2
        // Predicated region
        $region97: #{tpu_custom_call.1} parent=95 // pred_check
          %p6515 = pneg %p417
        $region98: #{tpu_custom_call.1} parent=95 // pred_check_branch
          %6517 = sbr.rel (%p6515) target = $region100
        $region99: #{tpu_custom_call.1} parent=95 // pred_region
          %s6518 = sand.u32 %s402, 1
          %s6519 = scalar_lea.sflag [#allocation9], %s6518
          %s6520 = sand.u32 %s402, 1
          %s6521 = smul.addr %s6520, 16
          %s6522 = scalar_lea.vmem [#allocation8], %s6521
          %6523 = dma.done %s6519, 256
        $region100: #{tpu_custom_call.1} parent=95 // pred_fallthru
          _
      $region96: #{tpu_custom_call.1} parent=5 // pred_fallthru
        _
    $region6: #{tpu_custom_call.1} parent=1 // loop_footer
      %s30 = sadd.s32 1, %s26
    $region7: #{tpu_custom_call.1} parent=1 // loop_footer_branch
      %25 = sbr.rel target = $region3
    $region8: #{tpu_custom_call.1} parent=1 // loop_exit
      _
    %6524 = vsyncpa [#allocation9], 1
    %s6525 = scalar_lea.sflag [#allocation9], 1
    %6526 = vsyncpa %s6525, 1

</llo_original>
